<compile_context>
chip_gen: v7x
topology: tpu7x:2x2x1
jax: 0.10.0
libtpu: 0.0.40
codegen_flags: <defaults>
</compile_context>

<pallas_src>
import jax
import jax.numpy as jnp
from jax.experimental import pallas as pl
from jax.experimental.pallas import tpu as pltpu


# --------------------------- Pallas kernels ---------------------------------

def _conv_pool_kernel(p_ref, w_ref, b_ref, o_ref):
    """Fused conv-matmul + bias + ReLU + 2x2 max-pool for one batch element.

    p: (4, M, K) bf16   - axis 0 indexes the 4 conv-output positions of each
                          2x2 pooling window, M = pooled H*W, K = kh*kw*Cin.
    w: (K, C)   bf16, b: (1, C) f32  ->  o: (M, C) f32.

    maxpool(relu(conv + b)) == relu(max_t(conv_t) + b) since the bias is
    shared across the window and ReLU is monotone.
    """
    w = w_ref[...]
    acc = jnp.dot(p_ref[0], w, preferred_element_type=jnp.float32)
    for t in range(1, 4):
        acc = jnp.maximum(
            acc, jnp.dot(p_ref[t], w, preferred_element_type=jnp.float32))
    o_ref[...] = jnp.maximum(acc + b_ref[...], 0.0).astype(o_ref.dtype)


def _fc_head_kernel(x_ref, w1_ref, b1_ref, w2_ref, b2_ref, w3_ref, b3_ref,
                    o_ref):
    """Fused fc1+ReLU -> fc2+ReLU -> fc3.  All weights stay VMEM-resident;
    matmuls in bf16 with f32 accumulation, elementwise epilogue in f32."""
    h = jnp.dot(x_ref[...], w1_ref[...], preferred_element_type=jnp.float32)
    h = jnp.maximum(h + b1_ref[...], 0.0)
    h = jnp.dot(h.astype(jnp.bfloat16), w2_ref[...],
                preferred_element_type=jnp.float32)
    h = jnp.maximum(h + b2_ref[...], 0.0)
    h = jnp.dot(h.astype(jnp.bfloat16), w3_ref[...],
                preferred_element_type=jnp.float32)
    o_ref[...] = (h + b3_ref[...]).astype(o_ref.dtype)


# ------------------------------ glue ----------------------------------------

def _pooled_patches(x, kh, kw, stride):
    """x: (B,H,W,C) f32 -> patches (B, 4, Hp*Wp, kh*kw*C) bf16.

    patches[b, 2*dy+dx, i*Wp+j, :] is the flattened input patch of the conv
    output at position (2*i+dy, 2*j+dx), i.e. position (dy, dx) inside the
    2x2 pooling window of pooled output (i, j).  Pure slicing/reshape glue;
    the matmul + pooling happen inside the Pallas kernel.
    """
    B, H, W, C = x.shape
    Ho = (H - kh) // stride + 1
    Wo = (W - kw) // stride + 1
    Hp, Wp = Ho // 2, Wo // 2
    K = kh * kw * C
    cols = []
    for i in range(kh):
        for j in range(kw):
            cols.append(jax.lax.slice(
                x, (0, i, j, 0),
                (B, i + (Ho - 1) * stride + 1, j + (Wo - 1) * stride + 1, C),
                (1, stride, stride, 1)))
    full = jnp.concatenate(cols, axis=-1)            # (B, Ho, Wo, K)
    offs = []
    for dy in range(2):
        for dx in range(2):
            offs.append(jax.lax.slice(
                full, (0, dy, dx, 0),
                (B, dy + 2 * (Hp - 1) + 1, dx + 2 * (Wp - 1) + 1, K),
                (1, 2, 2, 1)).reshape(B, Hp * Wp, K))
    return jnp.stack(offs, axis=1).astype(jnp.bfloat16), Hp, Wp


def conv_relu_pool(x, w_mat, b_row, kh, kw, stride):
    """maxpool2x2(relu(conv2d(x, w) + b)) as a single pallas_call.

    x: (B,H,W,Cin) f32; w_mat: (kh*kw*Cin, Cout) bf16; b_row: (1, Cout) f32.
    Returns (B, Hp, Wp, Cout) f32.
    """
    B = x.shape[0]
    K, Cout = w_mat.shape
    patches, Hp, Wp = _pooled_patches(x, kh, kw, stride)
    M = Hp * Wp
    out = pl.pallas_call(
        _conv_pool_kernel,
        out_shape=jax.ShapeDtypeStruct((B, M, Cout), jnp.float32),
        grid_spec=pltpu.PrefetchScalarGridSpec(
            num_scalar_prefetch=0,
            grid=(B,),                     # one full-size block per batch elem
            in_specs=[
                pl.BlockSpec((None, 4, M, K), lambda bb: (bb, 0, 0, 0)),
                pl.BlockSpec((K, Cout), lambda bb: (0, 0)),
                pl.BlockSpec((1, Cout), lambda bb: (0, 0)),
            ],
            out_specs=pl.BlockSpec((None, M, Cout), lambda bb: (bb, 0, 0)),
        ),
        compiler_params=pltpu.CompilerParams(
            dimension_semantics=("parallel",)),
    )(patches, w_mat, b_row)
    return out.reshape(B, Hp, Wp, Cout)


def fc_head(x, kp):
    """relu(fc1) -> relu(fc2) -> fc3 in one pallas_call.  x: (B, 576) f32."""
    B = x.shape[0]
    Bp = pl.cdiv(B, 8) * 8                 # sublane-align the (tiny) batch
    if Bp != B:
        x = jnp.pad(x, ((0, Bp - B), (0, 0)))
    out = pl.pallas_call(
        _fc_head_kernel,
        out_shape=jax.ShapeDtypeStruct((Bp, 5), jnp.float32),
    )(x.astype(jnp.bfloat16),
      kp["fc1_w"], kp["fc1_b"],
      kp["fc2_w"], kp["fc2_b"],
      kp["fc3_w"], kp["fc3_b"])
    return out[:B]


def net_forward(x_nchw, kp):
    # NCHW (PyTorch convention) -> NHWC for the kernels.
    x = jnp.transpose(x_nchw, (0, 2, 3, 1)).astype(jnp.float32)

    x = conv_relu_pool(x, kp["conv1_w"], kp["conv1_b"], 5, 5, 1)  # (B,40,40,16)
    x = conv_relu_pool(x, kp["conv2_w"], kp["conv2_b"], 4, 4, 1)  # (B,18,18,32)
    x = conv_relu_pool(x, kp["conv3_w"], kp["conv3_b"], 3, 3, 3)  # (B, 3, 3,64)

    B = x.shape[0]
    # Flatten in HWC order; fc1_w was pre-permuted CHW->HWC in prepare_params,
    # so no runtime transpose of the activations is needed.
    x = x.reshape(B, -1)                                          # (B, 576)
    return fc_head(x, kp)


# ------------------------- deterministic params ------------------------------

def init_params(key):
    """PyTorch-layout params: conv weights HWIO, fc weights (in, out) with
    fc1 input features in CHW (PyTorch flatten) order."""
    ks = jax.random.split(key, 12)

    def w_init(k, shape, fan_in):
        return jax.random.normal(k, shape, jnp.float32) / jnp.sqrt(float(fan_in))

    def b_init(k, shape):
        return 0.1 * jax.random.normal(k, shape, jnp.float32)

    return {
        "conv1_w": w_init(ks[0], (5, 5, 1, 16), 5 * 5 * 1),
        "conv1_b": b_init(ks[1], (16,)),
        "conv2_w": w_init(ks[2], (4, 4, 16, 32), 4 * 4 * 16),
        "conv2_b": b_init(ks[3], (32,)),
        "conv3_w": w_init(ks[4], (3, 3, 32, 64), 3 * 3 * 32),
        "conv3_b": b_init(ks[5], (64,)),
        "fc1_w": w_init(ks[6], (576, 256), 576),
        "fc1_b": b_init(ks[7], (256,)),
        "fc2_w": w_init(ks[8], (256, 128), 256),
        "fc2_b": b_init(ks[9], (128,)),
        "fc3_w": w_init(ks[10], (128, 5), 128),
        "fc3_b": b_init(ks[11], (5,)),
    }


def prepare_params(p):
    """One-time conversion to kernel layout: conv weights as (K, Cout) bf16
    matmul matrices, biases as (1, N) f32 rows, fc weights in bf16, and fc1
    rows permuted CHW->HWC so the runtime flatten stays in NHWC order."""
    bf16, f32 = jnp.bfloat16, jnp.float32
    fc1_w_hwc = (p["fc1_w"].reshape(64, 3, 3, 256)   # rows were (c, h, w)
                 .transpose(1, 2, 0, 3)              # -> (h, w, c)
                 .reshape(576, 256))
    return {
        "conv1_w": p["conv1_w"].reshape(5 * 5 * 1, 16).astype(bf16),
        "conv1_b": p["conv1_b"].reshape(1, 16).astype(f32),
        "conv2_w": p["conv2_w"].reshape(4 * 4 * 16, 32).astype(bf16),
        "conv2_b": p["conv2_b"].reshape(1, 32).astype(f32),
        "conv3_w": p["conv3_w"].reshape(3 * 3 * 32, 64).astype(bf16),
        "conv3_b": p["conv3_b"].reshape(1, 64).astype(f32),
        "fc1_w": fc1_w_hwc.astype(bf16),
        "fc1_b": p["fc1_b"].reshape(1, 256).astype(f32),
        "fc2_w": p["fc2_w"].astype(bf16),
        "fc2_b": p["fc2_b"].reshape(1, 128).astype(f32),
        "fc3_w": p["fc3_w"].astype(bf16),
        "fc3_b": p["fc3_b"].reshape(1, 5).astype(f32),
    }


# --------------------------- pure-JAX reference ------------------------------

def reference_forward(x_nchw, p):
    x = jnp.transpose(x_nchw, (0, 2, 3, 1)).astype(jnp.float32)
    hi = jax.lax.Precision.HIGHEST

    def conv(x, w, b, stride):
        y = jax.lax.conv_general_dilated(
            x, w, (stride, stride), "VALID",
            dimension_numbers=("NHWC", "HWIO", "NHWC"), precision=hi)
        return jax.nn.relu(y + b)

    def pool(x):
        return jax.lax.reduce_window(x, -jnp.inf, jax.lax.max,
                                     (1, 2, 2, 1), (1, 2, 2, 1), "VALID")

    x = pool(conv(x, p["conv1_w"], p["conv1_b"], 1))
    x = pool(conv(x, p["conv2_w"], p["conv2_b"], 1))
    x = pool(conv(x, p["conv3_w"], p["conv3_b"], 3))
    B = x.shape[0]
    x = jnp.transpose(x, (0, 3, 1, 2)).reshape(B, -1)   # PyTorch CHW flatten
    x = jax.nn.relu(jnp.dot(x, p["fc1_w"], precision=hi) + p["fc1_b"])
    x = jax.nn.relu(jnp.dot(x, p["fc2_w"], precision=hi) + p["fc2_b"])
    return jnp.dot(x, p["fc3_w"], precision=hi) + p["fc3_b"]


# --------------------------------- main --------------------------------------

if __name__ == "__main__":
    key = jax.random.PRNGKey(0)
    pkey, xkey = jax.random.split(key)
    params = init_params(pkey)
    kparams = prepare_params(params)

    # batch=2, 1 input channel, 84x84 spatial (required so 64*3*3=576 for fc1).
    x = jax.random.normal(xkey, (2, 1, 84, 84), jnp.float32)      # NCHW

    out = jax.jit(net_forward)(x, kparams)
    out = jax.block_until_ready(out)
    assert out.shape == (2, 5), out.shape

    # bf16 MXU inputs (per perf guidance) vs. a float32-HIGHEST reference:
    # tolerance stays tight enough to catch any real layout/shape bug.
    ref = reference_forward(x, params)
    max_err = float(jnp.max(jnp.abs(out - ref)))
    assert jnp.allclose(out, ref, atol=5e-2, rtol=5e-2), max_err

    print("KERNEL_OK")
</pallas_src>

<mosaic_0001>
module attributes {stable_mosaic.version = 11 : i64} {
  func.func @_conv_pool_kernel(%arg0: i32, %arg1: memref<1x4x1600x25xbf16, #tpu.memory_space<vmem>>, %arg2: memref<25x16xbf16, #tpu.memory_space<vmem>>, %arg3: memref<1x16xf32, #tpu.memory_space<vmem>>, %arg4: memref<1x1600x16xf32, #tpu.memory_space<vmem>>) attributes {dimension_semantics = [#tpu.dimension_semantics<parallel>], iteration_bounds = array<i64: 2>, scalar_prefetch = 0 : i64, scratch_operands = 0 : i64, tpu.core_type = #tpu.core_type<tc>, window_params = [{transform_indices = @transform_0, window_bounds = array<i64: 1, 4, 1600, 25>}, {pipeline_mode = #tpu.pipeline_mode<synchronous>, transform_indices = @transform_1, window_bounds = array<i64: 25, 16>}, {pipeline_mode = #tpu.pipeline_mode<synchronous>, transform_indices = @transform_2, window_bounds = array<i64: 1, 16>}, {transform_indices = @transform_3, window_bounds = array<i64: 1, 1600, 16>}]} {
    %c0 = arith.constant 0 : index
    %c0_0 = arith.constant 0 : index
    %0 = vector.load %arg2[%c0, %c0_0] : memref<25x16xbf16, #tpu.memory_space<vmem>>, vector<25x16xbf16>
    %c0_1 = arith.constant 0 : index
    %c0_2 = arith.constant 0 : index
    %c0_3 = arith.constant 0 : index
    %c0_4 = arith.constant 0 : index
    %1 = vector.load %arg1[%c0_1, %c0_2, %c0_3, %c0_4] : memref<1x4x1600x25xbf16, #tpu.memory_space<vmem>>, vector<1x1x1600x25xbf16>
    %2 = vector.shape_cast %1 : vector<1x1x1600x25xbf16> to vector<1600x25xbf16>
    %cst = arith.constant dense<0.000000e+00> : vector<1600x16xf32>
    %3 = tpu.matmul %2, %0, %cst {dimension_numbers = #tpu.dot_dimension_numbers<[1], [0], [0], [1], [0, 0, 1, 1], [], []>} : vector<1600x25xbf16>, vector<25x16xbf16>, vector<1600x16xf32> -> vector<1600x16xf32>
    %c0_5 = arith.constant 0 : index
    %c1 = arith.constant 1 : index
    %c0_6 = arith.constant 0 : index
    %c0_7 = arith.constant 0 : index
    %4 = vector.load %arg1[%c0_5, %c1, %c0_6, %c0_7] : memref<1x4x1600x25xbf16, #tpu.memory_space<vmem>>, vector<1x1x1600x25xbf16>
    %5 = vector.shape_cast %4 : vector<1x1x1600x25xbf16> to vector<1600x25xbf16>
    %cst_8 = arith.constant dense<0.000000e+00> : vector<1600x16xf32>
    %6 = tpu.matmul %5, %0, %cst_8 {dimension_numbers = #tpu.dot_dimension_numbers<[1], [0], [0], [1], [0, 0, 1, 1], [], []>} : vector<1600x25xbf16>, vector<25x16xbf16>, vector<1600x16xf32> -> vector<1600x16xf32>
    %7 = arith.maximumf %3, %6 : vector<1600x16xf32>
    %c0_9 = arith.constant 0 : index
    %c2 = arith.constant 2 : index
    %c0_10 = arith.constant 0 : index
    %c0_11 = arith.constant 0 : index
    %8 = vector.load %arg1[%c0_9, %c2, %c0_10, %c0_11] : memref<1x4x1600x25xbf16, #tpu.memory_space<vmem>>, vector<1x1x1600x25xbf16>
    %9 = vector.shape_cast %8 : vector<1x1x1600x25xbf16> to vector<1600x25xbf16>
    %cst_12 = arith.constant dense<0.000000e+00> : vector<1600x16xf32>
    %10 = tpu.matmul %9, %0, %cst_12 {dimension_numbers = #tpu.dot_dimension_numbers<[1], [0], [0], [1], [0, 0, 1, 1], [], []>} : vector<1600x25xbf16>, vector<25x16xbf16>, vector<1600x16xf32> -> vector<1600x16xf32>
    %11 = arith.maximumf %7, %10 : vector<1600x16xf32>
    %c0_13 = arith.constant 0 : index
    %c3 = arith.constant 3 : index
    %c0_14 = arith.constant 0 : index
    %c0_15 = arith.constant 0 : index
    %12 = vector.load %arg1[%c0_13, %c3, %c0_14, %c0_15] : memref<1x4x1600x25xbf16, #tpu.memory_space<vmem>>, vector<1x1x1600x25xbf16>
    %13 = vector.shape_cast %12 : vector<1x1x1600x25xbf16> to vector<1600x25xbf16>
    %cst_16 = arith.constant dense<0.000000e+00> : vector<1600x16xf32>
    %14 = tpu.matmul %13, %0, %cst_16 {dimension_numbers = #tpu.dot_dimension_numbers<[1], [0], [0], [1], [0, 0, 1, 1], [], []>} : vector<1600x25xbf16>, vector<25x16xbf16>, vector<1600x16xf32> -> vector<1600x16xf32>
    %15 = arith.maximumf %11, %14 : vector<1600x16xf32>
    %c0_17 = arith.constant 0 : index
    %c0_18 = arith.constant 0 : index
    %16 = vector.load %arg3[%c0_17, %c0_18] : memref<1x16xf32, #tpu.memory_space<vmem>>, vector<1x16xf32>
    %17 = vector.broadcast %16 : vector<1x16xf32> to vector<1600x16xf32>
    %18 = arith.addf %15, %17 : vector<1600x16xf32>
    %cst_19 = arith.constant 0.000000e+00 : f32
    %19 = vector.broadcast %cst_19 : f32 to vector<1600x16xf32>
    %20 = arith.maximumf %18, %19 : vector<1600x16xf32>
    %c0_20 = arith.constant 0 : index
    %c0_21 = arith.constant 0 : index
    %c0_22 = arith.constant 0 : index
    %21 = vector.load %arg4[%c0_20, %c0_21, %c0_22] : memref<1x1600x16xf32, #tpu.memory_space<vmem>>, vector<1x1600x16xf32>
    %22 = vector.shape_cast %21 : vector<1x1600x16xf32> to vector<1600x16xf32>
    %23 = vector.shape_cast %20 : vector<1600x16xf32> to vector<1x1600x16xf32>
    tpu.vector_store %arg4[%c0_20, %c0_21, %c0_22], %23 {strides = array<i32>} : memref<1x1600x16xf32, #tpu.memory_space<vmem>>, vector<1x1600x16xf32>,
    return
  }
  func.func @transform_0(%arg0: i32) -> (i32, i32, i32, i32) {
    %c0_i32 = arith.constant 0 : i32
    %c0_i32_0 = arith.constant 0 : i32
    %c0_i32_1 = arith.constant 0 : i32
    %c0_i32_2 = arith.constant 0 : i32
    return %arg0, %c0_i32, %c0_i32_0, %c0_i32_1 : i32, i32, i32, i32
  }
  func.func @transform_1(%arg0: i32) -> (i32, i32) {
    %c0_i32 = arith.constant 0 : i32
    %c0_i32_0 = arith.constant 0 : i32
    %c0_i32_1 = arith.constant 0 : i32
    return %c0_i32, %c0_i32_0 : i32, i32
  }
  func.func @transform_2(%arg0: i32) -> (i32, i32) {
    %c0_i32 = arith.constant 0 : i32
    %c0_i32_0 = arith.constant 0 : i32
    %c0_i32_1 = arith.constant 0 : i32
    return %c0_i32, %c0_i32_0 : i32, i32
  }
  func.func @transform_3(%arg0: i32) -> (i32, i32, i32) {
    %c0_i32 = arith.constant 0 : i32
    %c0_i32_0 = arith.constant 0 : i32
    %c0_i32_1 = arith.constant 0 : i32
    return %arg0, %c0_i32, %c0_i32_0 : i32, i32, i32
  }
}

module attributes {stable_mosaic.version = 11 : i64} {
  func.func @_conv_pool_kernel(%arg0: i32, %arg1: memref<1x4x324x256xbf16, #tpu.memory_space<vmem>>, %arg2: memref<256x32xbf16, #tpu.memory_space<vmem>>, %arg3: memref<1x32xf32, #tpu.memory_space<vmem>>, %arg4: memref<1x324x32xf32, #tpu.memory_space<vmem>>) attributes {dimension_semantics = [#tpu.dimension_semantics<parallel>], iteration_bounds = array<i64: 2>, scalar_prefetch = 0 : i64, scratch_operands = 0 : i64, tpu.core_type = #tpu.core_type<tc>, window_params = [{transform_indices = @transform_0, window_bounds = array<i64: 1, 4, 324, 256>}, {pipeline_mode = #tpu.pipeline_mode<synchronous>, transform_indices = @transform_1, window_bounds = array<i64: 256, 32>}, {pipeline_mode = #tpu.pipeline_mode<synchronous>, transform_indices = @transform_2, window_bounds = array<i64: 1, 32>}, {transform_indices = @transform_3, window_bounds = array<i64: 1, 324, 32>}]} {
    %c0 = arith.constant 0 : index
    %c0_0 = arith.constant 0 : index
    %0 = vector.load %arg2[%c0, %c0_0] : memref<256x32xbf16, #tpu.memory_space<vmem>>, vector<256x32xbf16>
    %c0_1 = arith.constant 0 : index
    %c0_2 = arith.constant 0 : index
    %c0_3 = arith.constant 0 : index
    %c0_4 = arith.constant 0 : index
    %1 = vector.load %arg1[%c0_1, %c0_2, %c0_3, %c0_4] : memref<1x4x324x256xbf16, #tpu.memory_space<vmem>>, vector<1x1x324x256xbf16>
    %2 = vector.shape_cast %1 : vector<1x1x324x256xbf16> to vector<324x256xbf16>
    %cst = arith.constant dense<0.000000e+00> : vector<324x32xf32>
    %3 = tpu.matmul %2, %0, %cst {dimension_numbers = #tpu.dot_dimension_numbers<[1], [0], [0], [1], [0, 0, 1, 1], [], []>} : vector<324x256xbf16>, vector<256x32xbf16>, vector<324x32xf32> -> vector<324x32xf32>
    %c0_5 = arith.constant 0 : index
    %c1 = arith.constant 1 : index
    %c0_6 = arith.constant 0 : index
    %c0_7 = arith.constant 0 : index
    %4 = vector.load %arg1[%c0_5, %c1, %c0_6, %c0_7] : memref<1x4x324x256xbf16, #tpu.memory_space<vmem>>, vector<1x1x324x256xbf16>
    %5 = vector.shape_cast %4 : vector<1x1x324x256xbf16> to vector<324x256xbf16>
    %cst_8 = arith.constant dense<0.000000e+00> : vector<324x32xf32>
    %6 = tpu.matmul %5, %0, %cst_8 {dimension_numbers = #tpu.dot_dimension_numbers<[1], [0], [0], [1], [0, 0, 1, 1], [], []>} : vector<324x256xbf16>, vector<256x32xbf16>, vector<324x32xf32> -> vector<324x32xf32>
    %7 = arith.maximumf %3, %6 : vector<324x32xf32>
    %c0_9 = arith.constant 0 : index
    %c2 = arith.constant 2 : index
    %c0_10 = arith.constant 0 : index
    %c0_11 = arith.constant 0 : index
    %8 = vector.load %arg1[%c0_9, %c2, %c0_10, %c0_11] : memref<1x4x324x256xbf16, #tpu.memory_space<vmem>>, vector<1x1x324x256xbf16>
    %9 = vector.shape_cast %8 : vector<1x1x324x256xbf16> to vector<324x256xbf16>
    %cst_12 = arith.constant dense<0.000000e+00> : vector<324x32xf32>
    %10 = tpu.matmul %9, %0, %cst_12 {dimension_numbers = #tpu.dot_dimension_numbers<[1], [0], [0], [1], [0, 0, 1, 1], [], []>} : vector<324x256xbf16>, vector<256x32xbf16>, vector<324x32xf32> -> vector<324x32xf32>
    %11 = arith.maximumf %7, %10 : vector<324x32xf32>
    %c0_13 = arith.constant 0 : index
    %c3 = arith.constant 3 : index
    %c0_14 = arith.constant 0 : index
    %c0_15 = arith.constant 0 : index
    %12 = vector.load %arg1[%c0_13, %c3, %c0_14, %c0_15] : memref<1x4x324x256xbf16, #tpu.memory_space<vmem>>, vector<1x1x324x256xbf16>
    %13 = vector.shape_cast %12 : vector<1x1x324x256xbf16> to vector<324x256xbf16>
    %cst_16 = arith.constant dense<0.000000e+00> : vector<324x32xf32>
    %14 = tpu.matmul %13, %0, %cst_16 {dimension_numbers = #tpu.dot_dimension_numbers<[1], [0], [0], [1], [0, 0, 1, 1], [], []>} : vector<324x256xbf16>, vector<256x32xbf16>, vector<324x32xf32> -> vector<324x32xf32>
    %15 = arith.maximumf %11, %14 : vector<324x32xf32>
    %c0_17 = arith.constant 0 : index
    %c0_18 = arith.constant 0 : index
    %16 = vector.load %arg3[%c0_17, %c0_18] : memref<1x32xf32, #tpu.memory_space<vmem>>, vector<1x32xf32>
    %17 = vector.broadcast %16 : vector<1x32xf32> to vector<324x32xf32>
    %18 = arith.addf %15, %17 : vector<324x32xf32>
    %cst_19 = arith.constant 0.000000e+00 : f32
    %19 = vector.broadcast %cst_19 : f32 to vector<324x32xf32>
    %20 = arith.maximumf %18, %19 : vector<324x32xf32>
    %c0_20 = arith.constant 0 : index
    %c0_21 = arith.constant 0 : index
    %c0_22 = arith.constant 0 : index
    %21 = vector.load %arg4[%c0_20, %c0_21, %c0_22] : memref<1x324x32xf32, #tpu.memory_space<vmem>>, vector<1x324x32xf32>
    %22 = vector.shape_cast %21 : vector<1x324x32xf32> to vector<324x32xf32>
    %23 = vector.shape_cast %20 : vector<324x32xf32> to vector<1x324x32xf32>
    tpu.vector_store %arg4[%c0_20, %c0_21, %c0_22], %23 {strides = array<i32>} : memref<1x324x32xf32, #tpu.memory_space<vmem>>, vector<1x324x32xf32>,
    return
  }
  func.func @transform_0(%arg0: i32) -> (i32, i32, i32, i32) {
    %c0_i32 = arith.constant 0 : i32
    %c0_i32_0 = arith.constant 0 : i32
    %c0_i32_1 = arith.constant 0 : i32
    %c0_i32_2 = arith.constant 0 : i32
    return %arg0, %c0_i32, %c0_i32_0, %c0_i32_1 : i32, i32, i32, i32
  }
  func.func @transform_1(%arg0: i32) -> (i32, i32) {
    %c0_i32 = arith.constant 0 : i32
    %c0_i32_0 = arith.constant 0 : i32
    %c0_i32_1 = arith.constant 0 : i32
    return %c0_i32, %c0_i32_0 : i32, i32
  }
  func.func @transform_2(%arg0: i32) -> (i32, i32) {
    %c0_i32 = arith.constant 0 : i32
    %c0_i32_0 = arith.constant 0 : i32
    %c0_i32_1 = arith.constant 0 : i32
    return %c0_i32, %c0_i32_0 : i32, i32
  }
  func.func @transform_3(%arg0: i32) -> (i32, i32, i32) {
    %c0_i32 = arith.constant 0 : i32
    %c0_i32_0 = arith.constant 0 : i32
    %c0_i32_1 = arith.constant 0 : i32
    return %arg0, %c0_i32, %c0_i32_0 : i32, i32, i32
  }
}

module attributes {stable_mosaic.version = 11 : i64} {
  func.func @_conv_pool_kernel(%arg0: i32, %arg1: memref<1x4x9x288xbf16, #tpu.memory_space<vmem>>, %arg2: memref<288x64xbf16, #tpu.memory_space<vmem>>, %arg3: memref<1x64xf32, #tpu.memory_space<vmem>>, %arg4: memref<1x9x64xf32, #tpu.memory_space<vmem>>) attributes {dimension_semantics = [#tpu.dimension_semantics<parallel>], iteration_bounds = array<i64: 2>, scalar_prefetch = 0 : i64, scratch_operands = 0 : i64, tpu.core_type = #tpu.core_type<tc>, window_params = [{transform_indices = @transform_0, window_bounds = array<i64: 1, 4, 9, 288>}, {pipeline_mode = #tpu.pipeline_mode<synchronous>, transform_indices = @transform_1, window_bounds = array<i64: 288, 64>}, {pipeline_mode = #tpu.pipeline_mode<synchronous>, transform_indices = @transform_2, window_bounds = array<i64: 1, 64>}, {transform_indices = @transform_3, window_bounds = array<i64: 1, 9, 64>}]} {
    %c0 = arith.constant 0 : index
    %c0_0 = arith.constant 0 : index
    %0 = vector.load %arg2[%c0, %c0_0] : memref<288x64xbf16, #tpu.memory_space<vmem>>, vector<288x64xbf16>
    %c0_1 = arith.constant 0 : index
    %c0_2 = arith.constant 0 : index
    %c0_3 = arith.constant 0 : index
    %c0_4 = arith.constant 0 : index
    %1 = vector.load %arg1[%c0_1, %c0_2, %c0_3, %c0_4] : memref<1x4x9x288xbf16, #tpu.memory_space<vmem>>, vector<1x1x9x288xbf16>
    %2 = vector.shape_cast %1 : vector<1x1x9x288xbf16> to vector<9x288xbf16>
    %cst = arith.constant dense<0.000000e+00> : vector<9x64xf32>
    %3 = tpu.matmul %2, %0, %cst {dimension_numbers = #tpu.dot_dimension_numbers<[1], [0], [0], [1], [0, 0, 1, 1], [], []>} : vector<9x288xbf16>, vector<288x64xbf16>, vector<9x64xf32> -> vector<9x64xf32>
    %c0_5 = arith.constant 0 : index
    %c1 = arith.constant 1 : index
    %c0_6 = arith.constant 0 : index
    %c0_7 = arith.constant 0 : index
    %4 = vector.load %arg1[%c0_5, %c1, %c0_6, %c0_7] : memref<1x4x9x288xbf16, #tpu.memory_space<vmem>>, vector<1x1x9x288xbf16>
    %5 = vector.shape_cast %4 : vector<1x1x9x288xbf16> to vector<9x288xbf16>
    %cst_8 = arith.constant dense<0.000000e+00> : vector<9x64xf32>
    %6 = tpu.matmul %5, %0, %cst_8 {dimension_numbers = #tpu.dot_dimension_numbers<[1], [0], [0], [1], [0, 0, 1, 1], [], []>} : vector<9x288xbf16>, vector<288x64xbf16>, vector<9x64xf32> -> vector<9x64xf32>
    %7 = arith.maximumf %3, %6 : vector<9x64xf32>
    %c0_9 = arith.constant 0 : index
    %c2 = arith.constant 2 : index
    %c0_10 = arith.constant 0 : index
    %c0_11 = arith.constant 0 : index
    %8 = vector.load %arg1[%c0_9, %c2, %c0_10, %c0_11] : memref<1x4x9x288xbf16, #tpu.memory_space<vmem>>, vector<1x1x9x288xbf16>
    %9 = vector.shape_cast %8 : vector<1x1x9x288xbf16> to vector<9x288xbf16>
    %cst_12 = arith.constant dense<0.000000e+00> : vector<9x64xf32>
    %10 = tpu.matmul %9, %0, %cst_12 {dimension_numbers = #tpu.dot_dimension_numbers<[1], [0], [0], [1], [0, 0, 1, 1], [], []>} : vector<9x288xbf16>, vector<288x64xbf16>, vector<9x64xf32> -> vector<9x64xf32>
    %11 = arith.maximumf %7, %10 : vector<9x64xf32>
    %c0_13 = arith.constant 0 : index
    %c3 = arith.constant 3 : index
    %c0_14 = arith.constant 0 : index
    %c0_15 = arith.constant 0 : index
    %12 = vector.load %arg1[%c0_13, %c3, %c0_14, %c0_15] : memref<1x4x9x288xbf16, #tpu.memory_space<vmem>>, vector<1x1x9x288xbf16>
    %13 = vector.shape_cast %12 : vector<1x1x9x288xbf16> to vector<9x288xbf16>
    %cst_16 = arith.constant dense<0.000000e+00> : vector<9x64xf32>
    %14 = tpu.matmul %13, %0, %cst_16 {dimension_numbers = #tpu.dot_dimension_numbers<[1], [0], [0], [1], [0, 0, 1, 1], [], []>} : vector<9x288xbf16>, vector<288x64xbf16>, vector<9x64xf32> -> vector<9x64xf32>
    %15 = arith.maximumf %11, %14 : vector<9x64xf32>
    %c0_17 = arith.constant 0 : index
    %c0_18 = arith.constant 0 : index
    %16 = vector.load %arg3[%c0_17, %c0_18] : memref<1x64xf32, #tpu.memory_space<vmem>>, vector<1x64xf32>
    %17 = vector.broadcast %16 : vector<1x64xf32> to vector<9x64xf32>
    %18 = arith.addf %15, %17 : vector<9x64xf32>
    %cst_19 = arith.constant 0.000000e+00 : f32
    %19 = vector.broadcast %cst_19 : f32 to vector<9x64xf32>
    %20 = arith.maximumf %18, %19 : vector<9x64xf32>
    %c0_20 = arith.constant 0 : index
    %c0_21 = arith.constant 0 : index
    %c0_22 = arith.constant 0 : index
    %21 = vector.load %arg4[%c0_20, %c0_21, %c0_22] : memref<1x9x64xf32, #tpu.memory_space<vmem>>, vector<1x9x64xf32>
    %22 = vector.shape_cast %21 : vector<1x9x64xf32> to vector<9x64xf32>
    %23 = vector.shape_cast %20 : vector<9x64xf32> to vector<1x9x64xf32>
    tpu.vector_store %arg4[%c0_20, %c0_21, %c0_22], %23 {strides = array<i32>} : memref<1x9x64xf32, #tpu.memory_space<vmem>>, vector<1x9x64xf32>,
    return
  }
  func.func @transform_0(%arg0: i32) -> (i32, i32, i32, i32) {
    %c0_i32 = arith.constant 0 : i32
    %c0_i32_0 = arith.constant 0 : i32
    %c0_i32_1 = arith.constant 0 : i32
    %c0_i32_2 = arith.constant 0 : i32
    return %arg0, %c0_i32, %c0_i32_0, %c0_i32_1 : i32, i32, i32, i32
  }
  func.func @transform_1(%arg0: i32) -> (i32, i32) {
    %c0_i32 = arith.constant 0 : i32
    %c0_i32_0 = arith.constant 0 : i32
    %c0_i32_1 = arith.constant 0 : i32
    return %c0_i32, %c0_i32_0 : i32, i32
  }
  func.func @transform_2(%arg0: i32) -> (i32, i32) {
    %c0_i32 = arith.constant 0 : i32
    %c0_i32_0 = arith.constant 0 : i32
    %c0_i32_1 = arith.constant 0 : i32
    return %c0_i32, %c0_i32_0 : i32, i32
  }
  func.func @transform_3(%arg0: i32) -> (i32, i32, i32) {
    %c0_i32 = arith.constant 0 : i32
    %c0_i32_0 = arith.constant 0 : i32
    %c0_i32_1 = arith.constant 0 : i32
    return %arg0, %c0_i32, %c0_i32_0 : i32, i32, i32
  }
}

module attributes {stable_mosaic.version = 11 : i64} {
  func.func @_fc_head_kernel(%arg0: memref<8x576xbf16, #tpu.memory_space<vmem>>, %arg1: memref<576x256xbf16, #tpu.memory_space<vmem>>, %arg2: memref<1x256xf32, #tpu.memory_space<vmem>>, %arg3: memref<256x128xbf16, #tpu.memory_space<vmem>>, %arg4: memref<1x128xf32, #tpu.memory_space<vmem>>, %arg5: memref<128x5xbf16, #tpu.memory_space<vmem>>, %arg6: memref<1x5xf32, #tpu.memory_space<vmem>>, %arg7: memref<8x5xf32, #tpu.memory_space<vmem>>) attributes {dimension_semantics = [], scalar_prefetch = 0 : i64, scratch_operands = 0 : i64, tpu.core_type = #tpu.core_type<tc>} {
    %c0 = arith.constant 0 : index
    %c0_0 = arith.constant 0 : index
    %0 = vector.load %arg0[%c0, %c0_0] : memref<8x576xbf16, #tpu.memory_space<vmem>>, vector<8x576xbf16>
    %c0_1 = arith.constant 0 : index
    %c0_2 = arith.constant 0 : index
    %1 = vector.load %arg1[%c0_1, %c0_2] : memref<576x256xbf16, #tpu.memory_space<vmem>>, vector<576x256xbf16>
    %cst = arith.constant dense<0.000000e+00> : vector<8x256xf32>
    %2 = tpu.matmul %0, %1, %cst {dimension_numbers = #tpu.dot_dimension_numbers<[1], [0], [0], [1], [0, 0, 1, 1], [], []>} : vector<8x576xbf16>, vector<576x256xbf16>, vector<8x256xf32> -> vector<8x256xf32>
    %c0_3 = arith.constant 0 : index
    %c0_4 = arith.constant 0 : index
    %3 = vector.load %arg2[%c0_3, %c0_4] : memref<1x256xf32, #tpu.memory_space<vmem>>, vector<1x256xf32>
    %4 = vector.broadcast %3 : vector<1x256xf32> to vector<8x256xf32>
    %5 = arith.addf %2, %4 : vector<8x256xf32>
    %cst_5 = arith.constant 0.000000e+00 : f32
    %6 = vector.broadcast %cst_5 : f32 to vector<8x256xf32>
    %7 = arith.maximumf %5, %6 : vector<8x256xf32>
    %8 = arith.truncf %7 : vector<8x256xf32> to vector<8x256xbf16>
    %c0_6 = arith.constant 0 : index
    %c0_7 = arith.constant 0 : index
    %9 = vector.load %arg3[%c0_6, %c0_7] : memref<256x128xbf16, #tpu.memory_space<vmem>>, vector<256x128xbf16>
    %cst_8 = arith.constant dense<0.000000e+00> : vector<8x128xf32>
    %10 = tpu.matmul %8, %9, %cst_8 {dimension_numbers = #tpu.dot_dimension_numbers<[1], [0], [0], [1], [0, 0, 1, 1], [], []>} : vector<8x256xbf16>, vector<256x128xbf16>, vector<8x128xf32> -> vector<8x128xf32>
    %c0_9 = arith.constant 0 : index
    %c0_10 = arith.constant 0 : index
    %11 = vector.load %arg4[%c0_9, %c0_10] : memref<1x128xf32, #tpu.memory_space<vmem>>, vector<1x128xf32>
    %12 = vector.broadcast %11 : vector<1x128xf32> to vector<8x128xf32>
    %13 = arith.addf %10, %12 : vector<8x128xf32>
    %cst_11 = arith.constant 0.000000e+00 : f32
    %14 = vector.broadcast %cst_11 : f32 to vector<8x128xf32>
    %15 = arith.maximumf %13, %14 : vector<8x128xf32>
    %16 = arith.truncf %15 : vector<8x128xf32> to vector<8x128xbf16>
    %c0_12 = arith.constant 0 : index
    %c0_13 = arith.constant 0 : index
    %17 = vector.load %arg5[%c0_12, %c0_13] : memref<128x5xbf16, #tpu.memory_space<vmem>>, vector<128x5xbf16>
    %cst_14 = arith.constant dense<0.000000e+00> : vector<8x5xf32>
    %18 = tpu.matmul %16, %17, %cst_14 {dimension_numbers = #tpu.dot_dimension_numbers<[1], [0], [0], [1], [0, 0, 1, 1], [], []>} : vector<8x128xbf16>, vector<128x5xbf16>, vector<8x5xf32> -> vector<8x5xf32>
    %c0_15 = arith.constant 0 : index
    %c0_16 = arith.constant 0 : index
    %19 = vector.load %arg6[%c0_15, %c0_16] : memref<1x5xf32, #tpu.memory_space<vmem>>, vector<1x5xf32>
    %20 = vector.broadcast %19 : vector<1x5xf32> to vector<8x5xf32>
    %21 = arith.addf %18, %20 : vector<8x5xf32>
    %c0_17 = arith.constant 0 : index
    %c0_18 = arith.constant 0 : index
    %22 = vector.load %arg7[%c0_17, %c0_18] : memref<8x5xf32, #tpu.memory_space<vmem>>, vector<8x5xf32>
    tpu.vector_store %arg7[%c0_17, %c0_18], %21 {strides = array<i32>} : memref<8x5xf32, #tpu.memory_space<vmem>>, vector<8x5xf32>,
    return
  }
}

</mosaic_0001>

<llo_original>
// kernel: net_forward.4
$region0: #{net_forward.4}
  #allocation0 [shape = 'u32[]', space=smem, size = 0x4, offset = 0x4, fixed_abs, tag = 'smem constant byte address 0x4 - core index']
  #allocation1 [shape = 'u32[144,128]{1,0:T(1,128)}', space=vmem, size = 0x12000, scoped, tag = 'internal scratch']
  %s0 = inlined_call_operand.vmem [shape: bf16[2,4,1600,25], index: 0, kind: input, shape index: {}]
  %s1 = inlined_call_operand.vmem [shape: bf16[25,16], index: 1, kind: input, shape index: {}]
  %s2 = inlined_call_operand.vmem [shape: f32[1,16], index: 2, kind: input, shape index: {}]
  %s3 = inlined_call_operand.vmem [shape: f32[2,1600,16], index: 3, kind: output, shape index: {}]
  %s4 = sld [smem:[#allocation0]]
  $region45: #{net_forward.4} parent=0
    _
  %s6 = ssub.s32 1, %s4
  %s7 = scalar_select 0, %s6, %s4
  loop: start=0, step=1, limit=4
  $region2: #{net_forward.4} parent=0 // loop_pre_header
    _
  $region3: #{net_forward.4} parent=0 // loop_header
    %s9 = sphi 0, %s13
    %p10 = scmp.ge.s32.totalorder %s9, 4
    %s19 = sphi 0, %s21
    %s22 = sphi 0, %s19
    %s23 = sphi 0, %s22
    %s39 = sphi 0, %s23
    %s43 = sphi 0, %s43
    %s45 = sphi 0, %s43
    %s46 = sphi 0, %s45
    %s60 = sphi 0, %s46
    %s64 = sphi 0, %s64
    %s66 = sphi 0, %s64
    %s67 = sphi 0, %s66
    %s81 = sphi 0, %s67
    %s87 = sphi 0, %s89
    %s90 = sphi 0, %s87
    %s91 = sphi 0, %s90
    %s107 = sphi 0, %s91
  $region4: #{net_forward.4} parent=0 // loop_header_branch
    %12 = sbr.rel (%p10) target = $region8
  $region5: #{net_forward.4} parent=0 // loop_body
    %s14 = ssub.s32 %s9, 1
    %s15 = ssub.s32 %s9, 2
    %s16 = sadd.s32 %s9, 1
    %s17 = ssub.s32 %s9, %s16
    %p18 = scmp.eq.s32.totalorder %s17, 0
    %s20 = sadd.s32 %s19, 1
    %s21 = scalar_select %p18, %s19, %s20
    %p24 = pneg %p18
    %p25 = scmp.eq.s32.totalorder %s9, 1
    %p26 = por %p24, %p25
    %p27 = scmp.ne.s32.totalorder %s19, %s22
    %p28 = scmp.eq.s32.totalorder %s9, 0
    %p29 = por %p27, %p28
    %p30 = scmp.ne.s32.totalorder %s19, %s22
    %p31 = scmp.eq.s32.totalorder %s14, 1
    %p32 = por %p30, %p31
    %p33 = scmp.ne.s32.totalorder %s22, %s23
    %p34 = scmp.eq.s32.totalorder %s14, 0
    %p35 = por %p33, %p34
    %p36 = scmp.ne.s32.totalorder %s22, %s23
    %p37 = scmp.eq.s32.totalorder %s15, 1
    %p38 = por %p36, %p37
    %p40 = scmp.ne.s32.totalorder %s23, %s39
    %p41 = scmp.eq.s32.totalorder %s15, 0
    %p42 = por %p40, %p41
    %s44 = sadd.s32 %s43, 1
    %p47 = scmp.eq.s32.totalorder %s9, 1
    %p48 = scmp.ne.s32.totalorder %s43, %s45
    %p49 = scmp.eq.s32.totalorder %s9, 0
    %p50 = por %p48, %p49
    %p51 = scmp.ne.s32.totalorder %s43, %s45
    %p52 = scmp.eq.s32.totalorder %s14, 1
    %p53 = por %p51, %p52
    %p54 = scmp.ne.s32.totalorder %s45, %s46
    %p55 = scmp.eq.s32.totalorder %s14, 0
    %p56 = por %p54, %p55
    %p57 = scmp.ne.s32.totalorder %s45, %s46
    %p58 = scmp.eq.s32.totalorder %s15, 1
    %p59 = por %p57, %p58
    %p61 = scmp.ne.s32.totalorder %s46, %s60
    %p62 = scmp.eq.s32.totalorder %s15, 0
    %p63 = por %p61, %p62
    %s65 = sadd.s32 %s64, 1
    %p68 = scmp.eq.s32.totalorder %s9, 1
    %p69 = scmp.ne.s32.totalorder %s64, %s66
    %p70 = scmp.eq.s32.totalorder %s9, 0
    %p71 = por %p69, %p70
    %p72 = scmp.ne.s32.totalorder %s64, %s66
    %p73 = scmp.eq.s32.totalorder %s14, 1
    %p74 = por %p72, %p73
    %p75 = scmp.ne.s32.totalorder %s66, %s67
    %p76 = scmp.eq.s32.totalorder %s14, 0
    %p77 = por %p75, %p76
    %p78 = scmp.ne.s32.totalorder %s66, %s67
    %p79 = scmp.eq.s32.totalorder %s15, 1
    %p80 = por %p78, %p79
    %p82 = scmp.ne.s32.totalorder %s67, %s81
    %p83 = scmp.eq.s32.totalorder %s15, 0
    %p84 = por %p82, %p83
    %s85 = ssub.s32 %s9, %s16
    %p86 = scmp.eq.s32.totalorder %s85, 0
    %s88 = sadd.s32 %s87, 1
    %s89 = scalar_select %p86, %s87, %s88
    %p92 = pneg %p86
    %p93 = scmp.eq.s32.totalorder %s9, 1
    %p94 = por %p92, %p93
    %p95 = scmp.ne.s32.totalorder %s87, %s90
    %p96 = scmp.eq.s32.totalorder %s9, 0
    %p97 = por %p95, %p96
    %p98 = scmp.ne.s32.totalorder %s87, %s90
    %p99 = scmp.eq.s32.totalorder %s14, 1
    %p100 = por %p98, %p99
    %p101 = scmp.ne.s32.totalorder %s90, %s91
    %p102 = scmp.eq.s32.totalorder %s14, 0
    %p103 = por %p101, %p102
    %p104 = scmp.ne.s32.totalorder %s90, %s91
    %p105 = scmp.eq.s32.totalorder %s15, 1
    %p106 = por %p104, %p105
    %p108 = scmp.ne.s32.totalorder %s91, %s107
    %p109 = scmp.eq.s32.totalorder %s15, 0
    %p110 = por %p108, %p109
    %p111 = scmp.le.s32.totalorder 1, %s9
    %p112 = scmp.lt.s32.totalorder %s9, 3
    %p113 = pnand %p111, %p112
    %p114 = pneg %p113
    // Predicated region
    $region9: #{net_forward.4} parent=5 // pred_check
      _
    $region10: #{net_forward.4} parent=5 // pred_check_branch
      %116 = sbr.rel (%p113) target = $region12
    $region11: #{net_forward.4} parent=5 // pred_region
      %s117 = ssub.s32 %s9, 1
      // Predicated region
      $region13: #{net_forward.4} parent=11 // pred_check
        %p118 = pneg %p56
      $region14: #{net_forward.4} parent=11 // pred_check_branch
        %120 = sbr.rel (%p118) target = $region16
      $region15: #{net_forward.4} parent=11 // pred_region
        _
      $region16: #{net_forward.4} parent=11 // pred_fallthru
        _
      // Predicated region
      $region17: #{net_forward.4} parent=11 // pred_check
        %p121 = pneg %p77
      $region18: #{net_forward.4} parent=11 // pred_check_branch
        %123 = sbr.rel (%p121) target = $region20
      $region19: #{net_forward.4} parent=11 // pred_region
        _
      $region20: #{net_forward.4} parent=11 // pred_fallthru
        _
    $region12: #{net_forward.4} parent=5 // pred_fallthru
      _
    %p124 = scmp.lt.s32.totalorder %s9, 2
    // Predicated region
    $region21: #{net_forward.4} parent=5 // pred_check
      %p125 = pneg %p124
    $region22: #{net_forward.4} parent=5 // pred_check_branch
      %127 = sbr.rel (%p125) target = $region24
    $region23: #{net_forward.4} parent=5 // pred_region
      // Predicated region
      $region25: #{net_forward.4} parent=23 // pred_check
        %p128 = pneg %p29
      $region26: #{net_forward.4} parent=23 // pred_check_branch
        %130 = sbr.rel (%p128) target = $region28
      $region27: #{net_forward.4} parent=23 // pred_region
        %p131 = scmp.lt.s32.totalorder %s9, 1
        %s132 = scalar_select %p131, %s9, 1
        %s133 = smul.addr %s132, 800
        %s134 = smul.addr %s133, 4
        %s135 = scalar_lea.vmem %s0, %s134
      $region28: #{net_forward.4} parent=23 // pred_fallthru
        _
    $region24: #{net_forward.4} parent=5 // pred_fallthru
      _
    %p136 = scmp.le.s32.totalorder 1, %s9
    %p137 = scmp.lt.s32.totalorder %s9, 3
    %p138 = pnand %p136, %p137
    %p139 = pneg %p138
    // Predicated region
    $region29: #{net_forward.4} parent=5 // pred_check
      _
    $region30: #{net_forward.4} parent=5 // pred_check_branch
      %141 = sbr.rel (%p138) target = $region32
    $region31: #{net_forward.4} parent=5 // pred_region
      %s142 = ssub.s32 %s9, 1
      %p143 = scmp.lt.s32.totalorder %s14, 1
      %s144 = scalar_select %p143, %s14, 1
      %s145 = smul.addr %s144, 800
      %s146 = smul.addr %s145, 4
      %s147 = scalar_lea.vmem %s0, %s146
      %p148 = pneg %p35
      %p149 = pneg %p32
      %p150 = pneg %p56
      %p151 = pneg %p53
      %p152 = pneg %p77
      %p153 = pneg %p74
      %p154 = pneg %p103
      %p155 = pneg %p100
      %p156 = scmp.lt.s32.totalorder %s14, 1
      %s157 = scalar_select %p156, %s14, 1
      %s158 = smul.addr %s157, 200
      %s159 = smul.addr %s158, 8
      %s160 = scalar_lea.vmem %s3, %s159
      %p161 = scmp.lt.s32.totalorder %s14, 1
      %s162 = scalar_select %p161, %s14, 1
      %s163 = smul.addr %s162, 800
      %s164 = smul.addr %s163, 4
      %s165 = scalar_lea.vmem %s0, %s164
      %p166 = scmp.lt.s32.totalorder %s14, 1
      %s167 = scalar_select %p166, %s14, 1
      %s168 = smul.addr %s167, 200
      %s169 = smul.addr %s168, 8
      %s170 = scalar_lea.vmem %s3, %s169
      %v172 = vld [vmem:[%s1] sm:$0xf]
      %v173 = vld [vmem:[%s1 + $0x4] sm:$0xf]
      %v174 = vld [vmem:[%s1 + $0x8] sm:$0xf]
      %v175 = vld [vmem:[%s1 + $0xc] sm:$0x1]
      %v176 = vld [vmem:[%s165] sm:$0xf]
      %v177 = vld [vmem:[%s165 + $0x4] sm:$0xf]
      %v178 = vld [vmem:[%s165 + $0x8] sm:$0xf]
      %v179 = vld [vmem:[%s165 + $0xc] sm:$0xf]
      %v180 = vld [vmem:[%s165 + $0x10] sm:$0xf]
      %v181 = vld [vmem:[%s165 + $0x14] sm:$0xf]
      %v182 = vld [vmem:[%s165 + $0x18] sm:$0xf]
      %v183 = vld [vmem:[%s165 + $0x1c] sm:$0xf]
      %v184 = vld [vmem:[%s165 + $0x20] sm:$0xf]
      %v185 = vld [vmem:[%s165 + $0x24] sm:$0xf]
      %v186 = vld [vmem:[%s165 + $0x28] sm:$0xf]
      %v187 = vld [vmem:[%s165 + $0x2c] sm:$0xf]
      %v188 = vld [vmem:[%s165 + $0x30] sm:$0xf]
      %v189 = vld [vmem:[%s165 + $0x34] sm:$0xf]
      %v190 = vld [vmem:[%s165 + $0x38] sm:$0xf]
      %v191 = vld [vmem:[%s165 + $0x3c] sm:$0xf]
      %v192 = vld [vmem:[%s165 + $0x40] sm:$0xf]
      %v193 = vld [vmem:[%s165 + $0x44] sm:$0xf]
      %v194 = vld [vmem:[%s165 + $0x48] sm:$0xf]
      %v195 = vld [vmem:[%s165 + $0x4c] sm:$0xf]
      %v196 = vld [vmem:[%s165 + $0x50] sm:$0xf]
      %v197 = vld [vmem:[%s165 + $0x54] sm:$0xf]
      %v198 = vld [vmem:[%s165 + $0x58] sm:$0xf]
      %v199 = vld [vmem:[%s165 + $0x5c] sm:$0xf]
      %v200 = vld [vmem:[%s165 + $0x60] sm:$0xf]
      %v201 = vld [vmem:[%s165 + $0x64] sm:$0xf]
      %v202 = vld [vmem:[%s165 + $0x68] sm:$0xf]
      %v203 = vld [vmem:[%s165 + $0x6c] sm:$0xf]
      %v204 = vld [vmem:[%s165 + $0x70] sm:$0xf]
      %v205 = vld [vmem:[%s165 + $0x74] sm:$0xf]
      %v206 = vld [vmem:[%s165 + $0x78] sm:$0xf]
      %v207 = vld [vmem:[%s165 + $0x7c] sm:$0xf]
      %v208 = vld [vmem:[%s165 + $0x80] sm:$0xf]
      %v209 = vld [vmem:[%s165 + $0x84] sm:$0xf]
      %v210 = vld [vmem:[%s165 + $0x88] sm:$0xf]
      %v211 = vld [vmem:[%s165 + $0x8c] sm:$0xf]
      %v212 = vld [vmem:[%s165 + $0x90] sm:$0xf]
      %v213 = vld [vmem:[%s165 + $0x94] sm:$0xf]
      %v214 = vld [vmem:[%s165 + $0x98] sm:$0xf]
      %v215 = vld [vmem:[%s165 + $0x9c] sm:$0xf]
      %v216 = vld [vmem:[%s165 + $0xa0] sm:$0xf]
      %v217 = vld [vmem:[%s165 + $0xa4] sm:$0xf]
      %v218 = vld [vmem:[%s165 + $0xa8] sm:$0xf]
      %v219 = vld [vmem:[%s165 + $0xac] sm:$0xf]
      %v220 = vld [vmem:[%s165 + $0xb0] sm:$0xf]
      %v221 = vld [vmem:[%s165 + $0xb4] sm:$0xf]
      %v222 = vld [vmem:[%s165 + $0xb8] sm:$0xf]
      %v223 = vld [vmem:[%s165 + $0xbc] sm:$0xf]
      %v224 = vld [vmem:[%s165 + $0xc0] sm:$0xf]
      %v225 = vld [vmem:[%s165 + $0xc4] sm:$0xf]
      %v226 = vld [vmem:[%s165 + $0xc8] sm:$0xf]
      %v227 = vld [vmem:[%s165 + $0xcc] sm:$0xf]
      %v228 = vld [vmem:[%s165 + $0xd0] sm:$0xf]
      %v229 = vld [vmem:[%s165 + $0xd4] sm:$0xf]
      %v230 = vld [vmem:[%s165 + $0xd8] sm:$0xf]
      %v231 = vld [vmem:[%s165 + $0xdc] sm:$0xf]
      %v232 = vld [vmem:[%s165 + $0xe0] sm:$0xf]
      %v233 = vld [vmem:[%s165 + $0xe4] sm:$0xf]
      %v234 = vld [vmem:[%s165 + $0xe8] sm:$0xf]
      %v235 = vld [vmem:[%s165 + $0xec] sm:$0xf]
      %v236 = vld [vmem:[%s165 + $0xf0] sm:$0xf]
      %v237 = vld [vmem:[%s165 + $0xf4] sm:$0xf]
      %v238 = vld [vmem:[%s165 + $0xf8] sm:$0xf]
      %v239 = vld [vmem:[%s165 + $0xfc] sm:$0xf]
      %v240 = vld [vmem:[%s165 + $0x100] sm:$0xf]
      %v241 = vld [vmem:[%s165 + $0x104] sm:$0xf]
      %v242 = vld [vmem:[%s165 + $0x108] sm:$0xf]
      %v243 = vld [vmem:[%s165 + $0x10c] sm:$0xf]
      %v244 = vld [vmem:[%s165 + $0x110] sm:$0xf]
      %v245 = vld [vmem:[%s165 + $0x114] sm:$0xf]
      %v246 = vld [vmem:[%s165 + $0x118] sm:$0xf]
      %v247 = vld [vmem:[%s165 + $0x11c] sm:$0xf]
      %v248 = vld [vmem:[%s165 + $0x120] sm:$0xf]
      %v249 = vld [vmem:[%s165 + $0x124] sm:$0xf]
      %v250 = vld [vmem:[%s165 + $0x128] sm:$0xf]
      %v251 = vld [vmem:[%s165 + $0x12c] sm:$0xf]
      %v252 = vld [vmem:[%s165 + $0x130] sm:$0xf]
      %v253 = vld [vmem:[%s165 + $0x134] sm:$0xf]
      %v254 = vld [vmem:[%s165 + $0x138] sm:$0xf]
      %v255 = vld [vmem:[%s165 + $0x13c] sm:$0xf]
      %v256 = vld [vmem:[%s165 + $0x140] sm:$0xf]
      %v257 = vld [vmem:[%s165 + $0x144] sm:$0xf]
      %v258 = vld [vmem:[%s165 + $0x148] sm:$0xf]
      %v259 = vld [vmem:[%s165 + $0x14c] sm:$0xf]
      %v260 = vld [vmem:[%s165 + $0x150] sm:$0xf]
      %v261 = vld [vmem:[%s165 + $0x154] sm:$0xf]
      %v262 = vld [vmem:[%s165 + $0x158] sm:$0xf]
      %v263 = vld [vmem:[%s165 + $0x15c] sm:$0xf]
      %v264 = vld [vmem:[%s165 + $0x160] sm:$0xf]
      %v265 = vld [vmem:[%s165 + $0x164] sm:$0xf]
      %v266 = vld [vmem:[%s165 + $0x168] sm:$0xf]
      %v267 = vld [vmem:[%s165 + $0x16c] sm:$0xf]
      %v268 = vld [vmem:[%s165 + $0x170] sm:$0xf]
      %v269 = vld [vmem:[%s165 + $0x174] sm:$0xf]
      %v270 = vld [vmem:[%s165 + $0x178] sm:$0xf]
      %v271 = vld [vmem:[%s165 + $0x17c] sm:$0xf]
      %v272 = vld [vmem:[%s165 + $0x180] sm:$0xf]
      %v273 = vld [vmem:[%s165 + $0x184] sm:$0xf]
      %v274 = vld [vmem:[%s165 + $0x188] sm:$0xf]
      %v275 = vld [vmem:[%s165 + $0x18c] sm:$0xf]
      %v276 = vld [vmem:[%s165 + $0x190] sm:$0xf]
      %v277 = vld [vmem:[%s165 + $0x194] sm:$0xf]
      %v278 = vld [vmem:[%s165 + $0x198] sm:$0xf]
      %v279 = vld [vmem:[%s165 + $0x19c] sm:$0xf]
      %v280 = vld [vmem:[%s165 + $0x1a0] sm:$0xf]
      %v281 = vld [vmem:[%s165 + $0x1a4] sm:$0xf]
      %v282 = vld [vmem:[%s165 + $0x1a8] sm:$0xf]
      %v283 = vld [vmem:[%s165 + $0x1ac] sm:$0xf]
      %v284 = vld [vmem:[%s165 + $0x1b0] sm:$0xf]
      %v285 = vld [vmem:[%s165 + $0x1b4] sm:$0xf]
      %v286 = vld [vmem:[%s165 + $0x1b8] sm:$0xf]
      %v287 = vld [vmem:[%s165 + $0x1bc] sm:$0xf]
      %v288 = vld [vmem:[%s165 + $0x1c0] sm:$0xf]
      %v289 = vld [vmem:[%s165 + $0x1c4] sm:$0xf]
      %v290 = vld [vmem:[%s165 + $0x1c8] sm:$0xf]
      %v291 = vld [vmem:[%s165 + $0x1cc] sm:$0xf]
      %v292 = vld [vmem:[%s165 + $0x1d0] sm:$0xf]
      %v293 = vld [vmem:[%s165 + $0x1d4] sm:$0xf]
      %v294 = vld [vmem:[%s165 + $0x1d8] sm:$0xf]
      %v295 = vld [vmem:[%s165 + $0x1dc] sm:$0xf]
      %v296 = vld [vmem:[%s165 + $0x1e0] sm:$0xf]
      %v297 = vld [vmem:[%s165 + $0x1e4] sm:$0xf]
      %v298 = vld [vmem:[%s165 + $0x1e8] sm:$0xf]
      %v299 = vld [vmem:[%s165 + $0x1ec] sm:$0xf]
      %v300 = vld [vmem:[%s165 + $0x1f0] sm:$0xf]
      %v301 = vld [vmem:[%s165 + $0x1f4] sm:$0xf]
      %v302 = vld [vmem:[%s165 + $0x1f8] sm:$0xf]
      %v303 = vld [vmem:[%s165 + $0x1fc] sm:$0xf]
      %v304 = vld [vmem:[%s165 + $0x200] sm:$0xf]
      %v305 = vld [vmem:[%s165 + $0x204] sm:$0xf]
      %v306 = vld [vmem:[%s165 + $0x208] sm:$0xf]
      %v307 = vld [vmem:[%s165 + $0x20c] sm:$0xf]
      %v308 = vld [vmem:[%s165 + $0x210] sm:$0xf]
      %v309 = vld [vmem:[%s165 + $0x214] sm:$0xf]
      %v310 = vld [vmem:[%s165 + $0x218] sm:$0xf]
      %v311 = vld [vmem:[%s165 + $0x21c] sm:$0xf]
      %v312 = vld [vmem:[%s165 + $0x220] sm:$0xf]
      %v313 = vld [vmem:[%s165 + $0x224] sm:$0xf]
      %v314 = vld [vmem:[%s165 + $0x228] sm:$0xf]
      %v315 = vld [vmem:[%s165 + $0x22c] sm:$0xf]
      %v316 = vld [vmem:[%s165 + $0x230] sm:$0xf]
      %v317 = vld [vmem:[%s165 + $0x234] sm:$0xf]
      %v318 = vld [vmem:[%s165 + $0x238] sm:$0xf]
      %v319 = vld [vmem:[%s165 + $0x23c] sm:$0xf]
      %v320 = vld [vmem:[%s165 + $0x240] sm:$0xf]
      %v321 = vld [vmem:[%s165 + $0x244] sm:$0xf]
      %v322 = vld [vmem:[%s165 + $0x248] sm:$0xf]
      %v323 = vld [vmem:[%s165 + $0x24c] sm:$0xf]
      %v324 = vld [vmem:[%s165 + $0x250] sm:$0xf]
      %v325 = vld [vmem:[%s165 + $0x254] sm:$0xf]
      %v326 = vld [vmem:[%s165 + $0x258] sm:$0xf]
      %v327 = vld [vmem:[%s165 + $0x25c] sm:$0xf]
      %v328 = vld [vmem:[%s165 + $0x260] sm:$0xf]
      %v329 = vld [vmem:[%s165 + $0x264] sm:$0xf]
      %v330 = vld [vmem:[%s165 + $0x268] sm:$0xf]
      %v331 = vld [vmem:[%s165 + $0x26c] sm:$0xf]
      %v332 = vld [vmem:[%s165 + $0x270] sm:$0xf]
      %v333 = vld [vmem:[%s165 + $0x274] sm:$0xf]
      %v334 = vld [vmem:[%s165 + $0x278] sm:$0xf]
      %v335 = vld [vmem:[%s165 + $0x27c] sm:$0xf]
      %v336 = vld [vmem:[%s165 + $0x280] sm:$0xf]
      %v337 = vld [vmem:[%s165 + $0x284] sm:$0xf]
      %v338 = vld [vmem:[%s165 + $0x288] sm:$0xf]
      %v339 = vld [vmem:[%s165 + $0x28c] sm:$0xf]
      %v340 = vld [vmem:[%s165 + $0x290] sm:$0xf]
      %v341 = vld [vmem:[%s165 + $0x294] sm:$0xf]
      %v342 = vld [vmem:[%s165 + $0x298] sm:$0xf]
      %v343 = vld [vmem:[%s165 + $0x29c] sm:$0xf]
      %v344 = vld [vmem:[%s165 + $0x2a0] sm:$0xf]
      %v345 = vld [vmem:[%s165 + $0x2a4] sm:$0xf]
      %v346 = vld [vmem:[%s165 + $0x2a8] sm:$0xf]
      %v347 = vld [vmem:[%s165 + $0x2ac] sm:$0xf]
      %v348 = vld [vmem:[%s165 + $0x2b0] sm:$0xf]
      %v349 = vld [vmem:[%s165 + $0x2b4] sm:$0xf]
      %v350 = vld [vmem:[%s165 + $0x2b8] sm:$0xf]
      %v351 = vld [vmem:[%s165 + $0x2bc] sm:$0xf]
      %v352 = vld [vmem:[%s165 + $0x2c0] sm:$0xf]
      %v353 = vld [vmem:[%s165 + $0x2c4] sm:$0xf]
      %v354 = vld [vmem:[%s165 + $0x2c8] sm:$0xf]
      %v355 = vld [vmem:[%s165 + $0x2cc] sm:$0xf]
      %v356 = vld [vmem:[%s165 + $0x2d0] sm:$0xf]
      %v357 = vld [vmem:[%s165 + $0x2d4] sm:$0xf]
      %v358 = vld [vmem:[%s165 + $0x2d8] sm:$0xf]
      %v359 = vld [vmem:[%s165 + $0x2dc] sm:$0xf]
      %v360 = vld [vmem:[%s165 + $0x2e0] sm:$0xf]
      %v361 = vld [vmem:[%s165 + $0x2e4] sm:$0xf]
      %v362 = vld [vmem:[%s165 + $0x2e8] sm:$0xf]
      %v363 = vld [vmem:[%s165 + $0x2ec] sm:$0xf]
      %v364 = vld [vmem:[%s165 + $0x2f0] sm:$0xf]
      %v365 = vld [vmem:[%s165 + $0x2f4] sm:$0xf]
      %v366 = vld [vmem:[%s165 + $0x2f8] sm:$0xf]
      %v367 = vld [vmem:[%s165 + $0x2fc] sm:$0xf]
      %v368 = vld [vmem:[%s165 + $0x300] sm:$0xf]
      %v369 = vld [vmem:[%s165 + $0x304] sm:$0xf]
      %v370 = vld [vmem:[%s165 + $0x308] sm:$0xf]
      %v371 = vld [vmem:[%s165 + $0x30c] sm:$0xf]
      %v372 = vld [vmem:[%s165 + $0x310] sm:$0xf]
      %v373 = vld [vmem:[%s165 + $0x314] sm:$0xf]
      %v374 = vld [vmem:[%s165 + $0x318] sm:$0xf]
      %v375 = vld [vmem:[%s165 + $0x31c] sm:$0xf]
      %v576 = vunpack.c.l.b16 %v176
      %v577 = vunpack.c.l.b16 %v177
      %v578 = vunpack.c.l.b16 %v178
      %v579 = vunpack.c.l.b16 %v179
      %v580 = vunpack.c.l.b16 %v180
      %v581 = vunpack.c.l.b16 %v181
      %v582 = vunpack.c.l.b16 %v182
      %v583 = vunpack.c.l.b16 %v183
      %v584 = vunpack.c.l.b16 %v184
      %v585 = vunpack.c.l.b16 %v185
      %v586 = vunpack.c.l.b16 %v186
      %v587 = vunpack.c.l.b16 %v187
      %v588 = vunpack.c.l.b16 %v188
      %v589 = vunpack.c.l.b16 %v189
      %v590 = vunpack.c.l.b16 %v190
      %v591 = vunpack.c.l.b16 %v191
      %v592 = vunpack.c.l.b16 %v192
      %v593 = vunpack.c.l.b16 %v193
      %v594 = vunpack.c.l.b16 %v194
      %v595 = vunpack.c.l.b16 %v195
      %v596 = vunpack.c.l.b16 %v196
      %v597 = vunpack.c.l.b16 %v197
      %v598 = vunpack.c.l.b16 %v198
      %v599 = vunpack.c.l.b16 %v199
      %v600 = vunpack.c.l.b16 %v200
      %v601 = vunpack.c.l.b16 %v201
      %v602 = vunpack.c.l.b16 %v202
      %v603 = vunpack.c.l.b16 %v203
      %v604 = vunpack.c.l.b16 %v204
      %v605 = vunpack.c.l.b16 %v205
      %v606 = vunpack.c.l.b16 %v206
      %v607 = vunpack.c.l.b16 %v207
      %v608 = vunpack.c.l.b16 %v208
      %v609 = vunpack.c.l.b16 %v209
      %v610 = vunpack.c.l.b16 %v210
      %v611 = vunpack.c.l.b16 %v211
      %v612 = vunpack.c.l.b16 %v212
      %v613 = vunpack.c.l.b16 %v213
      %v614 = vunpack.c.l.b16 %v214
      %v615 = vunpack.c.l.b16 %v215
      %v616 = vunpack.c.l.b16 %v216
      %v617 = vunpack.c.l.b16 %v217
      %v618 = vunpack.c.l.b16 %v218
      %v619 = vunpack.c.l.b16 %v219
      %v620 = vunpack.c.l.b16 %v220
      %v621 = vunpack.c.l.b16 %v221
      %v622 = vunpack.c.l.b16 %v222
      %v623 = vunpack.c.l.b16 %v223
      %v624 = vunpack.c.l.b16 %v224
      %v625 = vunpack.c.l.b16 %v225
      %v626 = vunpack.c.l.b16 %v226
      %v627 = vunpack.c.l.b16 %v227
      %v628 = vunpack.c.l.b16 %v228
      %v629 = vunpack.c.l.b16 %v229
      %v630 = vunpack.c.l.b16 %v230
      %v631 = vunpack.c.l.b16 %v231
      %v632 = vunpack.c.l.b16 %v232
      %v633 = vunpack.c.l.b16 %v233
      %v634 = vunpack.c.l.b16 %v234
      %v635 = vunpack.c.l.b16 %v235
      %v636 = vunpack.c.l.b16 %v236
      %v637 = vunpack.c.l.b16 %v237
      %v638 = vunpack.c.l.b16 %v238
      %v639 = vunpack.c.l.b16 %v239
      %v640 = vunpack.c.l.b16 %v240
      %v641 = vunpack.c.l.b16 %v241
      %v642 = vunpack.c.l.b16 %v242
      %v643 = vunpack.c.l.b16 %v243
      %v644 = vunpack.c.l.b16 %v244
      %v645 = vunpack.c.l.b16 %v245
      %v646 = vunpack.c.l.b16 %v246
      %v647 = vunpack.c.l.b16 %v247
      %v648 = vunpack.c.l.b16 %v248
      %v649 = vunpack.c.l.b16 %v249
      %v650 = vunpack.c.l.b16 %v250
      %v651 = vunpack.c.l.b16 %v251
      %v652 = vunpack.c.l.b16 %v252
      %v653 = vunpack.c.l.b16 %v253
      %v654 = vunpack.c.l.b16 %v254
      %v655 = vunpack.c.l.b16 %v255
      %v656 = vunpack.c.l.b16 %v256
      %v657 = vunpack.c.l.b16 %v257
      %v658 = vunpack.c.l.b16 %v258
      %v659 = vunpack.c.l.b16 %v259
      %v660 = vunpack.c.l.b16 %v260
      %v661 = vunpack.c.l.b16 %v261
      %v662 = vunpack.c.l.b16 %v262
      %v663 = vunpack.c.l.b16 %v263
      %v664 = vunpack.c.l.b16 %v264
      %v665 = vunpack.c.l.b16 %v265
      %v666 = vunpack.c.l.b16 %v266
      %v667 = vunpack.c.l.b16 %v267
      %v668 = vunpack.c.l.b16 %v268
      %v669 = vunpack.c.l.b16 %v269
      %v670 = vunpack.c.l.b16 %v270
      %v671 = vunpack.c.l.b16 %v271
      %v672 = vunpack.c.l.b16 %v272
      %v673 = vunpack.c.l.b16 %v273
      %v674 = vunpack.c.l.b16 %v274
      %v675 = vunpack.c.l.b16 %v275
      %v676 = vunpack.c.l.b16 %v276
      %v677 = vunpack.c.l.b16 %v277
      %v678 = vunpack.c.l.b16 %v278
      %v679 = vunpack.c.l.b16 %v279
      %v680 = vunpack.c.l.b16 %v280
      %v681 = vunpack.c.l.b16 %v281
      %v682 = vunpack.c.l.b16 %v282
      %v683 = vunpack.c.l.b16 %v283
      %v684 = vunpack.c.l.b16 %v284
      %v685 = vunpack.c.l.b16 %v285
      %v686 = vunpack.c.l.b16 %v286
      %v687 = vunpack.c.l.b16 %v287
      %v688 = vunpack.c.l.b16 %v288
      %v689 = vunpack.c.l.b16 %v289
      %v690 = vunpack.c.l.b16 %v290
      %v691 = vunpack.c.l.b16 %v291
      %v692 = vunpack.c.l.b16 %v292
      %v693 = vunpack.c.l.b16 %v293
      %v694 = vunpack.c.l.b16 %v294
      %v695 = vunpack.c.l.b16 %v295
      %v696 = vunpack.c.l.b16 %v296
      %v697 = vunpack.c.l.b16 %v297
      %v698 = vunpack.c.l.b16 %v298
      %v699 = vunpack.c.l.b16 %v299
      %v700 = vunpack.c.l.b16 %v300
      %v701 = vunpack.c.l.b16 %v301
      %v702 = vunpack.c.l.b16 %v302
      %v703 = vunpack.c.l.b16 %v303
      %v704 = vunpack.c.l.b16 %v304
      %v705 = vunpack.c.l.b16 %v305
      %v706 = vunpack.c.l.b16 %v306
      %v707 = vunpack.c.l.b16 %v307
      %v708 = vunpack.c.l.b16 %v308
      %v709 = vunpack.c.l.b16 %v309
      %v710 = vunpack.c.l.b16 %v310
      %v711 = vunpack.c.l.b16 %v311
      %v712 = vunpack.c.l.b16 %v312
      %v713 = vunpack.c.l.b16 %v313
      %v714 = vunpack.c.l.b16 %v314
      %v715 = vunpack.c.l.b16 %v315
      %v716 = vunpack.c.l.b16 %v316
      %v717 = vunpack.c.l.b16 %v317
      %v718 = vunpack.c.l.b16 %v318
      %v719 = vunpack.c.l.b16 %v319
      %v720 = vunpack.c.l.b16 %v320
      %v721 = vunpack.c.l.b16 %v321
      %v722 = vunpack.c.l.b16 %v322
      %v723 = vunpack.c.l.b16 %v323
      %v724 = vunpack.c.l.b16 %v324
      %v725 = vunpack.c.l.b16 %v325
      %v726 = vunpack.c.l.b16 %v326
      %v727 = vunpack.c.l.b16 %v327
      %v728 = vunpack.c.l.b16 %v328
      %v729 = vunpack.c.l.b16 %v329
      %v730 = vunpack.c.l.b16 %v330
      %v731 = vunpack.c.l.b16 %v331
      %v732 = vunpack.c.l.b16 %v332
      %v733 = vunpack.c.l.b16 %v333
      %v734 = vunpack.c.l.b16 %v334
      %v735 = vunpack.c.l.b16 %v335
      %v736 = vunpack.c.l.b16 %v336
      %v737 = vunpack.c.l.b16 %v337
      %v738 = vunpack.c.l.b16 %v338
      %v739 = vunpack.c.l.b16 %v339
      %v740 = vunpack.c.l.b16 %v340
      %v741 = vunpack.c.l.b16 %v341
      %v742 = vunpack.c.l.b16 %v342
      %v743 = vunpack.c.l.b16 %v343
      %v744 = vunpack.c.l.b16 %v344
      %v745 = vunpack.c.l.b16 %v345
      %v746 = vunpack.c.l.b16 %v346
      %v747 = vunpack.c.l.b16 %v347
      %v748 = vunpack.c.l.b16 %v348
      %v749 = vunpack.c.l.b16 %v349
      %v750 = vunpack.c.l.b16 %v350
      %v751 = vunpack.c.l.b16 %v351
      %v752 = vunpack.c.l.b16 %v352
      %v753 = vunpack.c.l.b16 %v353
      %v754 = vunpack.c.l.b16 %v354
      %v755 = vunpack.c.l.b16 %v355
      %v756 = vunpack.c.l.b16 %v356
      %v757 = vunpack.c.l.b16 %v357
      %v758 = vunpack.c.l.b16 %v358
      %v759 = vunpack.c.l.b16 %v359
      %v760 = vunpack.c.l.b16 %v360
      %v761 = vunpack.c.l.b16 %v361
      %v762 = vunpack.c.l.b16 %v362
      %v763 = vunpack.c.l.b16 %v363
      %v764 = vunpack.c.l.b16 %v364
      %v765 = vunpack.c.l.b16 %v365
      %v766 = vunpack.c.l.b16 %v366
      %v767 = vunpack.c.l.b16 %v367
      %v768 = vunpack.c.l.b16 %v368
      %v769 = vunpack.c.l.b16 %v369
      %v770 = vunpack.c.l.b16 %v370
      %v771 = vunpack.c.l.b16 %v371
      %v772 = vunpack.c.l.b16 %v372
      %v773 = vunpack.c.l.b16 %v373
      %v774 = vunpack.c.l.b16 %v374
      %v775 = vunpack.c.l.b16 %v375
      %v776 = vpack.c.b16 %v577, %v576
      %v777 = vpack.c.b16 %v579, %v578
      %v778 = vpack.c.b16 %v581, %v580
      %v779 = vpack.c.b16 %v583, %v582
      %v780 = vpack.c.b16 %v585, %v584
      %v781 = vpack.c.b16 %v587, %v586
      %v782 = vpack.c.b16 %v589, %v588
      %v783 = vpack.c.b16 %v591, %v590
      %v784 = vpack.c.b16 %v593, %v592
      %v785 = vpack.c.b16 %v595, %v594
      %v786 = vpack.c.b16 %v597, %v596
      %v787 = vpack.c.b16 %v599, %v598
      %v788 = vpack.c.b16 %v601, %v600
      %v789 = vpack.c.b16 %v603, %v602
      %v790 = vpack.c.b16 %v605, %v604
      %v791 = vpack.c.b16 %v607, %v606
      %v792 = vpack.c.b16 %v609, %v608
      %v793 = vpack.c.b16 %v611, %v610
      %v794 = vpack.c.b16 %v613, %v612
      %v795 = vpack.c.b16 %v615, %v614
      %v796 = vpack.c.b16 %v617, %v616
      %v797 = vpack.c.b16 %v619, %v618
      %v798 = vpack.c.b16 %v621, %v620
      %v799 = vpack.c.b16 %v623, %v622
      %v800 = vpack.c.b16 %v625, %v624
      %v801 = vpack.c.b16 %v627, %v626
      %v802 = vpack.c.b16 %v629, %v628
      %v803 = vpack.c.b16 %v631, %v630
      %v804 = vpack.c.b16 %v633, %v632
      %v805 = vpack.c.b16 %v635, %v634
      %v806 = vpack.c.b16 %v637, %v636
      %v807 = vpack.c.b16 %v639, %v638
      %v808 = vpack.c.b16 %v641, %v640
      %v809 = vpack.c.b16 %v643, %v642
      %v810 = vpack.c.b16 %v645, %v644
      %v811 = vpack.c.b16 %v647, %v646
      %v812 = vpack.c.b16 %v649, %v648
      %v813 = vpack.c.b16 %v651, %v650
      %v814 = vpack.c.b16 %v653, %v652
      %v815 = vpack.c.b16 %v655, %v654
      %v816 = vpack.c.b16 %v657, %v656
      %v817 = vpack.c.b16 %v659, %v658
      %v818 = vpack.c.b16 %v661, %v660
      %v819 = vpack.c.b16 %v663, %v662
      %v820 = vpack.c.b16 %v665, %v664
      %v821 = vpack.c.b16 %v667, %v666
      %v822 = vpack.c.b16 %v669, %v668
      %v823 = vpack.c.b16 %v671, %v670
      %v824 = vpack.c.b16 %v673, %v672
      %v825 = vpack.c.b16 %v675, %v674
      %v826 = vpack.c.b16 %v677, %v676
      %v827 = vpack.c.b16 %v679, %v678
      %v828 = vpack.c.b16 %v681, %v680
      %v829 = vpack.c.b16 %v683, %v682
      %v830 = vpack.c.b16 %v685, %v684
      %v831 = vpack.c.b16 %v687, %v686
      %v832 = vpack.c.b16 %v689, %v688
      %v833 = vpack.c.b16 %v691, %v690
      %v834 = vpack.c.b16 %v693, %v692
      %v835 = vpack.c.b16 %v695, %v694
      %v836 = vpack.c.b16 %v697, %v696
      %v837 = vpack.c.b16 %v699, %v698
      %v838 = vpack.c.b16 %v701, %v700
      %v839 = vpack.c.b16 %v703, %v702
      %v840 = vpack.c.b16 %v705, %v704
      %v841 = vpack.c.b16 %v707, %v706
      %v842 = vpack.c.b16 %v709, %v708
      %v843 = vpack.c.b16 %v711, %v710
      %v844 = vpack.c.b16 %v713, %v712
      %v845 = vpack.c.b16 %v715, %v714
      %v846 = vpack.c.b16 %v717, %v716
      %v847 = vpack.c.b16 %v719, %v718
      %v848 = vpack.c.b16 %v721, %v720
      %v849 = vpack.c.b16 %v723, %v722
      %v850 = vpack.c.b16 %v725, %v724
      %v851 = vpack.c.b16 %v727, %v726
      %v852 = vpack.c.b16 %v729, %v728
      %v853 = vpack.c.b16 %v731, %v730
      %v854 = vpack.c.b16 %v733, %v732
      %v855 = vpack.c.b16 %v735, %v734
      %v856 = vpack.c.b16 %v737, %v736
      %v857 = vpack.c.b16 %v739, %v738
      %v858 = vpack.c.b16 %v741, %v740
      %v859 = vpack.c.b16 %v743, %v742
      %v860 = vpack.c.b16 %v745, %v744
      %v861 = vpack.c.b16 %v747, %v746
      %v862 = vpack.c.b16 %v749, %v748
      %v863 = vpack.c.b16 %v751, %v750
      %v864 = vpack.c.b16 %v753, %v752
      %v865 = vpack.c.b16 %v755, %v754
      %v866 = vpack.c.b16 %v757, %v756
      %v867 = vpack.c.b16 %v759, %v758
      %v868 = vpack.c.b16 %v761, %v760
      %v869 = vpack.c.b16 %v763, %v762
      %v870 = vpack.c.b16 %v765, %v764
      %v871 = vpack.c.b16 %v767, %v766
      %v872 = vpack.c.b16 %v769, %v768
      %v873 = vpack.c.b16 %v771, %v770
      %v874 = vpack.c.b16 %v773, %v772
      %v875 = vpack.c.b16 %v775, %v774
      %v880 = vunpack.c.l.b16 %v172
      %v881 = vunpack.c.l.b16 %v173
      %v882 = vunpack.c.l.b16 %v174
      %v883 = vunpack.c.l.b16 %v175
      %v884 = vpack.c.b16 %v881, %v880
      %v885 = vpack.c.b16 %v883, %v882
      %vm887 = vcmask 203776
      %v889 = vsel %vm887, %v776, 0
      %v892 = vsel %vm887, %v777, 0
      %v895 = vsel %vm887, %v778, 0
      %v898 = vsel %vm887, %v779, 0
      %v901 = vsel %vm887, %v780, 0
      %v904 = vsel %vm887, %v781, 0
      %v907 = vsel %vm887, %v782, 0
      %v910 = vsel %vm887, %v783, 0
      %v913 = vsel %vm887, %v784, 0
      %v916 = vsel %vm887, %v785, 0
      %v919 = vsel %vm887, %v786, 0
      %v922 = vsel %vm887, %v787, 0
      %v925 = vsel %vm887, %v788, 0
      %v928 = vsel %vm887, %v789, 0
      %v931 = vsel %vm887, %v790, 0
      %v934 = vsel %vm887, %v791, 0
      %v937 = vsel %vm887, %v792, 0
      %v940 = vsel %vm887, %v793, 0
      %v943 = vsel %vm887, %v794, 0
      %v946 = vsel %vm887, %v795, 0
      %v949 = vsel %vm887, %v796, 0
      %v952 = vsel %vm887, %v797, 0
      %v955 = vsel %vm887, %v798, 0
      %v958 = vsel %vm887, %v799, 0
      %v961 = vsel %vm887, %v800, 0
      %v964 = vsel %vm887, %v801, 0
      %v967 = vsel %vm887, %v802, 0
      %v970 = vsel %vm887, %v803, 0
      %v973 = vsel %vm887, %v804, 0
      %v976 = vsel %vm887, %v805, 0
      %v979 = vsel %vm887, %v806, 0
      %v982 = vsel %vm887, %v807, 0
      %v985 = vsel %vm887, %v808, 0
      %v988 = vsel %vm887, %v809, 0
      %v991 = vsel %vm887, %v810, 0
      %v994 = vsel %vm887, %v811, 0
      %v997 = vsel %vm887, %v812, 0
      %v1000 = vsel %vm887, %v813, 0
      %v1003 = vsel %vm887, %v814, 0
      %v1006 = vsel %vm887, %v815, 0
      %v1009 = vsel %vm887, %v816, 0
      %v1012 = vsel %vm887, %v817, 0
      %v1015 = vsel %vm887, %v818, 0
      %v1018 = vsel %vm887, %v819, 0
      %v1021 = vsel %vm887, %v820, 0
      %v1024 = vsel %vm887, %v821, 0
      %v1027 = vsel %vm887, %v822, 0
      %v1030 = vsel %vm887, %v823, 0
      %v1033 = vsel %vm887, %v824, 0
      %v1036 = vsel %vm887, %v825, 0
      %v1039 = vsel %vm887, %v826, 0
      %v1042 = vsel %vm887, %v827, 0
      %v1045 = vsel %vm887, %v828, 0
      %v1048 = vsel %vm887, %v829, 0
      %v1051 = vsel %vm887, %v830, 0
      %v1054 = vsel %vm887, %v831, 0
      %v1057 = vsel %vm887, %v832, 0
      %v1060 = vsel %vm887, %v833, 0
      %v1063 = vsel %vm887, %v834, 0
      %v1066 = vsel %vm887, %v835, 0
      %v1069 = vsel %vm887, %v836, 0
      %v1072 = vsel %vm887, %v837, 0
      %v1075 = vsel %vm887, %v838, 0
      %v1078 = vsel %vm887, %v839, 0
      %v1081 = vsel %vm887, %v840, 0
      %v1084 = vsel %vm887, %v841, 0
      %v1087 = vsel %vm887, %v842, 0
      %v1090 = vsel %vm887, %v843, 0
      %v1093 = vsel %vm887, %v844, 0
      %v1096 = vsel %vm887, %v845, 0
      %v1099 = vsel %vm887, %v846, 0
      %v1102 = vsel %vm887, %v847, 0
      %v1105 = vsel %vm887, %v848, 0
      %v1108 = vsel %vm887, %v849, 0
      %v1111 = vsel %vm887, %v850, 0
      %v1114 = vsel %vm887, %v851, 0
      %v1117 = vsel %vm887, %v852, 0
      %v1120 = vsel %vm887, %v853, 0
      %v1123 = vsel %vm887, %v854, 0
      %v1126 = vsel %vm887, %v855, 0
      %v1129 = vsel %vm887, %v856, 0
      %v1132 = vsel %vm887, %v857, 0
      %v1135 = vsel %vm887, %v858, 0
      %v1138 = vsel %vm887, %v859, 0
      %v1141 = vsel %vm887, %v860, 0
      %v1144 = vsel %vm887, %v861, 0
      %v1147 = vsel %vm887, %v862, 0
      %v1150 = vsel %vm887, %v863, 0
      %v1153 = vsel %vm887, %v864, 0
      %v1156 = vsel %vm887, %v865, 0
      %v1159 = vsel %vm887, %v866, 0
      %v1162 = vsel %vm887, %v867, 0
      %v1165 = vsel %vm887, %v868, 0
      %v1168 = vsel %vm887, %v869, 0
      %v1171 = vsel %vm887, %v870, 0
      %v1174 = vsel %vm887, %v871, 0
      %v1177 = vsel %vm887, %v872, 0
      %v1180 = vsel %vm887, %v873, 0
      %v1183 = vsel %vm887, %v874, 0
      %v1186 = vsel %vm887, %v875, 0
      %vm1188 = vcmask 1043456
      %vm1189 = vcmask 1044480
      %v1190 = vsel %vm1188, 4294967295, 65535
      %v1191 = vsel %vm1189, %v1190, 0
      %v1193 = vand.u32 %v885, %v1191
      %1195 = vmatprep.subr.bf16.mxu0 0
      %1196 = vmatpush1.bf16.msra.mxu0 %v884
      %1197 = vmatprep.subr.bf16.mxu0 0
      %1198 = vmatpush1.bf16.msra.mxu0 %v1193
      %1199 = vmatprep.subr.bf16.mxu0 0
      %1200 = vmatpush1.bf16.msra.mxu0 0
      %1201 = vmatprep.subr.bf16.mxu0 0
      %1202 = vmatpush1.bf16.msra.mxu0 0
      %1203 = vmatprep.subr.bf16.mxu0 0
      %1204 = vmatpush1.bf16.msra.mxu0 0
      %1205 = vmatprep.subr.bf16.mxu0 0
      %1206 = vmatpush1.bf16.msra.mxu0 0
      %1207 = vmatprep.subr.bf16.mxu0 0
      %1208 = vmatpush1.bf16.msra.mxu0 0
      %1209 = vmatprep.subr.bf16.mxu0 0
      %1210 = vmatpush1.bf16.msra.mxu0 0
      %1211 = vmatprep.subr.bf16.mxu0 0
      %1212 = vmatpush1.bf16.msra.mxu0 0
      %1213 = vmatprep.subr.bf16.mxu0 0
      %1214 = vmatpush1.bf16.msra.mxu0 0
      %1215 = vmatprep.subr.bf16.mxu0 0
      %1216 = vmatpush1.bf16.msra.mxu0 0
      %1217 = vmatprep.subr.bf16.mxu0 0
      %1218 = vmatpush1.bf16.msra.mxu0 0
      %1219 = vmatprep.subr.bf16.mxu0 0
      %1220 = vmatpush1.bf16.msra.mxu0 0
      %1221 = vmatprep.subr.bf16.mxu0 0
      %1222 = vmatpush1.bf16.msra.mxu0 0
      %1223 = vmatprep.subr.bf16.mxu0 0
      %1224 = vmatpush1.bf16.msra.mxu0 0
      %1225 = vmatprep.subr.bf16.mxu0 0
      %1226 = vmatpush1.bf16.msra.mxu0 0
      %1227 = vmatprep.mubr.bf16.mxu0 0
      %1228 = vmatmul.mubr.bf16.gmra.mrb[0].mxu0 %v889
      %v1229 = vpop.f32.mrb[0].mxu0
      %v1230 = vadd.f32 0.0, %v1229
      %v1231 = vpop.f32.mrb[0].mxu0
      %v1232 = vpop.f32.mrb[0].mxu0
      %v1233 = vadd.f32 0.0, %v1232
      %v1234 = vpop.f32.mrb[0].mxu0
      %1235 = vmatprep.mubr.bf16.mxu0 0
      %1236 = vmatmul.mubr.bf16.gmra.mrb[0].mxu0 %v892
      %v1237 = vpop.f32.mrb[0].mxu0
      %v1238 = vadd.f32 0.0, %v1237
      %v1239 = vpop.f32.mrb[0].mxu0
      %v1240 = vpop.f32.mrb[0].mxu0
      %v1241 = vadd.f32 0.0, %v1240
      %v1242 = vpop.f32.mrb[0].mxu0
      %1243 = vmatprep.mubr.bf16.mxu0 0
      %1244 = vmatmul.mubr.bf16.gmra.mrb[0].mxu0 %v895
      %v1245 = vpop.f32.mrb[0].mxu0
      %v1246 = vadd.f32 0.0, %v1245
      %v1247 = vpop.f32.mrb[0].mxu0
      %v1248 = vpop.f32.mrb[0].mxu0
      %v1249 = vadd.f32 0.0, %v1248
      %v1250 = vpop.f32.mrb[0].mxu0
      %1251 = vmatprep.mubr.bf16.mxu0 0
      %1252 = vmatmul.mubr.bf16.gmra.mrb[0].mxu0 %v898
      %v1253 = vpop.f32.mrb[0].mxu0
      %v1254 = vadd.f32 0.0, %v1253
      %v1255 = vpop.f32.mrb[0].mxu0
      %v1256 = vpop.f32.mrb[0].mxu0
      %v1257 = vadd.f32 0.0, %v1256
      %v1258 = vpop.f32.mrb[0].mxu0
      %1259 = vmatprep.mubr.bf16.mxu0 0
      %1260 = vmatmul.mubr.bf16.gmra.mrb[0].mxu0 %v901
      %v1261 = vpop.f32.mrb[0].mxu0
      %v1262 = vadd.f32 0.0, %v1261
      %v1263 = vpop.f32.mrb[0].mxu0
      %v1264 = vpop.f32.mrb[0].mxu0
      %v1265 = vadd.f32 0.0, %v1264
      %v1266 = vpop.f32.mrb[0].mxu0
      %1267 = vmatprep.mubr.bf16.mxu0 0
      %1268 = vmatmul.mubr.bf16.gmra.mrb[0].mxu0 %v904
      %v1269 = vpop.f32.mrb[0].mxu0
      %v1270 = vadd.f32 0.0, %v1269
      %v1271 = vpop.f32.mrb[0].mxu0
      %v1272 = vpop.f32.mrb[0].mxu0
      %v1273 = vadd.f32 0.0, %v1272
      %v1274 = vpop.f32.mrb[0].mxu0
      %1275 = vmatprep.mubr.bf16.mxu0 0
      %1276 = vmatmul.mubr.bf16.gmra.mrb[0].mxu0 %v907
      %v1277 = vpop.f32.mrb[0].mxu0
      %v1278 = vadd.f32 0.0, %v1277
      %v1279 = vpop.f32.mrb[0].mxu0
      %v1280 = vpop.f32.mrb[0].mxu0
      %v1281 = vadd.f32 0.0, %v1280
      %v1282 = vpop.f32.mrb[0].mxu0
      %1283 = vmatprep.mubr.bf16.mxu0 0
      %1284 = vmatmul.mubr.bf16.gmra.mrb[0].mxu0 %v910
      %v1285 = vpop.f32.mrb[0].mxu0
      %v1286 = vadd.f32 0.0, %v1285
      %v1287 = vpop.f32.mrb[0].mxu0
      %v1288 = vpop.f32.mrb[0].mxu0
      %v1289 = vadd.f32 0.0, %v1288
      %v1290 = vpop.f32.mrb[0].mxu0
      %1291 = vmatprep.mubr.bf16.mxu0 0
      %1292 = vmatmul.mubr.bf16.gmra.mrb[0].mxu0 %v913
      %v1293 = vpop.f32.mrb[0].mxu0
      %v1294 = vadd.f32 0.0, %v1293
      %v1295 = vpop.f32.mrb[0].mxu0
      %v1296 = vpop.f32.mrb[0].mxu0
      %v1297 = vadd.f32 0.0, %v1296
      %v1298 = vpop.f32.mrb[0].mxu0
      %1299 = vmatprep.mubr.bf16.mxu0 0
      %1300 = vmatmul.mubr.bf16.gmra.mrb[0].mxu0 %v916
      %v1301 = vpop.f32.mrb[0].mxu0
      %v1302 = vadd.f32 0.0, %v1301
      %v1303 = vpop.f32.mrb[0].mxu0
      %v1304 = vpop.f32.mrb[0].mxu0
      %v1305 = vadd.f32 0.0, %v1304
      %v1306 = vpop.f32.mrb[0].mxu0
      %1307 = vmatprep.mubr.bf16.mxu0 0
      %1308 = vmatmul.mubr.bf16.gmra.mrb[0].mxu0 %v919
      %v1309 = vpop.f32.mrb[0].mxu0
      %v1310 = vadd.f32 0.0, %v1309
      %v1311 = vpop.f32.mrb[0].mxu0
      %v1312 = vpop.f32.mrb[0].mxu0
      %v1313 = vadd.f32 0.0, %v1312
      %v1314 = vpop.f32.mrb[0].mxu0
      %1315 = vmatprep.mubr.bf16.mxu0 0
      %1316 = vmatmul.mubr.bf16.gmra.mrb[0].mxu0 %v922
      %v1317 = vpop.f32.mrb[0].mxu0
      %v1318 = vadd.f32 0.0, %v1317
      %v1319 = vpop.f32.mrb[0].mxu0
      %v1320 = vpop.f32.mrb[0].mxu0
      %v1321 = vadd.f32 0.0, %v1320
      %v1322 = vpop.f32.mrb[0].mxu0
      %1323 = vmatprep.mubr.bf16.mxu0 0
      %1324 = vmatmul.mubr.bf16.gmra.mrb[0].mxu0 %v925
      %v1325 = vpop.f32.mrb[0].mxu0
      %v1326 = vadd.f32 0.0, %v1325
      %v1327 = vpop.f32.mrb[0].mxu0
      %v1328 = vpop.f32.mrb[0].mxu0
      %v1329 = vadd.f32 0.0, %v1328
      %v1330 = vpop.f32.mrb[0].mxu0
      %1331 = vmatprep.mubr.bf16.mxu0 0
      %1332 = vmatmul.mubr.bf16.gmra.mrb[0].mxu0 %v928
      %v1333 = vpop.f32.mrb[0].mxu0
      %v1334 = vadd.f32 0.0, %v1333
      %v1335 = vpop.f32.mrb[0].mxu0
      %v1336 = vpop.f32.mrb[0].mxu0
      %v1337 = vadd.f32 0.0, %v1336
      %v1338 = vpop.f32.mrb[0].mxu0
      %1339 = vmatprep.mubr.bf16.mxu0 0
      %1340 = vmatmul.mubr.bf16.gmra.mrb[0].mxu0 %v931
      %v1341 = vpop.f32.mrb[0].mxu0
      %v1342 = vadd.f32 0.0, %v1341
      %v1343 = vpop.f32.mrb[0].mxu0
      %v1344 = vpop.f32.mrb[0].mxu0
      %v1345 = vadd.f32 0.0, %v1344
      %v1346 = vpop.f32.mrb[0].mxu0
      %1347 = vmatprep.mubr.bf16.mxu0 0
      %1348 = vmatmul.mubr.bf16.gmra.mrb[0].mxu0 %v934
      %v1349 = vpop.f32.mrb[0].mxu0
      %v1350 = vadd.f32 0.0, %v1349
      %v1351 = vpop.f32.mrb[0].mxu0
      %v1352 = vpop.f32.mrb[0].mxu0
      %v1353 = vadd.f32 0.0, %v1352
      %v1354 = vpop.f32.mrb[0].mxu0
      %1355 = vmatprep.mubr.bf16.mxu0 0
      %1356 = vmatmul.mubr.bf16.gmra.mrb[0].mxu0 %v937
      %v1357 = vpop.f32.mrb[0].mxu0
      %v1358 = vadd.f32 0.0, %v1357
      %v1359 = vpop.f32.mrb[0].mxu0
      %v1360 = vpop.f32.mrb[0].mxu0
      %v1361 = vadd.f32 0.0, %v1360
      %v1362 = vpop.f32.mrb[0].mxu0
      %1363 = vmatprep.mubr.bf16.mxu0 0
      %1364 = vmatmul.mubr.bf16.gmra.mrb[0].mxu0 %v940
      %v1365 = vpop.f32.mrb[0].mxu0
      %v1366 = vadd.f32 0.0, %v1365
      %v1367 = vpop.f32.mrb[0].mxu0
      %v1368 = vpop.f32.mrb[0].mxu0
      %v1369 = vadd.f32 0.0, %v1368
      %v1370 = vpop.f32.mrb[0].mxu0
      %1371 = vmatprep.mubr.bf16.mxu0 0
      %1372 = vmatmul.mubr.bf16.gmra.mrb[0].mxu0 %v943
      %v1373 = vpop.f32.mrb[0].mxu0
      %v1374 = vadd.f32 0.0, %v1373
      %v1375 = vpop.f32.mrb[0].mxu0
      %v1376 = vpop.f32.mrb[0].mxu0
      %v1377 = vadd.f32 0.0, %v1376
      %v1378 = vpop.f32.mrb[0].mxu0
      %1379 = vmatprep.mubr.bf16.mxu0 0
      %1380 = vmatmul.mubr.bf16.gmra.mrb[0].mxu0 %v946
      %v1381 = vpop.f32.mrb[0].mxu0
      %v1382 = vadd.f32 0.0, %v1381
      %v1383 = vpop.f32.mrb[0].mxu0
      %v1384 = vpop.f32.mrb[0].mxu0
      %v1385 = vadd.f32 0.0, %v1384
      %v1386 = vpop.f32.mrb[0].mxu0
      %1387 = vmatprep.mubr.bf16.mxu0 0
      %1388 = vmatmul.mubr.bf16.gmra.mrb[0].mxu0 %v949
      %v1389 = vpop.f32.mrb[0].mxu0
      %v1390 = vadd.f32 0.0, %v1389
      %v1391 = vpop.f32.mrb[0].mxu0
      %v1392 = vpop.f32.mrb[0].mxu0
      %v1393 = vadd.f32 0.0, %v1392
      %v1394 = vpop.f32.mrb[0].mxu0
      %1395 = vmatprep.mubr.bf16.mxu0 0
      %1396 = vmatmul.mubr.bf16.gmra.mrb[0].mxu0 %v952
      %v1397 = vpop.f32.mrb[0].mxu0
      %v1398 = vadd.f32 0.0, %v1397
      %v1399 = vpop.f32.mrb[0].mxu0
      %v1400 = vpop.f32.mrb[0].mxu0
      %v1401 = vadd.f32 0.0, %v1400
      %v1402 = vpop.f32.mrb[0].mxu0
      %1403 = vmatprep.mubr.bf16.mxu0 0
      %1404 = vmatmul.mubr.bf16.gmra.mrb[0].mxu0 %v955
      %v1405 = vpop.f32.mrb[0].mxu0
      %v1406 = vadd.f32 0.0, %v1405
      %v1407 = vpop.f32.mrb[0].mxu0
      %v1408 = vpop.f32.mrb[0].mxu0
      %v1409 = vadd.f32 0.0, %v1408
      %v1410 = vpop.f32.mrb[0].mxu0
      %1411 = vmatprep.mubr.bf16.mxu0 0
      %1412 = vmatmul.mubr.bf16.gmra.mrb[0].mxu0 %v958
      %v1413 = vpop.f32.mrb[0].mxu0
      %v1414 = vadd.f32 0.0, %v1413
      %v1415 = vpop.f32.mrb[0].mxu0
      %v1416 = vpop.f32.mrb[0].mxu0
      %v1417 = vadd.f32 0.0, %v1416
      %v1418 = vpop.f32.mrb[0].mxu0
      %1419 = vmatprep.mubr.bf16.mxu0 0
      %1420 = vmatmul.mubr.bf16.gmra.mrb[0].mxu0 %v961
      %v1421 = vpop.f32.mrb[0].mxu0
      %v1422 = vadd.f32 0.0, %v1421
      %v1423 = vpop.f32.mrb[0].mxu0
      %v1424 = vpop.f32.mrb[0].mxu0
      %v1425 = vadd.f32 0.0, %v1424
      %v1426 = vpop.f32.mrb[0].mxu0
      %1427 = vmatprep.mubr.bf16.mxu0 0
      %1428 = vmatmul.mubr.bf16.gmra.mrb[0].mxu0 %v964
      %v1429 = vpop.f32.mrb[0].mxu0
      %v1430 = vadd.f32 0.0, %v1429
      %v1431 = vpop.f32.mrb[0].mxu0
      %v1432 = vpop.f32.mrb[0].mxu0
      %v1433 = vadd.f32 0.0, %v1432
      %v1434 = vpop.f32.mrb[0].mxu0
      %1435 = vmatprep.mubr.bf16.mxu0 0
      %1436 = vmatmul.mubr.bf16.gmra.mrb[0].mxu0 %v967
      %v1437 = vpop.f32.mrb[0].mxu0
      %v1438 = vadd.f32 0.0, %v1437
      %v1439 = vpop.f32.mrb[0].mxu0
      %v1440 = vpop.f32.mrb[0].mxu0
      %v1441 = vadd.f32 0.0, %v1440
      %v1442 = vpop.f32.mrb[0].mxu0
      %1443 = vmatprep.mubr.bf16.mxu0 0
      %1444 = vmatmul.mubr.bf16.gmra.mrb[0].mxu0 %v970
      %v1445 = vpop.f32.mrb[0].mxu0
      %v1446 = vadd.f32 0.0, %v1445
      %v1447 = vpop.f32.mrb[0].mxu0
      %v1448 = vpop.f32.mrb[0].mxu0
      %v1449 = vadd.f32 0.0, %v1448
      %v1450 = vpop.f32.mrb[0].mxu0
      %1451 = vmatprep.mubr.bf16.mxu0 0
      %1452 = vmatmul.mubr.bf16.gmra.mrb[0].mxu0 %v973
      %v1453 = vpop.f32.mrb[0].mxu0
      %v1454 = vadd.f32 0.0, %v1453
      %v1455 = vpop.f32.mrb[0].mxu0
      %v1456 = vpop.f32.mrb[0].mxu0
      %v1457 = vadd.f32 0.0, %v1456
      %v1458 = vpop.f32.mrb[0].mxu0
      %1459 = vmatprep.mubr.bf16.mxu0 0
      %1460 = vmatmul.mubr.bf16.gmra.mrb[0].mxu0 %v976
      %v1461 = vpop.f32.mrb[0].mxu0
      %v1462 = vadd.f32 0.0, %v1461
      %v1463 = vpop.f32.mrb[0].mxu0
      %v1464 = vpop.f32.mrb[0].mxu0
      %v1465 = vadd.f32 0.0, %v1464
      %v1466 = vpop.f32.mrb[0].mxu0
      %1467 = vmatprep.mubr.bf16.mxu0 0
      %1468 = vmatmul.mubr.bf16.gmra.mrb[0].mxu0 %v979
      %v1469 = vpop.f32.mrb[0].mxu0
      %v1470 = vadd.f32 0.0, %v1469
      %v1471 = vpop.f32.mrb[0].mxu0
      %v1472 = vpop.f32.mrb[0].mxu0
      %v1473 = vadd.f32 0.0, %v1472
      %v1474 = vpop.f32.mrb[0].mxu0
      %1475 = vmatprep.mubr.bf16.mxu0 0
      %1476 = vmatmul.mubr.bf16.gmra.mrb[0].mxu0 %v982
      %v1477 = vpop.f32.mrb[0].mxu0
      %v1478 = vadd.f32 0.0, %v1477
      %v1479 = vpop.f32.mrb[0].mxu0
      %v1480 = vpop.f32.mrb[0].mxu0
      %v1481 = vadd.f32 0.0, %v1480
      %v1482 = vpop.f32.mrb[0].mxu0
      %1483 = vmatprep.mubr.bf16.mxu0 0
      %1484 = vmatmul.mubr.bf16.gmra.mrb[0].mxu0 %v985
      %v1485 = vpop.f32.mrb[0].mxu0
      %v1486 = vadd.f32 0.0, %v1485
      %v1487 = vpop.f32.mrb[0].mxu0
      %v1488 = vpop.f32.mrb[0].mxu0
      %v1489 = vadd.f32 0.0, %v1488
      %v1490 = vpop.f32.mrb[0].mxu0
      %1491 = vmatprep.mubr.bf16.mxu0 0
      %1492 = vmatmul.mubr.bf16.gmra.mrb[0].mxu0 %v988
      %v1493 = vpop.f32.mrb[0].mxu0
      %v1494 = vadd.f32 0.0, %v1493
      %v1495 = vpop.f32.mrb[0].mxu0
      %v1496 = vpop.f32.mrb[0].mxu0
      %v1497 = vadd.f32 0.0, %v1496
      %v1498 = vpop.f32.mrb[0].mxu0
      %1499 = vmatprep.mubr.bf16.mxu0 0
      %1500 = vmatmul.mubr.bf16.gmra.mrb[0].mxu0 %v991
      %v1501 = vpop.f32.mrb[0].mxu0
      %v1502 = vadd.f32 0.0, %v1501
      %v1503 = vpop.f32.mrb[0].mxu0
      %v1504 = vpop.f32.mrb[0].mxu0
      %v1505 = vadd.f32 0.0, %v1504
      %v1506 = vpop.f32.mrb[0].mxu0
      %1507 = vmatprep.mubr.bf16.mxu0 0
      %1508 = vmatmul.mubr.bf16.gmra.mrb[0].mxu0 %v994
      %v1509 = vpop.f32.mrb[0].mxu0
      %v1510 = vadd.f32 0.0, %v1509
      %v1511 = vpop.f32.mrb[0].mxu0
      %v1512 = vpop.f32.mrb[0].mxu0
      %v1513 = vadd.f32 0.0, %v1512
      %v1514 = vpop.f32.mrb[0].mxu0
      %1515 = vmatprep.mubr.bf16.mxu0 0
      %1516 = vmatmul.mubr.bf16.gmra.mrb[0].mxu0 %v997
      %v1517 = vpop.f32.mrb[0].mxu0
      %v1518 = vadd.f32 0.0, %v1517
      %v1519 = vpop.f32.mrb[0].mxu0
      %v1520 = vpop.f32.mrb[0].mxu0
      %v1521 = vadd.f32 0.0, %v1520
      %v1522 = vpop.f32.mrb[0].mxu0
      %1523 = vmatprep.mubr.bf16.mxu0 0
      %1524 = vmatmul.mubr.bf16.gmra.mrb[0].mxu0 %v1000
      %v1525 = vpop.f32.mrb[0].mxu0
      %v1526 = vadd.f32 0.0, %v1525
      %v1527 = vpop.f32.mrb[0].mxu0
      %v1528 = vpop.f32.mrb[0].mxu0
      %v1529 = vadd.f32 0.0, %v1528
      %v1530 = vpop.f32.mrb[0].mxu0
      %1531 = vmatprep.mubr.bf16.mxu0 0
      %1532 = vmatmul.mubr.bf16.gmra.mrb[0].mxu0 %v1003
      %v1533 = vpop.f32.mrb[0].mxu0
      %v1534 = vadd.f32 0.0, %v1533
      %v1535 = vpop.f32.mrb[0].mxu0
      %v1536 = vpop.f32.mrb[0].mxu0
      %v1537 = vadd.f32 0.0, %v1536
      %v1538 = vpop.f32.mrb[0].mxu0
      %1539 = vmatprep.mubr.bf16.mxu0 0
      %1540 = vmatmul.mubr.bf16.gmra.mrb[0].mxu0 %v1006
      %v1541 = vpop.f32.mrb[0].mxu0
      %v1542 = vadd.f32 0.0, %v1541
      %v1543 = vpop.f32.mrb[0].mxu0
      %v1544 = vpop.f32.mrb[0].mxu0
      %v1545 = vadd.f32 0.0, %v1544
      %v1546 = vpop.f32.mrb[0].mxu0
      %1547 = vmatprep.mubr.bf16.mxu0 0
      %1548 = vmatmul.mubr.bf16.gmra.mrb[0].mxu0 %v1009
      %v1549 = vpop.f32.mrb[0].mxu0
      %v1550 = vadd.f32 0.0, %v1549
      %v1551 = vpop.f32.mrb[0].mxu0
      %v1552 = vpop.f32.mrb[0].mxu0
      %v1553 = vadd.f32 0.0, %v1552
      %v1554 = vpop.f32.mrb[0].mxu0
      %1555 = vmatprep.mubr.bf16.mxu0 0
      %1556 = vmatmul.mubr.bf16.gmra.mrb[0].mxu0 %v1012
      %v1557 = vpop.f32.mrb[0].mxu0
      %v1558 = vadd.f32 0.0, %v1557
      %v1559 = vpop.f32.mrb[0].mxu0
      %v1560 = vpop.f32.mrb[0].mxu0
      %v1561 = vadd.f32 0.0, %v1560
      %v1562 = vpop.f32.mrb[0].mxu0
      %1563 = vmatprep.mubr.bf16.mxu0 0
      %1564 = vmatmul.mubr.bf16.gmra.mrb[0].mxu0 %v1015
      %v1565 = vpop.f32.mrb[0].mxu0
      %v1566 = vadd.f32 0.0, %v1565
      %v1567 = vpop.f32.mrb[0].mxu0
      %v1568 = vpop.f32.mrb[0].mxu0
      %v1569 = vadd.f32 0.0, %v1568
      %v1570 = vpop.f32.mrb[0].mxu0
      %1571 = vmatprep.mubr.bf16.mxu0 0
      %1572 = vmatmul.mubr.bf16.gmra.mrb[0].mxu0 %v1018
      %v1573 = vpop.f32.mrb[0].mxu0
      %v1574 = vadd.f32 0.0, %v1573
      %v1575 = vpop.f32.mrb[0].mxu0
      %v1576 = vpop.f32.mrb[0].mxu0
      %v1577 = vadd.f32 0.0, %v1576
      %v1578 = vpop.f32.mrb[0].mxu0
      %1579 = vmatprep.mubr.bf16.mxu0 0
      %1580 = vmatmul.mubr.bf16.gmra.mrb[0].mxu0 %v1021
      %v1581 = vpop.f32.mrb[0].mxu0
      %v1582 = vadd.f32 0.0, %v1581
      %v1583 = vpop.f32.mrb[0].mxu0
      %v1584 = vpop.f32.mrb[0].mxu0
      %v1585 = vadd.f32 0.0, %v1584
      %v1586 = vpop.f32.mrb[0].mxu0
      %1587 = vmatprep.mubr.bf16.mxu0 0
      %1588 = vmatmul.mubr.bf16.gmra.mrb[0].mxu0 %v1024
      %v1589 = vpop.f32.mrb[0].mxu0
      %v1590 = vadd.f32 0.0, %v1589
      %v1591 = vpop.f32.mrb[0].mxu0
      %v1592 = vpop.f32.mrb[0].mxu0
      %v1593 = vadd.f32 0.0, %v1592
      %v1594 = vpop.f32.mrb[0].mxu0
      %1595 = vmatprep.mubr.bf16.mxu0 0
      %1596 = vmatmul.mubr.bf16.gmra.mrb[0].mxu0 %v1027
      %v1597 = vpop.f32.mrb[0].mxu0
      %v1598 = vadd.f32 0.0, %v1597
      %v1599 = vpop.f32.mrb[0].mxu0
      %v1600 = vpop.f32.mrb[0].mxu0
      %v1601 = vadd.f32 0.0, %v1600
      %v1602 = vpop.f32.mrb[0].mxu0
      %1603 = vmatprep.mubr.bf16.mxu0 0
      %1604 = vmatmul.mubr.bf16.gmra.mrb[0].mxu0 %v1030
      %v1605 = vpop.f32.mrb[0].mxu0
      %v1606 = vadd.f32 0.0, %v1605
      %v1607 = vpop.f32.mrb[0].mxu0
      %v1608 = vpop.f32.mrb[0].mxu0
      %v1609 = vadd.f32 0.0, %v1608
      %v1610 = vpop.f32.mrb[0].mxu0
      %1611 = vmatprep.mubr.bf16.mxu0 0
      %1612 = vmatmul.mubr.bf16.gmra.mrb[0].mxu0 %v1033
      %v1613 = vpop.f32.mrb[0].mxu0
      %v1614 = vadd.f32 0.0, %v1613
      %v1615 = vpop.f32.mrb[0].mxu0
      %v1616 = vpop.f32.mrb[0].mxu0
      %v1617 = vadd.f32 0.0, %v1616
      %v1618 = vpop.f32.mrb[0].mxu0
      %1619 = vmatprep.mubr.bf16.mxu0 0
      %1620 = vmatmul.mubr.bf16.gmra.mrb[0].mxu0 %v1036
      %v1621 = vpop.f32.mrb[0].mxu0
      %v1622 = vadd.f32 0.0, %v1621
      %v1623 = vpop.f32.mrb[0].mxu0
      %v1624 = vpop.f32.mrb[0].mxu0
      %v1625 = vadd.f32 0.0, %v1624
      %v1626 = vpop.f32.mrb[0].mxu0
      %1627 = vmatprep.mubr.bf16.mxu0 0
      %1628 = vmatmul.mubr.bf16.gmra.mrb[0].mxu0 %v1039
      %v1629 = vpop.f32.mrb[0].mxu0
      %v1630 = vadd.f32 0.0, %v1629
      %v1631 = vpop.f32.mrb[0].mxu0
      %v1632 = vpop.f32.mrb[0].mxu0
      %v1633 = vadd.f32 0.0, %v1632
      %v1634 = vpop.f32.mrb[0].mxu0
      %1635 = vmatprep.mubr.bf16.mxu0 0
      %1636 = vmatmul.mubr.bf16.gmra.mrb[0].mxu0 %v1042
      %v1637 = vpop.f32.mrb[0].mxu0
      %v1638 = vadd.f32 0.0, %v1637
      %v1639 = vpop.f32.mrb[0].mxu0
      %v1640 = vpop.f32.mrb[0].mxu0
      %v1641 = vadd.f32 0.0, %v1640
      %v1642 = vpop.f32.mrb[0].mxu0
      %1643 = vmatprep.mubr.bf16.mxu0 0
      %1644 = vmatmul.mubr.bf16.gmra.mrb[0].mxu0 %v1045
      %v1645 = vpop.f32.mrb[0].mxu0
      %v1646 = vadd.f32 0.0, %v1645
      %v1647 = vpop.f32.mrb[0].mxu0
      %v1648 = vpop.f32.mrb[0].mxu0
      %v1649 = vadd.f32 0.0, %v1648
      %v1650 = vpop.f32.mrb[0].mxu0
      %1651 = vmatprep.mubr.bf16.mxu0 0
      %1652 = vmatmul.mubr.bf16.gmra.mrb[0].mxu0 %v1048
      %v1653 = vpop.f32.mrb[0].mxu0
      %v1654 = vadd.f32 0.0, %v1653
      %v1655 = vpop.f32.mrb[0].mxu0
      %v1656 = vpop.f32.mrb[0].mxu0
      %v1657 = vadd.f32 0.0, %v1656
      %v1658 = vpop.f32.mrb[0].mxu0
      %1659 = vmatprep.mubr.bf16.mxu0 0
      %1660 = vmatmul.mubr.bf16.gmra.mrb[0].mxu0 %v1051
      %v1661 = vpop.f32.mrb[0].mxu0
      %v1662 = vadd.f32 0.0, %v1661
      %v1663 = vpop.f32.mrb[0].mxu0
      %v1664 = vpop.f32.mrb[0].mxu0
      %v1665 = vadd.f32 0.0, %v1664
      %v1666 = vpop.f32.mrb[0].mxu0
      %1667 = vmatprep.mubr.bf16.mxu0 0
      %1668 = vmatmul.mubr.bf16.gmra.mrb[0].mxu0 %v1054
      %v1669 = vpop.f32.mrb[0].mxu0
      %v1670 = vadd.f32 0.0, %v1669
      %v1671 = vpop.f32.mrb[0].mxu0
      %v1672 = vpop.f32.mrb[0].mxu0
      %v1673 = vadd.f32 0.0, %v1672
      %v1674 = vpop.f32.mrb[0].mxu0
      %1675 = vmatprep.mubr.bf16.mxu0 0
      %1676 = vmatmul.mubr.bf16.gmra.mrb[0].mxu0 %v1057
      %v1677 = vpop.f32.mrb[0].mxu0
      %v1678 = vadd.f32 0.0, %v1677
      %v1679 = vpop.f32.mrb[0].mxu0
      %v1680 = vpop.f32.mrb[0].mxu0
      %v1681 = vadd.f32 0.0, %v1680
      %v1682 = vpop.f32.mrb[0].mxu0
      %1683 = vmatprep.mubr.bf16.mxu0 0
      %1684 = vmatmul.mubr.bf16.gmra.mrb[0].mxu0 %v1060
      %v1685 = vpop.f32.mrb[0].mxu0
      %v1686 = vadd.f32 0.0, %v1685
      %v1687 = vpop.f32.mrb[0].mxu0
      %v1688 = vpop.f32.mrb[0].mxu0
      %v1689 = vadd.f32 0.0, %v1688
      %v1690 = vpop.f32.mrb[0].mxu0
      %1691 = vmatprep.mubr.bf16.mxu0 0
      %1692 = vmatmul.mubr.bf16.gmra.mrb[0].mxu0 %v1063
      %v1693 = vpop.f32.mrb[0].mxu0
      %v1694 = vadd.f32 0.0, %v1693
      %v1695 = vpop.f32.mrb[0].mxu0
      %v1696 = vpop.f32.mrb[0].mxu0
      %v1697 = vadd.f32 0.0, %v1696
      %v1698 = vpop.f32.mrb[0].mxu0
      %1699 = vmatprep.mubr.bf16.mxu0 0
      %1700 = vmatmul.mubr.bf16.gmra.mrb[0].mxu0 %v1066
      %v1701 = vpop.f32.mrb[0].mxu0
      %v1702 = vadd.f32 0.0, %v1701
      %v1703 = vpop.f32.mrb[0].mxu0
      %v1704 = vpop.f32.mrb[0].mxu0
      %v1705 = vadd.f32 0.0, %v1704
      %v1706 = vpop.f32.mrb[0].mxu0
      %1707 = vmatprep.mubr.bf16.mxu0 0
      %1708 = vmatmul.mubr.bf16.gmra.mrb[0].mxu0 %v1069
      %v1709 = vpop.f32.mrb[0].mxu0
      %v1710 = vadd.f32 0.0, %v1709
      %v1711 = vpop.f32.mrb[0].mxu0
      %v1712 = vpop.f32.mrb[0].mxu0
      %v1713 = vadd.f32 0.0, %v1712
      %v1714 = vpop.f32.mrb[0].mxu0
      %1715 = vmatprep.mubr.bf16.mxu0 0
      %1716 = vmatmul.mubr.bf16.gmra.mrb[0].mxu0 %v1072
      %v1717 = vpop.f32.mrb[0].mxu0
      %v1718 = vadd.f32 0.0, %v1717
      %v1719 = vpop.f32.mrb[0].mxu0
      %v1720 = vpop.f32.mrb[0].mxu0
      %v1721 = vadd.f32 0.0, %v1720
      %v1722 = vpop.f32.mrb[0].mxu0
      %1723 = vmatprep.mubr.bf16.mxu0 0
      %1724 = vmatmul.mubr.bf16.gmra.mrb[0].mxu0 %v1075
      %v1725 = vpop.f32.mrb[0].mxu0
      %v1726 = vadd.f32 0.0, %v1725
      %v1727 = vpop.f32.mrb[0].mxu0
      %v1728 = vpop.f32.mrb[0].mxu0
      %v1729 = vadd.f32 0.0, %v1728
      %v1730 = vpop.f32.mrb[0].mxu0
      %1731 = vmatprep.mubr.bf16.mxu0 0
      %1732 = vmatmul.mubr.bf16.gmra.mrb[0].mxu0 %v1078
      %v1733 = vpop.f32.mrb[0].mxu0
      %v1734 = vadd.f32 0.0, %v1733
      %v1735 = vpop.f32.mrb[0].mxu0
      %v1736 = vpop.f32.mrb[0].mxu0
      %v1737 = vadd.f32 0.0, %v1736
      %v1738 = vpop.f32.mrb[0].mxu0
      %1739 = vmatprep.mubr.bf16.mxu0 0
      %1740 = vmatmul.mubr.bf16.gmra.mrb[0].mxu0 %v1081
      %v1741 = vpop.f32.mrb[0].mxu0
      %v1742 = vadd.f32 0.0, %v1741
      %v1743 = vpop.f32.mrb[0].mxu0
      %v1744 = vpop.f32.mrb[0].mxu0
      %v1745 = vadd.f32 0.0, %v1744
      %v1746 = vpop.f32.mrb[0].mxu0
      %1747 = vmatprep.mubr.bf16.mxu0 0
      %1748 = vmatmul.mubr.bf16.gmra.mrb[0].mxu0 %v1084
      %v1749 = vpop.f32.mrb[0].mxu0
      %v1750 = vadd.f32 0.0, %v1749
      %v1751 = vpop.f32.mrb[0].mxu0
      %v1752 = vpop.f32.mrb[0].mxu0
      %v1753 = vadd.f32 0.0, %v1752
      %v1754 = vpop.f32.mrb[0].mxu0
      %1755 = vmatprep.mubr.bf16.mxu0 0
      %1756 = vmatmul.mubr.bf16.gmra.mrb[0].mxu0 %v1087
      %v1757 = vpop.f32.mrb[0].mxu0
      %v1758 = vadd.f32 0.0, %v1757
      %v1759 = vpop.f32.mrb[0].mxu0
      %v1760 = vpop.f32.mrb[0].mxu0
      %v1761 = vadd.f32 0.0, %v1760
      %v1762 = vpop.f32.mrb[0].mxu0
      %1763 = vmatprep.mubr.bf16.mxu0 0
      %1764 = vmatmul.mubr.bf16.gmra.mrb[0].mxu0 %v1090
      %v1765 = vpop.f32.mrb[0].mxu0
      %v1766 = vadd.f32 0.0, %v1765
      %v1767 = vpop.f32.mrb[0].mxu0
      %v1768 = vpop.f32.mrb[0].mxu0
      %v1769 = vadd.f32 0.0, %v1768
      %v1770 = vpop.f32.mrb[0].mxu0
      %1771 = vmatprep.mubr.bf16.mxu0 0
      %1772 = vmatmul.mubr.bf16.gmra.mrb[0].mxu0 %v1093
      %v1773 = vpop.f32.mrb[0].mxu0
      %v1774 = vadd.f32 0.0, %v1773
      %v1775 = vpop.f32.mrb[0].mxu0
      %v1776 = vpop.f32.mrb[0].mxu0
      %v1777 = vadd.f32 0.0, %v1776
      %v1778 = vpop.f32.mrb[0].mxu0
      %1779 = vmatprep.mubr.bf16.mxu0 0
      %1780 = vmatmul.mubr.bf16.gmra.mrb[0].mxu0 %v1096
      %v1781 = vpop.f32.mrb[0].mxu0
      %v1782 = vadd.f32 0.0, %v1781
      %v1783 = vpop.f32.mrb[0].mxu0
      %v1784 = vpop.f32.mrb[0].mxu0
      %v1785 = vadd.f32 0.0, %v1784
      %v1786 = vpop.f32.mrb[0].mxu0
      %1787 = vmatprep.mubr.bf16.mxu0 0
      %1788 = vmatmul.mubr.bf16.gmra.mrb[0].mxu0 %v1099
      %v1789 = vpop.f32.mrb[0].mxu0
      %v1790 = vadd.f32 0.0, %v1789
      %v1791 = vpop.f32.mrb[0].mxu0
      %v1792 = vpop.f32.mrb[0].mxu0
      %v1793 = vadd.f32 0.0, %v1792
      %v1794 = vpop.f32.mrb[0].mxu0
      %1795 = vmatprep.mubr.bf16.mxu0 0
      %1796 = vmatmul.mubr.bf16.gmra.mrb[0].mxu0 %v1102
      %v1797 = vpop.f32.mrb[0].mxu0
      %v1798 = vadd.f32 0.0, %v1797
      %v1799 = vpop.f32.mrb[0].mxu0
      %v1800 = vpop.f32.mrb[0].mxu0
      %v1801 = vadd.f32 0.0, %v1800
      %v1802 = vpop.f32.mrb[0].mxu0
      %1803 = vmatprep.mubr.bf16.mxu0 0
      %1804 = vmatmul.mubr.bf16.gmra.mrb[0].mxu0 %v1105
      %v1805 = vpop.f32.mrb[0].mxu0
      %v1806 = vadd.f32 0.0, %v1805
      %v1807 = vpop.f32.mrb[0].mxu0
      %v1808 = vpop.f32.mrb[0].mxu0
      %v1809 = vadd.f32 0.0, %v1808
      %v1810 = vpop.f32.mrb[0].mxu0
      %1811 = vmatprep.mubr.bf16.mxu0 0
      %1812 = vmatmul.mubr.bf16.gmra.mrb[0].mxu0 %v1108
      %v1813 = vpop.f32.mrb[0].mxu0
      %v1814 = vadd.f32 0.0, %v1813
      %v1815 = vpop.f32.mrb[0].mxu0
      %v1816 = vpop.f32.mrb[0].mxu0
      %v1817 = vadd.f32 0.0, %v1816
      %v1818 = vpop.f32.mrb[0].mxu0
      %1819 = vmatprep.mubr.bf16.mxu0 0
      %1820 = vmatmul.mubr.bf16.gmra.mrb[0].mxu0 %v1111
      %v1821 = vpop.f32.mrb[0].mxu0
      %v1822 = vadd.f32 0.0, %v1821
      %v1823 = vpop.f32.mrb[0].mxu0
      %v1824 = vpop.f32.mrb[0].mxu0
      %v1825 = vadd.f32 0.0, %v1824
      %v1826 = vpop.f32.mrb[0].mxu0
      %1827 = vmatprep.mubr.bf16.mxu0 0
      %1828 = vmatmul.mubr.bf16.gmra.mrb[0].mxu0 %v1114
      %v1829 = vpop.f32.mrb[0].mxu0
      %v1830 = vadd.f32 0.0, %v1829
      %v1831 = vpop.f32.mrb[0].mxu0
      %v1832 = vpop.f32.mrb[0].mxu0
      %v1833 = vadd.f32 0.0, %v1832
      %v1834 = vpop.f32.mrb[0].mxu0
      %1835 = vmatprep.mubr.bf16.mxu0 0
      %1836 = vmatmul.mubr.bf16.gmra.mrb[0].mxu0 %v1117
      %v1837 = vpop.f32.mrb[0].mxu0
      %v1838 = vadd.f32 0.0, %v1837
      %v1839 = vpop.f32.mrb[0].mxu0
      %v1840 = vpop.f32.mrb[0].mxu0
      %v1841 = vadd.f32 0.0, %v1840
      %v1842 = vpop.f32.mrb[0].mxu0
      %1843 = vmatprep.mubr.bf16.mxu0 0
      %1844 = vmatmul.mubr.bf16.gmra.mrb[0].mxu0 %v1120
      %v1845 = vpop.f32.mrb[0].mxu0
      %v1846 = vadd.f32 0.0, %v1845
      %v1847 = vpop.f32.mrb[0].mxu0
      %v1848 = vpop.f32.mrb[0].mxu0
      %v1849 = vadd.f32 0.0, %v1848
      %v1850 = vpop.f32.mrb[0].mxu0
      %1851 = vmatprep.mubr.bf16.mxu0 0
      %1852 = vmatmul.mubr.bf16.gmra.mrb[0].mxu0 %v1123
      %v1853 = vpop.f32.mrb[0].mxu0
      %v1854 = vadd.f32 0.0, %v1853
      %v1855 = vpop.f32.mrb[0].mxu0
      %v1856 = vpop.f32.mrb[0].mxu0
      %v1857 = vadd.f32 0.0, %v1856
      %v1858 = vpop.f32.mrb[0].mxu0
      %1859 = vmatprep.mubr.bf16.mxu0 0
      %1860 = vmatmul.mubr.bf16.gmra.mrb[0].mxu0 %v1126
      %v1861 = vpop.f32.mrb[0].mxu0
      %v1862 = vadd.f32 0.0, %v1861
      %v1863 = vpop.f32.mrb[0].mxu0
      %v1864 = vpop.f32.mrb[0].mxu0
      %v1865 = vadd.f32 0.0, %v1864
      %v1866 = vpop.f32.mrb[0].mxu0
      %1867 = vmatprep.mubr.bf16.mxu0 0
      %1868 = vmatmul.mubr.bf16.gmra.mrb[0].mxu0 %v1129
      %v1869 = vpop.f32.mrb[0].mxu0
      %v1870 = vadd.f32 0.0, %v1869
      %v1871 = vpop.f32.mrb[0].mxu0
      %v1872 = vpop.f32.mrb[0].mxu0
      %v1873 = vadd.f32 0.0, %v1872
      %v1874 = vpop.f32.mrb[0].mxu0
      %1875 = vmatprep.mubr.bf16.mxu0 0
      %1876 = vmatmul.mubr.bf16.gmra.mrb[0].mxu0 %v1132
      %v1877 = vpop.f32.mrb[0].mxu0
      %v1878 = vadd.f32 0.0, %v1877
      %v1879 = vpop.f32.mrb[0].mxu0
      %v1880 = vpop.f32.mrb[0].mxu0
      %v1881 = vadd.f32 0.0, %v1880
      %v1882 = vpop.f32.mrb[0].mxu0
      %1883 = vmatprep.mubr.bf16.mxu0 0
      %1884 = vmatmul.mubr.bf16.gmra.mrb[0].mxu0 %v1135
      %v1885 = vpop.f32.mrb[0].mxu0
      %v1886 = vadd.f32 0.0, %v1885
      %v1887 = vpop.f32.mrb[0].mxu0
      %v1888 = vpop.f32.mrb[0].mxu0
      %v1889 = vadd.f32 0.0, %v1888
      %v1890 = vpop.f32.mrb[0].mxu0
      %1891 = vmatprep.mubr.bf16.mxu0 0
      %1892 = vmatmul.mubr.bf16.gmra.mrb[0].mxu0 %v1138
      %v1893 = vpop.f32.mrb[0].mxu0
      %v1894 = vadd.f32 0.0, %v1893
      %v1895 = vpop.f32.mrb[0].mxu0
      %v1896 = vpop.f32.mrb[0].mxu0
      %v1897 = vadd.f32 0.0, %v1896
      %v1898 = vpop.f32.mrb[0].mxu0
      %1899 = vmatprep.mubr.bf16.mxu0 0
      %1900 = vmatmul.mubr.bf16.gmra.mrb[0].mxu0 %v1141
      %v1901 = vpop.f32.mrb[0].mxu0
      %v1902 = vadd.f32 0.0, %v1901
      %v1903 = vpop.f32.mrb[0].mxu0
      %v1904 = vpop.f32.mrb[0].mxu0
      %v1905 = vadd.f32 0.0, %v1904
      %v1906 = vpop.f32.mrb[0].mxu0
      %1907 = vmatprep.mubr.bf16.mxu0 0
      %1908 = vmatmul.mubr.bf16.gmra.mrb[0].mxu0 %v1144
      %v1909 = vpop.f32.mrb[0].mxu0
      %v1910 = vadd.f32 0.0, %v1909
      %v1911 = vpop.f32.mrb[0].mxu0
      %v1912 = vpop.f32.mrb[0].mxu0
      %v1913 = vadd.f32 0.0, %v1912
      %v1914 = vpop.f32.mrb[0].mxu0
      %1915 = vmatprep.mubr.bf16.mxu0 0
      %1916 = vmatmul.mubr.bf16.gmra.mrb[0].mxu0 %v1147
      %v1917 = vpop.f32.mrb[0].mxu0
      %v1918 = vadd.f32 0.0, %v1917
      %v1919 = vpop.f32.mrb[0].mxu0
      %v1920 = vpop.f32.mrb[0].mxu0
      %v1921 = vadd.f32 0.0, %v1920
      %v1922 = vpop.f32.mrb[0].mxu0
      %1923 = vmatprep.mubr.bf16.mxu0 0
      %1924 = vmatmul.mubr.bf16.gmra.mrb[0].mxu0 %v1150
      %v1925 = vpop.f32.mrb[0].mxu0
      %v1926 = vadd.f32 0.0, %v1925
      %v1927 = vpop.f32.mrb[0].mxu0
      %v1928 = vpop.f32.mrb[0].mxu0
      %v1929 = vadd.f32 0.0, %v1928
      %v1930 = vpop.f32.mrb[0].mxu0
      %1931 = vmatprep.mubr.bf16.mxu0 0
      %1932 = vmatmul.mubr.bf16.gmra.mrb[0].mxu0 %v1153
      %v1933 = vpop.f32.mrb[0].mxu0
      %v1934 = vadd.f32 0.0, %v1933
      %v1935 = vpop.f32.mrb[0].mxu0
      %v1936 = vpop.f32.mrb[0].mxu0
      %v1937 = vadd.f32 0.0, %v1936
      %v1938 = vpop.f32.mrb[0].mxu0
      %1939 = vmatprep.mubr.bf16.mxu0 0
      %1940 = vmatmul.mubr.bf16.gmra.mrb[0].mxu0 %v1156
      %v1941 = vpop.f32.mrb[0].mxu0
      %v1942 = vadd.f32 0.0, %v1941
      %v1943 = vpop.f32.mrb[0].mxu0
      %v1944 = vpop.f32.mrb[0].mxu0
      %v1945 = vadd.f32 0.0, %v1944
      %v1946 = vpop.f32.mrb[0].mxu0
      %1947 = vmatprep.mubr.bf16.mxu0 0
      %1948 = vmatmul.mubr.bf16.gmra.mrb[0].mxu0 %v1159
      %v1949 = vpop.f32.mrb[0].mxu0
      %v1950 = vadd.f32 0.0, %v1949
      %v1951 = vpop.f32.mrb[0].mxu0
      %v1952 = vpop.f32.mrb[0].mxu0
      %v1953 = vadd.f32 0.0, %v1952
      %v1954 = vpop.f32.mrb[0].mxu0
      %1955 = vmatprep.mubr.bf16.mxu0 0
      %1956 = vmatmul.mubr.bf16.gmra.mrb[0].mxu0 %v1162
      %v1957 = vpop.f32.mrb[0].mxu0
      %v1958 = vadd.f32 0.0, %v1957
      %v1959 = vpop.f32.mrb[0].mxu0
      %v1960 = vpop.f32.mrb[0].mxu0
      %v1961 = vadd.f32 0.0, %v1960
      %v1962 = vpop.f32.mrb[0].mxu0
      %1963 = vmatprep.mubr.bf16.mxu0 0
      %1964 = vmatmul.mubr.bf16.gmra.mrb[0].mxu0 %v1165
      %v1965 = vpop.f32.mrb[0].mxu0
      %v1966 = vadd.f32 0.0, %v1965
      %v1967 = vpop.f32.mrb[0].mxu0
      %v1968 = vpop.f32.mrb[0].mxu0
      %v1969 = vadd.f32 0.0, %v1968
      %v1970 = vpop.f32.mrb[0].mxu0
      %1971 = vmatprep.mubr.bf16.mxu0 0
      %1972 = vmatmul.mubr.bf16.gmra.mrb[0].mxu0 %v1168
      %v1973 = vpop.f32.mrb[0].mxu0
      %v1974 = vadd.f32 0.0, %v1973
      %v1975 = vpop.f32.mrb[0].mxu0
      %v1976 = vpop.f32.mrb[0].mxu0
      %v1977 = vadd.f32 0.0, %v1976
      %v1978 = vpop.f32.mrb[0].mxu0
      %1979 = vmatprep.mubr.bf16.mxu0 0
      %1980 = vmatmul.mubr.bf16.gmra.mrb[0].mxu0 %v1171
      %v1981 = vpop.f32.mrb[0].mxu0
      %v1982 = vadd.f32 0.0, %v1981
      %v1983 = vpop.f32.mrb[0].mxu0
      %v1984 = vpop.f32.mrb[0].mxu0
      %v1985 = vadd.f32 0.0, %v1984
      %v1986 = vpop.f32.mrb[0].mxu0
      %1987 = vmatprep.mubr.bf16.mxu0 0
      %1988 = vmatmul.mubr.bf16.gmra.mrb[0].mxu0 %v1174
      %v1989 = vpop.f32.mrb[0].mxu0
      %v1990 = vadd.f32 0.0, %v1989
      %v1991 = vpop.f32.mrb[0].mxu0
      %v1992 = vpop.f32.mrb[0].mxu0
      %v1993 = vadd.f32 0.0, %v1992
      %v1994 = vpop.f32.mrb[0].mxu0
      %1995 = vmatprep.mubr.bf16.mxu0 0
      %1996 = vmatmul.mubr.bf16.gmra.mrb[0].mxu0 %v1177
      %v1997 = vpop.f32.mrb[0].mxu0
      %v1998 = vadd.f32 0.0, %v1997
      %v1999 = vpop.f32.mrb[0].mxu0
      %v2000 = vpop.f32.mrb[0].mxu0
      %v2001 = vadd.f32 0.0, %v2000
      %v2002 = vpop.f32.mrb[0].mxu0
      %2003 = vmatprep.mubr.bf16.mxu0 0
      %2004 = vmatmul.mubr.bf16.gmra.mrb[0].mxu0 %v1180
      %v2005 = vpop.f32.mrb[0].mxu0
      %v2006 = vadd.f32 0.0, %v2005
      %v2007 = vpop.f32.mrb[0].mxu0
      %v2008 = vpop.f32.mrb[0].mxu0
      %v2009 = vadd.f32 0.0, %v2008
      %v2010 = vpop.f32.mrb[0].mxu0
      %2011 = vmatprep.mubr.bf16.mxu0 0
      %2012 = vmatmul.mubr.bf16.gmra.mrb[0].mxu0 %v1183
      %v2013 = vpop.f32.mrb[0].mxu0
      %v2014 = vadd.f32 0.0, %v2013
      %v2015 = vpop.f32.mrb[0].mxu0
      %v2016 = vpop.f32.mrb[0].mxu0
      %v2017 = vadd.f32 0.0, %v2016
      %v2018 = vpop.f32.mrb[0].mxu0
      %2019 = vmatprep.mubr.bf16.mxu0 0
      %2020 = vmatmul.mubr.bf16.gmra.mrb[0].mxu0 %v1186
      %v2021 = vpop.f32.mrb[0].mxu0
      %v2022 = vadd.f32 0.0, %v2021
      %v2023 = vpop.f32.mrb[0].mxu0
      %v2024 = vpop.f32.mrb[0].mxu0
      %v2025 = vadd.f32 0.0, %v2024
      %v2026 = vpop.f32.mrb[0].mxu0
      %2027 = vdwg.mxu0
      %s2028 = scalar_lea.vmem %s165, 800
      %v2029 = vld [vmem:[%s2028] sm:$0xf]
      %v2030 = vld [vmem:[%s2028 + $0x4] sm:$0xf]
      %v2031 = vld [vmem:[%s2028 + $0x8] sm:$0xf]
      %v2032 = vld [vmem:[%s2028 + $0xc] sm:$0xf]
      %v2033 = vld [vmem:[%s2028 + $0x10] sm:$0xf]
      %v2034 = vld [vmem:[%s2028 + $0x14] sm:$0xf]
      %v2035 = vld [vmem:[%s2028 + $0x18] sm:$0xf]
      %v2036 = vld [vmem:[%s2028 + $0x1c] sm:$0xf]
      %v2037 = vld [vmem:[%s2028 + $0x20] sm:$0xf]
      %v2038 = vld [vmem:[%s2028 + $0x24] sm:$0xf]
      %v2039 = vld [vmem:[%s2028 + $0x28] sm:$0xf]
      %v2040 = vld [vmem:[%s2028 + $0x2c] sm:$0xf]
      %v2041 = vld [vmem:[%s2028 + $0x30] sm:$0xf]
      %v2042 = vld [vmem:[%s2028 + $0x34] sm:$0xf]
      %v2043 = vld [vmem:[%s2028 + $0x38] sm:$0xf]
      %v2044 = vld [vmem:[%s2028 + $0x3c] sm:$0xf]
      %v2045 = vld [vmem:[%s2028 + $0x40] sm:$0xf]
      %v2046 = vld [vmem:[%s2028 + $0x44] sm:$0xf]
      %v2047 = vld [vmem:[%s2028 + $0x48] sm:$0xf]
      %v2048 = vld [vmem:[%s2028 + $0x4c] sm:$0xf]
      %v2049 = vld [vmem:[%s2028 + $0x50] sm:$0xf]
      %v2050 = vld [vmem:[%s2028 + $0x54] sm:$0xf]
      %v2051 = vld [vmem:[%s2028 + $0x58] sm:$0xf]
      %v2052 = vld [vmem:[%s2028 + $0x5c] sm:$0xf]
      %v2053 = vld [vmem:[%s2028 + $0x60] sm:$0xf]
      %v2054 = vld [vmem:[%s2028 + $0x64] sm:$0xf]
      %v2055 = vld [vmem:[%s2028 + $0x68] sm:$0xf]
      %v2056 = vld [vmem:[%s2028 + $0x6c] sm:$0xf]
      %v2057 = vld [vmem:[%s2028 + $0x70] sm:$0xf]
      %v2058 = vld [vmem:[%s2028 + $0x74] sm:$0xf]
      %v2059 = vld [vmem:[%s2028 + $0x78] sm:$0xf]
      %v2060 = vld [vmem:[%s2028 + $0x7c] sm:$0xf]
      %v2061 = vld [vmem:[%s2028 + $0x80] sm:$0xf]
      %v2062 = vld [vmem:[%s2028 + $0x84] sm:$0xf]
      %v2063 = vld [vmem:[%s2028 + $0x88] sm:$0xf]
      %v2064 = vld [vmem:[%s2028 + $0x8c] sm:$0xf]
      %v2065 = vld [vmem:[%s2028 + $0x90] sm:$0xf]
      %v2066 = vld [vmem:[%s2028 + $0x94] sm:$0xf]
      %v2067 = vld [vmem:[%s2028 + $0x98] sm:$0xf]
      %v2068 = vld [vmem:[%s2028 + $0x9c] sm:$0xf]
      %v2069 = vld [vmem:[%s2028 + $0xa0] sm:$0xf]
      %v2070 = vld [vmem:[%s2028 + $0xa4] sm:$0xf]
      %v2071 = vld [vmem:[%s2028 + $0xa8] sm:$0xf]
      %v2072 = vld [vmem:[%s2028 + $0xac] sm:$0xf]
      %v2073 = vld [vmem:[%s2028 + $0xb0] sm:$0xf]
      %v2074 = vld [vmem:[%s2028 + $0xb4] sm:$0xf]
      %v2075 = vld [vmem:[%s2028 + $0xb8] sm:$0xf]
      %v2076 = vld [vmem:[%s2028 + $0xbc] sm:$0xf]
      %v2077 = vld [vmem:[%s2028 + $0xc0] sm:$0xf]
      %v2078 = vld [vmem:[%s2028 + $0xc4] sm:$0xf]
      %v2079 = vld [vmem:[%s2028 + $0xc8] sm:$0xf]
      %v2080 = vld [vmem:[%s2028 + $0xcc] sm:$0xf]
      %v2081 = vld [vmem:[%s2028 + $0xd0] sm:$0xf]
      %v2082 = vld [vmem:[%s2028 + $0xd4] sm:$0xf]
      %v2083 = vld [vmem:[%s2028 + $0xd8] sm:$0xf]
      %v2084 = vld [vmem:[%s2028 + $0xdc] sm:$0xf]
      %v2085 = vld [vmem:[%s2028 + $0xe0] sm:$0xf]
      %v2086 = vld [vmem:[%s2028 + $0xe4] sm:$0xf]
      %v2087 = vld [vmem:[%s2028 + $0xe8] sm:$0xf]
      %v2088 = vld [vmem:[%s2028 + $0xec] sm:$0xf]
      %v2089 = vld [vmem:[%s2028 + $0xf0] sm:$0xf]
      %v2090 = vld [vmem:[%s2028 + $0xf4] sm:$0xf]
      %v2091 = vld [vmem:[%s2028 + $0xf8] sm:$0xf]
      %v2092 = vld [vmem:[%s2028 + $0xfc] sm:$0xf]
      %v2093 = vld [vmem:[%s2028 + $0x100] sm:$0xf]
      %v2094 = vld [vmem:[%s2028 + $0x104] sm:$0xf]
      %v2095 = vld [vmem:[%s2028 + $0x108] sm:$0xf]
      %v2096 = vld [vmem:[%s2028 + $0x10c] sm:$0xf]
      %v2097 = vld [vmem:[%s2028 + $0x110] sm:$0xf]
      %v2098 = vld [vmem:[%s2028 + $0x114] sm:$0xf]
      %v2099 = vld [vmem:[%s2028 + $0x118] sm:$0xf]
      %v2100 = vld [vmem:[%s2028 + $0x11c] sm:$0xf]
      %v2101 = vld [vmem:[%s2028 + $0x120] sm:$0xf]
      %v2102 = vld [vmem:[%s2028 + $0x124] sm:$0xf]
      %v2103 = vld [vmem:[%s2028 + $0x128] sm:$0xf]
      %v2104 = vld [vmem:[%s2028 + $0x12c] sm:$0xf]
      %v2105 = vld [vmem:[%s2028 + $0x130] sm:$0xf]
      %v2106 = vld [vmem:[%s2028 + $0x134] sm:$0xf]
      %v2107 = vld [vmem:[%s2028 + $0x138] sm:$0xf]
      %v2108 = vld [vmem:[%s2028 + $0x13c] sm:$0xf]
      %v2109 = vld [vmem:[%s2028 + $0x140] sm:$0xf]
      %v2110 = vld [vmem:[%s2028 + $0x144] sm:$0xf]
      %v2111 = vld [vmem:[%s2028 + $0x148] sm:$0xf]
      %v2112 = vld [vmem:[%s2028 + $0x14c] sm:$0xf]
      %v2113 = vld [vmem:[%s2028 + $0x150] sm:$0xf]
      %v2114 = vld [vmem:[%s2028 + $0x154] sm:$0xf]
      %v2115 = vld [vmem:[%s2028 + $0x158] sm:$0xf]
      %v2116 = vld [vmem:[%s2028 + $0x15c] sm:$0xf]
      %v2117 = vld [vmem:[%s2028 + $0x160] sm:$0xf]
      %v2118 = vld [vmem:[%s2028 + $0x164] sm:$0xf]
      %v2119 = vld [vmem:[%s2028 + $0x168] sm:$0xf]
      %v2120 = vld [vmem:[%s2028 + $0x16c] sm:$0xf]
      %v2121 = vld [vmem:[%s2028 + $0x170] sm:$0xf]
      %v2122 = vld [vmem:[%s2028 + $0x174] sm:$0xf]
      %v2123 = vld [vmem:[%s2028 + $0x178] sm:$0xf]
      %v2124 = vld [vmem:[%s2028 + $0x17c] sm:$0xf]
      %v2125 = vld [vmem:[%s2028 + $0x180] sm:$0xf]
      %v2126 = vld [vmem:[%s2028 + $0x184] sm:$0xf]
      %v2127 = vld [vmem:[%s2028 + $0x188] sm:$0xf]
      %v2128 = vld [vmem:[%s2028 + $0x18c] sm:$0xf]
      %v2129 = vld [vmem:[%s2028 + $0x190] sm:$0xf]
      %v2130 = vld [vmem:[%s2028 + $0x194] sm:$0xf]
      %v2131 = vld [vmem:[%s2028 + $0x198] sm:$0xf]
      %v2132 = vld [vmem:[%s2028 + $0x19c] sm:$0xf]
      %v2133 = vld [vmem:[%s2028 + $0x1a0] sm:$0xf]
      %v2134 = vld [vmem:[%s2028 + $0x1a4] sm:$0xf]
      %v2135 = vld [vmem:[%s2028 + $0x1a8] sm:$0xf]
      %v2136 = vld [vmem:[%s2028 + $0x1ac] sm:$0xf]
      %v2137 = vld [vmem:[%s2028 + $0x1b0] sm:$0xf]
      %v2138 = vld [vmem:[%s2028 + $0x1b4] sm:$0xf]
      %v2139 = vld [vmem:[%s2028 + $0x1b8] sm:$0xf]
      %v2140 = vld [vmem:[%s2028 + $0x1bc] sm:$0xf]
      %v2141 = vld [vmem:[%s2028 + $0x1c0] sm:$0xf]
      %v2142 = vld [vmem:[%s2028 + $0x1c4] sm:$0xf]
      %v2143 = vld [vmem:[%s2028 + $0x1c8] sm:$0xf]
      %v2144 = vld [vmem:[%s2028 + $0x1cc] sm:$0xf]
      %v2145 = vld [vmem:[%s2028 + $0x1d0] sm:$0xf]
      %v2146 = vld [vmem:[%s2028 + $0x1d4] sm:$0xf]
      %v2147 = vld [vmem:[%s2028 + $0x1d8] sm:$0xf]
      %v2148 = vld [vmem:[%s2028 + $0x1dc] sm:$0xf]
      %v2149 = vld [vmem:[%s2028 + $0x1e0] sm:$0xf]
      %v2150 = vld [vmem:[%s2028 + $0x1e4] sm:$0xf]
      %v2151 = vld [vmem:[%s2028 + $0x1e8] sm:$0xf]
      %v2152 = vld [vmem:[%s2028 + $0x1ec] sm:$0xf]
      %v2153 = vld [vmem:[%s2028 + $0x1f0] sm:$0xf]
      %v2154 = vld [vmem:[%s2028 + $0x1f4] sm:$0xf]
      %v2155 = vld [vmem:[%s2028 + $0x1f8] sm:$0xf]
      %v2156 = vld [vmem:[%s2028 + $0x1fc] sm:$0xf]
      %v2157 = vld [vmem:[%s2028 + $0x200] sm:$0xf]
      %v2158 = vld [vmem:[%s2028 + $0x204] sm:$0xf]
      %v2159 = vld [vmem:[%s2028 + $0x208] sm:$0xf]
      %v2160 = vld [vmem:[%s2028 + $0x20c] sm:$0xf]
      %v2161 = vld [vmem:[%s2028 + $0x210] sm:$0xf]
      %v2162 = vld [vmem:[%s2028 + $0x214] sm:$0xf]
      %v2163 = vld [vmem:[%s2028 + $0x218] sm:$0xf]
      %v2164 = vld [vmem:[%s2028 + $0x21c] sm:$0xf]
      %v2165 = vld [vmem:[%s2028 + $0x220] sm:$0xf]
      %v2166 = vld [vmem:[%s2028 + $0x224] sm:$0xf]
      %v2167 = vld [vmem:[%s2028 + $0x228] sm:$0xf]
      %v2168 = vld [vmem:[%s2028 + $0x22c] sm:$0xf]
      %v2169 = vld [vmem:[%s2028 + $0x230] sm:$0xf]
      %v2170 = vld [vmem:[%s2028 + $0x234] sm:$0xf]
      %v2171 = vld [vmem:[%s2028 + $0x238] sm:$0xf]
      %v2172 = vld [vmem:[%s2028 + $0x23c] sm:$0xf]
      %v2173 = vld [vmem:[%s2028 + $0x240] sm:$0xf]
      %v2174 = vld [vmem:[%s2028 + $0x244] sm:$0xf]
      %v2175 = vld [vmem:[%s2028 + $0x248] sm:$0xf]
      %v2176 = vld [vmem:[%s2028 + $0x24c] sm:$0xf]
      %v2177 = vld [vmem:[%s2028 + $0x250] sm:$0xf]
      %v2178 = vld [vmem:[%s2028 + $0x254] sm:$0xf]
      %v2179 = vld [vmem:[%s2028 + $0x258] sm:$0xf]
      %v2180 = vld [vmem:[%s2028 + $0x25c] sm:$0xf]
      %v2181 = vld [vmem:[%s2028 + $0x260] sm:$0xf]
      %v2182 = vld [vmem:[%s2028 + $0x264] sm:$0xf]
      %v2183 = vld [vmem:[%s2028 + $0x268] sm:$0xf]
      %v2184 = vld [vmem:[%s2028 + $0x26c] sm:$0xf]
      %v2185 = vld [vmem:[%s2028 + $0x270] sm:$0xf]
      %v2186 = vld [vmem:[%s2028 + $0x274] sm:$0xf]
      %v2187 = vld [vmem:[%s2028 + $0x278] sm:$0xf]
      %v2188 = vld [vmem:[%s2028 + $0x27c] sm:$0xf]
      %v2189 = vld [vmem:[%s2028 + $0x280] sm:$0xf]
      %v2190 = vld [vmem:[%s2028 + $0x284] sm:$0xf]
      %v2191 = vld [vmem:[%s2028 + $0x288] sm:$0xf]
      %v2192 = vld [vmem:[%s2028 + $0x28c] sm:$0xf]
      %v2193 = vld [vmem:[%s2028 + $0x290] sm:$0xf]
      %v2194 = vld [vmem:[%s2028 + $0x294] sm:$0xf]
      %v2195 = vld [vmem:[%s2028 + $0x298] sm:$0xf]
      %v2196 = vld [vmem:[%s2028 + $0x29c] sm:$0xf]
      %v2197 = vld [vmem:[%s2028 + $0x2a0] sm:$0xf]
      %v2198 = vld [vmem:[%s2028 + $0x2a4] sm:$0xf]
      %v2199 = vld [vmem:[%s2028 + $0x2a8] sm:$0xf]
      %v2200 = vld [vmem:[%s2028 + $0x2ac] sm:$0xf]
      %v2201 = vld [vmem:[%s2028 + $0x2b0] sm:$0xf]
      %v2202 = vld [vmem:[%s2028 + $0x2b4] sm:$0xf]
      %v2203 = vld [vmem:[%s2028 + $0x2b8] sm:$0xf]
      %v2204 = vld [vmem:[%s2028 + $0x2bc] sm:$0xf]
      %v2205 = vld [vmem:[%s2028 + $0x2c0] sm:$0xf]
      %v2206 = vld [vmem:[%s2028 + $0x2c4] sm:$0xf]
      %v2207 = vld [vmem:[%s2028 + $0x2c8] sm:$0xf]
      %v2208 = vld [vmem:[%s2028 + $0x2cc] sm:$0xf]
      %v2209 = vld [vmem:[%s2028 + $0x2d0] sm:$0xf]
      %v2210 = vld [vmem:[%s2028 + $0x2d4] sm:$0xf]
      %v2211 = vld [vmem:[%s2028 + $0x2d8] sm:$0xf]
      %v2212 = vld [vmem:[%s2028 + $0x2dc] sm:$0xf]
      %v2213 = vld [vmem:[%s2028 + $0x2e0] sm:$0xf]
      %v2214 = vld [vmem:[%s2028 + $0x2e4] sm:$0xf]
      %v2215 = vld [vmem:[%s2028 + $0x2e8] sm:$0xf]
      %v2216 = vld [vmem:[%s2028 + $0x2ec] sm:$0xf]
      %v2217 = vld [vmem:[%s2028 + $0x2f0] sm:$0xf]
      %v2218 = vld [vmem:[%s2028 + $0x2f4] sm:$0xf]
      %v2219 = vld [vmem:[%s2028 + $0x2f8] sm:$0xf]
      %v2220 = vld [vmem:[%s2028 + $0x2fc] sm:$0xf]
      %v2221 = vld [vmem:[%s2028 + $0x300] sm:$0xf]
      %v2222 = vld [vmem:[%s2028 + $0x304] sm:$0xf]
      %v2223 = vld [vmem:[%s2028 + $0x308] sm:$0xf]
      %v2224 = vld [vmem:[%s2028 + $0x30c] sm:$0xf]
      %v2225 = vld [vmem:[%s2028 + $0x310] sm:$0xf]
      %v2226 = vld [vmem:[%s2028 + $0x314] sm:$0xf]
      %v2227 = vld [vmem:[%s2028 + $0x318] sm:$0xf]
      %v2228 = vld [vmem:[%s2028 + $0x31c] sm:$0xf]
      %v2429 = vunpack.c.l.b16 %v2029
      %v2430 = vunpack.c.l.b16 %v2030
      %v2431 = vunpack.c.l.b16 %v2031
      %v2432 = vunpack.c.l.b16 %v2032
      %v2433 = vunpack.c.l.b16 %v2033
      %v2434 = vunpack.c.l.b16 %v2034
      %v2435 = vunpack.c.l.b16 %v2035
      %v2436 = vunpack.c.l.b16 %v2036
      %v2437 = vunpack.c.l.b16 %v2037
      %v2438 = vunpack.c.l.b16 %v2038
      %v2439 = vunpack.c.l.b16 %v2039
      %v2440 = vunpack.c.l.b16 %v2040
      %v2441 = vunpack.c.l.b16 %v2041
      %v2442 = vunpack.c.l.b16 %v2042
      %v2443 = vunpack.c.l.b16 %v2043
      %v2444 = vunpack.c.l.b16 %v2044
      %v2445 = vunpack.c.l.b16 %v2045
      %v2446 = vunpack.c.l.b16 %v2046
      %v2447 = vunpack.c.l.b16 %v2047
      %v2448 = vunpack.c.l.b16 %v2048
      %v2449 = vunpack.c.l.b16 %v2049
      %v2450 = vunpack.c.l.b16 %v2050
      %v2451 = vunpack.c.l.b16 %v2051
      %v2452 = vunpack.c.l.b16 %v2052
      %v2453 = vunpack.c.l.b16 %v2053
      %v2454 = vunpack.c.l.b16 %v2054
      %v2455 = vunpack.c.l.b16 %v2055
      %v2456 = vunpack.c.l.b16 %v2056
      %v2457 = vunpack.c.l.b16 %v2057
      %v2458 = vunpack.c.l.b16 %v2058
      %v2459 = vunpack.c.l.b16 %v2059
      %v2460 = vunpack.c.l.b16 %v2060
      %v2461 = vunpack.c.l.b16 %v2061
      %v2462 = vunpack.c.l.b16 %v2062
      %v2463 = vunpack.c.l.b16 %v2063
      %v2464 = vunpack.c.l.b16 %v2064
      %v2465 = vunpack.c.l.b16 %v2065
      %v2466 = vunpack.c.l.b16 %v2066
      %v2467 = vunpack.c.l.b16 %v2067
      %v2468 = vunpack.c.l.b16 %v2068
      %v2469 = vunpack.c.l.b16 %v2069
      %v2470 = vunpack.c.l.b16 %v2070
      %v2471 = vunpack.c.l.b16 %v2071
      %v2472 = vunpack.c.l.b16 %v2072
      %v2473 = vunpack.c.l.b16 %v2073
      %v2474 = vunpack.c.l.b16 %v2074
      %v2475 = vunpack.c.l.b16 %v2075
      %v2476 = vunpack.c.l.b16 %v2076
      %v2477 = vunpack.c.l.b16 %v2077
      %v2478 = vunpack.c.l.b16 %v2078
      %v2479 = vunpack.c.l.b16 %v2079
      %v2480 = vunpack.c.l.b16 %v2080
      %v2481 = vunpack.c.l.b16 %v2081
      %v2482 = vunpack.c.l.b16 %v2082
      %v2483 = vunpack.c.l.b16 %v2083
      %v2484 = vunpack.c.l.b16 %v2084
      %v2485 = vunpack.c.l.b16 %v2085
      %v2486 = vunpack.c.l.b16 %v2086
      %v2487 = vunpack.c.l.b16 %v2087
      %v2488 = vunpack.c.l.b16 %v2088
      %v2489 = vunpack.c.l.b16 %v2089
      %v2490 = vunpack.c.l.b16 %v2090
      %v2491 = vunpack.c.l.b16 %v2091
      %v2492 = vunpack.c.l.b16 %v2092
      %v2493 = vunpack.c.l.b16 %v2093
      %v2494 = vunpack.c.l.b16 %v2094
      %v2495 = vunpack.c.l.b16 %v2095
      %v2496 = vunpack.c.l.b16 %v2096
      %v2497 = vunpack.c.l.b16 %v2097
      %v2498 = vunpack.c.l.b16 %v2098
      %v2499 = vunpack.c.l.b16 %v2099
      %v2500 = vunpack.c.l.b16 %v2100
      %v2501 = vunpack.c.l.b16 %v2101
      %v2502 = vunpack.c.l.b16 %v2102
      %v2503 = vunpack.c.l.b16 %v2103
      %v2504 = vunpack.c.l.b16 %v2104
      %v2505 = vunpack.c.l.b16 %v2105
      %v2506 = vunpack.c.l.b16 %v2106
      %v2507 = vunpack.c.l.b16 %v2107
      %v2508 = vunpack.c.l.b16 %v2108
      %v2509 = vunpack.c.l.b16 %v2109
      %v2510 = vunpack.c.l.b16 %v2110
      %v2511 = vunpack.c.l.b16 %v2111
      %v2512 = vunpack.c.l.b16 %v2112
      %v2513 = vunpack.c.l.b16 %v2113
      %v2514 = vunpack.c.l.b16 %v2114
      %v2515 = vunpack.c.l.b16 %v2115
      %v2516 = vunpack.c.l.b16 %v2116
      %v2517 = vunpack.c.l.b16 %v2117
      %v2518 = vunpack.c.l.b16 %v2118
      %v2519 = vunpack.c.l.b16 %v2119
      %v2520 = vunpack.c.l.b16 %v2120
      %v2521 = vunpack.c.l.b16 %v2121
      %v2522 = vunpack.c.l.b16 %v2122
      %v2523 = vunpack.c.l.b16 %v2123
      %v2524 = vunpack.c.l.b16 %v2124
      %v2525 = vunpack.c.l.b16 %v2125
      %v2526 = vunpack.c.l.b16 %v2126
      %v2527 = vunpack.c.l.b16 %v2127
      %v2528 = vunpack.c.l.b16 %v2128
      %v2529 = vunpack.c.l.b16 %v2129
      %v2530 = vunpack.c.l.b16 %v2130
      %v2531 = vunpack.c.l.b16 %v2131
      %v2532 = vunpack.c.l.b16 %v2132
      %v2533 = vunpack.c.l.b16 %v2133
      %v2534 = vunpack.c.l.b16 %v2134
      %v2535 = vunpack.c.l.b16 %v2135
      %v2536 = vunpack.c.l.b16 %v2136
      %v2537 = vunpack.c.l.b16 %v2137
      %v2538 = vunpack.c.l.b16 %v2138
      %v2539 = vunpack.c.l.b16 %v2139
      %v2540 = vunpack.c.l.b16 %v2140
      %v2541 = vunpack.c.l.b16 %v2141
      %v2542 = vunpack.c.l.b16 %v2142
      %v2543 = vunpack.c.l.b16 %v2143
      %v2544 = vunpack.c.l.b16 %v2144
      %v2545 = vunpack.c.l.b16 %v2145
      %v2546 = vunpack.c.l.b16 %v2146
      %v2547 = vunpack.c.l.b16 %v2147
      %v2548 = vunpack.c.l.b16 %v2148
      %v2549 = vunpack.c.l.b16 %v2149
      %v2550 = vunpack.c.l.b16 %v2150
      %v2551 = vunpack.c.l.b16 %v2151
      %v2552 = vunpack.c.l.b16 %v2152
      %v2553 = vunpack.c.l.b16 %v2153
      %v2554 = vunpack.c.l.b16 %v2154
      %v2555 = vunpack.c.l.b16 %v2155
      %v2556 = vunpack.c.l.b16 %v2156
      %v2557 = vunpack.c.l.b16 %v2157
      %v2558 = vunpack.c.l.b16 %v2158
      %v2559 = vunpack.c.l.b16 %v2159
      %v2560 = vunpack.c.l.b16 %v2160
      %v2561 = vunpack.c.l.b16 %v2161
      %v2562 = vunpack.c.l.b16 %v2162
      %v2563 = vunpack.c.l.b16 %v2163
      %v2564 = vunpack.c.l.b16 %v2164
      %v2565 = vunpack.c.l.b16 %v2165
      %v2566 = vunpack.c.l.b16 %v2166
      %v2567 = vunpack.c.l.b16 %v2167
      %v2568 = vunpack.c.l.b16 %v2168
      %v2569 = vunpack.c.l.b16 %v2169
      %v2570 = vunpack.c.l.b16 %v2170
      %v2571 = vunpack.c.l.b16 %v2171
      %v2572 = vunpack.c.l.b16 %v2172
      %v2573 = vunpack.c.l.b16 %v2173
      %v2574 = vunpack.c.l.b16 %v2174
      %v2575 = vunpack.c.l.b16 %v2175
      %v2576 = vunpack.c.l.b16 %v2176
      %v2577 = vunpack.c.l.b16 %v2177
      %v2578 = vunpack.c.l.b16 %v2178
      %v2579 = vunpack.c.l.b16 %v2179
      %v2580 = vunpack.c.l.b16 %v2180
      %v2581 = vunpack.c.l.b16 %v2181
      %v2582 = vunpack.c.l.b16 %v2182
      %v2583 = vunpack.c.l.b16 %v2183
      %v2584 = vunpack.c.l.b16 %v2184
      %v2585 = vunpack.c.l.b16 %v2185
      %v2586 = vunpack.c.l.b16 %v2186
      %v2587 = vunpack.c.l.b16 %v2187
      %v2588 = vunpack.c.l.b16 %v2188
      %v2589 = vunpack.c.l.b16 %v2189
      %v2590 = vunpack.c.l.b16 %v2190
      %v2591 = vunpack.c.l.b16 %v2191
      %v2592 = vunpack.c.l.b16 %v2192
      %v2593 = vunpack.c.l.b16 %v2193
      %v2594 = vunpack.c.l.b16 %v2194
      %v2595 = vunpack.c.l.b16 %v2195
      %v2596 = vunpack.c.l.b16 %v2196
      %v2597 = vunpack.c.l.b16 %v2197
      %v2598 = vunpack.c.l.b16 %v2198
      %v2599 = vunpack.c.l.b16 %v2199
      %v2600 = vunpack.c.l.b16 %v2200
      %v2601 = vunpack.c.l.b16 %v2201
      %v2602 = vunpack.c.l.b16 %v2202
      %v2603 = vunpack.c.l.b16 %v2203
      %v2604 = vunpack.c.l.b16 %v2204
      %v2605 = vunpack.c.l.b16 %v2205
      %v2606 = vunpack.c.l.b16 %v2206
      %v2607 = vunpack.c.l.b16 %v2207
      %v2608 = vunpack.c.l.b16 %v2208
      %v2609 = vunpack.c.l.b16 %v2209
      %v2610 = vunpack.c.l.b16 %v2210
      %v2611 = vunpack.c.l.b16 %v2211
      %v2612 = vunpack.c.l.b16 %v2212
      %v2613 = vunpack.c.l.b16 %v2213
      %v2614 = vunpack.c.l.b16 %v2214
      %v2615 = vunpack.c.l.b16 %v2215
      %v2616 = vunpack.c.l.b16 %v2216
      %v2617 = vunpack.c.l.b16 %v2217
      %v2618 = vunpack.c.l.b16 %v2218
      %v2619 = vunpack.c.l.b16 %v2219
      %v2620 = vunpack.c.l.b16 %v2220
      %v2621 = vunpack.c.l.b16 %v2221
      %v2622 = vunpack.c.l.b16 %v2222
      %v2623 = vunpack.c.l.b16 %v2223
      %v2624 = vunpack.c.l.b16 %v2224
      %v2625 = vunpack.c.l.b16 %v2225
      %v2626 = vunpack.c.l.b16 %v2226
      %v2627 = vunpack.c.l.b16 %v2227
      %v2628 = vunpack.c.l.b16 %v2228
      %v2629 = vpack.c.b16 %v2430, %v2429
      %v2630 = vpack.c.b16 %v2432, %v2431
      %v2631 = vpack.c.b16 %v2434, %v2433
      %v2632 = vpack.c.b16 %v2436, %v2435
      %v2633 = vpack.c.b16 %v2438, %v2437
      %v2634 = vpack.c.b16 %v2440, %v2439
      %v2635 = vpack.c.b16 %v2442, %v2441
      %v2636 = vpack.c.b16 %v2444, %v2443
      %v2637 = vpack.c.b16 %v2446, %v2445
      %v2638 = vpack.c.b16 %v2448, %v2447
      %v2639 = vpack.c.b16 %v2450, %v2449
      %v2640 = vpack.c.b16 %v2452, %v2451
      %v2641 = vpack.c.b16 %v2454, %v2453
      %v2642 = vpack.c.b16 %v2456, %v2455
      %v2643 = vpack.c.b16 %v2458, %v2457
      %v2644 = vpack.c.b16 %v2460, %v2459
      %v2645 = vpack.c.b16 %v2462, %v2461
      %v2646 = vpack.c.b16 %v2464, %v2463
      %v2647 = vpack.c.b16 %v2466, %v2465
      %v2648 = vpack.c.b16 %v2468, %v2467
      %v2649 = vpack.c.b16 %v2470, %v2469
      %v2650 = vpack.c.b16 %v2472, %v2471
      %v2651 = vpack.c.b16 %v2474, %v2473
      %v2652 = vpack.c.b16 %v2476, %v2475
      %v2653 = vpack.c.b16 %v2478, %v2477
      %v2654 = vpack.c.b16 %v2480, %v2479
      %v2655 = vpack.c.b16 %v2482, %v2481
      %v2656 = vpack.c.b16 %v2484, %v2483
      %v2657 = vpack.c.b16 %v2486, %v2485
      %v2658 = vpack.c.b16 %v2488, %v2487
      %v2659 = vpack.c.b16 %v2490, %v2489
      %v2660 = vpack.c.b16 %v2492, %v2491
      %v2661 = vpack.c.b16 %v2494, %v2493
      %v2662 = vpack.c.b16 %v2496, %v2495
      %v2663 = vpack.c.b16 %v2498, %v2497
      %v2664 = vpack.c.b16 %v2500, %v2499
      %v2665 = vpack.c.b16 %v2502, %v2501
      %v2666 = vpack.c.b16 %v2504, %v2503
      %v2667 = vpack.c.b16 %v2506, %v2505
      %v2668 = vpack.c.b16 %v2508, %v2507
      %v2669 = vpack.c.b16 %v2510, %v2509
      %v2670 = vpack.c.b16 %v2512, %v2511
      %v2671 = vpack.c.b16 %v2514, %v2513
      %v2672 = vpack.c.b16 %v2516, %v2515
      %v2673 = vpack.c.b16 %v2518, %v2517
      %v2674 = vpack.c.b16 %v2520, %v2519
      %v2675 = vpack.c.b16 %v2522, %v2521
      %v2676 = vpack.c.b16 %v2524, %v2523
      %v2677 = vpack.c.b16 %v2526, %v2525
      %v2678 = vpack.c.b16 %v2528, %v2527
      %v2679 = vpack.c.b16 %v2530, %v2529
      %v2680 = vpack.c.b16 %v2532, %v2531
      %v2681 = vpack.c.b16 %v2534, %v2533
      %v2682 = vpack.c.b16 %v2536, %v2535
      %v2683 = vpack.c.b16 %v2538, %v2537
      %v2684 = vpack.c.b16 %v2540, %v2539
      %v2685 = vpack.c.b16 %v2542, %v2541
      %v2686 = vpack.c.b16 %v2544, %v2543
      %v2687 = vpack.c.b16 %v2546, %v2545
      %v2688 = vpack.c.b16 %v2548, %v2547
      %v2689 = vpack.c.b16 %v2550, %v2549
      %v2690 = vpack.c.b16 %v2552, %v2551
      %v2691 = vpack.c.b16 %v2554, %v2553
      %v2692 = vpack.c.b16 %v2556, %v2555
      %v2693 = vpack.c.b16 %v2558, %v2557
      %v2694 = vpack.c.b16 %v2560, %v2559
      %v2695 = vpack.c.b16 %v2562, %v2561
      %v2696 = vpack.c.b16 %v2564, %v2563
      %v2697 = vpack.c.b16 %v2566, %v2565
      %v2698 = vpack.c.b16 %v2568, %v2567
      %v2699 = vpack.c.b16 %v2570, %v2569
      %v2700 = vpack.c.b16 %v2572, %v2571
      %v2701 = vpack.c.b16 %v2574, %v2573
      %v2702 = vpack.c.b16 %v2576, %v2575
      %v2703 = vpack.c.b16 %v2578, %v2577
      %v2704 = vpack.c.b16 %v2580, %v2579
      %v2705 = vpack.c.b16 %v2582, %v2581
      %v2706 = vpack.c.b16 %v2584, %v2583
      %v2707 = vpack.c.b16 %v2586, %v2585
      %v2708 = vpack.c.b16 %v2588, %v2587
      %v2709 = vpack.c.b16 %v2590, %v2589
      %v2710 = vpack.c.b16 %v2592, %v2591
      %v2711 = vpack.c.b16 %v2594, %v2593
      %v2712 = vpack.c.b16 %v2596, %v2595
      %v2713 = vpack.c.b16 %v2598, %v2597
      %v2714 = vpack.c.b16 %v2600, %v2599
      %v2715 = vpack.c.b16 %v2602, %v2601
      %v2716 = vpack.c.b16 %v2604, %v2603
      %v2717 = vpack.c.b16 %v2606, %v2605
      %v2718 = vpack.c.b16 %v2608, %v2607
      %v2719 = vpack.c.b16 %v2610, %v2609
      %v2720 = vpack.c.b16 %v2612, %v2611
      %v2721 = vpack.c.b16 %v2614, %v2613
      %v2722 = vpack.c.b16 %v2616, %v2615
      %v2723 = vpack.c.b16 %v2618, %v2617
      %v2724 = vpack.c.b16 %v2620, %v2619
      %v2725 = vpack.c.b16 %v2622, %v2621
      %v2726 = vpack.c.b16 %v2624, %v2623
      %v2727 = vpack.c.b16 %v2626, %v2625
      %v2728 = vpack.c.b16 %v2628, %v2627
      %v2730 = vsel %vm887, %v2629, 0
      %v2733 = vsel %vm887, %v2630, 0
      %v2736 = vsel %vm887, %v2631, 0
      %v2739 = vsel %vm887, %v2632, 0
      %v2742 = vsel %vm887, %v2633, 0
      %v2745 = vsel %vm887, %v2634, 0
      %v2748 = vsel %vm887, %v2635, 0
      %v2751 = vsel %vm887, %v2636, 0
      %v2754 = vsel %vm887, %v2637, 0
      %v2757 = vsel %vm887, %v2638, 0
      %v2760 = vsel %vm887, %v2639, 0
      %v2763 = vsel %vm887, %v2640, 0
      %v2766 = vsel %vm887, %v2641, 0
      %v2769 = vsel %vm887, %v2642, 0
      %v2772 = vsel %vm887, %v2643, 0
      %v2775 = vsel %vm887, %v2644, 0
      %v2778 = vsel %vm887, %v2645, 0
      %v2781 = vsel %vm887, %v2646, 0
      %v2784 = vsel %vm887, %v2647, 0
      %v2787 = vsel %vm887, %v2648, 0
      %v2790 = vsel %vm887, %v2649, 0
      %v2793 = vsel %vm887, %v2650, 0
      %v2796 = vsel %vm887, %v2651, 0
      %v2799 = vsel %vm887, %v2652, 0
      %v2802 = vsel %vm887, %v2653, 0
      %v2805 = vsel %vm887, %v2654, 0
      %v2808 = vsel %vm887, %v2655, 0
      %v2811 = vsel %vm887, %v2656, 0
      %v2814 = vsel %vm887, %v2657, 0
      %v2817 = vsel %vm887, %v2658, 0
      %v2820 = vsel %vm887, %v2659, 0
      %v2823 = vsel %vm887, %v2660, 0
      %v2826 = vsel %vm887, %v2661, 0
      %v2829 = vsel %vm887, %v2662, 0
      %v2832 = vsel %vm887, %v2663, 0
      %v2835 = vsel %vm887, %v2664, 0
      %v2838 = vsel %vm887, %v2665, 0
      %v2841 = vsel %vm887, %v2666, 0
      %v2844 = vsel %vm887, %v2667, 0
      %v2847 = vsel %vm887, %v2668, 0
      %v2850 = vsel %vm887, %v2669, 0
      %v2853 = vsel %vm887, %v2670, 0
      %v2856 = vsel %vm887, %v2671, 0
      %v2859 = vsel %vm887, %v2672, 0
      %v2862 = vsel %vm887, %v2673, 0
      %v2865 = vsel %vm887, %v2674, 0
      %v2868 = vsel %vm887, %v2675, 0
      %v2871 = vsel %vm887, %v2676, 0
      %v2874 = vsel %vm887, %v2677, 0
      %v2877 = vsel %vm887, %v2678, 0
      %v2880 = vsel %vm887, %v2679, 0
      %v2883 = vsel %vm887, %v2680, 0
      %v2886 = vsel %vm887, %v2681, 0
      %v2889 = vsel %vm887, %v2682, 0
      %v2892 = vsel %vm887, %v2683, 0
      %v2895 = vsel %vm887, %v2684, 0
      %v2898 = vsel %vm887, %v2685, 0
      %v2901 = vsel %vm887, %v2686, 0
      %v2904 = vsel %vm887, %v2687, 0
      %v2907 = vsel %vm887, %v2688, 0
      %v2910 = vsel %vm887, %v2689, 0
      %v2913 = vsel %vm887, %v2690, 0
      %v2916 = vsel %vm887, %v2691, 0
      %v2919 = vsel %vm887, %v2692, 0
      %v2922 = vsel %vm887, %v2693, 0
      %v2925 = vsel %vm887, %v2694, 0
      %v2928 = vsel %vm887, %v2695, 0
      %v2931 = vsel %vm887, %v2696, 0
      %v2934 = vsel %vm887, %v2697, 0
      %v2937 = vsel %vm887, %v2698, 0
      %v2940 = vsel %vm887, %v2699, 0
      %v2943 = vsel %vm887, %v2700, 0
      %v2946 = vsel %vm887, %v2701, 0
      %v2949 = vsel %vm887, %v2702, 0
      %v2952 = vsel %vm887, %v2703, 0
      %v2955 = vsel %vm887, %v2704, 0
      %v2958 = vsel %vm887, %v2705, 0
      %v2961 = vsel %vm887, %v2706, 0
      %v2964 = vsel %vm887, %v2707, 0
      %v2967 = vsel %vm887, %v2708, 0
      %v2970 = vsel %vm887, %v2709, 0
      %v2973 = vsel %vm887, %v2710, 0
      %v2976 = vsel %vm887, %v2711, 0
      %v2979 = vsel %vm887, %v2712, 0
      %v2982 = vsel %vm887, %v2713, 0
      %v2985 = vsel %vm887, %v2714, 0
      %v2988 = vsel %vm887, %v2715, 0
      %v2991 = vsel %vm887, %v2716, 0
      %v2994 = vsel %vm887, %v2717, 0
      %v2997 = vsel %vm887, %v2718, 0
      %v3000 = vsel %vm887, %v2719, 0
      %v3003 = vsel %vm887, %v2720, 0
      %v3006 = vsel %vm887, %v2721, 0
      %v3009 = vsel %vm887, %v2722, 0
      %v3012 = vsel %vm887, %v2723, 0
      %v3015 = vsel %vm887, %v2724, 0
      %v3018 = vsel %vm887, %v2725, 0
      %v3021 = vsel %vm887, %v2726, 0
      %v3024 = vsel %vm887, %v2727, 0
      %v3027 = vsel %vm887, %v2728, 0
      %3029 = vmatprep.subr.bf16.mxu0 0
      %3030 = vmatpush1.bf16.msra.mxu0 %v884
      %3031 = vmatprep.subr.bf16.mxu0 0
      %3032 = vmatpush1.bf16.msra.mxu0 %v1193
      %3033 = vmatprep.subr.bf16.mxu0 0
      %3034 = vmatpush1.bf16.msra.mxu0 0
      %3035 = vmatprep.subr.bf16.mxu0 0
      %3036 = vmatpush1.bf16.msra.mxu0 0
      %3037 = vmatprep.subr.bf16.mxu0 0
      %3038 = vmatpush1.bf16.msra.mxu0 0
      %3039 = vmatprep.subr.bf16.mxu0 0
      %3040 = vmatpush1.bf16.msra.mxu0 0
      %3041 = vmatprep.subr.bf16.mxu0 0
      %3042 = vmatpush1.bf16.msra.mxu0 0
      %3043 = vmatprep.subr.bf16.mxu0 0
      %3044 = vmatpush1.bf16.msra.mxu0 0
      %3045 = vmatprep.subr.bf16.mxu0 0
      %3046 = vmatpush1.bf16.msra.mxu0 0
      %3047 = vmatprep.subr.bf16.mxu0 0
      %3048 = vmatpush1.bf16.msra.mxu0 0
      %3049 = vmatprep.subr.bf16.mxu0 0
      %3050 = vmatpush1.bf16.msra.mxu0 0
      %3051 = vmatprep.subr.bf16.mxu0 0
      %3052 = vmatpush1.bf16.msra.mxu0 0
      %3053 = vmatprep.subr.bf16.mxu0 0
      %3054 = vmatpush1.bf16.msra.mxu0 0
      %3055 = vmatprep.subr.bf16.mxu0 0
      %3056 = vmatpush1.bf16.msra.mxu0 0
      %3057 = vmatprep.subr.bf16.mxu0 0
      %3058 = vmatpush1.bf16.msra.mxu0 0
      %3059 = vmatprep.subr.bf16.mxu0 0
      %3060 = vmatpush1.bf16.msra.mxu0 0
      %3061 = vmatprep.mubr.bf16.mxu0 0
      %3062 = vmatmul.mubr.bf16.gmra.mrb[0].mxu0 %v2730
      %v3063 = vpop.f32.mrb[0].mxu0
      %v3064 = vadd.f32 0.0, %v3063
      %v3065 = vpop.f32.mrb[0].mxu0
      %v3066 = vpop.f32.mrb[0].mxu0
      %v3067 = vadd.f32 0.0, %v3066
      %v3068 = vpop.f32.mrb[0].mxu0
      %3069 = vmatprep.mubr.bf16.mxu0 0
      %3070 = vmatmul.mubr.bf16.gmra.mrb[0].mxu0 %v2733
      %v3071 = vpop.f32.mrb[0].mxu0
      %v3072 = vadd.f32 0.0, %v3071
      %v3073 = vpop.f32.mrb[0].mxu0
      %v3074 = vpop.f32.mrb[0].mxu0
      %v3075 = vadd.f32 0.0, %v3074
      %v3076 = vpop.f32.mrb[0].mxu0
      %3077 = vmatprep.mubr.bf16.mxu0 0
      %3078 = vmatmul.mubr.bf16.gmra.mrb[0].mxu0 %v2736
      %v3079 = vpop.f32.mrb[0].mxu0
      %v3080 = vadd.f32 0.0, %v3079
      %v3081 = vpop.f32.mrb[0].mxu0
      %v3082 = vpop.f32.mrb[0].mxu0
      %v3083 = vadd.f32 0.0, %v3082
      %v3084 = vpop.f32.mrb[0].mxu0
      %3085 = vmatprep.mubr.bf16.mxu0 0
      %3086 = vmatmul.mubr.bf16.gmra.mrb[0].mxu0 %v2739
      %v3087 = vpop.f32.mrb[0].mxu0
      %v3088 = vadd.f32 0.0, %v3087
      %v3089 = vpop.f32.mrb[0].mxu0
      %v3090 = vpop.f32.mrb[0].mxu0
      %v3091 = vadd.f32 0.0, %v3090
      %v3092 = vpop.f32.mrb[0].mxu0
      %3093 = vmatprep.mubr.bf16.mxu0 0
      %3094 = vmatmul.mubr.bf16.gmra.mrb[0].mxu0 %v2742
      %v3095 = vpop.f32.mrb[0].mxu0
      %v3096 = vadd.f32 0.0, %v3095
      %v3097 = vpop.f32.mrb[0].mxu0
      %v3098 = vpop.f32.mrb[0].mxu0
      %v3099 = vadd.f32 0.0, %v3098
      %v3100 = vpop.f32.mrb[0].mxu0
      %3101 = vmatprep.mubr.bf16.mxu0 0
      %3102 = vmatmul.mubr.bf16.gmra.mrb[0].mxu0 %v2745
      %v3103 = vpop.f32.mrb[0].mxu0
      %v3104 = vadd.f32 0.0, %v3103
      %v3105 = vpop.f32.mrb[0].mxu0
      %v3106 = vpop.f32.mrb[0].mxu0
      %v3107 = vadd.f32 0.0, %v3106
      %v3108 = vpop.f32.mrb[0].mxu0
      %3109 = vmatprep.mubr.bf16.mxu0 0
      %3110 = vmatmul.mubr.bf16.gmra.mrb[0].mxu0 %v2748
      %v3111 = vpop.f32.mrb[0].mxu0
      %v3112 = vadd.f32 0.0, %v3111
      %v3113 = vpop.f32.mrb[0].mxu0
      %v3114 = vpop.f32.mrb[0].mxu0
      %v3115 = vadd.f32 0.0, %v3114
      %v3116 = vpop.f32.mrb[0].mxu0
      %3117 = vmatprep.mubr.bf16.mxu0 0
      %3118 = vmatmul.mubr.bf16.gmra.mrb[0].mxu0 %v2751
      %v3119 = vpop.f32.mrb[0].mxu0
      %v3120 = vadd.f32 0.0, %v3119
      %v3121 = vpop.f32.mrb[0].mxu0
      %v3122 = vpop.f32.mrb[0].mxu0
      %v3123 = vadd.f32 0.0, %v3122
      %v3124 = vpop.f32.mrb[0].mxu0
      %3125 = vmatprep.mubr.bf16.mxu0 0
      %3126 = vmatmul.mubr.bf16.gmra.mrb[0].mxu0 %v2754
      %v3127 = vpop.f32.mrb[0].mxu0
      %v3128 = vadd.f32 0.0, %v3127
      %v3129 = vpop.f32.mrb[0].mxu0
      %v3130 = vpop.f32.mrb[0].mxu0
      %v3131 = vadd.f32 0.0, %v3130
      %v3132 = vpop.f32.mrb[0].mxu0
      %3133 = vmatprep.mubr.bf16.mxu0 0
      %3134 = vmatmul.mubr.bf16.gmra.mrb[0].mxu0 %v2757
      %v3135 = vpop.f32.mrb[0].mxu0
      %v3136 = vadd.f32 0.0, %v3135
      %v3137 = vpop.f32.mrb[0].mxu0
      %v3138 = vpop.f32.mrb[0].mxu0
      %v3139 = vadd.f32 0.0, %v3138
      %v3140 = vpop.f32.mrb[0].mxu0
      %3141 = vmatprep.mubr.bf16.mxu0 0
      %3142 = vmatmul.mubr.bf16.gmra.mrb[0].mxu0 %v2760
      %v3143 = vpop.f32.mrb[0].mxu0
      %v3144 = vadd.f32 0.0, %v3143
      %v3145 = vpop.f32.mrb[0].mxu0
      %v3146 = vpop.f32.mrb[0].mxu0
      %v3147 = vadd.f32 0.0, %v3146
      %v3148 = vpop.f32.mrb[0].mxu0
      %3149 = vmatprep.mubr.bf16.mxu0 0
      %3150 = vmatmul.mubr.bf16.gmra.mrb[0].mxu0 %v2763
      %v3151 = vpop.f32.mrb[0].mxu0
      %v3152 = vadd.f32 0.0, %v3151
      %v3153 = vpop.f32.mrb[0].mxu0
      %v3154 = vpop.f32.mrb[0].mxu0
      %v3155 = vadd.f32 0.0, %v3154
      %v3156 = vpop.f32.mrb[0].mxu0
      %3157 = vmatprep.mubr.bf16.mxu0 0
      %3158 = vmatmul.mubr.bf16.gmra.mrb[0].mxu0 %v2766
      %v3159 = vpop.f32.mrb[0].mxu0
      %v3160 = vadd.f32 0.0, %v3159
      %v3161 = vpop.f32.mrb[0].mxu0
      %v3162 = vpop.f32.mrb[0].mxu0
      %v3163 = vadd.f32 0.0, %v3162
      %v3164 = vpop.f32.mrb[0].mxu0
      %3165 = vmatprep.mubr.bf16.mxu0 0
      %3166 = vmatmul.mubr.bf16.gmra.mrb[0].mxu0 %v2769
      %v3167 = vpop.f32.mrb[0].mxu0
      %v3168 = vadd.f32 0.0, %v3167
      %v3169 = vpop.f32.mrb[0].mxu0
      %v3170 = vpop.f32.mrb[0].mxu0
      %v3171 = vadd.f32 0.0, %v3170
      %v3172 = vpop.f32.mrb[0].mxu0
      %3173 = vmatprep.mubr.bf16.mxu0 0
      %3174 = vmatmul.mubr.bf16.gmra.mrb[0].mxu0 %v2772
      %v3175 = vpop.f32.mrb[0].mxu0
      %v3176 = vadd.f32 0.0, %v3175
      %v3177 = vpop.f32.mrb[0].mxu0
      %v3178 = vpop.f32.mrb[0].mxu0
      %v3179 = vadd.f32 0.0, %v3178
      %v3180 = vpop.f32.mrb[0].mxu0
      %3181 = vmatprep.mubr.bf16.mxu0 0
      %3182 = vmatmul.mubr.bf16.gmra.mrb[0].mxu0 %v2775
      %v3183 = vpop.f32.mrb[0].mxu0
      %v3184 = vadd.f32 0.0, %v3183
      %v3185 = vpop.f32.mrb[0].mxu0
      %v3186 = vpop.f32.mrb[0].mxu0
      %v3187 = vadd.f32 0.0, %v3186
      %v3188 = vpop.f32.mrb[0].mxu0
      %3189 = vmatprep.mubr.bf16.mxu0 0
      %3190 = vmatmul.mubr.bf16.gmra.mrb[0].mxu0 %v2778
      %v3191 = vpop.f32.mrb[0].mxu0
      %v3192 = vadd.f32 0.0, %v3191
      %v3193 = vpop.f32.mrb[0].mxu0
      %v3194 = vpop.f32.mrb[0].mxu0
      %v3195 = vadd.f32 0.0, %v3194
      %v3196 = vpop.f32.mrb[0].mxu0
      %3197 = vmatprep.mubr.bf16.mxu0 0
      %3198 = vmatmul.mubr.bf16.gmra.mrb[0].mxu0 %v2781
      %v3199 = vpop.f32.mrb[0].mxu0
      %v3200 = vadd.f32 0.0, %v3199
      %v3201 = vpop.f32.mrb[0].mxu0
      %v3202 = vpop.f32.mrb[0].mxu0
      %v3203 = vadd.f32 0.0, %v3202
      %v3204 = vpop.f32.mrb[0].mxu0
      %3205 = vmatprep.mubr.bf16.mxu0 0
      %3206 = vmatmul.mubr.bf16.gmra.mrb[0].mxu0 %v2784
      %v3207 = vpop.f32.mrb[0].mxu0
      %v3208 = vadd.f32 0.0, %v3207
      %v3209 = vpop.f32.mrb[0].mxu0
      %v3210 = vpop.f32.mrb[0].mxu0
      %v3211 = vadd.f32 0.0, %v3210
      %v3212 = vpop.f32.mrb[0].mxu0
      %3213 = vmatprep.mubr.bf16.mxu0 0
      %3214 = vmatmul.mubr.bf16.gmra.mrb[0].mxu0 %v2787
      %v3215 = vpop.f32.mrb[0].mxu0
      %v3216 = vadd.f32 0.0, %v3215
      %v3217 = vpop.f32.mrb[0].mxu0
      %v3218 = vpop.f32.mrb[0].mxu0
      %v3219 = vadd.f32 0.0, %v3218
      %v3220 = vpop.f32.mrb[0].mxu0
      %3221 = vmatprep.mubr.bf16.mxu0 0
      %3222 = vmatmul.mubr.bf16.gmra.mrb[0].mxu0 %v2790
      %v3223 = vpop.f32.mrb[0].mxu0
      %v3224 = vadd.f32 0.0, %v3223
      %v3225 = vpop.f32.mrb[0].mxu0
      %v3226 = vpop.f32.mrb[0].mxu0
      %v3227 = vadd.f32 0.0, %v3226
      %v3228 = vpop.f32.mrb[0].mxu0
      %3229 = vmatprep.mubr.bf16.mxu0 0
      %3230 = vmatmul.mubr.bf16.gmra.mrb[0].mxu0 %v2793
      %v3231 = vpop.f32.mrb[0].mxu0
      %v3232 = vadd.f32 0.0, %v3231
      %v3233 = vpop.f32.mrb[0].mxu0
      %v3234 = vpop.f32.mrb[0].mxu0
      %v3235 = vadd.f32 0.0, %v3234
      %v3236 = vpop.f32.mrb[0].mxu0
      %3237 = vmatprep.mubr.bf16.mxu0 0
      %3238 = vmatmul.mubr.bf16.gmra.mrb[0].mxu0 %v2796
      %v3239 = vpop.f32.mrb[0].mxu0
      %v3240 = vadd.f32 0.0, %v3239
      %v3241 = vpop.f32.mrb[0].mxu0
      %v3242 = vpop.f32.mrb[0].mxu0
      %v3243 = vadd.f32 0.0, %v3242
      %v3244 = vpop.f32.mrb[0].mxu0
      %3245 = vmatprep.mubr.bf16.mxu0 0
      %3246 = vmatmul.mubr.bf16.gmra.mrb[0].mxu0 %v2799
      %v3247 = vpop.f32.mrb[0].mxu0
      %v3248 = vadd.f32 0.0, %v3247
      %v3249 = vpop.f32.mrb[0].mxu0
      %v3250 = vpop.f32.mrb[0].mxu0
      %v3251 = vadd.f32 0.0, %v3250
      %v3252 = vpop.f32.mrb[0].mxu0
      %3253 = vmatprep.mubr.bf16.mxu0 0
      %3254 = vmatmul.mubr.bf16.gmra.mrb[0].mxu0 %v2802
      %v3255 = vpop.f32.mrb[0].mxu0
      %v3256 = vadd.f32 0.0, %v3255
      %v3257 = vpop.f32.mrb[0].mxu0
      %v3258 = vpop.f32.mrb[0].mxu0
      %v3259 = vadd.f32 0.0, %v3258
      %v3260 = vpop.f32.mrb[0].mxu0
      %3261 = vmatprep.mubr.bf16.mxu0 0
      %3262 = vmatmul.mubr.bf16.gmra.mrb[0].mxu0 %v2805
      %v3263 = vpop.f32.mrb[0].mxu0
      %v3264 = vadd.f32 0.0, %v3263
      %v3265 = vpop.f32.mrb[0].mxu0
      %v3266 = vpop.f32.mrb[0].mxu0
      %v3267 = vadd.f32 0.0, %v3266
      %v3268 = vpop.f32.mrb[0].mxu0
      %3269 = vmatprep.mubr.bf16.mxu0 0
      %3270 = vmatmul.mubr.bf16.gmra.mrb[0].mxu0 %v2808
      %v3271 = vpop.f32.mrb[0].mxu0
      %v3272 = vadd.f32 0.0, %v3271
      %v3273 = vpop.f32.mrb[0].mxu0
      %v3274 = vpop.f32.mrb[0].mxu0
      %v3275 = vadd.f32 0.0, %v3274
      %v3276 = vpop.f32.mrb[0].mxu0
      %3277 = vmatprep.mubr.bf16.mxu0 0
      %3278 = vmatmul.mubr.bf16.gmra.mrb[0].mxu0 %v2811
      %v3279 = vpop.f32.mrb[0].mxu0
      %v3280 = vadd.f32 0.0, %v3279
      %v3281 = vpop.f32.mrb[0].mxu0
      %v3282 = vpop.f32.mrb[0].mxu0
      %v3283 = vadd.f32 0.0, %v3282
      %v3284 = vpop.f32.mrb[0].mxu0
      %3285 = vmatprep.mubr.bf16.mxu0 0
      %3286 = vmatmul.mubr.bf16.gmra.mrb[0].mxu0 %v2814
      %v3287 = vpop.f32.mrb[0].mxu0
      %v3288 = vadd.f32 0.0, %v3287
      %v3289 = vpop.f32.mrb[0].mxu0
      %v3290 = vpop.f32.mrb[0].mxu0
      %v3291 = vadd.f32 0.0, %v3290
      %v3292 = vpop.f32.mrb[0].mxu0
      %3293 = vmatprep.mubr.bf16.mxu0 0
      %3294 = vmatmul.mubr.bf16.gmra.mrb[0].mxu0 %v2817
      %v3295 = vpop.f32.mrb[0].mxu0
      %v3296 = vadd.f32 0.0, %v3295
      %v3297 = vpop.f32.mrb[0].mxu0
      %v3298 = vpop.f32.mrb[0].mxu0
      %v3299 = vadd.f32 0.0, %v3298
      %v3300 = vpop.f32.mrb[0].mxu0
      %3301 = vmatprep.mubr.bf16.mxu0 0
      %3302 = vmatmul.mubr.bf16.gmra.mrb[0].mxu0 %v2820
      %v3303 = vpop.f32.mrb[0].mxu0
      %v3304 = vadd.f32 0.0, %v3303
      %v3305 = vpop.f32.mrb[0].mxu0
      %v3306 = vpop.f32.mrb[0].mxu0
      %v3307 = vadd.f32 0.0, %v3306
      %v3308 = vpop.f32.mrb[0].mxu0
      %3309 = vmatprep.mubr.bf16.mxu0 0
      %3310 = vmatmul.mubr.bf16.gmra.mrb[0].mxu0 %v2823
      %v3311 = vpop.f32.mrb[0].mxu0
      %v3312 = vadd.f32 0.0, %v3311
      %v3313 = vpop.f32.mrb[0].mxu0
      %v3314 = vpop.f32.mrb[0].mxu0
      %v3315 = vadd.f32 0.0, %v3314
      %v3316 = vpop.f32.mrb[0].mxu0
      %3317 = vmatprep.mubr.bf16.mxu0 0
      %3318 = vmatmul.mubr.bf16.gmra.mrb[0].mxu0 %v2826
      %v3319 = vpop.f32.mrb[0].mxu0
      %v3320 = vadd.f32 0.0, %v3319
      %v3321 = vpop.f32.mrb[0].mxu0
      %v3322 = vpop.f32.mrb[0].mxu0
      %v3323 = vadd.f32 0.0, %v3322
      %v3324 = vpop.f32.mrb[0].mxu0
      %3325 = vmatprep.mubr.bf16.mxu0 0
      %3326 = vmatmul.mubr.bf16.gmra.mrb[0].mxu0 %v2829
      %v3327 = vpop.f32.mrb[0].mxu0
      %v3328 = vadd.f32 0.0, %v3327
      %v3329 = vpop.f32.mrb[0].mxu0
      %v3330 = vpop.f32.mrb[0].mxu0
      %v3331 = vadd.f32 0.0, %v3330
      %v3332 = vpop.f32.mrb[0].mxu0
      %3333 = vmatprep.mubr.bf16.mxu0 0
      %3334 = vmatmul.mubr.bf16.gmra.mrb[0].mxu0 %v2832
      %v3335 = vpop.f32.mrb[0].mxu0
      %v3336 = vadd.f32 0.0, %v3335
      %v3337 = vpop.f32.mrb[0].mxu0
      %v3338 = vpop.f32.mrb[0].mxu0
      %v3339 = vadd.f32 0.0, %v3338
      %v3340 = vpop.f32.mrb[0].mxu0
      %3341 = vmatprep.mubr.bf16.mxu0 0
      %3342 = vmatmul.mubr.bf16.gmra.mrb[0].mxu0 %v2835
      %v3343 = vpop.f32.mrb[0].mxu0
      %v3344 = vadd.f32 0.0, %v3343
      %v3345 = vpop.f32.mrb[0].mxu0
      %v3346 = vpop.f32.mrb[0].mxu0
      %v3347 = vadd.f32 0.0, %v3346
      %v3348 = vpop.f32.mrb[0].mxu0
      %3349 = vmatprep.mubr.bf16.mxu0 0
      %3350 = vmatmul.mubr.bf16.gmra.mrb[0].mxu0 %v2838
      %v3351 = vpop.f32.mrb[0].mxu0
      %v3352 = vadd.f32 0.0, %v3351
      %v3353 = vpop.f32.mrb[0].mxu0
      %v3354 = vpop.f32.mrb[0].mxu0
      %v3355 = vadd.f32 0.0, %v3354
      %v3356 = vpop.f32.mrb[0].mxu0
      %3357 = vmatprep.mubr.bf16.mxu0 0
      %3358 = vmatmul.mubr.bf16.gmra.mrb[0].mxu0 %v2841
      %v3359 = vpop.f32.mrb[0].mxu0
      %v3360 = vadd.f32 0.0, %v3359
      %v3361 = vpop.f32.mrb[0].mxu0
      %v3362 = vpop.f32.mrb[0].mxu0
      %v3363 = vadd.f32 0.0, %v3362
      %v3364 = vpop.f32.mrb[0].mxu0
      %3365 = vmatprep.mubr.bf16.mxu0 0
      %3366 = vmatmul.mubr.bf16.gmra.mrb[0].mxu0 %v2844
      %v3367 = vpop.f32.mrb[0].mxu0
      %v3368 = vadd.f32 0.0, %v3367
      %v3369 = vpop.f32.mrb[0].mxu0
      %v3370 = vpop.f32.mrb[0].mxu0
      %v3371 = vadd.f32 0.0, %v3370
      %v3372 = vpop.f32.mrb[0].mxu0
      %3373 = vmatprep.mubr.bf16.mxu0 0
      %3374 = vmatmul.mubr.bf16.gmra.mrb[0].mxu0 %v2847
      %v3375 = vpop.f32.mrb[0].mxu0
      %v3376 = vadd.f32 0.0, %v3375
      %v3377 = vpop.f32.mrb[0].mxu0
      %v3378 = vpop.f32.mrb[0].mxu0
      %v3379 = vadd.f32 0.0, %v3378
      %v3380 = vpop.f32.mrb[0].mxu0
      %3381 = vmatprep.mubr.bf16.mxu0 0
      %3382 = vmatmul.mubr.bf16.gmra.mrb[0].mxu0 %v2850
      %v3383 = vpop.f32.mrb[0].mxu0
      %v3384 = vadd.f32 0.0, %v3383
      %v3385 = vpop.f32.mrb[0].mxu0
      %v3386 = vpop.f32.mrb[0].mxu0
      %v3387 = vadd.f32 0.0, %v3386
      %v3388 = vpop.f32.mrb[0].mxu0
      %3389 = vmatprep.mubr.bf16.mxu0 0
      %3390 = vmatmul.mubr.bf16.gmra.mrb[0].mxu0 %v2853
      %v3391 = vpop.f32.mrb[0].mxu0
      %v3392 = vadd.f32 0.0, %v3391
      %v3393 = vpop.f32.mrb[0].mxu0
      %v3394 = vpop.f32.mrb[0].mxu0
      %v3395 = vadd.f32 0.0, %v3394
      %v3396 = vpop.f32.mrb[0].mxu0
      %3397 = vmatprep.mubr.bf16.mxu0 0
      %3398 = vmatmul.mubr.bf16.gmra.mrb[0].mxu0 %v2856
      %v3399 = vpop.f32.mrb[0].mxu0
      %v3400 = vadd.f32 0.0, %v3399
      %v3401 = vpop.f32.mrb[0].mxu0
      %v3402 = vpop.f32.mrb[0].mxu0
      %v3403 = vadd.f32 0.0, %v3402
      %v3404 = vpop.f32.mrb[0].mxu0
      %3405 = vmatprep.mubr.bf16.mxu0 0
      %3406 = vmatmul.mubr.bf16.gmra.mrb[0].mxu0 %v2859
      %v3407 = vpop.f32.mrb[0].mxu0
      %v3408 = vadd.f32 0.0, %v3407
      %v3409 = vpop.f32.mrb[0].mxu0
      %v3410 = vpop.f32.mrb[0].mxu0
      %v3411 = vadd.f32 0.0, %v3410
      %v3412 = vpop.f32.mrb[0].mxu0
      %3413 = vmatprep.mubr.bf16.mxu0 0
      %3414 = vmatmul.mubr.bf16.gmra.mrb[0].mxu0 %v2862
      %v3415 = vpop.f32.mrb[0].mxu0
      %v3416 = vadd.f32 0.0, %v3415
      %v3417 = vpop.f32.mrb[0].mxu0
      %v3418 = vpop.f32.mrb[0].mxu0
      %v3419 = vadd.f32 0.0, %v3418
      %v3420 = vpop.f32.mrb[0].mxu0
      %3421 = vmatprep.mubr.bf16.mxu0 0
      %3422 = vmatmul.mubr.bf16.gmra.mrb[0].mxu0 %v2865
      %v3423 = vpop.f32.mrb[0].mxu0
      %v3424 = vadd.f32 0.0, %v3423
      %v3425 = vpop.f32.mrb[0].mxu0
      %v3426 = vpop.f32.mrb[0].mxu0
      %v3427 = vadd.f32 0.0, %v3426
      %v3428 = vpop.f32.mrb[0].mxu0
      %3429 = vmatprep.mubr.bf16.mxu0 0
      %3430 = vmatmul.mubr.bf16.gmra.mrb[0].mxu0 %v2868
      %v3431 = vpop.f32.mrb[0].mxu0
      %v3432 = vadd.f32 0.0, %v3431
      %v3433 = vpop.f32.mrb[0].mxu0
      %v3434 = vpop.f32.mrb[0].mxu0
      %v3435 = vadd.f32 0.0, %v3434
      %v3436 = vpop.f32.mrb[0].mxu0
      %3437 = vmatprep.mubr.bf16.mxu0 0
      %3438 = vmatmul.mubr.bf16.gmra.mrb[0].mxu0 %v2871
      %v3439 = vpop.f32.mrb[0].mxu0
      %v3440 = vadd.f32 0.0, %v3439
      %v3441 = vpop.f32.mrb[0].mxu0
      %v3442 = vpop.f32.mrb[0].mxu0
      %v3443 = vadd.f32 0.0, %v3442
      %v3444 = vpop.f32.mrb[0].mxu0
      %3445 = vmatprep.mubr.bf16.mxu0 0
      %3446 = vmatmul.mubr.bf16.gmra.mrb[0].mxu0 %v2874
      %v3447 = vpop.f32.mrb[0].mxu0
      %v3448 = vadd.f32 0.0, %v3447
      %v3449 = vpop.f32.mrb[0].mxu0
      %v3450 = vpop.f32.mrb[0].mxu0
      %v3451 = vadd.f32 0.0, %v3450
      %v3452 = vpop.f32.mrb[0].mxu0
      %3453 = vmatprep.mubr.bf16.mxu0 0
      %3454 = vmatmul.mubr.bf16.gmra.mrb[0].mxu0 %v2877
      %v3455 = vpop.f32.mrb[0].mxu0
      %v3456 = vadd.f32 0.0, %v3455
      %v3457 = vpop.f32.mrb[0].mxu0
      %v3458 = vpop.f32.mrb[0].mxu0
      %v3459 = vadd.f32 0.0, %v3458
      %v3460 = vpop.f32.mrb[0].mxu0
      %3461 = vmatprep.mubr.bf16.mxu0 0
      %3462 = vmatmul.mubr.bf16.gmra.mrb[0].mxu0 %v2880
      %v3463 = vpop.f32.mrb[0].mxu0
      %v3464 = vadd.f32 0.0, %v3463
      %v3465 = vpop.f32.mrb[0].mxu0
      %v3466 = vpop.f32.mrb[0].mxu0
      %v3467 = vadd.f32 0.0, %v3466
      %v3468 = vpop.f32.mrb[0].mxu0
      %3469 = vmatprep.mubr.bf16.mxu0 0
      %3470 = vmatmul.mubr.bf16.gmra.mrb[0].mxu0 %v2883
      %v3471 = vpop.f32.mrb[0].mxu0
      %v3472 = vadd.f32 0.0, %v3471
      %v3473 = vpop.f32.mrb[0].mxu0
      %v3474 = vpop.f32.mrb[0].mxu0
      %v3475 = vadd.f32 0.0, %v3474
      %v3476 = vpop.f32.mrb[0].mxu0
      %3477 = vmatprep.mubr.bf16.mxu0 0
      %3478 = vmatmul.mubr.bf16.gmra.mrb[0].mxu0 %v2886
      %v3479 = vpop.f32.mrb[0].mxu0
      %v3480 = vadd.f32 0.0, %v3479
      %v3481 = vpop.f32.mrb[0].mxu0
      %v3482 = vpop.f32.mrb[0].mxu0
      %v3483 = vadd.f32 0.0, %v3482
      %v3484 = vpop.f32.mrb[0].mxu0
      %3485 = vmatprep.mubr.bf16.mxu0 0
      %3486 = vmatmul.mubr.bf16.gmra.mrb[0].mxu0 %v2889
      %v3487 = vpop.f32.mrb[0].mxu0
      %v3488 = vadd.f32 0.0, %v3487
      %v3489 = vpop.f32.mrb[0].mxu0
      %v3490 = vpop.f32.mrb[0].mxu0
      %v3491 = vadd.f32 0.0, %v3490
      %v3492 = vpop.f32.mrb[0].mxu0
      %3493 = vmatprep.mubr.bf16.mxu0 0
      %3494 = vmatmul.mubr.bf16.gmra.mrb[0].mxu0 %v2892
      %v3495 = vpop.f32.mrb[0].mxu0
      %v3496 = vadd.f32 0.0, %v3495
      %v3497 = vpop.f32.mrb[0].mxu0
      %v3498 = vpop.f32.mrb[0].mxu0
      %v3499 = vadd.f32 0.0, %v3498
      %v3500 = vpop.f32.mrb[0].mxu0
      %3501 = vmatprep.mubr.bf16.mxu0 0
      %3502 = vmatmul.mubr.bf16.gmra.mrb[0].mxu0 %v2895
      %v3503 = vpop.f32.mrb[0].mxu0
      %v3504 = vadd.f32 0.0, %v3503
      %v3505 = vpop.f32.mrb[0].mxu0
      %v3506 = vpop.f32.mrb[0].mxu0
      %v3507 = vadd.f32 0.0, %v3506
      %v3508 = vpop.f32.mrb[0].mxu0
      %3509 = vmatprep.mubr.bf16.mxu0 0
      %3510 = vmatmul.mubr.bf16.gmra.mrb[0].mxu0 %v2898
      %v3511 = vpop.f32.mrb[0].mxu0
      %v3512 = vadd.f32 0.0, %v3511
      %v3513 = vpop.f32.mrb[0].mxu0
      %v3514 = vpop.f32.mrb[0].mxu0
      %v3515 = vadd.f32 0.0, %v3514
      %v3516 = vpop.f32.mrb[0].mxu0
      %3517 = vmatprep.mubr.bf16.mxu0 0
      %3518 = vmatmul.mubr.bf16.gmra.mrb[0].mxu0 %v2901
      %v3519 = vpop.f32.mrb[0].mxu0
      %v3520 = vadd.f32 0.0, %v3519
      %v3521 = vpop.f32.mrb[0].mxu0
      %v3522 = vpop.f32.mrb[0].mxu0
      %v3523 = vadd.f32 0.0, %v3522
      %v3524 = vpop.f32.mrb[0].mxu0
      %3525 = vmatprep.mubr.bf16.mxu0 0
      %3526 = vmatmul.mubr.bf16.gmra.mrb[0].mxu0 %v2904
      %v3527 = vpop.f32.mrb[0].mxu0
      %v3528 = vadd.f32 0.0, %v3527
      %v3529 = vpop.f32.mrb[0].mxu0
      %v3530 = vpop.f32.mrb[0].mxu0
      %v3531 = vadd.f32 0.0, %v3530
      %v3532 = vpop.f32.mrb[0].mxu0
      %3533 = vmatprep.mubr.bf16.mxu0 0
      %3534 = vmatmul.mubr.bf16.gmra.mrb[0].mxu0 %v2907
      %v3535 = vpop.f32.mrb[0].mxu0
      %v3536 = vadd.f32 0.0, %v3535
      %v3537 = vpop.f32.mrb[0].mxu0
      %v3538 = vpop.f32.mrb[0].mxu0
      %v3539 = vadd.f32 0.0, %v3538
      %v3540 = vpop.f32.mrb[0].mxu0
      %3541 = vmatprep.mubr.bf16.mxu0 0
      %3542 = vmatmul.mubr.bf16.gmra.mrb[0].mxu0 %v2910
      %v3543 = vpop.f32.mrb[0].mxu0
      %v3544 = vadd.f32 0.0, %v3543
      %v3545 = vpop.f32.mrb[0].mxu0
      %v3546 = vpop.f32.mrb[0].mxu0
      %v3547 = vadd.f32 0.0, %v3546
      %v3548 = vpop.f32.mrb[0].mxu0
      %3549 = vmatprep.mubr.bf16.mxu0 0
      %3550 = vmatmul.mubr.bf16.gmra.mrb[0].mxu0 %v2913
      %v3551 = vpop.f32.mrb[0].mxu0
      %v3552 = vadd.f32 0.0, %v3551
      %v3553 = vpop.f32.mrb[0].mxu0
      %v3554 = vpop.f32.mrb[0].mxu0
      %v3555 = vadd.f32 0.0, %v3554
      %v3556 = vpop.f32.mrb[0].mxu0
      %3557 = vmatprep.mubr.bf16.mxu0 0
      %3558 = vmatmul.mubr.bf16.gmra.mrb[0].mxu0 %v2916
      %v3559 = vpop.f32.mrb[0].mxu0
      %v3560 = vadd.f32 0.0, %v3559
      %v3561 = vpop.f32.mrb[0].mxu0
      %v3562 = vpop.f32.mrb[0].mxu0
      %v3563 = vadd.f32 0.0, %v3562
      %v3564 = vpop.f32.mrb[0].mxu0
      %3565 = vmatprep.mubr.bf16.mxu0 0
      %3566 = vmatmul.mubr.bf16.gmra.mrb[0].mxu0 %v2919
      %v3567 = vpop.f32.mrb[0].mxu0
      %v3568 = vadd.f32 0.0, %v3567
      %v3569 = vpop.f32.mrb[0].mxu0
      %v3570 = vpop.f32.mrb[0].mxu0
      %v3571 = vadd.f32 0.0, %v3570
      %v3572 = vpop.f32.mrb[0].mxu0
      %3573 = vmatprep.mubr.bf16.mxu0 0
      %3574 = vmatmul.mubr.bf16.gmra.mrb[0].mxu0 %v2922
      %v3575 = vpop.f32.mrb[0].mxu0
      %v3576 = vadd.f32 0.0, %v3575
      %v3577 = vpop.f32.mrb[0].mxu0
      %v3578 = vpop.f32.mrb[0].mxu0
      %v3579 = vadd.f32 0.0, %v3578
      %v3580 = vpop.f32.mrb[0].mxu0
      %3581 = vmatprep.mubr.bf16.mxu0 0
      %3582 = vmatmul.mubr.bf16.gmra.mrb[0].mxu0 %v2925
      %v3583 = vpop.f32.mrb[0].mxu0
      %v3584 = vadd.f32 0.0, %v3583
      %v3585 = vpop.f32.mrb[0].mxu0
      %v3586 = vpop.f32.mrb[0].mxu0
      %v3587 = vadd.f32 0.0, %v3586
      %v3588 = vpop.f32.mrb[0].mxu0
      %3589 = vmatprep.mubr.bf16.mxu0 0
      %3590 = vmatmul.mubr.bf16.gmra.mrb[0].mxu0 %v2928
      %v3591 = vpop.f32.mrb[0].mxu0
      %v3592 = vadd.f32 0.0, %v3591
      %v3593 = vpop.f32.mrb[0].mxu0
      %v3594 = vpop.f32.mrb[0].mxu0
      %v3595 = vadd.f32 0.0, %v3594
      %v3596 = vpop.f32.mrb[0].mxu0
      %3597 = vmatprep.mubr.bf16.mxu0 0
      %3598 = vmatmul.mubr.bf16.gmra.mrb[0].mxu0 %v2931
      %v3599 = vpop.f32.mrb[0].mxu0
      %v3600 = vadd.f32 0.0, %v3599
      %v3601 = vpop.f32.mrb[0].mxu0
      %v3602 = vpop.f32.mrb[0].mxu0
      %v3603 = vadd.f32 0.0, %v3602
      %v3604 = vpop.f32.mrb[0].mxu0
      %3605 = vmatprep.mubr.bf16.mxu0 0
      %3606 = vmatmul.mubr.bf16.gmra.mrb[0].mxu0 %v2934
      %v3607 = vpop.f32.mrb[0].mxu0
      %v3608 = vadd.f32 0.0, %v3607
      %v3609 = vpop.f32.mrb[0].mxu0
      %v3610 = vpop.f32.mrb[0].mxu0
      %v3611 = vadd.f32 0.0, %v3610
      %v3612 = vpop.f32.mrb[0].mxu0
      %3613 = vmatprep.mubr.bf16.mxu0 0
      %3614 = vmatmul.mubr.bf16.gmra.mrb[0].mxu0 %v2937
      %v3615 = vpop.f32.mrb[0].mxu0
      %v3616 = vadd.f32 0.0, %v3615
      %v3617 = vpop.f32.mrb[0].mxu0
      %v3618 = vpop.f32.mrb[0].mxu0
      %v3619 = vadd.f32 0.0, %v3618
      %v3620 = vpop.f32.mrb[0].mxu0
      %3621 = vmatprep.mubr.bf16.mxu0 0
      %3622 = vmatmul.mubr.bf16.gmra.mrb[0].mxu0 %v2940
      %v3623 = vpop.f32.mrb[0].mxu0
      %v3624 = vadd.f32 0.0, %v3623
      %v3625 = vpop.f32.mrb[0].mxu0
      %v3626 = vpop.f32.mrb[0].mxu0
      %v3627 = vadd.f32 0.0, %v3626
      %v3628 = vpop.f32.mrb[0].mxu0
      %3629 = vmatprep.mubr.bf16.mxu0 0
      %3630 = vmatmul.mubr.bf16.gmra.mrb[0].mxu0 %v2943
      %v3631 = vpop.f32.mrb[0].mxu0
      %v3632 = vadd.f32 0.0, %v3631
      %v3633 = vpop.f32.mrb[0].mxu0
      %v3634 = vpop.f32.mrb[0].mxu0
      %v3635 = vadd.f32 0.0, %v3634
      %v3636 = vpop.f32.mrb[0].mxu0
      %3637 = vmatprep.mubr.bf16.mxu0 0
      %3638 = vmatmul.mubr.bf16.gmra.mrb[0].mxu0 %v2946
      %v3639 = vpop.f32.mrb[0].mxu0
      %v3640 = vadd.f32 0.0, %v3639
      %v3641 = vpop.f32.mrb[0].mxu0
      %v3642 = vpop.f32.mrb[0].mxu0
      %v3643 = vadd.f32 0.0, %v3642
      %v3644 = vpop.f32.mrb[0].mxu0
      %3645 = vmatprep.mubr.bf16.mxu0 0
      %3646 = vmatmul.mubr.bf16.gmra.mrb[0].mxu0 %v2949
      %v3647 = vpop.f32.mrb[0].mxu0
      %v3648 = vadd.f32 0.0, %v3647
      %v3649 = vpop.f32.mrb[0].mxu0
      %v3650 = vpop.f32.mrb[0].mxu0
      %v3651 = vadd.f32 0.0, %v3650
      %v3652 = vpop.f32.mrb[0].mxu0
      %3653 = vmatprep.mubr.bf16.mxu0 0
      %3654 = vmatmul.mubr.bf16.gmra.mrb[0].mxu0 %v2952
      %v3655 = vpop.f32.mrb[0].mxu0
      %v3656 = vadd.f32 0.0, %v3655
      %v3657 = vpop.f32.mrb[0].mxu0
      %v3658 = vpop.f32.mrb[0].mxu0
      %v3659 = vadd.f32 0.0, %v3658
      %v3660 = vpop.f32.mrb[0].mxu0
      %3661 = vmatprep.mubr.bf16.mxu0 0
      %3662 = vmatmul.mubr.bf16.gmra.mrb[0].mxu0 %v2955
      %v3663 = vpop.f32.mrb[0].mxu0
      %v3664 = vadd.f32 0.0, %v3663
      %v3665 = vpop.f32.mrb[0].mxu0
      %v3666 = vpop.f32.mrb[0].mxu0
      %v3667 = vadd.f32 0.0, %v3666
      %v3668 = vpop.f32.mrb[0].mxu0
      %3669 = vmatprep.mubr.bf16.mxu0 0
      %3670 = vmatmul.mubr.bf16.gmra.mrb[0].mxu0 %v2958
      %v3671 = vpop.f32.mrb[0].mxu0
      %v3672 = vadd.f32 0.0, %v3671
      %v3673 = vpop.f32.mrb[0].mxu0
      %v3674 = vpop.f32.mrb[0].mxu0
      %v3675 = vadd.f32 0.0, %v3674
      %v3676 = vpop.f32.mrb[0].mxu0
      %3677 = vmatprep.mubr.bf16.mxu0 0
      %3678 = vmatmul.mubr.bf16.gmra.mrb[0].mxu0 %v2961
      %v3679 = vpop.f32.mrb[0].mxu0
      %v3680 = vadd.f32 0.0, %v3679
      %v3681 = vpop.f32.mrb[0].mxu0
      %v3682 = vpop.f32.mrb[0].mxu0
      %v3683 = vadd.f32 0.0, %v3682
      %v3684 = vpop.f32.mrb[0].mxu0
      %3685 = vmatprep.mubr.bf16.mxu0 0
      %3686 = vmatmul.mubr.bf16.gmra.mrb[0].mxu0 %v2964
      %v3687 = vpop.f32.mrb[0].mxu0
      %v3688 = vadd.f32 0.0, %v3687
      %v3689 = vpop.f32.mrb[0].mxu0
      %v3690 = vpop.f32.mrb[0].mxu0
      %v3691 = vadd.f32 0.0, %v3690
      %v3692 = vpop.f32.mrb[0].mxu0
      %3693 = vmatprep.mubr.bf16.mxu0 0
      %3694 = vmatmul.mubr.bf16.gmra.mrb[0].mxu0 %v2967
      %v3695 = vpop.f32.mrb[0].mxu0
      %v3696 = vadd.f32 0.0, %v3695
      %v3697 = vpop.f32.mrb[0].mxu0
      %v3698 = vpop.f32.mrb[0].mxu0
      %v3699 = vadd.f32 0.0, %v3698
      %v3700 = vpop.f32.mrb[0].mxu0
      %3701 = vmatprep.mubr.bf16.mxu0 0
      %3702 = vmatmul.mubr.bf16.gmra.mrb[0].mxu0 %v2970
      %v3703 = vpop.f32.mrb[0].mxu0
      %v3704 = vadd.f32 0.0, %v3703
      %v3705 = vpop.f32.mrb[0].mxu0
      %v3706 = vpop.f32.mrb[0].mxu0
      %v3707 = vadd.f32 0.0, %v3706
      %v3708 = vpop.f32.mrb[0].mxu0
      %3709 = vmatprep.mubr.bf16.mxu0 0
      %3710 = vmatmul.mubr.bf16.gmra.mrb[0].mxu0 %v2973
      %v3711 = vpop.f32.mrb[0].mxu0
      %v3712 = vadd.f32 0.0, %v3711
      %v3713 = vpop.f32.mrb[0].mxu0
      %v3714 = vpop.f32.mrb[0].mxu0
      %v3715 = vadd.f32 0.0, %v3714
      %v3716 = vpop.f32.mrb[0].mxu0
      %3717 = vmatprep.mubr.bf16.mxu0 0
      %3718 = vmatmul.mubr.bf16.gmra.mrb[0].mxu0 %v2976
      %v3719 = vpop.f32.mrb[0].mxu0
      %v3720 = vadd.f32 0.0, %v3719
      %v3721 = vpop.f32.mrb[0].mxu0
      %v3722 = vpop.f32.mrb[0].mxu0
      %v3723 = vadd.f32 0.0, %v3722
      %v3724 = vpop.f32.mrb[0].mxu0
      %3725 = vmatprep.mubr.bf16.mxu0 0
      %3726 = vmatmul.mubr.bf16.gmra.mrb[0].mxu0 %v2979
      %v3727 = vpop.f32.mrb[0].mxu0
      %v3728 = vadd.f32 0.0, %v3727
      %v3729 = vpop.f32.mrb[0].mxu0
      %v3730 = vpop.f32.mrb[0].mxu0
      %v3731 = vadd.f32 0.0, %v3730
      %v3732 = vpop.f32.mrb[0].mxu0
      %3733 = vmatprep.mubr.bf16.mxu0 0
      %3734 = vmatmul.mubr.bf16.gmra.mrb[0].mxu0 %v2982
      %v3735 = vpop.f32.mrb[0].mxu0
      %v3736 = vadd.f32 0.0, %v3735
      %v3737 = vpop.f32.mrb[0].mxu0
      %v3738 = vpop.f32.mrb[0].mxu0
      %v3739 = vadd.f32 0.0, %v3738
      %v3740 = vpop.f32.mrb[0].mxu0
      %3741 = vmatprep.mubr.bf16.mxu0 0
      %3742 = vmatmul.mubr.bf16.gmra.mrb[0].mxu0 %v2985
      %v3743 = vpop.f32.mrb[0].mxu0
      %v3744 = vadd.f32 0.0, %v3743
      %v3745 = vpop.f32.mrb[0].mxu0
      %v3746 = vpop.f32.mrb[0].mxu0
      %v3747 = vadd.f32 0.0, %v3746
      %v3748 = vpop.f32.mrb[0].mxu0
      %3749 = vmatprep.mubr.bf16.mxu0 0
      %3750 = vmatmul.mubr.bf16.gmra.mrb[0].mxu0 %v2988
      %v3751 = vpop.f32.mrb[0].mxu0
      %v3752 = vadd.f32 0.0, %v3751
      %v3753 = vpop.f32.mrb[0].mxu0
      %v3754 = vpop.f32.mrb[0].mxu0
      %v3755 = vadd.f32 0.0, %v3754
      %v3756 = vpop.f32.mrb[0].mxu0
      %3757 = vmatprep.mubr.bf16.mxu0 0
      %3758 = vmatmul.mubr.bf16.gmra.mrb[0].mxu0 %v2991
      %v3759 = vpop.f32.mrb[0].mxu0
      %v3760 = vadd.f32 0.0, %v3759
      %v3761 = vpop.f32.mrb[0].mxu0
      %v3762 = vpop.f32.mrb[0].mxu0
      %v3763 = vadd.f32 0.0, %v3762
      %v3764 = vpop.f32.mrb[0].mxu0
      %3765 = vmatprep.mubr.bf16.mxu0 0
      %3766 = vmatmul.mubr.bf16.gmra.mrb[0].mxu0 %v2994
      %v3767 = vpop.f32.mrb[0].mxu0
      %v3768 = vadd.f32 0.0, %v3767
      %v3769 = vpop.f32.mrb[0].mxu0
      %v3770 = vpop.f32.mrb[0].mxu0
      %v3771 = vadd.f32 0.0, %v3770
      %v3772 = vpop.f32.mrb[0].mxu0
      %3773 = vmatprep.mubr.bf16.mxu0 0
      %3774 = vmatmul.mubr.bf16.gmra.mrb[0].mxu0 %v2997
      %v3775 = vpop.f32.mrb[0].mxu0
      %v3776 = vadd.f32 0.0, %v3775
      %v3777 = vpop.f32.mrb[0].mxu0
      %v3778 = vpop.f32.mrb[0].mxu0
      %v3779 = vadd.f32 0.0, %v3778
      %v3780 = vpop.f32.mrb[0].mxu0
      %3781 = vmatprep.mubr.bf16.mxu0 0
      %3782 = vmatmul.mubr.bf16.gmra.mrb[0].mxu0 %v3000
      %v3783 = vpop.f32.mrb[0].mxu0
      %v3784 = vadd.f32 0.0, %v3783
      %v3785 = vpop.f32.mrb[0].mxu0
      %v3786 = vpop.f32.mrb[0].mxu0
      %v3787 = vadd.f32 0.0, %v3786
      %v3788 = vpop.f32.mrb[0].mxu0
      %3789 = vmatprep.mubr.bf16.mxu0 0
      %3790 = vmatmul.mubr.bf16.gmra.mrb[0].mxu0 %v3003
      %v3791 = vpop.f32.mrb[0].mxu0
      %v3792 = vadd.f32 0.0, %v3791
      %v3793 = vpop.f32.mrb[0].mxu0
      %v3794 = vpop.f32.mrb[0].mxu0
      %v3795 = vadd.f32 0.0, %v3794
      %v3796 = vpop.f32.mrb[0].mxu0
      %3797 = vmatprep.mubr.bf16.mxu0 0
      %3798 = vmatmul.mubr.bf16.gmra.mrb[0].mxu0 %v3006
      %v3799 = vpop.f32.mrb[0].mxu0
      %v3800 = vadd.f32 0.0, %v3799
      %v3801 = vpop.f32.mrb[0].mxu0
      %v3802 = vpop.f32.mrb[0].mxu0
      %v3803 = vadd.f32 0.0, %v3802
      %v3804 = vpop.f32.mrb[0].mxu0
      %3805 = vmatprep.mubr.bf16.mxu0 0
      %3806 = vmatmul.mubr.bf16.gmra.mrb[0].mxu0 %v3009
      %v3807 = vpop.f32.mrb[0].mxu0
      %v3808 = vadd.f32 0.0, %v3807
      %v3809 = vpop.f32.mrb[0].mxu0
      %v3810 = vpop.f32.mrb[0].mxu0
      %v3811 = vadd.f32 0.0, %v3810
      %v3812 = vpop.f32.mrb[0].mxu0
      %3813 = vmatprep.mubr.bf16.mxu0 0
      %3814 = vmatmul.mubr.bf16.gmra.mrb[0].mxu0 %v3012
      %v3815 = vpop.f32.mrb[0].mxu0
      %v3816 = vadd.f32 0.0, %v3815
      %v3817 = vpop.f32.mrb[0].mxu0
      %v3818 = vpop.f32.mrb[0].mxu0
      %v3819 = vadd.f32 0.0, %v3818
      %v3820 = vpop.f32.mrb[0].mxu0
      %3821 = vmatprep.mubr.bf16.mxu0 0
      %3822 = vmatmul.mubr.bf16.gmra.mrb[0].mxu0 %v3015
      %v3823 = vpop.f32.mrb[0].mxu0
      %v3824 = vadd.f32 0.0, %v3823
      %v3825 = vpop.f32.mrb[0].mxu0
      %v3826 = vpop.f32.mrb[0].mxu0
      %v3827 = vadd.f32 0.0, %v3826
      %v3828 = vpop.f32.mrb[0].mxu0
      %3829 = vmatprep.mubr.bf16.mxu0 0
      %3830 = vmatmul.mubr.bf16.gmra.mrb[0].mxu0 %v3018
      %v3831 = vpop.f32.mrb[0].mxu0
      %v3832 = vadd.f32 0.0, %v3831
      %v3833 = vpop.f32.mrb[0].mxu0
      %v3834 = vpop.f32.mrb[0].mxu0
      %v3835 = vadd.f32 0.0, %v3834
      %v3836 = vpop.f32.mrb[0].mxu0
      %3837 = vmatprep.mubr.bf16.mxu0 0
      %3838 = vmatmul.mubr.bf16.gmra.mrb[0].mxu0 %v3021
      %v3839 = vpop.f32.mrb[0].mxu0
      %v3840 = vadd.f32 0.0, %v3839
      %v3841 = vpop.f32.mrb[0].mxu0
      %v3842 = vpop.f32.mrb[0].mxu0
      %v3843 = vadd.f32 0.0, %v3842
      %v3844 = vpop.f32.mrb[0].mxu0
      %3845 = vmatprep.mubr.bf16.mxu0 0
      %3846 = vmatmul.mubr.bf16.gmra.mrb[0].mxu0 %v3024
      %v3847 = vpop.f32.mrb[0].mxu0
      %v3848 = vadd.f32 0.0, %v3847
      %v3849 = vpop.f32.mrb[0].mxu0
      %v3850 = vpop.f32.mrb[0].mxu0
      %v3851 = vadd.f32 0.0, %v3850
      %v3852 = vpop.f32.mrb[0].mxu0
      %3853 = vmatprep.mubr.bf16.mxu0 0
      %3854 = vmatmul.mubr.bf16.gmra.mrb[0].mxu0 %v3027
      %v3855 = vpop.f32.mrb[0].mxu0
      %v3856 = vadd.f32 0.0, %v3855
      %v3857 = vpop.f32.mrb[0].mxu0
      %v3858 = vpop.f32.mrb[0].mxu0
      %v3859 = vadd.f32 0.0, %v3858
      %v3860 = vpop.f32.mrb[0].mxu0
      %3861 = vdwg.mxu0
      %v3862 = vmax.f32 %v1230, %v3064
      %v3863 = vmax.f32 %v1233, %v3067
      %v3864 = vmax.f32 %v1238, %v3072
      %v3865 = vmax.f32 %v1241, %v3075
      %v3866 = vmax.f32 %v1246, %v3080
      %v3867 = vmax.f32 %v1249, %v3083
      %v3868 = vmax.f32 %v1254, %v3088
      %v3869 = vmax.f32 %v1257, %v3091
      %v3870 = vmax.f32 %v1262, %v3096
      %v3871 = vmax.f32 %v1265, %v3099
      %v3872 = vmax.f32 %v1270, %v3104
      %v3873 = vmax.f32 %v1273, %v3107
      %v3874 = vmax.f32 %v1278, %v3112
      %v3875 = vmax.f32 %v1281, %v3115
      %v3876 = vmax.f32 %v1286, %v3120
      %v3877 = vmax.f32 %v1289, %v3123
      %v3878 = vmax.f32 %v1294, %v3128
      %v3879 = vmax.f32 %v1297, %v3131
      %v3880 = vmax.f32 %v1302, %v3136
      %v3881 = vmax.f32 %v1305, %v3139
      %v3882 = vmax.f32 %v1310, %v3144
      %v3883 = vmax.f32 %v1313, %v3147
      %v3884 = vmax.f32 %v1318, %v3152
      %v3885 = vmax.f32 %v1321, %v3155
      %v3886 = vmax.f32 %v1326, %v3160
      %v3887 = vmax.f32 %v1329, %v3163
      %v3888 = vmax.f32 %v1334, %v3168
      %v3889 = vmax.f32 %v1337, %v3171
      %v3890 = vmax.f32 %v1342, %v3176
      %v3891 = vmax.f32 %v1345, %v3179
      %v3892 = vmax.f32 %v1350, %v3184
      %v3893 = vmax.f32 %v1353, %v3187
      %v3894 = vmax.f32 %v1358, %v3192
      %v3895 = vmax.f32 %v1361, %v3195
      %v3896 = vmax.f32 %v1366, %v3200
      %v3897 = vmax.f32 %v1369, %v3203
      %v3898 = vmax.f32 %v1374, %v3208
      %v3899 = vmax.f32 %v1377, %v3211
      %v3900 = vmax.f32 %v1382, %v3216
      %v3901 = vmax.f32 %v1385, %v3219
      %v3902 = vmax.f32 %v1390, %v3224
      %v3903 = vmax.f32 %v1393, %v3227
      %v3904 = vmax.f32 %v1398, %v3232
      %v3905 = vmax.f32 %v1401, %v3235
      %v3906 = vmax.f32 %v1406, %v3240
      %v3907 = vmax.f32 %v1409, %v3243
      %v3908 = vmax.f32 %v1414, %v3248
      %v3909 = vmax.f32 %v1417, %v3251
      %v3910 = vmax.f32 %v1422, %v3256
      %v3911 = vmax.f32 %v1425, %v3259
      %v3912 = vmax.f32 %v1430, %v3264
      %v3913 = vmax.f32 %v1433, %v3267
      %v3914 = vmax.f32 %v1438, %v3272
      %v3915 = vmax.f32 %v1441, %v3275
      %v3916 = vmax.f32 %v1446, %v3280
      %v3917 = vmax.f32 %v1449, %v3283
      %v3918 = vmax.f32 %v1454, %v3288
      %v3919 = vmax.f32 %v1457, %v3291
      %v3920 = vmax.f32 %v1462, %v3296
      %v3921 = vmax.f32 %v1465, %v3299
      %v3922 = vmax.f32 %v1470, %v3304
      %v3923 = vmax.f32 %v1473, %v3307
      %v3924 = vmax.f32 %v1478, %v3312
      %v3925 = vmax.f32 %v1481, %v3315
      %v3926 = vmax.f32 %v1486, %v3320
      %v3927 = vmax.f32 %v1489, %v3323
      %v3928 = vmax.f32 %v1494, %v3328
      %v3929 = vmax.f32 %v1497, %v3331
      %v3930 = vmax.f32 %v1502, %v3336
      %v3931 = vmax.f32 %v1505, %v3339
      %v3932 = vmax.f32 %v1510, %v3344
      %v3933 = vmax.f32 %v1513, %v3347
      %v3934 = vmax.f32 %v1518, %v3352
      %v3935 = vmax.f32 %v1521, %v3355
      %v3936 = vmax.f32 %v1526, %v3360
      %v3937 = vmax.f32 %v1529, %v3363
      %v3938 = vmax.f32 %v1534, %v3368
      %v3939 = vmax.f32 %v1537, %v3371
      %v3940 = vmax.f32 %v1542, %v3376
      %v3941 = vmax.f32 %v1545, %v3379
      %v3942 = vmax.f32 %v1550, %v3384
      %v3943 = vmax.f32 %v1553, %v3387
      %v3944 = vmax.f32 %v1558, %v3392
      %v3945 = vmax.f32 %v1561, %v3395
      %v3946 = vmax.f32 %v1566, %v3400
      %v3947 = vmax.f32 %v1569, %v3403
      %v3948 = vmax.f32 %v1574, %v3408
      %v3949 = vmax.f32 %v1577, %v3411
      %v3950 = vmax.f32 %v1582, %v3416
      %v3951 = vmax.f32 %v1585, %v3419
      %v3952 = vmax.f32 %v1590, %v3424
      %v3953 = vmax.f32 %v1593, %v3427
      %v3954 = vmax.f32 %v1598, %v3432
      %v3955 = vmax.f32 %v1601, %v3435
      %v3956 = vmax.f32 %v1606, %v3440
      %v3957 = vmax.f32 %v1609, %v3443
      %v3958 = vmax.f32 %v1614, %v3448
      %v3959 = vmax.f32 %v1617, %v3451
      %v3960 = vmax.f32 %v1622, %v3456
      %v3961 = vmax.f32 %v1625, %v3459
      %v3962 = vmax.f32 %v1630, %v3464
      %v3963 = vmax.f32 %v1633, %v3467
      %v3964 = vmax.f32 %v1638, %v3472
      %v3965 = vmax.f32 %v1641, %v3475
      %v3966 = vmax.f32 %v1646, %v3480
      %v3967 = vmax.f32 %v1649, %v3483
      %v3968 = vmax.f32 %v1654, %v3488
      %v3969 = vmax.f32 %v1657, %v3491
      %v3970 = vmax.f32 %v1662, %v3496
      %v3971 = vmax.f32 %v1665, %v3499
      %v3972 = vmax.f32 %v1670, %v3504
      %v3973 = vmax.f32 %v1673, %v3507
      %v3974 = vmax.f32 %v1678, %v3512
      %v3975 = vmax.f32 %v1681, %v3515
      %v3976 = vmax.f32 %v1686, %v3520
      %v3977 = vmax.f32 %v1689, %v3523
      %v3978 = vmax.f32 %v1694, %v3528
      %v3979 = vmax.f32 %v1697, %v3531
      %v3980 = vmax.f32 %v1702, %v3536
      %v3981 = vmax.f32 %v1705, %v3539
      %v3982 = vmax.f32 %v1710, %v3544
      %v3983 = vmax.f32 %v1713, %v3547
      %v3984 = vmax.f32 %v1718, %v3552
      %v3985 = vmax.f32 %v1721, %v3555
      %v3986 = vmax.f32 %v1726, %v3560
      %v3987 = vmax.f32 %v1729, %v3563
      %v3988 = vmax.f32 %v1734, %v3568
      %v3989 = vmax.f32 %v1737, %v3571
      %v3990 = vmax.f32 %v1742, %v3576
      %v3991 = vmax.f32 %v1745, %v3579
      %v3992 = vmax.f32 %v1750, %v3584
      %v3993 = vmax.f32 %v1753, %v3587
      %v3994 = vmax.f32 %v1758, %v3592
      %v3995 = vmax.f32 %v1761, %v3595
      %v3996 = vmax.f32 %v1766, %v3600
      %v3997 = vmax.f32 %v1769, %v3603
      %v3998 = vmax.f32 %v1774, %v3608
      %v3999 = vmax.f32 %v1777, %v3611
      %v4000 = vmax.f32 %v1782, %v3616
      %v4001 = vmax.f32 %v1785, %v3619
      %v4002 = vmax.f32 %v1790, %v3624
      %v4003 = vmax.f32 %v1793, %v3627
      %v4004 = vmax.f32 %v1798, %v3632
      %v4005 = vmax.f32 %v1801, %v3635
      %v4006 = vmax.f32 %v1806, %v3640
      %v4007 = vmax.f32 %v1809, %v3643
      %v4008 = vmax.f32 %v1814, %v3648
      %v4009 = vmax.f32 %v1817, %v3651
      %v4010 = vmax.f32 %v1822, %v3656
      %v4011 = vmax.f32 %v1825, %v3659
      %v4012 = vmax.f32 %v1830, %v3664
      %v4013 = vmax.f32 %v1833, %v3667
      %v4014 = vmax.f32 %v1838, %v3672
      %v4015 = vmax.f32 %v1841, %v3675
      %v4016 = vmax.f32 %v1846, %v3680
      %v4017 = vmax.f32 %v1849, %v3683
      %v4018 = vmax.f32 %v1854, %v3688
      %v4019 = vmax.f32 %v1857, %v3691
      %v4020 = vmax.f32 %v1862, %v3696
      %v4021 = vmax.f32 %v1865, %v3699
      %v4022 = vmax.f32 %v1870, %v3704
      %v4023 = vmax.f32 %v1873, %v3707
      %v4024 = vmax.f32 %v1878, %v3712
      %v4025 = vmax.f32 %v1881, %v3715
      %v4026 = vmax.f32 %v1886, %v3720
      %v4027 = vmax.f32 %v1889, %v3723
      %v4028 = vmax.f32 %v1894, %v3728
      %v4029 = vmax.f32 %v1897, %v3731
      %v4030 = vmax.f32 %v1902, %v3736
      %v4031 = vmax.f32 %v1905, %v3739
      %v4032 = vmax.f32 %v1910, %v3744
      %v4033 = vmax.f32 %v1913, %v3747
      %v4034 = vmax.f32 %v1918, %v3752
      %v4035 = vmax.f32 %v1921, %v3755
      %v4036 = vmax.f32 %v1926, %v3760
      %v4037 = vmax.f32 %v1929, %v3763
      %v4038 = vmax.f32 %v1934, %v3768
      %v4039 = vmax.f32 %v1937, %v3771
      %v4040 = vmax.f32 %v1942, %v3776
      %v4041 = vmax.f32 %v1945, %v3779
      %v4042 = vmax.f32 %v1950, %v3784
      %v4043 = vmax.f32 %v1953, %v3787
      %v4044 = vmax.f32 %v1958, %v3792
      %v4045 = vmax.f32 %v1961, %v3795
      %v4046 = vmax.f32 %v1966, %v3800
      %v4047 = vmax.f32 %v1969, %v3803
      %v4048 = vmax.f32 %v1974, %v3808
      %v4049 = vmax.f32 %v1977, %v3811
      %v4050 = vmax.f32 %v1982, %v3816
      %v4051 = vmax.f32 %v1985, %v3819
      %v4052 = vmax.f32 %v1990, %v3824
      %v4053 = vmax.f32 %v1993, %v3827
      %v4054 = vmax.f32 %v1998, %v3832
      %v4055 = vmax.f32 %v2001, %v3835
      %v4056 = vmax.f32 %v2006, %v3840
      %v4057 = vmax.f32 %v2009, %v3843
      %v4058 = vmax.f32 %v2014, %v3848
      %v4059 = vmax.f32 %v2017, %v3851
      %v4060 = vmax.f32 %v2022, %v3856
      %v4061 = vmax.f32 %v2025, %v3859
      %s4062 = scalar_lea.vmem %s165, 1600
      %v4063 = vld [vmem:[%s4062] sm:$0xf]
      %v4064 = vld [vmem:[%s4062 + $0x4] sm:$0xf]
      %v4065 = vld [vmem:[%s4062 + $0x8] sm:$0xf]
      %v4066 = vld [vmem:[%s4062 + $0xc] sm:$0xf]
      %v4067 = vld [vmem:[%s4062 + $0x10] sm:$0xf]
      %v4068 = vld [vmem:[%s4062 + $0x14] sm:$0xf]
      %v4069 = vld [vmem:[%s4062 + $0x18] sm:$0xf]
      %v4070 = vld [vmem:[%s4062 + $0x1c] sm:$0xf]
      %v4071 = vld [vmem:[%s4062 + $0x20] sm:$0xf]
      %v4072 = vld [vmem:[%s4062 + $0x24] sm:$0xf]
      %v4073 = vld [vmem:[%s4062 + $0x28] sm:$0xf]
      %v4074 = vld [vmem:[%s4062 + $0x2c] sm:$0xf]
      %v4075 = vld [vmem:[%s4062 + $0x30] sm:$0xf]
      %v4076 = vld [vmem:[%s4062 + $0x34] sm:$0xf]
      %v4077 = vld [vmem:[%s4062 + $0x38] sm:$0xf]
      %v4078 = vld [vmem:[%s4062 + $0x3c] sm:$0xf]
      %v4079 = vld [vmem:[%s4062 + $0x40] sm:$0xf]
      %v4080 = vld [vmem:[%s4062 + $0x44] sm:$0xf]
      %v4081 = vld [vmem:[%s4062 + $0x48] sm:$0xf]
      %v4082 = vld [vmem:[%s4062 + $0x4c] sm:$0xf]
      %v4083 = vld [vmem:[%s4062 + $0x50] sm:$0xf]
      %v4084 = vld [vmem:[%s4062 + $0x54] sm:$0xf]
      %v4085 = vld [vmem:[%s4062 + $0x58] sm:$0xf]
      %v4086 = vld [vmem:[%s4062 + $0x5c] sm:$0xf]
      %v4087 = vld [vmem:[%s4062 + $0x60] sm:$0xf]
      %v4088 = vld [vmem:[%s4062 + $0x64] sm:$0xf]
      %v4089 = vld [vmem:[%s4062 + $0x68] sm:$0xf]
      %v4090 = vld [vmem:[%s4062 + $0x6c] sm:$0xf]
      %v4091 = vld [vmem:[%s4062 + $0x70] sm:$0xf]
      %v4092 = vld [vmem:[%s4062 + $0x74] sm:$0xf]
      %v4093 = vld [vmem:[%s4062 + $0x78] sm:$0xf]
      %v4094 = vld [vmem:[%s4062 + $0x7c] sm:$0xf]
      %v4095 = vld [vmem:[%s4062 + $0x80] sm:$0xf]
      %v4096 = vld [vmem:[%s4062 + $0x84] sm:$0xf]
      %v4097 = vld [vmem:[%s4062 + $0x88] sm:$0xf]
      %v4098 = vld [vmem:[%s4062 + $0x8c] sm:$0xf]
      %v4099 = vld [vmem:[%s4062 + $0x90] sm:$0xf]
      %v4100 = vld [vmem:[%s4062 + $0x94] sm:$0xf]
      %v4101 = vld [vmem:[%s4062 + $0x98] sm:$0xf]
      %v4102 = vld [vmem:[%s4062 + $0x9c] sm:$0xf]
      %v4103 = vld [vmem:[%s4062 + $0xa0] sm:$0xf]
      %v4104 = vld [vmem:[%s4062 + $0xa4] sm:$0xf]
      %v4105 = vld [vmem:[%s4062 + $0xa8] sm:$0xf]
      %v4106 = vld [vmem:[%s4062 + $0xac] sm:$0xf]
      %v4107 = vld [vmem:[%s4062 + $0xb0] sm:$0xf]
      %v4108 = vld [vmem:[%s4062 + $0xb4] sm:$0xf]
      %v4109 = vld [vmem:[%s4062 + $0xb8] sm:$0xf]
      %v4110 = vld [vmem:[%s4062 + $0xbc] sm:$0xf]
      %v4111 = vld [vmem:[%s4062 + $0xc0] sm:$0xf]
      %v4112 = vld [vmem:[%s4062 + $0xc4] sm:$0xf]
      %v4113 = vld [vmem:[%s4062 + $0xc8] sm:$0xf]
      %v4114 = vld [vmem:[%s4062 + $0xcc] sm:$0xf]
      %v4115 = vld [vmem:[%s4062 + $0xd0] sm:$0xf]
      %v4116 = vld [vmem:[%s4062 + $0xd4] sm:$0xf]
      %v4117 = vld [vmem:[%s4062 + $0xd8] sm:$0xf]
      %v4118 = vld [vmem:[%s4062 + $0xdc] sm:$0xf]
      %v4119 = vld [vmem:[%s4062 + $0xe0] sm:$0xf]
      %v4120 = vld [vmem:[%s4062 + $0xe4] sm:$0xf]
      %v4121 = vld [vmem:[%s4062 + $0xe8] sm:$0xf]
      %v4122 = vld [vmem:[%s4062 + $0xec] sm:$0xf]
      %v4123 = vld [vmem:[%s4062 + $0xf0] sm:$0xf]
      %v4124 = vld [vmem:[%s4062 + $0xf4] sm:$0xf]
      %v4125 = vld [vmem:[%s4062 + $0xf8] sm:$0xf]
      %v4126 = vld [vmem:[%s4062 + $0xfc] sm:$0xf]
      %v4127 = vld [vmem:[%s4062 + $0x100] sm:$0xf]
      %v4128 = vld [vmem:[%s4062 + $0x104] sm:$0xf]
      %v4129 = vld [vmem:[%s4062 + $0x108] sm:$0xf]
      %v4130 = vld [vmem:[%s4062 + $0x10c] sm:$0xf]
      %v4131 = vld [vmem:[%s4062 + $0x110] sm:$0xf]
      %v4132 = vld [vmem:[%s4062 + $0x114] sm:$0xf]
      %v4133 = vld [vmem:[%s4062 + $0x118] sm:$0xf]
      %v4134 = vld [vmem:[%s4062 + $0x11c] sm:$0xf]
      %v4135 = vld [vmem:[%s4062 + $0x120] sm:$0xf]
      %v4136 = vld [vmem:[%s4062 + $0x124] sm:$0xf]
      %v4137 = vld [vmem:[%s4062 + $0x128] sm:$0xf]
      %v4138 = vld [vmem:[%s4062 + $0x12c] sm:$0xf]
      %v4139 = vld [vmem:[%s4062 + $0x130] sm:$0xf]
      %v4140 = vld [vmem:[%s4062 + $0x134] sm:$0xf]
      %v4141 = vld [vmem:[%s4062 + $0x138] sm:$0xf]
      %v4142 = vld [vmem:[%s4062 + $0x13c] sm:$0xf]
      %v4143 = vld [vmem:[%s4062 + $0x140] sm:$0xf]
      %v4144 = vld [vmem:[%s4062 + $0x144] sm:$0xf]
      %v4145 = vld [vmem:[%s4062 + $0x148] sm:$0xf]
      %v4146 = vld [vmem:[%s4062 + $0x14c] sm:$0xf]
      %v4147 = vld [vmem:[%s4062 + $0x150] sm:$0xf]
      %v4148 = vld [vmem:[%s4062 + $0x154] sm:$0xf]
      %v4149 = vld [vmem:[%s4062 + $0x158] sm:$0xf]
      %v4150 = vld [vmem:[%s4062 + $0x15c] sm:$0xf]
      %v4151 = vld [vmem:[%s4062 + $0x160] sm:$0xf]
      %v4152 = vld [vmem:[%s4062 + $0x164] sm:$0xf]
      %v4153 = vld [vmem:[%s4062 + $0x168] sm:$0xf]
      %v4154 = vld [vmem:[%s4062 + $0x16c] sm:$0xf]
      %v4155 = vld [vmem:[%s4062 + $0x170] sm:$0xf]
      %v4156 = vld [vmem:[%s4062 + $0x174] sm:$0xf]
      %v4157 = vld [vmem:[%s4062 + $0x178] sm:$0xf]
      %v4158 = vld [vmem:[%s4062 + $0x17c] sm:$0xf]
      %v4159 = vld [vmem:[%s4062 + $0x180] sm:$0xf]
      %v4160 = vld [vmem:[%s4062 + $0x184] sm:$0xf]
      %v4161 = vld [vmem:[%s4062 + $0x188] sm:$0xf]
      %v4162 = vld [vmem:[%s4062 + $0x18c] sm:$0xf]
      %v4163 = vld [vmem:[%s4062 + $0x190] sm:$0xf]
      %v4164 = vld [vmem:[%s4062 + $0x194] sm:$0xf]
      %v4165 = vld [vmem:[%s4062 + $0x198] sm:$0xf]
      %v4166 = vld [vmem:[%s4062 + $0x19c] sm:$0xf]
      %v4167 = vld [vmem:[%s4062 + $0x1a0] sm:$0xf]
      %v4168 = vld [vmem:[%s4062 + $0x1a4] sm:$0xf]
      %v4169 = vld [vmem:[%s4062 + $0x1a8] sm:$0xf]
      %v4170 = vld [vmem:[%s4062 + $0x1ac] sm:$0xf]
      %v4171 = vld [vmem:[%s4062 + $0x1b0] sm:$0xf]
      %v4172 = vld [vmem:[%s4062 + $0x1b4] sm:$0xf]
      %v4173 = vld [vmem:[%s4062 + $0x1b8] sm:$0xf]
      %v4174 = vld [vmem:[%s4062 + $0x1bc] sm:$0xf]
      %v4175 = vld [vmem:[%s4062 + $0x1c0] sm:$0xf]
      %v4176 = vld [vmem:[%s4062 + $0x1c4] sm:$0xf]
      %v4177 = vld [vmem:[%s4062 + $0x1c8] sm:$0xf]
      %v4178 = vld [vmem:[%s4062 + $0x1cc] sm:$0xf]
      %v4179 = vld [vmem:[%s4062 + $0x1d0] sm:$0xf]
      %v4180 = vld [vmem:[%s4062 + $0x1d4] sm:$0xf]
      %v4181 = vld [vmem:[%s4062 + $0x1d8] sm:$0xf]
      %v4182 = vld [vmem:[%s4062 + $0x1dc] sm:$0xf]
      %v4183 = vld [vmem:[%s4062 + $0x1e0] sm:$0xf]
      %v4184 = vld [vmem:[%s4062 + $0x1e4] sm:$0xf]
      %v4185 = vld [vmem:[%s4062 + $0x1e8] sm:$0xf]
      %v4186 = vld [vmem:[%s4062 + $0x1ec] sm:$0xf]
      %v4187 = vld [vmem:[%s4062 + $0x1f0] sm:$0xf]
      %v4188 = vld [vmem:[%s4062 + $0x1f4] sm:$0xf]
      %v4189 = vld [vmem:[%s4062 + $0x1f8] sm:$0xf]
      %v4190 = vld [vmem:[%s4062 + $0x1fc] sm:$0xf]
      %v4191 = vld [vmem:[%s4062 + $0x200] sm:$0xf]
      %v4192 = vld [vmem:[%s4062 + $0x204] sm:$0xf]
      %v4193 = vld [vmem:[%s4062 + $0x208] sm:$0xf]
      %v4194 = vld [vmem:[%s4062 + $0x20c] sm:$0xf]
      %v4195 = vld [vmem:[%s4062 + $0x210] sm:$0xf]
      %v4196 = vld [vmem:[%s4062 + $0x214] sm:$0xf]
      %v4197 = vld [vmem:[%s4062 + $0x218] sm:$0xf]
      %v4198 = vld [vmem:[%s4062 + $0x21c] sm:$0xf]
      %v4199 = vld [vmem:[%s4062 + $0x220] sm:$0xf]
      %v4200 = vld [vmem:[%s4062 + $0x224] sm:$0xf]
      %v4201 = vld [vmem:[%s4062 + $0x228] sm:$0xf]
      %v4202 = vld [vmem:[%s4062 + $0x22c] sm:$0xf]
      %v4203 = vld [vmem:[%s4062 + $0x230] sm:$0xf]
      %v4204 = vld [vmem:[%s4062 + $0x234] sm:$0xf]
      %v4205 = vld [vmem:[%s4062 + $0x238] sm:$0xf]
      %v4206 = vld [vmem:[%s4062 + $0x23c] sm:$0xf]
      %v4207 = vld [vmem:[%s4062 + $0x240] sm:$0xf]
      %v4208 = vld [vmem:[%s4062 + $0x244] sm:$0xf]
      %v4209 = vld [vmem:[%s4062 + $0x248] sm:$0xf]
      %v4210 = vld [vmem:[%s4062 + $0x24c] sm:$0xf]
      %v4211 = vld [vmem:[%s4062 + $0x250] sm:$0xf]
      %v4212 = vld [vmem:[%s4062 + $0x254] sm:$0xf]
      %v4213 = vld [vmem:[%s4062 + $0x258] sm:$0xf]
      %v4214 = vld [vmem:[%s4062 + $0x25c] sm:$0xf]
      %v4215 = vld [vmem:[%s4062 + $0x260] sm:$0xf]
      %v4216 = vld [vmem:[%s4062 + $0x264] sm:$0xf]
      %v4217 = vld [vmem:[%s4062 + $0x268] sm:$0xf]
      %v4218 = vld [vmem:[%s4062 + $0x26c] sm:$0xf]
      %v4219 = vld [vmem:[%s4062 + $0x270] sm:$0xf]
      %v4220 = vld [vmem:[%s4062 + $0x274] sm:$0xf]
      %v4221 = vld [vmem:[%s4062 + $0x278] sm:$0xf]
      %v4222 = vld [vmem:[%s4062 + $0x27c] sm:$0xf]
      %v4223 = vld [vmem:[%s4062 + $0x280] sm:$0xf]
      %v4224 = vld [vmem:[%s4062 + $0x284] sm:$0xf]
      %v4225 = vld [vmem:[%s4062 + $0x288] sm:$0xf]
      %v4226 = vld [vmem:[%s4062 + $0x28c] sm:$0xf]
      %v4227 = vld [vmem:[%s4062 + $0x290] sm:$0xf]
      %v4228 = vld [vmem:[%s4062 + $0x294] sm:$0xf]
      %v4229 = vld [vmem:[%s4062 + $0x298] sm:$0xf]
      %v4230 = vld [vmem:[%s4062 + $0x29c] sm:$0xf]
      %v4231 = vld [vmem:[%s4062 + $0x2a0] sm:$0xf]
      %v4232 = vld [vmem:[%s4062 + $0x2a4] sm:$0xf]
      %v4233 = vld [vmem:[%s4062 + $0x2a8] sm:$0xf]
      %v4234 = vld [vmem:[%s4062 + $0x2ac] sm:$0xf]
      %v4235 = vld [vmem:[%s4062 + $0x2b0] sm:$0xf]
      %v4236 = vld [vmem:[%s4062 + $0x2b4] sm:$0xf]
      %v4237 = vld [vmem:[%s4062 + $0x2b8] sm:$0xf]
      %v4238 = vld [vmem:[%s4062 + $0x2bc] sm:$0xf]
      %v4239 = vld [vmem:[%s4062 + $0x2c0] sm:$0xf]
      %v4240 = vld [vmem:[%s4062 + $0x2c4] sm:$0xf]
      %v4241 = vld [vmem:[%s4062 + $0x2c8] sm:$0xf]
      %v4242 = vld [vmem:[%s4062 + $0x2cc] sm:$0xf]
      %v4243 = vld [vmem:[%s4062 + $0x2d0] sm:$0xf]
      %v4244 = vld [vmem:[%s4062 + $0x2d4] sm:$0xf]
      %v4245 = vld [vmem:[%s4062 + $0x2d8] sm:$0xf]
      %v4246 = vld [vmem:[%s4062 + $0x2dc] sm:$0xf]
      %v4247 = vld [vmem:[%s4062 + $0x2e0] sm:$0xf]
      %v4248 = vld [vmem:[%s4062 + $0x2e4] sm:$0xf]
      %v4249 = vld [vmem:[%s4062 + $0x2e8] sm:$0xf]
      %v4250 = vld [vmem:[%s4062 + $0x2ec] sm:$0xf]
      %v4251 = vld [vmem:[%s4062 + $0x2f0] sm:$0xf]
      %v4252 = vld [vmem:[%s4062 + $0x2f4] sm:$0xf]
      %v4253 = vld [vmem:[%s4062 + $0x2f8] sm:$0xf]
      %v4254 = vld [vmem:[%s4062 + $0x2fc] sm:$0xf]
      %v4255 = vld [vmem:[%s4062 + $0x300] sm:$0xf]
      %v4256 = vld [vmem:[%s4062 + $0x304] sm:$0xf]
      %v4257 = vld [vmem:[%s4062 + $0x308] sm:$0xf]
      %v4258 = vld [vmem:[%s4062 + $0x30c] sm:$0xf]
      %v4259 = vld [vmem:[%s4062 + $0x310] sm:$0xf]
      %v4260 = vld [vmem:[%s4062 + $0x314] sm:$0xf]
      %v4261 = vld [vmem:[%s4062 + $0x318] sm:$0xf]
      %v4262 = vld [vmem:[%s4062 + $0x31c] sm:$0xf]
      %v4463 = vunpack.c.l.b16 %v4063
      %v4464 = vunpack.c.l.b16 %v4064
      %v4465 = vunpack.c.l.b16 %v4065
      %v4466 = vunpack.c.l.b16 %v4066
      %v4467 = vunpack.c.l.b16 %v4067
      %v4468 = vunpack.c.l.b16 %v4068
      %v4469 = vunpack.c.l.b16 %v4069
      %v4470 = vunpack.c.l.b16 %v4070
      %v4471 = vunpack.c.l.b16 %v4071
      %v4472 = vunpack.c.l.b16 %v4072
      %v4473 = vunpack.c.l.b16 %v4073
      %v4474 = vunpack.c.l.b16 %v4074
      %v4475 = vunpack.c.l.b16 %v4075
      %v4476 = vunpack.c.l.b16 %v4076
      %v4477 = vunpack.c.l.b16 %v4077
      %v4478 = vunpack.c.l.b16 %v4078
      %v4479 = vunpack.c.l.b16 %v4079
      %v4480 = vunpack.c.l.b16 %v4080
      %v4481 = vunpack.c.l.b16 %v4081
      %v4482 = vunpack.c.l.b16 %v4082
      %v4483 = vunpack.c.l.b16 %v4083
      %v4484 = vunpack.c.l.b16 %v4084
      %v4485 = vunpack.c.l.b16 %v4085
      %v4486 = vunpack.c.l.b16 %v4086
      %v4487 = vunpack.c.l.b16 %v4087
      %v4488 = vunpack.c.l.b16 %v4088
      %v4489 = vunpack.c.l.b16 %v4089
      %v4490 = vunpack.c.l.b16 %v4090
      %v4491 = vunpack.c.l.b16 %v4091
      %v4492 = vunpack.c.l.b16 %v4092
      %v4493 = vunpack.c.l.b16 %v4093
      %v4494 = vunpack.c.l.b16 %v4094
      %v4495 = vunpack.c.l.b16 %v4095
      %v4496 = vunpack.c.l.b16 %v4096
      %v4497 = vunpack.c.l.b16 %v4097
      %v4498 = vunpack.c.l.b16 %v4098
      %v4499 = vunpack.c.l.b16 %v4099
      %v4500 = vunpack.c.l.b16 %v4100
      %v4501 = vunpack.c.l.b16 %v4101
      %v4502 = vunpack.c.l.b16 %v4102
      %v4503 = vunpack.c.l.b16 %v4103
      %v4504 = vunpack.c.l.b16 %v4104
      %v4505 = vunpack.c.l.b16 %v4105
      %v4506 = vunpack.c.l.b16 %v4106
      %v4507 = vunpack.c.l.b16 %v4107
      %v4508 = vunpack.c.l.b16 %v4108
      %v4509 = vunpack.c.l.b16 %v4109
      %v4510 = vunpack.c.l.b16 %v4110
      %v4511 = vunpack.c.l.b16 %v4111
      %v4512 = vunpack.c.l.b16 %v4112
      %v4513 = vunpack.c.l.b16 %v4113
      %v4514 = vunpack.c.l.b16 %v4114
      %v4515 = vunpack.c.l.b16 %v4115
      %v4516 = vunpack.c.l.b16 %v4116
      %v4517 = vunpack.c.l.b16 %v4117
      %v4518 = vunpack.c.l.b16 %v4118
      %v4519 = vunpack.c.l.b16 %v4119
      %v4520 = vunpack.c.l.b16 %v4120
      %v4521 = vunpack.c.l.b16 %v4121
      %v4522 = vunpack.c.l.b16 %v4122
      %v4523 = vunpack.c.l.b16 %v4123
      %v4524 = vunpack.c.l.b16 %v4124
      %v4525 = vunpack.c.l.b16 %v4125
      %v4526 = vunpack.c.l.b16 %v4126
      %v4527 = vunpack.c.l.b16 %v4127
      %v4528 = vunpack.c.l.b16 %v4128
      %v4529 = vunpack.c.l.b16 %v4129
      %v4530 = vunpack.c.l.b16 %v4130
      %v4531 = vunpack.c.l.b16 %v4131
      %v4532 = vunpack.c.l.b16 %v4132
      %v4533 = vunpack.c.l.b16 %v4133
      %v4534 = vunpack.c.l.b16 %v4134
      %v4535 = vunpack.c.l.b16 %v4135
      %v4536 = vunpack.c.l.b16 %v4136
      %v4537 = vunpack.c.l.b16 %v4137
      %v4538 = vunpack.c.l.b16 %v4138
      %v4539 = vunpack.c.l.b16 %v4139
      %v4540 = vunpack.c.l.b16 %v4140
      %v4541 = vunpack.c.l.b16 %v4141
      %v4542 = vunpack.c.l.b16 %v4142
      %v4543 = vunpack.c.l.b16 %v4143
      %v4544 = vunpack.c.l.b16 %v4144
      %v4545 = vunpack.c.l.b16 %v4145
      %v4546 = vunpack.c.l.b16 %v4146
      %v4547 = vunpack.c.l.b16 %v4147
      %v4548 = vunpack.c.l.b16 %v4148
      %v4549 = vunpack.c.l.b16 %v4149
      %v4550 = vunpack.c.l.b16 %v4150
      %v4551 = vunpack.c.l.b16 %v4151
      %v4552 = vunpack.c.l.b16 %v4152
      %v4553 = vunpack.c.l.b16 %v4153
      %v4554 = vunpack.c.l.b16 %v4154
      %v4555 = vunpack.c.l.b16 %v4155
      %v4556 = vunpack.c.l.b16 %v4156
      %v4557 = vunpack.c.l.b16 %v4157
      %v4558 = vunpack.c.l.b16 %v4158
      %v4559 = vunpack.c.l.b16 %v4159
      %v4560 = vunpack.c.l.b16 %v4160
      %v4561 = vunpack.c.l.b16 %v4161
      %v4562 = vunpack.c.l.b16 %v4162
      %v4563 = vunpack.c.l.b16 %v4163
      %v4564 = vunpack.c.l.b16 %v4164
      %v4565 = vunpack.c.l.b16 %v4165
      %v4566 = vunpack.c.l.b16 %v4166
      %v4567 = vunpack.c.l.b16 %v4167
      %v4568 = vunpack.c.l.b16 %v4168
      %v4569 = vunpack.c.l.b16 %v4169
      %v4570 = vunpack.c.l.b16 %v4170
      %v4571 = vunpack.c.l.b16 %v4171
      %v4572 = vunpack.c.l.b16 %v4172
      %v4573 = vunpack.c.l.b16 %v4173
      %v4574 = vunpack.c.l.b16 %v4174
      %v4575 = vunpack.c.l.b16 %v4175
      %v4576 = vunpack.c.l.b16 %v4176
      %v4577 = vunpack.c.l.b16 %v4177
      %v4578 = vunpack.c.l.b16 %v4178
      %v4579 = vunpack.c.l.b16 %v4179
      %v4580 = vunpack.c.l.b16 %v4180
      %v4581 = vunpack.c.l.b16 %v4181
      %v4582 = vunpack.c.l.b16 %v4182
      %v4583 = vunpack.c.l.b16 %v4183
      %v4584 = vunpack.c.l.b16 %v4184
      %v4585 = vunpack.c.l.b16 %v4185
      %v4586 = vunpack.c.l.b16 %v4186
      %v4587 = vunpack.c.l.b16 %v4187
      %v4588 = vunpack.c.l.b16 %v4188
      %v4589 = vunpack.c.l.b16 %v4189
      %v4590 = vunpack.c.l.b16 %v4190
      %v4591 = vunpack.c.l.b16 %v4191
      %v4592 = vunpack.c.l.b16 %v4192
      %v4593 = vunpack.c.l.b16 %v4193
      %v4594 = vunpack.c.l.b16 %v4194
      %v4595 = vunpack.c.l.b16 %v4195
      %v4596 = vunpack.c.l.b16 %v4196
      %v4597 = vunpack.c.l.b16 %v4197
      %v4598 = vunpack.c.l.b16 %v4198
      %v4599 = vunpack.c.l.b16 %v4199
      %v4600 = vunpack.c.l.b16 %v4200
      %v4601 = vunpack.c.l.b16 %v4201
      %v4602 = vunpack.c.l.b16 %v4202
      %v4603 = vunpack.c.l.b16 %v4203
      %v4604 = vunpack.c.l.b16 %v4204
      %v4605 = vunpack.c.l.b16 %v4205
      %v4606 = vunpack.c.l.b16 %v4206
      %v4607 = vunpack.c.l.b16 %v4207
      %v4608 = vunpack.c.l.b16 %v4208
      %v4609 = vunpack.c.l.b16 %v4209
      %v4610 = vunpack.c.l.b16 %v4210
      %v4611 = vunpack.c.l.b16 %v4211
      %v4612 = vunpack.c.l.b16 %v4212
      %v4613 = vunpack.c.l.b16 %v4213
      %v4614 = vunpack.c.l.b16 %v4214
      %v4615 = vunpack.c.l.b16 %v4215
      %v4616 = vunpack.c.l.b16 %v4216
      %v4617 = vunpack.c.l.b16 %v4217
      %v4618 = vunpack.c.l.b16 %v4218
      %v4619 = vunpack.c.l.b16 %v4219
      %v4620 = vunpack.c.l.b16 %v4220
      %v4621 = vunpack.c.l.b16 %v4221
      %v4622 = vunpack.c.l.b16 %v4222
      %v4623 = vunpack.c.l.b16 %v4223
      %v4624 = vunpack.c.l.b16 %v4224
      %v4625 = vunpack.c.l.b16 %v4225
      %v4626 = vunpack.c.l.b16 %v4226
      %v4627 = vunpack.c.l.b16 %v4227
      %v4628 = vunpack.c.l.b16 %v4228
      %v4629 = vunpack.c.l.b16 %v4229
      %v4630 = vunpack.c.l.b16 %v4230
      %v4631 = vunpack.c.l.b16 %v4231
      %v4632 = vunpack.c.l.b16 %v4232
      %v4633 = vunpack.c.l.b16 %v4233
      %v4634 = vunpack.c.l.b16 %v4234
      %v4635 = vunpack.c.l.b16 %v4235
      %v4636 = vunpack.c.l.b16 %v4236
      %v4637 = vunpack.c.l.b16 %v4237
      %v4638 = vunpack.c.l.b16 %v4238
      %v4639 = vunpack.c.l.b16 %v4239
      %v4640 = vunpack.c.l.b16 %v4240
      %v4641 = vunpack.c.l.b16 %v4241
      %v4642 = vunpack.c.l.b16 %v4242
      %v4643 = vunpack.c.l.b16 %v4243
      %v4644 = vunpack.c.l.b16 %v4244
      %v4645 = vunpack.c.l.b16 %v4245
      %v4646 = vunpack.c.l.b16 %v4246
      %v4647 = vunpack.c.l.b16 %v4247
      %v4648 = vunpack.c.l.b16 %v4248
      %v4649 = vunpack.c.l.b16 %v4249
      %v4650 = vunpack.c.l.b16 %v4250
      %v4651 = vunpack.c.l.b16 %v4251
      %v4652 = vunpack.c.l.b16 %v4252
      %v4653 = vunpack.c.l.b16 %v4253
      %v4654 = vunpack.c.l.b16 %v4254
      %v4655 = vunpack.c.l.b16 %v4255
      %v4656 = vunpack.c.l.b16 %v4256
      %v4657 = vunpack.c.l.b16 %v4257
      %v4658 = vunpack.c.l.b16 %v4258
      %v4659 = vunpack.c.l.b16 %v4259
      %v4660 = vunpack.c.l.b16 %v4260
      %v4661 = vunpack.c.l.b16 %v4261
      %v4662 = vunpack.c.l.b16 %v4262
      %v4663 = vpack.c.b16 %v4464, %v4463
      %v4664 = vpack.c.b16 %v4466, %v4465
      %v4665 = vpack.c.b16 %v4468, %v4467
      %v4666 = vpack.c.b16 %v4470, %v4469
      %v4667 = vpack.c.b16 %v4472, %v4471
      %v4668 = vpack.c.b16 %v4474, %v4473
      %v4669 = vpack.c.b16 %v4476, %v4475
      %v4670 = vpack.c.b16 %v4478, %v4477
      %v4671 = vpack.c.b16 %v4480, %v4479
      %v4672 = vpack.c.b16 %v4482, %v4481
      %v4673 = vpack.c.b16 %v4484, %v4483
      %v4674 = vpack.c.b16 %v4486, %v4485
      %v4675 = vpack.c.b16 %v4488, %v4487
      %v4676 = vpack.c.b16 %v4490, %v4489
      %v4677 = vpack.c.b16 %v4492, %v4491
      %v4678 = vpack.c.b16 %v4494, %v4493
      %v4679 = vpack.c.b16 %v4496, %v4495
      %v4680 = vpack.c.b16 %v4498, %v4497
      %v4681 = vpack.c.b16 %v4500, %v4499
      %v4682 = vpack.c.b16 %v4502, %v4501
      %v4683 = vpack.c.b16 %v4504, %v4503
      %v4684 = vpack.c.b16 %v4506, %v4505
      %v4685 = vpack.c.b16 %v4508, %v4507
      %v4686 = vpack.c.b16 %v4510, %v4509
      %v4687 = vpack.c.b16 %v4512, %v4511
      %v4688 = vpack.c.b16 %v4514, %v4513
      %v4689 = vpack.c.b16 %v4516, %v4515
      %v4690 = vpack.c.b16 %v4518, %v4517
      %v4691 = vpack.c.b16 %v4520, %v4519
      %v4692 = vpack.c.b16 %v4522, %v4521
      %v4693 = vpack.c.b16 %v4524, %v4523
      %v4694 = vpack.c.b16 %v4526, %v4525
      %v4695 = vpack.c.b16 %v4528, %v4527
      %v4696 = vpack.c.b16 %v4530, %v4529
      %v4697 = vpack.c.b16 %v4532, %v4531
      %v4698 = vpack.c.b16 %v4534, %v4533
      %v4699 = vpack.c.b16 %v4536, %v4535
      %v4700 = vpack.c.b16 %v4538, %v4537
      %v4701 = vpack.c.b16 %v4540, %v4539
      %v4702 = vpack.c.b16 %v4542, %v4541
      %v4703 = vpack.c.b16 %v4544, %v4543
      %v4704 = vpack.c.b16 %v4546, %v4545
      %v4705 = vpack.c.b16 %v4548, %v4547
      %v4706 = vpack.c.b16 %v4550, %v4549
      %v4707 = vpack.c.b16 %v4552, %v4551
      %v4708 = vpack.c.b16 %v4554, %v4553
      %v4709 = vpack.c.b16 %v4556, %v4555
      %v4710 = vpack.c.b16 %v4558, %v4557
      %v4711 = vpack.c.b16 %v4560, %v4559
      %v4712 = vpack.c.b16 %v4562, %v4561
      %v4713 = vpack.c.b16 %v4564, %v4563
      %v4714 = vpack.c.b16 %v4566, %v4565
      %v4715 = vpack.c.b16 %v4568, %v4567
      %v4716 = vpack.c.b16 %v4570, %v4569
      %v4717 = vpack.c.b16 %v4572, %v4571
      %v4718 = vpack.c.b16 %v4574, %v4573
      %v4719 = vpack.c.b16 %v4576, %v4575
      %v4720 = vpack.c.b16 %v4578, %v4577
      %v4721 = vpack.c.b16 %v4580, %v4579
      %v4722 = vpack.c.b16 %v4582, %v4581
      %v4723 = vpack.c.b16 %v4584, %v4583
      %v4724 = vpack.c.b16 %v4586, %v4585
      %v4725 = vpack.c.b16 %v4588, %v4587
      %v4726 = vpack.c.b16 %v4590, %v4589
      %v4727 = vpack.c.b16 %v4592, %v4591
      %v4728 = vpack.c.b16 %v4594, %v4593
      %v4729 = vpack.c.b16 %v4596, %v4595
      %v4730 = vpack.c.b16 %v4598, %v4597
      %v4731 = vpack.c.b16 %v4600, %v4599
      %v4732 = vpack.c.b16 %v4602, %v4601
      %v4733 = vpack.c.b16 %v4604, %v4603
      %v4734 = vpack.c.b16 %v4606, %v4605
      %v4735 = vpack.c.b16 %v4608, %v4607
      %v4736 = vpack.c.b16 %v4610, %v4609
      %v4737 = vpack.c.b16 %v4612, %v4611
      %v4738 = vpack.c.b16 %v4614, %v4613
      %v4739 = vpack.c.b16 %v4616, %v4615
      %v4740 = vpack.c.b16 %v4618, %v4617
      %v4741 = vpack.c.b16 %v4620, %v4619
      %v4742 = vpack.c.b16 %v4622, %v4621
      %v4743 = vpack.c.b16 %v4624, %v4623
      %v4744 = vpack.c.b16 %v4626, %v4625
      %v4745 = vpack.c.b16 %v4628, %v4627
      %v4746 = vpack.c.b16 %v4630, %v4629
      %v4747 = vpack.c.b16 %v4632, %v4631
      %v4748 = vpack.c.b16 %v4634, %v4633
      %v4749 = vpack.c.b16 %v4636, %v4635
      %v4750 = vpack.c.b16 %v4638, %v4637
      %v4751 = vpack.c.b16 %v4640, %v4639
      %v4752 = vpack.c.b16 %v4642, %v4641
      %v4753 = vpack.c.b16 %v4644, %v4643
      %v4754 = vpack.c.b16 %v4646, %v4645
      %v4755 = vpack.c.b16 %v4648, %v4647
      %v4756 = vpack.c.b16 %v4650, %v4649
      %v4757 = vpack.c.b16 %v4652, %v4651
      %v4758 = vpack.c.b16 %v4654, %v4653
      %v4759 = vpack.c.b16 %v4656, %v4655
      %v4760 = vpack.c.b16 %v4658, %v4657
      %v4761 = vpack.c.b16 %v4660, %v4659
      %v4762 = vpack.c.b16 %v4662, %v4661
      %v4764 = vsel %vm887, %v4663, 0
      %v4767 = vsel %vm887, %v4664, 0
      %v4770 = vsel %vm887, %v4665, 0
      %v4773 = vsel %vm887, %v4666, 0
      %v4776 = vsel %vm887, %v4667, 0
      %v4779 = vsel %vm887, %v4668, 0
      %v4782 = vsel %vm887, %v4669, 0
      %v4785 = vsel %vm887, %v4670, 0
      %v4788 = vsel %vm887, %v4671, 0
      %v4791 = vsel %vm887, %v4672, 0
      %v4794 = vsel %vm887, %v4673, 0
      %v4797 = vsel %vm887, %v4674, 0
      %v4800 = vsel %vm887, %v4675, 0
      %v4803 = vsel %vm887, %v4676, 0
      %v4806 = vsel %vm887, %v4677, 0
      %v4809 = vsel %vm887, %v4678, 0
      %v4812 = vsel %vm887, %v4679, 0
      %v4815 = vsel %vm887, %v4680, 0
      %v4818 = vsel %vm887, %v4681, 0
      %v4821 = vsel %vm887, %v4682, 0
      %v4824 = vsel %vm887, %v4683, 0
      %v4827 = vsel %vm887, %v4684, 0
      %v4830 = vsel %vm887, %v4685, 0
      %v4833 = vsel %vm887, %v4686, 0
      %v4836 = vsel %vm887, %v4687, 0
      %v4839 = vsel %vm887, %v4688, 0
      %v4842 = vsel %vm887, %v4689, 0
      %v4845 = vsel %vm887, %v4690, 0
      %v4848 = vsel %vm887, %v4691, 0
      %v4851 = vsel %vm887, %v4692, 0
      %v4854 = vsel %vm887, %v4693, 0
      %v4857 = vsel %vm887, %v4694, 0
      %v4860 = vsel %vm887, %v4695, 0
      %v4863 = vsel %vm887, %v4696, 0
      %v4866 = vsel %vm887, %v4697, 0
      %v4869 = vsel %vm887, %v4698, 0
      %v4872 = vsel %vm887, %v4699, 0
      %v4875 = vsel %vm887, %v4700, 0
      %v4878 = vsel %vm887, %v4701, 0
      %v4881 = vsel %vm887, %v4702, 0
      %v4884 = vsel %vm887, %v4703, 0
      %v4887 = vsel %vm887, %v4704, 0
      %v4890 = vsel %vm887, %v4705, 0
      %v4893 = vsel %vm887, %v4706, 0
      %v4896 = vsel %vm887, %v4707, 0
      %v4899 = vsel %vm887, %v4708, 0
      %v4902 = vsel %vm887, %v4709, 0
      %v4905 = vsel %vm887, %v4710, 0
      %v4908 = vsel %vm887, %v4711, 0
      %v4911 = vsel %vm887, %v4712, 0
      %v4914 = vsel %vm887, %v4713, 0
      %v4917 = vsel %vm887, %v4714, 0
      %v4920 = vsel %vm887, %v4715, 0
      %v4923 = vsel %vm887, %v4716, 0
      %v4926 = vsel %vm887, %v4717, 0
      %v4929 = vsel %vm887, %v4718, 0
      %v4932 = vsel %vm887, %v4719, 0
      %v4935 = vsel %vm887, %v4720, 0
      %v4938 = vsel %vm887, %v4721, 0
      %v4941 = vsel %vm887, %v4722, 0
      %v4944 = vsel %vm887, %v4723, 0
      %v4947 = vsel %vm887, %v4724, 0
      %v4950 = vsel %vm887, %v4725, 0
      %v4953 = vsel %vm887, %v4726, 0
      %v4956 = vsel %vm887, %v4727, 0
      %v4959 = vsel %vm887, %v4728, 0
      %v4962 = vsel %vm887, %v4729, 0
      %v4965 = vsel %vm887, %v4730, 0
      %v4968 = vsel %vm887, %v4731, 0
      %v4971 = vsel %vm887, %v4732, 0
      %v4974 = vsel %vm887, %v4733, 0
      %v4977 = vsel %vm887, %v4734, 0
      %v4980 = vsel %vm887, %v4735, 0
      %v4983 = vsel %vm887, %v4736, 0
      %v4986 = vsel %vm887, %v4737, 0
      %v4989 = vsel %vm887, %v4738, 0
      %v4992 = vsel %vm887, %v4739, 0
      %v4995 = vsel %vm887, %v4740, 0
      %v4998 = vsel %vm887, %v4741, 0
      %v5001 = vsel %vm887, %v4742, 0
      %v5004 = vsel %vm887, %v4743, 0
      %v5007 = vsel %vm887, %v4744, 0
      %v5010 = vsel %vm887, %v4745, 0
      %v5013 = vsel %vm887, %v4746, 0
      %v5016 = vsel %vm887, %v4747, 0
      %v5019 = vsel %vm887, %v4748, 0
      %v5022 = vsel %vm887, %v4749, 0
      %v5025 = vsel %vm887, %v4750, 0
      %v5028 = vsel %vm887, %v4751, 0
      %v5031 = vsel %vm887, %v4752, 0
      %v5034 = vsel %vm887, %v4753, 0
      %v5037 = vsel %vm887, %v4754, 0
      %v5040 = vsel %vm887, %v4755, 0
      %v5043 = vsel %vm887, %v4756, 0
      %v5046 = vsel %vm887, %v4757, 0
      %v5049 = vsel %vm887, %v4758, 0
      %v5052 = vsel %vm887, %v4759, 0
      %v5055 = vsel %vm887, %v4760, 0
      %v5058 = vsel %vm887, %v4761, 0
      %v5061 = vsel %vm887, %v4762, 0
      %5063 = vmatprep.subr.bf16.mxu0 0
      %5064 = vmatpush1.bf16.msra.mxu0 %v884
      %5065 = vmatprep.subr.bf16.mxu0 0
      %5066 = vmatpush1.bf16.msra.mxu0 %v1193
      %5067 = vmatprep.subr.bf16.mxu0 0
      %5068 = vmatpush1.bf16.msra.mxu0 0
      %5069 = vmatprep.subr.bf16.mxu0 0
      %5070 = vmatpush1.bf16.msra.mxu0 0
      %5071 = vmatprep.subr.bf16.mxu0 0
      %5072 = vmatpush1.bf16.msra.mxu0 0
      %5073 = vmatprep.subr.bf16.mxu0 0
      %5074 = vmatpush1.bf16.msra.mxu0 0
      %5075 = vmatprep.subr.bf16.mxu0 0
      %5076 = vmatpush1.bf16.msra.mxu0 0
      %5077 = vmatprep.subr.bf16.mxu0 0
      %5078 = vmatpush1.bf16.msra.mxu0 0
      %5079 = vmatprep.subr.bf16.mxu0 0
      %5080 = vmatpush1.bf16.msra.mxu0 0
      %5081 = vmatprep.subr.bf16.mxu0 0
      %5082 = vmatpush1.bf16.msra.mxu0 0
      %5083 = vmatprep.subr.bf16.mxu0 0
      %5084 = vmatpush1.bf16.msra.mxu0 0
      %5085 = vmatprep.subr.bf16.mxu0 0
      %5086 = vmatpush1.bf16.msra.mxu0 0
      %5087 = vmatprep.subr.bf16.mxu0 0
      %5088 = vmatpush1.bf16.msra.mxu0 0
      %5089 = vmatprep.subr.bf16.mxu0 0
      %5090 = vmatpush1.bf16.msra.mxu0 0
      %5091 = vmatprep.subr.bf16.mxu0 0
      %5092 = vmatpush1.bf16.msra.mxu0 0
      %5093 = vmatprep.subr.bf16.mxu0 0
      %5094 = vmatpush1.bf16.msra.mxu0 0
      %5095 = vmatprep.mubr.bf16.mxu0 0
      %5096 = vmatmul.mubr.bf16.gmra.mrb[0].mxu0 %v4764
      %v5097 = vpop.f32.mrb[0].mxu0
      %v5098 = vadd.f32 0.0, %v5097
      %v5099 = vpop.f32.mrb[0].mxu0
      %v5100 = vpop.f32.mrb[0].mxu0
      %v5101 = vadd.f32 0.0, %v5100
      %v5102 = vpop.f32.mrb[0].mxu0
      %5103 = vmatprep.mubr.bf16.mxu0 0
      %5104 = vmatmul.mubr.bf16.gmra.mrb[0].mxu0 %v4767
      %v5105 = vpop.f32.mrb[0].mxu0
      %v5106 = vadd.f32 0.0, %v5105
      %v5107 = vpop.f32.mrb[0].mxu0
      %v5108 = vpop.f32.mrb[0].mxu0
      %v5109 = vadd.f32 0.0, %v5108
      %v5110 = vpop.f32.mrb[0].mxu0
      %5111 = vmatprep.mubr.bf16.mxu0 0
      %5112 = vmatmul.mubr.bf16.gmra.mrb[0].mxu0 %v4770
      %v5113 = vpop.f32.mrb[0].mxu0
      %v5114 = vadd.f32 0.0, %v5113
      %v5115 = vpop.f32.mrb[0].mxu0
      %v5116 = vpop.f32.mrb[0].mxu0
      %v5117 = vadd.f32 0.0, %v5116
      %v5118 = vpop.f32.mrb[0].mxu0
      %5119 = vmatprep.mubr.bf16.mxu0 0
      %5120 = vmatmul.mubr.bf16.gmra.mrb[0].mxu0 %v4773
      %v5121 = vpop.f32.mrb[0].mxu0
      %v5122 = vadd.f32 0.0, %v5121
      %v5123 = vpop.f32.mrb[0].mxu0
      %v5124 = vpop.f32.mrb[0].mxu0
      %v5125 = vadd.f32 0.0, %v5124
      %v5126 = vpop.f32.mrb[0].mxu0
      %5127 = vmatprep.mubr.bf16.mxu0 0
      %5128 = vmatmul.mubr.bf16.gmra.mrb[0].mxu0 %v4776
      %v5129 = vpop.f32.mrb[0].mxu0
      %v5130 = vadd.f32 0.0, %v5129
      %v5131 = vpop.f32.mrb[0].mxu0
      %v5132 = vpop.f32.mrb[0].mxu0
      %v5133 = vadd.f32 0.0, %v5132
      %v5134 = vpop.f32.mrb[0].mxu0
      %5135 = vmatprep.mubr.bf16.mxu0 0
      %5136 = vmatmul.mubr.bf16.gmra.mrb[0].mxu0 %v4779
      %v5137 = vpop.f32.mrb[0].mxu0
      %v5138 = vadd.f32 0.0, %v5137
      %v5139 = vpop.f32.mrb[0].mxu0
      %v5140 = vpop.f32.mrb[0].mxu0
      %v5141 = vadd.f32 0.0, %v5140
      %v5142 = vpop.f32.mrb[0].mxu0
      %5143 = vmatprep.mubr.bf16.mxu0 0
      %5144 = vmatmul.mubr.bf16.gmra.mrb[0].mxu0 %v4782
      %v5145 = vpop.f32.mrb[0].mxu0
      %v5146 = vadd.f32 0.0, %v5145
      %v5147 = vpop.f32.mrb[0].mxu0
      %v5148 = vpop.f32.mrb[0].mxu0
      %v5149 = vadd.f32 0.0, %v5148
      %v5150 = vpop.f32.mrb[0].mxu0
      %5151 = vmatprep.mubr.bf16.mxu0 0
      %5152 = vmatmul.mubr.bf16.gmra.mrb[0].mxu0 %v4785
      %v5153 = vpop.f32.mrb[0].mxu0
      %v5154 = vadd.f32 0.0, %v5153
      %v5155 = vpop.f32.mrb[0].mxu0
      %v5156 = vpop.f32.mrb[0].mxu0
      %v5157 = vadd.f32 0.0, %v5156
      %v5158 = vpop.f32.mrb[0].mxu0
      %5159 = vmatprep.mubr.bf16.mxu0 0
      %5160 = vmatmul.mubr.bf16.gmra.mrb[0].mxu0 %v4788
      %v5161 = vpop.f32.mrb[0].mxu0
      %v5162 = vadd.f32 0.0, %v5161
      %v5163 = vpop.f32.mrb[0].mxu0
      %v5164 = vpop.f32.mrb[0].mxu0
      %v5165 = vadd.f32 0.0, %v5164
      %v5166 = vpop.f32.mrb[0].mxu0
      %5167 = vmatprep.mubr.bf16.mxu0 0
      %5168 = vmatmul.mubr.bf16.gmra.mrb[0].mxu0 %v4791
      %v5169 = vpop.f32.mrb[0].mxu0
      %v5170 = vadd.f32 0.0, %v5169
      %v5171 = vpop.f32.mrb[0].mxu0
      %v5172 = vpop.f32.mrb[0].mxu0
      %v5173 = vadd.f32 0.0, %v5172
      %v5174 = vpop.f32.mrb[0].mxu0
      %5175 = vmatprep.mubr.bf16.mxu0 0
      %5176 = vmatmul.mubr.bf16.gmra.mrb[0].mxu0 %v4794
      %v5177 = vpop.f32.mrb[0].mxu0
      %v5178 = vadd.f32 0.0, %v5177
      %v5179 = vpop.f32.mrb[0].mxu0
      %v5180 = vpop.f32.mrb[0].mxu0
      %v5181 = vadd.f32 0.0, %v5180
      %v5182 = vpop.f32.mrb[0].mxu0
      %5183 = vmatprep.mubr.bf16.mxu0 0
      %5184 = vmatmul.mubr.bf16.gmra.mrb[0].mxu0 %v4797
      %v5185 = vpop.f32.mrb[0].mxu0
      %v5186 = vadd.f32 0.0, %v5185
      %v5187 = vpop.f32.mrb[0].mxu0
      %v5188 = vpop.f32.mrb[0].mxu0
      %v5189 = vadd.f32 0.0, %v5188
      %v5190 = vpop.f32.mrb[0].mxu0
      %5191 = vmatprep.mubr.bf16.mxu0 0
      %5192 = vmatmul.mubr.bf16.gmra.mrb[0].mxu0 %v4800
      %v5193 = vpop.f32.mrb[0].mxu0
      %v5194 = vadd.f32 0.0, %v5193
      %v5195 = vpop.f32.mrb[0].mxu0
      %v5196 = vpop.f32.mrb[0].mxu0
      %v5197 = vadd.f32 0.0, %v5196
      %v5198 = vpop.f32.mrb[0].mxu0
      %5199 = vmatprep.mubr.bf16.mxu0 0
      %5200 = vmatmul.mubr.bf16.gmra.mrb[0].mxu0 %v4803
      %v5201 = vpop.f32.mrb[0].mxu0
      %v5202 = vadd.f32 0.0, %v5201
      %v5203 = vpop.f32.mrb[0].mxu0
      %v5204 = vpop.f32.mrb[0].mxu0
      %v5205 = vadd.f32 0.0, %v5204
      %v5206 = vpop.f32.mrb[0].mxu0
      %5207 = vmatprep.mubr.bf16.mxu0 0
      %5208 = vmatmul.mubr.bf16.gmra.mrb[0].mxu0 %v4806
      %v5209 = vpop.f32.mrb[0].mxu0
      %v5210 = vadd.f32 0.0, %v5209
      %v5211 = vpop.f32.mrb[0].mxu0
      %v5212 = vpop.f32.mrb[0].mxu0
      %v5213 = vadd.f32 0.0, %v5212
      %v5214 = vpop.f32.mrb[0].mxu0
      %5215 = vmatprep.mubr.bf16.mxu0 0
      %5216 = vmatmul.mubr.bf16.gmra.mrb[0].mxu0 %v4809
      %v5217 = vpop.f32.mrb[0].mxu0
      %v5218 = vadd.f32 0.0, %v5217
      %v5219 = vpop.f32.mrb[0].mxu0
      %v5220 = vpop.f32.mrb[0].mxu0
      %v5221 = vadd.f32 0.0, %v5220
      %v5222 = vpop.f32.mrb[0].mxu0
      %5223 = vmatprep.mubr.bf16.mxu0 0
      %5224 = vmatmul.mubr.bf16.gmra.mrb[0].mxu0 %v4812
      %v5225 = vpop.f32.mrb[0].mxu0
      %v5226 = vadd.f32 0.0, %v5225
      %v5227 = vpop.f32.mrb[0].mxu0
      %v5228 = vpop.f32.mrb[0].mxu0
      %v5229 = vadd.f32 0.0, %v5228
      %v5230 = vpop.f32.mrb[0].mxu0
      %5231 = vmatprep.mubr.bf16.mxu0 0
      %5232 = vmatmul.mubr.bf16.gmra.mrb[0].mxu0 %v4815
      %v5233 = vpop.f32.mrb[0].mxu0
      %v5234 = vadd.f32 0.0, %v5233
      %v5235 = vpop.f32.mrb[0].mxu0
      %v5236 = vpop.f32.mrb[0].mxu0
      %v5237 = vadd.f32 0.0, %v5236
      %v5238 = vpop.f32.mrb[0].mxu0
      %5239 = vmatprep.mubr.bf16.mxu0 0
      %5240 = vmatmul.mubr.bf16.gmra.mrb[0].mxu0 %v4818
      %v5241 = vpop.f32.mrb[0].mxu0
      %v5242 = vadd.f32 0.0, %v5241
      %v5243 = vpop.f32.mrb[0].mxu0
      %v5244 = vpop.f32.mrb[0].mxu0
      %v5245 = vadd.f32 0.0, %v5244
      %v5246 = vpop.f32.mrb[0].mxu0
      %5247 = vmatprep.mubr.bf16.mxu0 0
      %5248 = vmatmul.mubr.bf16.gmra.mrb[0].mxu0 %v4821
      %v5249 = vpop.f32.mrb[0].mxu0
      %v5250 = vadd.f32 0.0, %v5249
      %v5251 = vpop.f32.mrb[0].mxu0
      %v5252 = vpop.f32.mrb[0].mxu0
      %v5253 = vadd.f32 0.0, %v5252
      %v5254 = vpop.f32.mrb[0].mxu0
      %5255 = vmatprep.mubr.bf16.mxu0 0
      %5256 = vmatmul.mubr.bf16.gmra.mrb[0].mxu0 %v4824
      %v5257 = vpop.f32.mrb[0].mxu0
      %v5258 = vadd.f32 0.0, %v5257
      %v5259 = vpop.f32.mrb[0].mxu0
      %v5260 = vpop.f32.mrb[0].mxu0
      %v5261 = vadd.f32 0.0, %v5260
      %v5262 = vpop.f32.mrb[0].mxu0
      %5263 = vmatprep.mubr.bf16.mxu0 0
      %5264 = vmatmul.mubr.bf16.gmra.mrb[0].mxu0 %v4827
      %v5265 = vpop.f32.mrb[0].mxu0
      %v5266 = vadd.f32 0.0, %v5265
      %v5267 = vpop.f32.mrb[0].mxu0
      %v5268 = vpop.f32.mrb[0].mxu0
      %v5269 = vadd.f32 0.0, %v5268
      %v5270 = vpop.f32.mrb[0].mxu0
      %5271 = vmatprep.mubr.bf16.mxu0 0
      %5272 = vmatmul.mubr.bf16.gmra.mrb[0].mxu0 %v4830
      %v5273 = vpop.f32.mrb[0].mxu0
      %v5274 = vadd.f32 0.0, %v5273
      %v5275 = vpop.f32.mrb[0].mxu0
      %v5276 = vpop.f32.mrb[0].mxu0
      %v5277 = vadd.f32 0.0, %v5276
      %v5278 = vpop.f32.mrb[0].mxu0
      %5279 = vmatprep.mubr.bf16.mxu0 0
      %5280 = vmatmul.mubr.bf16.gmra.mrb[0].mxu0 %v4833
      %v5281 = vpop.f32.mrb[0].mxu0
      %v5282 = vadd.f32 0.0, %v5281
      %v5283 = vpop.f32.mrb[0].mxu0
      %v5284 = vpop.f32.mrb[0].mxu0
      %v5285 = vadd.f32 0.0, %v5284
      %v5286 = vpop.f32.mrb[0].mxu0
      %5287 = vmatprep.mubr.bf16.mxu0 0
      %5288 = vmatmul.mubr.bf16.gmra.mrb[0].mxu0 %v4836
      %v5289 = vpop.f32.mrb[0].mxu0
      %v5290 = vadd.f32 0.0, %v5289
      %v5291 = vpop.f32.mrb[0].mxu0
      %v5292 = vpop.f32.mrb[0].mxu0
      %v5293 = vadd.f32 0.0, %v5292
      %v5294 = vpop.f32.mrb[0].mxu0
      %5295 = vmatprep.mubr.bf16.mxu0 0
      %5296 = vmatmul.mubr.bf16.gmra.mrb[0].mxu0 %v4839
      %v5297 = vpop.f32.mrb[0].mxu0
      %v5298 = vadd.f32 0.0, %v5297
      %v5299 = vpop.f32.mrb[0].mxu0
      %v5300 = vpop.f32.mrb[0].mxu0
      %v5301 = vadd.f32 0.0, %v5300
      %v5302 = vpop.f32.mrb[0].mxu0
      %5303 = vmatprep.mubr.bf16.mxu0 0
      %5304 = vmatmul.mubr.bf16.gmra.mrb[0].mxu0 %v4842
      %v5305 = vpop.f32.mrb[0].mxu0
      %v5306 = vadd.f32 0.0, %v5305
      %v5307 = vpop.f32.mrb[0].mxu0
      %v5308 = vpop.f32.mrb[0].mxu0
      %v5309 = vadd.f32 0.0, %v5308
      %v5310 = vpop.f32.mrb[0].mxu0
      %5311 = vmatprep.mubr.bf16.mxu0 0
      %5312 = vmatmul.mubr.bf16.gmra.mrb[0].mxu0 %v4845
      %v5313 = vpop.f32.mrb[0].mxu0
      %v5314 = vadd.f32 0.0, %v5313
      %v5315 = vpop.f32.mrb[0].mxu0
      %v5316 = vpop.f32.mrb[0].mxu0
      %v5317 = vadd.f32 0.0, %v5316
      %v5318 = vpop.f32.mrb[0].mxu0
      %5319 = vmatprep.mubr.bf16.mxu0 0
      %5320 = vmatmul.mubr.bf16.gmra.mrb[0].mxu0 %v4848
      %v5321 = vpop.f32.mrb[0].mxu0
      %v5322 = vadd.f32 0.0, %v5321
      %v5323 = vpop.f32.mrb[0].mxu0
      %v5324 = vpop.f32.mrb[0].mxu0
      %v5325 = vadd.f32 0.0, %v5324
      %v5326 = vpop.f32.mrb[0].mxu0
      %5327 = vmatprep.mubr.bf16.mxu0 0
      %5328 = vmatmul.mubr.bf16.gmra.mrb[0].mxu0 %v4851
      %v5329 = vpop.f32.mrb[0].mxu0
      %v5330 = vadd.f32 0.0, %v5329
      %v5331 = vpop.f32.mrb[0].mxu0
      %v5332 = vpop.f32.mrb[0].mxu0
      %v5333 = vadd.f32 0.0, %v5332
      %v5334 = vpop.f32.mrb[0].mxu0
      %5335 = vmatprep.mubr.bf16.mxu0 0
      %5336 = vmatmul.mubr.bf16.gmra.mrb[0].mxu0 %v4854
      %v5337 = vpop.f32.mrb[0].mxu0
      %v5338 = vadd.f32 0.0, %v5337
      %v5339 = vpop.f32.mrb[0].mxu0
      %v5340 = vpop.f32.mrb[0].mxu0
      %v5341 = vadd.f32 0.0, %v5340
      %v5342 = vpop.f32.mrb[0].mxu0
      %5343 = vmatprep.mubr.bf16.mxu0 0
      %5344 = vmatmul.mubr.bf16.gmra.mrb[0].mxu0 %v4857
      %v5345 = vpop.f32.mrb[0].mxu0
      %v5346 = vadd.f32 0.0, %v5345
      %v5347 = vpop.f32.mrb[0].mxu0
      %v5348 = vpop.f32.mrb[0].mxu0
      %v5349 = vadd.f32 0.0, %v5348
      %v5350 = vpop.f32.mrb[0].mxu0
      %5351 = vmatprep.mubr.bf16.mxu0 0
      %5352 = vmatmul.mubr.bf16.gmra.mrb[0].mxu0 %v4860
      %v5353 = vpop.f32.mrb[0].mxu0
      %v5354 = vadd.f32 0.0, %v5353
      %v5355 = vpop.f32.mrb[0].mxu0
      %v5356 = vpop.f32.mrb[0].mxu0
      %v5357 = vadd.f32 0.0, %v5356
      %v5358 = vpop.f32.mrb[0].mxu0
      %5359 = vmatprep.mubr.bf16.mxu0 0
      %5360 = vmatmul.mubr.bf16.gmra.mrb[0].mxu0 %v4863
      %v5361 = vpop.f32.mrb[0].mxu0
      %v5362 = vadd.f32 0.0, %v5361
      %v5363 = vpop.f32.mrb[0].mxu0
      %v5364 = vpop.f32.mrb[0].mxu0
      %v5365 = vadd.f32 0.0, %v5364
      %v5366 = vpop.f32.mrb[0].mxu0
      %5367 = vmatprep.mubr.bf16.mxu0 0
      %5368 = vmatmul.mubr.bf16.gmra.mrb[0].mxu0 %v4866
      %v5369 = vpop.f32.mrb[0].mxu0
      %v5370 = vadd.f32 0.0, %v5369
      %v5371 = vpop.f32.mrb[0].mxu0
      %v5372 = vpop.f32.mrb[0].mxu0
      %v5373 = vadd.f32 0.0, %v5372
      %v5374 = vpop.f32.mrb[0].mxu0
      %5375 = vmatprep.mubr.bf16.mxu0 0
      %5376 = vmatmul.mubr.bf16.gmra.mrb[0].mxu0 %v4869
      %v5377 = vpop.f32.mrb[0].mxu0
      %v5378 = vadd.f32 0.0, %v5377
      %v5379 = vpop.f32.mrb[0].mxu0
      %v5380 = vpop.f32.mrb[0].mxu0
      %v5381 = vadd.f32 0.0, %v5380
      %v5382 = vpop.f32.mrb[0].mxu0
      %5383 = vmatprep.mubr.bf16.mxu0 0
      %5384 = vmatmul.mubr.bf16.gmra.mrb[0].mxu0 %v4872
      %v5385 = vpop.f32.mrb[0].mxu0
      %v5386 = vadd.f32 0.0, %v5385
      %v5387 = vpop.f32.mrb[0].mxu0
      %v5388 = vpop.f32.mrb[0].mxu0
      %v5389 = vadd.f32 0.0, %v5388
      %v5390 = vpop.f32.mrb[0].mxu0
      %5391 = vmatprep.mubr.bf16.mxu0 0
      %5392 = vmatmul.mubr.bf16.gmra.mrb[0].mxu0 %v4875
      %v5393 = vpop.f32.mrb[0].mxu0
      %v5394 = vadd.f32 0.0, %v5393
      %v5395 = vpop.f32.mrb[0].mxu0
      %v5396 = vpop.f32.mrb[0].mxu0
      %v5397 = vadd.f32 0.0, %v5396
      %v5398 = vpop.f32.mrb[0].mxu0
      %5399 = vmatprep.mubr.bf16.mxu0 0
      %5400 = vmatmul.mubr.bf16.gmra.mrb[0].mxu0 %v4878
      %v5401 = vpop.f32.mrb[0].mxu0
      %v5402 = vadd.f32 0.0, %v5401
      %v5403 = vpop.f32.mrb[0].mxu0
      %v5404 = vpop.f32.mrb[0].mxu0
      %v5405 = vadd.f32 0.0, %v5404
      %v5406 = vpop.f32.mrb[0].mxu0
      %5407 = vmatprep.mubr.bf16.mxu0 0
      %5408 = vmatmul.mubr.bf16.gmra.mrb[0].mxu0 %v4881
      %v5409 = vpop.f32.mrb[0].mxu0
      %v5410 = vadd.f32 0.0, %v5409
      %v5411 = vpop.f32.mrb[0].mxu0
      %v5412 = vpop.f32.mrb[0].mxu0
      %v5413 = vadd.f32 0.0, %v5412
      %v5414 = vpop.f32.mrb[0].mxu0
      %5415 = vmatprep.mubr.bf16.mxu0 0
      %5416 = vmatmul.mubr.bf16.gmra.mrb[0].mxu0 %v4884
      %v5417 = vpop.f32.mrb[0].mxu0
      %v5418 = vadd.f32 0.0, %v5417
      %v5419 = vpop.f32.mrb[0].mxu0
      %v5420 = vpop.f32.mrb[0].mxu0
      %v5421 = vadd.f32 0.0, %v5420
      %v5422 = vpop.f32.mrb[0].mxu0
      %5423 = vmatprep.mubr.bf16.mxu0 0
      %5424 = vmatmul.mubr.bf16.gmra.mrb[0].mxu0 %v4887
      %v5425 = vpop.f32.mrb[0].mxu0
      %v5426 = vadd.f32 0.0, %v5425
      %v5427 = vpop.f32.mrb[0].mxu0
      %v5428 = vpop.f32.mrb[0].mxu0
      %v5429 = vadd.f32 0.0, %v5428
      %v5430 = vpop.f32.mrb[0].mxu0
      %5431 = vmatprep.mubr.bf16.mxu0 0
      %5432 = vmatmul.mubr.bf16.gmra.mrb[0].mxu0 %v4890
      %v5433 = vpop.f32.mrb[0].mxu0
      %v5434 = vadd.f32 0.0, %v5433
      %v5435 = vpop.f32.mrb[0].mxu0
      %v5436 = vpop.f32.mrb[0].mxu0
      %v5437 = vadd.f32 0.0, %v5436
      %v5438 = vpop.f32.mrb[0].mxu0
      %5439 = vmatprep.mubr.bf16.mxu0 0
      %5440 = vmatmul.mubr.bf16.gmra.mrb[0].mxu0 %v4893
      %v5441 = vpop.f32.mrb[0].mxu0
      %v5442 = vadd.f32 0.0, %v5441
      %v5443 = vpop.f32.mrb[0].mxu0
      %v5444 = vpop.f32.mrb[0].mxu0
      %v5445 = vadd.f32 0.0, %v5444
      %v5446 = vpop.f32.mrb[0].mxu0
      %5447 = vmatprep.mubr.bf16.mxu0 0
      %5448 = vmatmul.mubr.bf16.gmra.mrb[0].mxu0 %v4896
      %v5449 = vpop.f32.mrb[0].mxu0
      %v5450 = vadd.f32 0.0, %v5449
      %v5451 = vpop.f32.mrb[0].mxu0
      %v5452 = vpop.f32.mrb[0].mxu0
      %v5453 = vadd.f32 0.0, %v5452
      %v5454 = vpop.f32.mrb[0].mxu0
      %5455 = vmatprep.mubr.bf16.mxu0 0
      %5456 = vmatmul.mubr.bf16.gmra.mrb[0].mxu0 %v4899
      %v5457 = vpop.f32.mrb[0].mxu0
      %v5458 = vadd.f32 0.0, %v5457
      %v5459 = vpop.f32.mrb[0].mxu0
      %v5460 = vpop.f32.mrb[0].mxu0
      %v5461 = vadd.f32 0.0, %v5460
      %v5462 = vpop.f32.mrb[0].mxu0
      %5463 = vmatprep.mubr.bf16.mxu0 0
      %5464 = vmatmul.mubr.bf16.gmra.mrb[0].mxu0 %v4902
      %v5465 = vpop.f32.mrb[0].mxu0
      %v5466 = vadd.f32 0.0, %v5465
      %v5467 = vpop.f32.mrb[0].mxu0
      %v5468 = vpop.f32.mrb[0].mxu0
      %v5469 = vadd.f32 0.0, %v5468
      %v5470 = vpop.f32.mrb[0].mxu0
      %5471 = vmatprep.mubr.bf16.mxu0 0
      %5472 = vmatmul.mubr.bf16.gmra.mrb[0].mxu0 %v4905
      %v5473 = vpop.f32.mrb[0].mxu0
      %v5474 = vadd.f32 0.0, %v5473
      %v5475 = vpop.f32.mrb[0].mxu0
      %v5476 = vpop.f32.mrb[0].mxu0
      %v5477 = vadd.f32 0.0, %v5476
      %v5478 = vpop.f32.mrb[0].mxu0
      %5479 = vmatprep.mubr.bf16.mxu0 0
      %5480 = vmatmul.mubr.bf16.gmra.mrb[0].mxu0 %v4908
      %v5481 = vpop.f32.mrb[0].mxu0
      %v5482 = vadd.f32 0.0, %v5481
      %v5483 = vpop.f32.mrb[0].mxu0
      %v5484 = vpop.f32.mrb[0].mxu0
      %v5485 = vadd.f32 0.0, %v5484
      %v5486 = vpop.f32.mrb[0].mxu0
      %5487 = vmatprep.mubr.bf16.mxu0 0
      %5488 = vmatmul.mubr.bf16.gmra.mrb[0].mxu0 %v4911
      %v5489 = vpop.f32.mrb[0].mxu0
      %v5490 = vadd.f32 0.0, %v5489
      %v5491 = vpop.f32.mrb[0].mxu0
      %v5492 = vpop.f32.mrb[0].mxu0
      %v5493 = vadd.f32 0.0, %v5492
      %v5494 = vpop.f32.mrb[0].mxu0
      %5495 = vmatprep.mubr.bf16.mxu0 0
      %5496 = vmatmul.mubr.bf16.gmra.mrb[0].mxu0 %v4914
      %v5497 = vpop.f32.mrb[0].mxu0
      %v5498 = vadd.f32 0.0, %v5497
      %v5499 = vpop.f32.mrb[0].mxu0
      %v5500 = vpop.f32.mrb[0].mxu0
      %v5501 = vadd.f32 0.0, %v5500
      %v5502 = vpop.f32.mrb[0].mxu0
      %5503 = vmatprep.mubr.bf16.mxu0 0
      %5504 = vmatmul.mubr.bf16.gmra.mrb[0].mxu0 %v4917
      %v5505 = vpop.f32.mrb[0].mxu0
      %v5506 = vadd.f32 0.0, %v5505
      %v5507 = vpop.f32.mrb[0].mxu0
      %v5508 = vpop.f32.mrb[0].mxu0
      %v5509 = vadd.f32 0.0, %v5508
      %v5510 = vpop.f32.mrb[0].mxu0
      %5511 = vmatprep.mubr.bf16.mxu0 0
      %5512 = vmatmul.mubr.bf16.gmra.mrb[0].mxu0 %v4920
      %v5513 = vpop.f32.mrb[0].mxu0
      %v5514 = vadd.f32 0.0, %v5513
      %v5515 = vpop.f32.mrb[0].mxu0
      %v5516 = vpop.f32.mrb[0].mxu0
      %v5517 = vadd.f32 0.0, %v5516
      %v5518 = vpop.f32.mrb[0].mxu0
      %5519 = vmatprep.mubr.bf16.mxu0 0
      %5520 = vmatmul.mubr.bf16.gmra.mrb[0].mxu0 %v4923
      %v5521 = vpop.f32.mrb[0].mxu0
      %v5522 = vadd.f32 0.0, %v5521
      %v5523 = vpop.f32.mrb[0].mxu0
      %v5524 = vpop.f32.mrb[0].mxu0
      %v5525 = vadd.f32 0.0, %v5524
      %v5526 = vpop.f32.mrb[0].mxu0
      %5527 = vmatprep.mubr.bf16.mxu0 0
      %5528 = vmatmul.mubr.bf16.gmra.mrb[0].mxu0 %v4926
      %v5529 = vpop.f32.mrb[0].mxu0
      %v5530 = vadd.f32 0.0, %v5529
      %v5531 = vpop.f32.mrb[0].mxu0
      %v5532 = vpop.f32.mrb[0].mxu0
      %v5533 = vadd.f32 0.0, %v5532
      %v5534 = vpop.f32.mrb[0].mxu0
      %5535 = vmatprep.mubr.bf16.mxu0 0
      %5536 = vmatmul.mubr.bf16.gmra.mrb[0].mxu0 %v4929
      %v5537 = vpop.f32.mrb[0].mxu0
      %v5538 = vadd.f32 0.0, %v5537
      %v5539 = vpop.f32.mrb[0].mxu0
      %v5540 = vpop.f32.mrb[0].mxu0
      %v5541 = vadd.f32 0.0, %v5540
      %v5542 = vpop.f32.mrb[0].mxu0
      %5543 = vmatprep.mubr.bf16.mxu0 0
      %5544 = vmatmul.mubr.bf16.gmra.mrb[0].mxu0 %v4932
      %v5545 = vpop.f32.mrb[0].mxu0
      %v5546 = vadd.f32 0.0, %v5545
      %v5547 = vpop.f32.mrb[0].mxu0
      %v5548 = vpop.f32.mrb[0].mxu0
      %v5549 = vadd.f32 0.0, %v5548
      %v5550 = vpop.f32.mrb[0].mxu0
      %5551 = vmatprep.mubr.bf16.mxu0 0
      %5552 = vmatmul.mubr.bf16.gmra.mrb[0].mxu0 %v4935
      %v5553 = vpop.f32.mrb[0].mxu0
      %v5554 = vadd.f32 0.0, %v5553
      %v5555 = vpop.f32.mrb[0].mxu0
      %v5556 = vpop.f32.mrb[0].mxu0
      %v5557 = vadd.f32 0.0, %v5556
      %v5558 = vpop.f32.mrb[0].mxu0
      %5559 = vmatprep.mubr.bf16.mxu0 0
      %5560 = vmatmul.mubr.bf16.gmra.mrb[0].mxu0 %v4938
      %v5561 = vpop.f32.mrb[0].mxu0
      %v5562 = vadd.f32 0.0, %v5561
      %v5563 = vpop.f32.mrb[0].mxu0
      %v5564 = vpop.f32.mrb[0].mxu0
      %v5565 = vadd.f32 0.0, %v5564
      %v5566 = vpop.f32.mrb[0].mxu0
      %5567 = vmatprep.mubr.bf16.mxu0 0
      %5568 = vmatmul.mubr.bf16.gmra.mrb[0].mxu0 %v4941
      %v5569 = vpop.f32.mrb[0].mxu0
      %v5570 = vadd.f32 0.0, %v5569
      %v5571 = vpop.f32.mrb[0].mxu0
      %v5572 = vpop.f32.mrb[0].mxu0
      %v5573 = vadd.f32 0.0, %v5572
      %v5574 = vpop.f32.mrb[0].mxu0
      %5575 = vmatprep.mubr.bf16.mxu0 0
      %5576 = vmatmul.mubr.bf16.gmra.mrb[0].mxu0 %v4944
      %v5577 = vpop.f32.mrb[0].mxu0
      %v5578 = vadd.f32 0.0, %v5577
      %v5579 = vpop.f32.mrb[0].mxu0
      %v5580 = vpop.f32.mrb[0].mxu0
      %v5581 = vadd.f32 0.0, %v5580
      %v5582 = vpop.f32.mrb[0].mxu0
      %5583 = vmatprep.mubr.bf16.mxu0 0
      %5584 = vmatmul.mubr.bf16.gmra.mrb[0].mxu0 %v4947
      %v5585 = vpop.f32.mrb[0].mxu0
      %v5586 = vadd.f32 0.0, %v5585
      %v5587 = vpop.f32.mrb[0].mxu0
      %v5588 = vpop.f32.mrb[0].mxu0
      %v5589 = vadd.f32 0.0, %v5588
      %v5590 = vpop.f32.mrb[0].mxu0
      %5591 = vmatprep.mubr.bf16.mxu0 0
      %5592 = vmatmul.mubr.bf16.gmra.mrb[0].mxu0 %v4950
      %v5593 = vpop.f32.mrb[0].mxu0
      %v5594 = vadd.f32 0.0, %v5593
      %v5595 = vpop.f32.mrb[0].mxu0
      %v5596 = vpop.f32.mrb[0].mxu0
      %v5597 = vadd.f32 0.0, %v5596
      %v5598 = vpop.f32.mrb[0].mxu0
      %5599 = vmatprep.mubr.bf16.mxu0 0
      %5600 = vmatmul.mubr.bf16.gmra.mrb[0].mxu0 %v4953
      %v5601 = vpop.f32.mrb[0].mxu0
      %v5602 = vadd.f32 0.0, %v5601
      %v5603 = vpop.f32.mrb[0].mxu0
      %v5604 = vpop.f32.mrb[0].mxu0
      %v5605 = vadd.f32 0.0, %v5604
      %v5606 = vpop.f32.mrb[0].mxu0
      %5607 = vmatprep.mubr.bf16.mxu0 0
      %5608 = vmatmul.mubr.bf16.gmra.mrb[0].mxu0 %v4956
      %v5609 = vpop.f32.mrb[0].mxu0
      %v5610 = vadd.f32 0.0, %v5609
      %v5611 = vpop.f32.mrb[0].mxu0
      %v5612 = vpop.f32.mrb[0].mxu0
      %v5613 = vadd.f32 0.0, %v5612
      %v5614 = vpop.f32.mrb[0].mxu0
      %5615 = vmatprep.mubr.bf16.mxu0 0
      %5616 = vmatmul.mubr.bf16.gmra.mrb[0].mxu0 %v4959
      %v5617 = vpop.f32.mrb[0].mxu0
      %v5618 = vadd.f32 0.0, %v5617
      %v5619 = vpop.f32.mrb[0].mxu0
      %v5620 = vpop.f32.mrb[0].mxu0
      %v5621 = vadd.f32 0.0, %v5620
      %v5622 = vpop.f32.mrb[0].mxu0
      %5623 = vmatprep.mubr.bf16.mxu0 0
      %5624 = vmatmul.mubr.bf16.gmra.mrb[0].mxu0 %v4962
      %v5625 = vpop.f32.mrb[0].mxu0
      %v5626 = vadd.f32 0.0, %v5625
      %v5627 = vpop.f32.mrb[0].mxu0
      %v5628 = vpop.f32.mrb[0].mxu0
      %v5629 = vadd.f32 0.0, %v5628
      %v5630 = vpop.f32.mrb[0].mxu0
      %5631 = vmatprep.mubr.bf16.mxu0 0
      %5632 = vmatmul.mubr.bf16.gmra.mrb[0].mxu0 %v4965
      %v5633 = vpop.f32.mrb[0].mxu0
      %v5634 = vadd.f32 0.0, %v5633
      %v5635 = vpop.f32.mrb[0].mxu0
      %v5636 = vpop.f32.mrb[0].mxu0
      %v5637 = vadd.f32 0.0, %v5636
      %v5638 = vpop.f32.mrb[0].mxu0
      %5639 = vmatprep.mubr.bf16.mxu0 0
      %5640 = vmatmul.mubr.bf16.gmra.mrb[0].mxu0 %v4968
      %v5641 = vpop.f32.mrb[0].mxu0
      %v5642 = vadd.f32 0.0, %v5641
      %v5643 = vpop.f32.mrb[0].mxu0
      %v5644 = vpop.f32.mrb[0].mxu0
      %v5645 = vadd.f32 0.0, %v5644
      %v5646 = vpop.f32.mrb[0].mxu0
      %5647 = vmatprep.mubr.bf16.mxu0 0
      %5648 = vmatmul.mubr.bf16.gmra.mrb[0].mxu0 %v4971
      %v5649 = vpop.f32.mrb[0].mxu0
      %v5650 = vadd.f32 0.0, %v5649
      %v5651 = vpop.f32.mrb[0].mxu0
      %v5652 = vpop.f32.mrb[0].mxu0
      %v5653 = vadd.f32 0.0, %v5652
      %v5654 = vpop.f32.mrb[0].mxu0
      %5655 = vmatprep.mubr.bf16.mxu0 0
      %5656 = vmatmul.mubr.bf16.gmra.mrb[0].mxu0 %v4974
      %v5657 = vpop.f32.mrb[0].mxu0
      %v5658 = vadd.f32 0.0, %v5657
      %v5659 = vpop.f32.mrb[0].mxu0
      %v5660 = vpop.f32.mrb[0].mxu0
      %v5661 = vadd.f32 0.0, %v5660
      %v5662 = vpop.f32.mrb[0].mxu0
      %5663 = vmatprep.mubr.bf16.mxu0 0
      %5664 = vmatmul.mubr.bf16.gmra.mrb[0].mxu0 %v4977
      %v5665 = vpop.f32.mrb[0].mxu0
      %v5666 = vadd.f32 0.0, %v5665
      %v5667 = vpop.f32.mrb[0].mxu0
      %v5668 = vpop.f32.mrb[0].mxu0
      %v5669 = vadd.f32 0.0, %v5668
      %v5670 = vpop.f32.mrb[0].mxu0
      %5671 = vmatprep.mubr.bf16.mxu0 0
      %5672 = vmatmul.mubr.bf16.gmra.mrb[0].mxu0 %v4980
      %v5673 = vpop.f32.mrb[0].mxu0
      %v5674 = vadd.f32 0.0, %v5673
      %v5675 = vpop.f32.mrb[0].mxu0
      %v5676 = vpop.f32.mrb[0].mxu0
      %v5677 = vadd.f32 0.0, %v5676
      %v5678 = vpop.f32.mrb[0].mxu0
      %5679 = vmatprep.mubr.bf16.mxu0 0
      %5680 = vmatmul.mubr.bf16.gmra.mrb[0].mxu0 %v4983
      %v5681 = vpop.f32.mrb[0].mxu0
      %v5682 = vadd.f32 0.0, %v5681
      %v5683 = vpop.f32.mrb[0].mxu0
      %v5684 = vpop.f32.mrb[0].mxu0
      %v5685 = vadd.f32 0.0, %v5684
      %v5686 = vpop.f32.mrb[0].mxu0
      %5687 = vmatprep.mubr.bf16.mxu0 0
      %5688 = vmatmul.mubr.bf16.gmra.mrb[0].mxu0 %v4986
      %v5689 = vpop.f32.mrb[0].mxu0
      %v5690 = vadd.f32 0.0, %v5689
      %v5691 = vpop.f32.mrb[0].mxu0
      %v5692 = vpop.f32.mrb[0].mxu0
      %v5693 = vadd.f32 0.0, %v5692
      %v5694 = vpop.f32.mrb[0].mxu0
      %5695 = vmatprep.mubr.bf16.mxu0 0
      %5696 = vmatmul.mubr.bf16.gmra.mrb[0].mxu0 %v4989
      %v5697 = vpop.f32.mrb[0].mxu0
      %v5698 = vadd.f32 0.0, %v5697
      %v5699 = vpop.f32.mrb[0].mxu0
      %v5700 = vpop.f32.mrb[0].mxu0
      %v5701 = vadd.f32 0.0, %v5700
      %v5702 = vpop.f32.mrb[0].mxu0
      %5703 = vmatprep.mubr.bf16.mxu0 0
      %5704 = vmatmul.mubr.bf16.gmra.mrb[0].mxu0 %v4992
      %v5705 = vpop.f32.mrb[0].mxu0
      %v5706 = vadd.f32 0.0, %v5705
      %v5707 = vpop.f32.mrb[0].mxu0
      %v5708 = vpop.f32.mrb[0].mxu0
      %v5709 = vadd.f32 0.0, %v5708
      %v5710 = vpop.f32.mrb[0].mxu0
      %5711 = vmatprep.mubr.bf16.mxu0 0
      %5712 = vmatmul.mubr.bf16.gmra.mrb[0].mxu0 %v4995
      %v5713 = vpop.f32.mrb[0].mxu0
      %v5714 = vadd.f32 0.0, %v5713
      %v5715 = vpop.f32.mrb[0].mxu0
      %v5716 = vpop.f32.mrb[0].mxu0
      %v5717 = vadd.f32 0.0, %v5716
      %v5718 = vpop.f32.mrb[0].mxu0
      %5719 = vmatprep.mubr.bf16.mxu0 0
      %5720 = vmatmul.mubr.bf16.gmra.mrb[0].mxu0 %v4998
      %v5721 = vpop.f32.mrb[0].mxu0
      %v5722 = vadd.f32 0.0, %v5721
      %v5723 = vpop.f32.mrb[0].mxu0
      %v5724 = vpop.f32.mrb[0].mxu0
      %v5725 = vadd.f32 0.0, %v5724
      %v5726 = vpop.f32.mrb[0].mxu0
      %5727 = vmatprep.mubr.bf16.mxu0 0
      %5728 = vmatmul.mubr.bf16.gmra.mrb[0].mxu0 %v5001
      %v5729 = vpop.f32.mrb[0].mxu0
      %v5730 = vadd.f32 0.0, %v5729
      %v5731 = vpop.f32.mrb[0].mxu0
      %v5732 = vpop.f32.mrb[0].mxu0
      %v5733 = vadd.f32 0.0, %v5732
      %v5734 = vpop.f32.mrb[0].mxu0
      %5735 = vmatprep.mubr.bf16.mxu0 0
      %5736 = vmatmul.mubr.bf16.gmra.mrb[0].mxu0 %v5004
      %v5737 = vpop.f32.mrb[0].mxu0
      %v5738 = vadd.f32 0.0, %v5737
      %v5739 = vpop.f32.mrb[0].mxu0
      %v5740 = vpop.f32.mrb[0].mxu0
      %v5741 = vadd.f32 0.0, %v5740
      %v5742 = vpop.f32.mrb[0].mxu0
      %5743 = vmatprep.mubr.bf16.mxu0 0
      %5744 = vmatmul.mubr.bf16.gmra.mrb[0].mxu0 %v5007
      %v5745 = vpop.f32.mrb[0].mxu0
      %v5746 = vadd.f32 0.0, %v5745
      %v5747 = vpop.f32.mrb[0].mxu0
      %v5748 = vpop.f32.mrb[0].mxu0
      %v5749 = vadd.f32 0.0, %v5748
      %v5750 = vpop.f32.mrb[0].mxu0
      %5751 = vmatprep.mubr.bf16.mxu0 0
      %5752 = vmatmul.mubr.bf16.gmra.mrb[0].mxu0 %v5010
      %v5753 = vpop.f32.mrb[0].mxu0
      %v5754 = vadd.f32 0.0, %v5753
      %v5755 = vpop.f32.mrb[0].mxu0
      %v5756 = vpop.f32.mrb[0].mxu0
      %v5757 = vadd.f32 0.0, %v5756
      %v5758 = vpop.f32.mrb[0].mxu0
      %5759 = vmatprep.mubr.bf16.mxu0 0
      %5760 = vmatmul.mubr.bf16.gmra.mrb[0].mxu0 %v5013
      %v5761 = vpop.f32.mrb[0].mxu0
      %v5762 = vadd.f32 0.0, %v5761
      %v5763 = vpop.f32.mrb[0].mxu0
      %v5764 = vpop.f32.mrb[0].mxu0
      %v5765 = vadd.f32 0.0, %v5764
      %v5766 = vpop.f32.mrb[0].mxu0
      %5767 = vmatprep.mubr.bf16.mxu0 0
      %5768 = vmatmul.mubr.bf16.gmra.mrb[0].mxu0 %v5016
      %v5769 = vpop.f32.mrb[0].mxu0
      %v5770 = vadd.f32 0.0, %v5769
      %v5771 = vpop.f32.mrb[0].mxu0
      %v5772 = vpop.f32.mrb[0].mxu0
      %v5773 = vadd.f32 0.0, %v5772
      %v5774 = vpop.f32.mrb[0].mxu0
      %5775 = vmatprep.mubr.bf16.mxu0 0
      %5776 = vmatmul.mubr.bf16.gmra.mrb[0].mxu0 %v5019
      %v5777 = vpop.f32.mrb[0].mxu0
      %v5778 = vadd.f32 0.0, %v5777
      %v5779 = vpop.f32.mrb[0].mxu0
      %v5780 = vpop.f32.mrb[0].mxu0
      %v5781 = vadd.f32 0.0, %v5780
      %v5782 = vpop.f32.mrb[0].mxu0
      %5783 = vmatprep.mubr.bf16.mxu0 0
      %5784 = vmatmul.mubr.bf16.gmra.mrb[0].mxu0 %v5022
      %v5785 = vpop.f32.mrb[0].mxu0
      %v5786 = vadd.f32 0.0, %v5785
      %v5787 = vpop.f32.mrb[0].mxu0
      %v5788 = vpop.f32.mrb[0].mxu0
      %v5789 = vadd.f32 0.0, %v5788
      %v5790 = vpop.f32.mrb[0].mxu0
      %5791 = vmatprep.mubr.bf16.mxu0 0
      %5792 = vmatmul.mubr.bf16.gmra.mrb[0].mxu0 %v5025
      %v5793 = vpop.f32.mrb[0].mxu0
      %v5794 = vadd.f32 0.0, %v5793
      %v5795 = vpop.f32.mrb[0].mxu0
      %v5796 = vpop.f32.mrb[0].mxu0
      %v5797 = vadd.f32 0.0, %v5796
      %v5798 = vpop.f32.mrb[0].mxu0
      %5799 = vmatprep.mubr.bf16.mxu0 0
      %5800 = vmatmul.mubr.bf16.gmra.mrb[0].mxu0 %v5028
      %v5801 = vpop.f32.mrb[0].mxu0
      %v5802 = vadd.f32 0.0, %v5801
      %v5803 = vpop.f32.mrb[0].mxu0
      %v5804 = vpop.f32.mrb[0].mxu0
      %v5805 = vadd.f32 0.0, %v5804
      %v5806 = vpop.f32.mrb[0].mxu0
      %5807 = vmatprep.mubr.bf16.mxu0 0
      %5808 = vmatmul.mubr.bf16.gmra.mrb[0].mxu0 %v5031
      %v5809 = vpop.f32.mrb[0].mxu0
      %v5810 = vadd.f32 0.0, %v5809
      %v5811 = vpop.f32.mrb[0].mxu0
      %v5812 = vpop.f32.mrb[0].mxu0
      %v5813 = vadd.f32 0.0, %v5812
      %v5814 = vpop.f32.mrb[0].mxu0
      %5815 = vmatprep.mubr.bf16.mxu0 0
      %5816 = vmatmul.mubr.bf16.gmra.mrb[0].mxu0 %v5034
      %v5817 = vpop.f32.mrb[0].mxu0
      %v5818 = vadd.f32 0.0, %v5817
      %v5819 = vpop.f32.mrb[0].mxu0
      %v5820 = vpop.f32.mrb[0].mxu0
      %v5821 = vadd.f32 0.0, %v5820
      %v5822 = vpop.f32.mrb[0].mxu0
      %5823 = vmatprep.mubr.bf16.mxu0 0
      %5824 = vmatmul.mubr.bf16.gmra.mrb[0].mxu0 %v5037
      %v5825 = vpop.f32.mrb[0].mxu0
      %v5826 = vadd.f32 0.0, %v5825
      %v5827 = vpop.f32.mrb[0].mxu0
      %v5828 = vpop.f32.mrb[0].mxu0
      %v5829 = vadd.f32 0.0, %v5828
      %v5830 = vpop.f32.mrb[0].mxu0
      %5831 = vmatprep.mubr.bf16.mxu0 0
      %5832 = vmatmul.mubr.bf16.gmra.mrb[0].mxu0 %v5040
      %v5833 = vpop.f32.mrb[0].mxu0
      %v5834 = vadd.f32 0.0, %v5833
      %v5835 = vpop.f32.mrb[0].mxu0
      %v5836 = vpop.f32.mrb[0].mxu0
      %v5837 = vadd.f32 0.0, %v5836
      %v5838 = vpop.f32.mrb[0].mxu0
      %5839 = vmatprep.mubr.bf16.mxu0 0
      %5840 = vmatmul.mubr.bf16.gmra.mrb[0].mxu0 %v5043
      %v5841 = vpop.f32.mrb[0].mxu0
      %v5842 = vadd.f32 0.0, %v5841
      %v5843 = vpop.f32.mrb[0].mxu0
      %v5844 = vpop.f32.mrb[0].mxu0
      %v5845 = vadd.f32 0.0, %v5844
      %v5846 = vpop.f32.mrb[0].mxu0
      %5847 = vmatprep.mubr.bf16.mxu0 0
      %5848 = vmatmul.mubr.bf16.gmra.mrb[0].mxu0 %v5046
      %v5849 = vpop.f32.mrb[0].mxu0
      %v5850 = vadd.f32 0.0, %v5849
      %v5851 = vpop.f32.mrb[0].mxu0
      %v5852 = vpop.f32.mrb[0].mxu0
      %v5853 = vadd.f32 0.0, %v5852
      %v5854 = vpop.f32.mrb[0].mxu0
      %5855 = vmatprep.mubr.bf16.mxu0 0
      %5856 = vmatmul.mubr.bf16.gmra.mrb[0].mxu0 %v5049
      %v5857 = vpop.f32.mrb[0].mxu0
      %v5858 = vadd.f32 0.0, %v5857
      %v5859 = vpop.f32.mrb[0].mxu0
      %v5860 = vpop.f32.mrb[0].mxu0
      %v5861 = vadd.f32 0.0, %v5860
      %v5862 = vpop.f32.mrb[0].mxu0
      %5863 = vmatprep.mubr.bf16.mxu0 0
      %5864 = vmatmul.mubr.bf16.gmra.mrb[0].mxu0 %v5052
      %v5865 = vpop.f32.mrb[0].mxu0
      %v5866 = vadd.f32 0.0, %v5865
      %v5867 = vpop.f32.mrb[0].mxu0
      %v5868 = vpop.f32.mrb[0].mxu0
      %v5869 = vadd.f32 0.0, %v5868
      %v5870 = vpop.f32.mrb[0].mxu0
      %5871 = vmatprep.mubr.bf16.mxu0 0
      %5872 = vmatmul.mubr.bf16.gmra.mrb[0].mxu0 %v5055
      %v5873 = vpop.f32.mrb[0].mxu0
      %v5874 = vadd.f32 0.0, %v5873
      %v5875 = vpop.f32.mrb[0].mxu0
      %v5876 = vpop.f32.mrb[0].mxu0
      %v5877 = vadd.f32 0.0, %v5876
      %v5878 = vpop.f32.mrb[0].mxu0
      %5879 = vmatprep.mubr.bf16.mxu0 0
      %5880 = vmatmul.mubr.bf16.gmra.mrb[0].mxu0 %v5058
      %v5881 = vpop.f32.mrb[0].mxu0
      %v5882 = vadd.f32 0.0, %v5881
      %v5883 = vpop.f32.mrb[0].mxu0
      %v5884 = vpop.f32.mrb[0].mxu0
      %v5885 = vadd.f32 0.0, %v5884
      %v5886 = vpop.f32.mrb[0].mxu0
      %5887 = vmatprep.mubr.bf16.mxu0 0
      %5888 = vmatmul.mubr.bf16.gmra.mrb[0].mxu0 %v5061
      %v5889 = vpop.f32.mrb[0].mxu0
      %v5890 = vadd.f32 0.0, %v5889
      %v5891 = vpop.f32.mrb[0].mxu0
      %v5892 = vpop.f32.mrb[0].mxu0
      %v5893 = vadd.f32 0.0, %v5892
      %v5894 = vpop.f32.mrb[0].mxu0
      %5895 = vdwg.mxu0
      %v5896 = vmax.f32 %v3862, %v5098
      %v5897 = vmax.f32 %v3863, %v5101
      %v5898 = vmax.f32 %v3864, %v5106
      %v5899 = vmax.f32 %v3865, %v5109
      %v5900 = vmax.f32 %v3866, %v5114
      %v5901 = vmax.f32 %v3867, %v5117
      %v5902 = vmax.f32 %v3868, %v5122
      %v5903 = vmax.f32 %v3869, %v5125
      %v5904 = vmax.f32 %v3870, %v5130
      %v5905 = vmax.f32 %v3871, %v5133
      %v5906 = vmax.f32 %v3872, %v5138
      %v5907 = vmax.f32 %v3873, %v5141
      %v5908 = vmax.f32 %v3874, %v5146
      %v5909 = vmax.f32 %v3875, %v5149
      %v5910 = vmax.f32 %v3876, %v5154
      %v5911 = vmax.f32 %v3877, %v5157
      %v5912 = vmax.f32 %v3878, %v5162
      %v5913 = vmax.f32 %v3879, %v5165
      %v5914 = vmax.f32 %v3880, %v5170
      %v5915 = vmax.f32 %v3881, %v5173
      %v5916 = vmax.f32 %v3882, %v5178
      %v5917 = vmax.f32 %v3883, %v5181
      %v5918 = vmax.f32 %v3884, %v5186
      %v5919 = vmax.f32 %v3885, %v5189
      %v5920 = vmax.f32 %v3886, %v5194
      %v5921 = vmax.f32 %v3887, %v5197
      %v5922 = vmax.f32 %v3888, %v5202
      %v5923 = vmax.f32 %v3889, %v5205
      %v5924 = vmax.f32 %v3890, %v5210
      %v5925 = vmax.f32 %v3891, %v5213
      %v5926 = vmax.f32 %v3892, %v5218
      %v5927 = vmax.f32 %v3893, %v5221
      %v5928 = vmax.f32 %v3894, %v5226
      %v5929 = vmax.f32 %v3895, %v5229
      %v5930 = vmax.f32 %v3896, %v5234
      %v5931 = vmax.f32 %v3897, %v5237
      %v5932 = vmax.f32 %v3898, %v5242
      %v5933 = vmax.f32 %v3899, %v5245
      %v5934 = vmax.f32 %v3900, %v5250
      %v5935 = vmax.f32 %v3901, %v5253
      %v5936 = vmax.f32 %v3902, %v5258
      %v5937 = vmax.f32 %v3903, %v5261
      %v5938 = vmax.f32 %v3904, %v5266
      %v5939 = vmax.f32 %v3905, %v5269
      %v5940 = vmax.f32 %v3906, %v5274
      %v5941 = vmax.f32 %v3907, %v5277
      %v5942 = vmax.f32 %v3908, %v5282
      %v5943 = vmax.f32 %v3909, %v5285
      %v5944 = vmax.f32 %v3910, %v5290
      %v5945 = vmax.f32 %v3911, %v5293
      %v5946 = vmax.f32 %v3912, %v5298
      %v5947 = vmax.f32 %v3913, %v5301
      %v5948 = vmax.f32 %v3914, %v5306
      %v5949 = vmax.f32 %v3915, %v5309
      %v5950 = vmax.f32 %v3916, %v5314
      %v5951 = vmax.f32 %v3917, %v5317
      %v5952 = vmax.f32 %v3918, %v5322
      %v5953 = vmax.f32 %v3919, %v5325
      %v5954 = vmax.f32 %v3920, %v5330
      %v5955 = vmax.f32 %v3921, %v5333
      %v5956 = vmax.f32 %v3922, %v5338
      %v5957 = vmax.f32 %v3923, %v5341
      %v5958 = vmax.f32 %v3924, %v5346
      %v5959 = vmax.f32 %v3925, %v5349
      %v5960 = vmax.f32 %v3926, %v5354
      %v5961 = vmax.f32 %v3927, %v5357
      %v5962 = vmax.f32 %v3928, %v5362
      %v5963 = vmax.f32 %v3929, %v5365
      %v5964 = vmax.f32 %v3930, %v5370
      %v5965 = vmax.f32 %v3931, %v5373
      %v5966 = vmax.f32 %v3932, %v5378
      %v5967 = vmax.f32 %v3933, %v5381
      %v5968 = vmax.f32 %v3934, %v5386
      %v5969 = vmax.f32 %v3935, %v5389
      %v5970 = vmax.f32 %v3936, %v5394
      %v5971 = vmax.f32 %v3937, %v5397
      %v5972 = vmax.f32 %v3938, %v5402
      %v5973 = vmax.f32 %v3939, %v5405
      %v5974 = vmax.f32 %v3940, %v5410
      %v5975 = vmax.f32 %v3941, %v5413
      %v5976 = vmax.f32 %v3942, %v5418
      %v5977 = vmax.f32 %v3943, %v5421
      %v5978 = vmax.f32 %v3944, %v5426
      %v5979 = vmax.f32 %v3945, %v5429
      %v5980 = vmax.f32 %v3946, %v5434
      %v5981 = vmax.f32 %v3947, %v5437
      %v5982 = vmax.f32 %v3948, %v5442
      %v5983 = vmax.f32 %v3949, %v5445
      %v5984 = vmax.f32 %v3950, %v5450
      %v5985 = vmax.f32 %v3951, %v5453
      %v5986 = vmax.f32 %v3952, %v5458
      %v5987 = vmax.f32 %v3953, %v5461
      %v5988 = vmax.f32 %v3954, %v5466
      %v5989 = vmax.f32 %v3955, %v5469
      %v5990 = vmax.f32 %v3956, %v5474
      %v5991 = vmax.f32 %v3957, %v5477
      %v5992 = vmax.f32 %v3958, %v5482
      %v5993 = vmax.f32 %v3959, %v5485
      %v5994 = vmax.f32 %v3960, %v5490
      %v5995 = vmax.f32 %v3961, %v5493
      %v5996 = vmax.f32 %v3962, %v5498
      %v5997 = vmax.f32 %v3963, %v5501
      %v5998 = vmax.f32 %v3964, %v5506
      %v5999 = vmax.f32 %v3965, %v5509
      %v6000 = vmax.f32 %v3966, %v5514
      %v6001 = vmax.f32 %v3967, %v5517
      %v6002 = vmax.f32 %v3968, %v5522
      %v6003 = vmax.f32 %v3969, %v5525
      %v6004 = vmax.f32 %v3970, %v5530
      %v6005 = vmax.f32 %v3971, %v5533
      %v6006 = vmax.f32 %v3972, %v5538
      %v6007 = vmax.f32 %v3973, %v5541
      %v6008 = vmax.f32 %v3974, %v5546
      %v6009 = vmax.f32 %v3975, %v5549
      %v6010 = vmax.f32 %v3976, %v5554
      %v6011 = vmax.f32 %v3977, %v5557
      %v6012 = vmax.f32 %v3978, %v5562
      %v6013 = vmax.f32 %v3979, %v5565
      %v6014 = vmax.f32 %v3980, %v5570
      %v6015 = vmax.f32 %v3981, %v5573
      %v6016 = vmax.f32 %v3982, %v5578
      %v6017 = vmax.f32 %v3983, %v5581
      %v6018 = vmax.f32 %v3984, %v5586
      %v6019 = vmax.f32 %v3985, %v5589
      %v6020 = vmax.f32 %v3986, %v5594
      %v6021 = vmax.f32 %v3987, %v5597
      %v6022 = vmax.f32 %v3988, %v5602
      %v6023 = vmax.f32 %v3989, %v5605
      %v6024 = vmax.f32 %v3990, %v5610
      %v6025 = vmax.f32 %v3991, %v5613
      %v6026 = vmax.f32 %v3992, %v5618
      %v6027 = vmax.f32 %v3993, %v5621
      %v6028 = vmax.f32 %v3994, %v5626
      %v6029 = vmax.f32 %v3995, %v5629
      %v6030 = vmax.f32 %v3996, %v5634
      %v6031 = vmax.f32 %v3997, %v5637
      %v6032 = vmax.f32 %v3998, %v5642
      %v6033 = vmax.f32 %v3999, %v5645
      %v6034 = vmax.f32 %v4000, %v5650
      %v6035 = vmax.f32 %v4001, %v5653
      %v6036 = vmax.f32 %v4002, %v5658
      %v6037 = vmax.f32 %v4003, %v5661
      %v6038 = vmax.f32 %v4004, %v5666
      %v6039 = vmax.f32 %v4005, %v5669
      %v6040 = vmax.f32 %v4006, %v5674
      %v6041 = vmax.f32 %v4007, %v5677
      %v6042 = vmax.f32 %v4008, %v5682
      %v6043 = vmax.f32 %v4009, %v5685
      %v6044 = vmax.f32 %v4010, %v5690
      %v6045 = vmax.f32 %v4011, %v5693
      %v6046 = vmax.f32 %v4012, %v5698
      %v6047 = vmax.f32 %v4013, %v5701
      %v6048 = vmax.f32 %v4014, %v5706
      %v6049 = vmax.f32 %v4015, %v5709
      %v6050 = vmax.f32 %v4016, %v5714
      %v6051 = vmax.f32 %v4017, %v5717
      %v6052 = vmax.f32 %v4018, %v5722
      %v6053 = vmax.f32 %v4019, %v5725
      %v6054 = vmax.f32 %v4020, %v5730
      %v6055 = vmax.f32 %v4021, %v5733
      %v6056 = vmax.f32 %v4022, %v5738
      %v6057 = vmax.f32 %v4023, %v5741
      %v6058 = vmax.f32 %v4024, %v5746
      %v6059 = vmax.f32 %v4025, %v5749
      %v6060 = vmax.f32 %v4026, %v5754
      %v6061 = vmax.f32 %v4027, %v5757
      %v6062 = vmax.f32 %v4028, %v5762
      %v6063 = vmax.f32 %v4029, %v5765
      %v6064 = vmax.f32 %v4030, %v5770
      %v6065 = vmax.f32 %v4031, %v5773
      %v6066 = vmax.f32 %v4032, %v5778
      %v6067 = vmax.f32 %v4033, %v5781
      %v6068 = vmax.f32 %v4034, %v5786
      %v6069 = vmax.f32 %v4035, %v5789
      %v6070 = vmax.f32 %v4036, %v5794
      %v6071 = vmax.f32 %v4037, %v5797
      %v6072 = vmax.f32 %v4038, %v5802
      %v6073 = vmax.f32 %v4039, %v5805
      %v6074 = vmax.f32 %v4040, %v5810
      %v6075 = vmax.f32 %v4041, %v5813
      %v6076 = vmax.f32 %v4042, %v5818
      %v6077 = vmax.f32 %v4043, %v5821
      %v6078 = vmax.f32 %v4044, %v5826
      %v6079 = vmax.f32 %v4045, %v5829
      %v6080 = vmax.f32 %v4046, %v5834
      %v6081 = vmax.f32 %v4047, %v5837
      %v6082 = vmax.f32 %v4048, %v5842
      %v6083 = vmax.f32 %v4049, %v5845
      %v6084 = vmax.f32 %v4050, %v5850
      %v6085 = vmax.f32 %v4051, %v5853
      %v6086 = vmax.f32 %v4052, %v5858
      %v6087 = vmax.f32 %v4053, %v5861
      %v6088 = vmax.f32 %v4054, %v5866
      %v6089 = vmax.f32 %v4055, %v5869
      %v6090 = vmax.f32 %v4056, %v5874
      %v6091 = vmax.f32 %v4057, %v5877
      %v6092 = vmax.f32 %v4058, %v5882
      %v6093 = vmax.f32 %v4059, %v5885
      %v6094 = vmax.f32 %v4060, %v5890
      %v6095 = vmax.f32 %v4061, %v5893
      %s6096 = scalar_lea.vmem %s165, 2400
      %v6097 = vld [vmem:[%s6096] sm:$0xf]
      %v6098 = vld [vmem:[%s6096 + $0x4] sm:$0xf]
      %v6099 = vld [vmem:[%s6096 + $0x8] sm:$0xf]
      %v6100 = vld [vmem:[%s6096 + $0xc] sm:$0xf]
      %v6101 = vld [vmem:[%s6096 + $0x10] sm:$0xf]
      %v6102 = vld [vmem:[%s6096 + $0x14] sm:$0xf]
      %v6103 = vld [vmem:[%s6096 + $0x18] sm:$0xf]
      %v6104 = vld [vmem:[%s6096 + $0x1c] sm:$0xf]
      %v6105 = vld [vmem:[%s6096 + $0x20] sm:$0xf]
      %v6106 = vld [vmem:[%s6096 + $0x24] sm:$0xf]
      %v6107 = vld [vmem:[%s6096 + $0x28] sm:$0xf]
      %v6108 = vld [vmem:[%s6096 + $0x2c] sm:$0xf]
      %v6109 = vld [vmem:[%s6096 + $0x30] sm:$0xf]
      %v6110 = vld [vmem:[%s6096 + $0x34] sm:$0xf]
      %v6111 = vld [vmem:[%s6096 + $0x38] sm:$0xf]
      %v6112 = vld [vmem:[%s6096 + $0x3c] sm:$0xf]
      %v6113 = vld [vmem:[%s6096 + $0x40] sm:$0xf]
      %v6114 = vld [vmem:[%s6096 + $0x44] sm:$0xf]
      %v6115 = vld [vmem:[%s6096 + $0x48] sm:$0xf]
      %v6116 = vld [vmem:[%s6096 + $0x4c] sm:$0xf]
      %v6117 = vld [vmem:[%s6096 + $0x50] sm:$0xf]
      %v6118 = vld [vmem:[%s6096 + $0x54] sm:$0xf]
      %v6119 = vld [vmem:[%s6096 + $0x58] sm:$0xf]
      %v6120 = vld [vmem:[%s6096 + $0x5c] sm:$0xf]
      %v6121 = vld [vmem:[%s6096 + $0x60] sm:$0xf]
      %v6122 = vld [vmem:[%s6096 + $0x64] sm:$0xf]
      %v6123 = vld [vmem:[%s6096 + $0x68] sm:$0xf]
      %v6124 = vld [vmem:[%s6096 + $0x6c] sm:$0xf]
      %v6125 = vld [vmem:[%s6096 + $0x70] sm:$0xf]
      %v6126 = vld [vmem:[%s6096 + $0x74] sm:$0xf]
      %v6127 = vld [vmem:[%s6096 + $0x78] sm:$0xf]
      %v6128 = vld [vmem:[%s6096 + $0x7c] sm:$0xf]
      %v6129 = vld [vmem:[%s6096 + $0x80] sm:$0xf]
      %v6130 = vld [vmem:[%s6096 + $0x84] sm:$0xf]
      %v6131 = vld [vmem:[%s6096 + $0x88] sm:$0xf]
      %v6132 = vld [vmem:[%s6096 + $0x8c] sm:$0xf]
      %v6133 = vld [vmem:[%s6096 + $0x90] sm:$0xf]
      %v6134 = vld [vmem:[%s6096 + $0x94] sm:$0xf]
      %v6135 = vld [vmem:[%s6096 + $0x98] sm:$0xf]
      %v6136 = vld [vmem:[%s6096 + $0x9c] sm:$0xf]
      %v6137 = vld [vmem:[%s6096 + $0xa0] sm:$0xf]
      %v6138 = vld [vmem:[%s6096 + $0xa4] sm:$0xf]
      %v6139 = vld [vmem:[%s6096 + $0xa8] sm:$0xf]
      %v6140 = vld [vmem:[%s6096 + $0xac] sm:$0xf]
      %v6141 = vld [vmem:[%s6096 + $0xb0] sm:$0xf]
      %v6142 = vld [vmem:[%s6096 + $0xb4] sm:$0xf]
      %v6143 = vld [vmem:[%s6096 + $0xb8] sm:$0xf]
      %v6144 = vld [vmem:[%s6096 + $0xbc] sm:$0xf]
      %v6145 = vld [vmem:[%s6096 + $0xc0] sm:$0xf]
      %v6146 = vld [vmem:[%s6096 + $0xc4] sm:$0xf]
      %v6147 = vld [vmem:[%s6096 + $0xc8] sm:$0xf]
      %v6148 = vld [vmem:[%s6096 + $0xcc] sm:$0xf]
      %v6149 = vld [vmem:[%s6096 + $0xd0] sm:$0xf]
      %v6150 = vld [vmem:[%s6096 + $0xd4] sm:$0xf]
      %v6151 = vld [vmem:[%s6096 + $0xd8] sm:$0xf]
      %v6152 = vld [vmem:[%s6096 + $0xdc] sm:$0xf]
      %v6153 = vld [vmem:[%s6096 + $0xe0] sm:$0xf]
      %v6154 = vld [vmem:[%s6096 + $0xe4] sm:$0xf]
      %v6155 = vld [vmem:[%s6096 + $0xe8] sm:$0xf]
      %v6156 = vld [vmem:[%s6096 + $0xec] sm:$0xf]
      %v6157 = vld [vmem:[%s6096 + $0xf0] sm:$0xf]
      %v6158 = vld [vmem:[%s6096 + $0xf4] sm:$0xf]
      %v6159 = vld [vmem:[%s6096 + $0xf8] sm:$0xf]
      %v6160 = vld [vmem:[%s6096 + $0xfc] sm:$0xf]
      %v6161 = vld [vmem:[%s6096 + $0x100] sm:$0xf]
      %v6162 = vld [vmem:[%s6096 + $0x104] sm:$0xf]
      %v6163 = vld [vmem:[%s6096 + $0x108] sm:$0xf]
      %v6164 = vld [vmem:[%s6096 + $0x10c] sm:$0xf]
      %v6165 = vld [vmem:[%s6096 + $0x110] sm:$0xf]
      %v6166 = vld [vmem:[%s6096 + $0x114] sm:$0xf]
      %v6167 = vld [vmem:[%s6096 + $0x118] sm:$0xf]
      %v6168 = vld [vmem:[%s6096 + $0x11c] sm:$0xf]
      %v6169 = vld [vmem:[%s6096 + $0x120] sm:$0xf]
      %v6170 = vld [vmem:[%s6096 + $0x124] sm:$0xf]
      %v6171 = vld [vmem:[%s6096 + $0x128] sm:$0xf]
      %v6172 = vld [vmem:[%s6096 + $0x12c] sm:$0xf]
      %v6173 = vld [vmem:[%s6096 + $0x130] sm:$0xf]
      %v6174 = vld [vmem:[%s6096 + $0x134] sm:$0xf]
      %v6175 = vld [vmem:[%s6096 + $0x138] sm:$0xf]
      %v6176 = vld [vmem:[%s6096 + $0x13c] sm:$0xf]
      %v6177 = vld [vmem:[%s6096 + $0x140] sm:$0xf]
      %v6178 = vld [vmem:[%s6096 + $0x144] sm:$0xf]
      %v6179 = vld [vmem:[%s6096 + $0x148] sm:$0xf]
      %v6180 = vld [vmem:[%s6096 + $0x14c] sm:$0xf]
      %v6181 = vld [vmem:[%s6096 + $0x150] sm:$0xf]
      %v6182 = vld [vmem:[%s6096 + $0x154] sm:$0xf]
      %v6183 = vld [vmem:[%s6096 + $0x158] sm:$0xf]
      %v6184 = vld [vmem:[%s6096 + $0x15c] sm:$0xf]
      %v6185 = vld [vmem:[%s6096 + $0x160] sm:$0xf]
      %v6186 = vld [vmem:[%s6096 + $0x164] sm:$0xf]
      %v6187 = vld [vmem:[%s6096 + $0x168] sm:$0xf]
      %v6188 = vld [vmem:[%s6096 + $0x16c] sm:$0xf]
      %v6189 = vld [vmem:[%s6096 + $0x170] sm:$0xf]
      %v6190 = vld [vmem:[%s6096 + $0x174] sm:$0xf]
      %v6191 = vld [vmem:[%s6096 + $0x178] sm:$0xf]
      %v6192 = vld [vmem:[%s6096 + $0x17c] sm:$0xf]
      %v6193 = vld [vmem:[%s6096 + $0x180] sm:$0xf]
      %v6194 = vld [vmem:[%s6096 + $0x184] sm:$0xf]
      %v6195 = vld [vmem:[%s6096 + $0x188] sm:$0xf]
      %v6196 = vld [vmem:[%s6096 + $0x18c] sm:$0xf]
      %v6197 = vld [vmem:[%s6096 + $0x190] sm:$0xf]
      %v6198 = vld [vmem:[%s6096 + $0x194] sm:$0xf]
      %v6199 = vld [vmem:[%s6096 + $0x198] sm:$0xf]
      %v6200 = vld [vmem:[%s6096 + $0x19c] sm:$0xf]
      %v6201 = vld [vmem:[%s6096 + $0x1a0] sm:$0xf]
      %v6202 = vld [vmem:[%s6096 + $0x1a4] sm:$0xf]
      %v6203 = vld [vmem:[%s6096 + $0x1a8] sm:$0xf]
      %v6204 = vld [vmem:[%s6096 + $0x1ac] sm:$0xf]
      %v6205 = vld [vmem:[%s6096 + $0x1b0] sm:$0xf]
      %v6206 = vld [vmem:[%s6096 + $0x1b4] sm:$0xf]
      %v6207 = vld [vmem:[%s6096 + $0x1b8] sm:$0xf]
      %v6208 = vld [vmem:[%s6096 + $0x1bc] sm:$0xf]
      %v6209 = vld [vmem:[%s6096 + $0x1c0] sm:$0xf]
      %v6210 = vld [vmem:[%s6096 + $0x1c4] sm:$0xf]
      %v6211 = vld [vmem:[%s6096 + $0x1c8] sm:$0xf]
      %v6212 = vld [vmem:[%s6096 + $0x1cc] sm:$0xf]
      %v6213 = vld [vmem:[%s6096 + $0x1d0] sm:$0xf]
      %v6214 = vld [vmem:[%s6096 + $0x1d4] sm:$0xf]
      %v6215 = vld [vmem:[%s6096 + $0x1d8] sm:$0xf]
      %v6216 = vld [vmem:[%s6096 + $0x1dc] sm:$0xf]
      %v6217 = vld [vmem:[%s6096 + $0x1e0] sm:$0xf]
      %v6218 = vld [vmem:[%s6096 + $0x1e4] sm:$0xf]
      %v6219 = vld [vmem:[%s6096 + $0x1e8] sm:$0xf]
      %v6220 = vld [vmem:[%s6096 + $0x1ec] sm:$0xf]
      %v6221 = vld [vmem:[%s6096 + $0x1f0] sm:$0xf]
      %v6222 = vld [vmem:[%s6096 + $0x1f4] sm:$0xf]
      %v6223 = vld [vmem:[%s6096 + $0x1f8] sm:$0xf]
      %v6224 = vld [vmem:[%s6096 + $0x1fc] sm:$0xf]
      %v6225 = vld [vmem:[%s6096 + $0x200] sm:$0xf]
      %v6226 = vld [vmem:[%s6096 + $0x204] sm:$0xf]
      %v6227 = vld [vmem:[%s6096 + $0x208] sm:$0xf]
      %v6228 = vld [vmem:[%s6096 + $0x20c] sm:$0xf]
      %v6229 = vld [vmem:[%s6096 + $0x210] sm:$0xf]
      %v6230 = vld [vmem:[%s6096 + $0x214] sm:$0xf]
      %v6231 = vld [vmem:[%s6096 + $0x218] sm:$0xf]
      %v6232 = vld [vmem:[%s6096 + $0x21c] sm:$0xf]
      %v6233 = vld [vmem:[%s6096 + $0x220] sm:$0xf]
      %v6234 = vld [vmem:[%s6096 + $0x224] sm:$0xf]
      %v6235 = vld [vmem:[%s6096 + $0x228] sm:$0xf]
      %v6236 = vld [vmem:[%s6096 + $0x22c] sm:$0xf]
      %v6237 = vld [vmem:[%s6096 + $0x230] sm:$0xf]
      %v6238 = vld [vmem:[%s6096 + $0x234] sm:$0xf]
      %v6239 = vld [vmem:[%s6096 + $0x238] sm:$0xf]
      %v6240 = vld [vmem:[%s6096 + $0x23c] sm:$0xf]
      %v6241 = vld [vmem:[%s6096 + $0x240] sm:$0xf]
      %v6242 = vld [vmem:[%s6096 + $0x244] sm:$0xf]
      %v6243 = vld [vmem:[%s6096 + $0x248] sm:$0xf]
      %v6244 = vld [vmem:[%s6096 + $0x24c] sm:$0xf]
      %v6245 = vld [vmem:[%s6096 + $0x250] sm:$0xf]
      %v6246 = vld [vmem:[%s6096 + $0x254] sm:$0xf]
      %v6247 = vld [vmem:[%s6096 + $0x258] sm:$0xf]
      %v6248 = vld [vmem:[%s6096 + $0x25c] sm:$0xf]
      %v6249 = vld [vmem:[%s6096 + $0x260] sm:$0xf]
      %v6250 = vld [vmem:[%s6096 + $0x264] sm:$0xf]
      %v6251 = vld [vmem:[%s6096 + $0x268] sm:$0xf]
      %v6252 = vld [vmem:[%s6096 + $0x26c] sm:$0xf]
      %v6253 = vld [vmem:[%s6096 + $0x270] sm:$0xf]
      %v6254 = vld [vmem:[%s6096 + $0x274] sm:$0xf]
      %v6255 = vld [vmem:[%s6096 + $0x278] sm:$0xf]
      %v6256 = vld [vmem:[%s6096 + $0x27c] sm:$0xf]
      %v6257 = vld [vmem:[%s6096 + $0x280] sm:$0xf]
      %v6258 = vld [vmem:[%s6096 + $0x284] sm:$0xf]
      %v6259 = vld [vmem:[%s6096 + $0x288] sm:$0xf]
      %v6260 = vld [vmem:[%s6096 + $0x28c] sm:$0xf]
      %v6261 = vld [vmem:[%s6096 + $0x290] sm:$0xf]
      %v6262 = vld [vmem:[%s6096 + $0x294] sm:$0xf]
      %v6263 = vld [vmem:[%s6096 + $0x298] sm:$0xf]
      %v6264 = vld [vmem:[%s6096 + $0x29c] sm:$0xf]
      %v6265 = vld [vmem:[%s6096 + $0x2a0] sm:$0xf]
      %v6266 = vld [vmem:[%s6096 + $0x2a4] sm:$0xf]
      %v6267 = vld [vmem:[%s6096 + $0x2a8] sm:$0xf]
      %v6268 = vld [vmem:[%s6096 + $0x2ac] sm:$0xf]
      %v6269 = vld [vmem:[%s6096 + $0x2b0] sm:$0xf]
      %v6270 = vld [vmem:[%s6096 + $0x2b4] sm:$0xf]
      %v6271 = vld [vmem:[%s6096 + $0x2b8] sm:$0xf]
      %v6272 = vld [vmem:[%s6096 + $0x2bc] sm:$0xf]
      %v6273 = vld [vmem:[%s6096 + $0x2c0] sm:$0xf]
      %v6274 = vld [vmem:[%s6096 + $0x2c4] sm:$0xf]
      %v6275 = vld [vmem:[%s6096 + $0x2c8] sm:$0xf]
      %v6276 = vld [vmem:[%s6096 + $0x2cc] sm:$0xf]
      %v6277 = vld [vmem:[%s6096 + $0x2d0] sm:$0xf]
      %v6278 = vld [vmem:[%s6096 + $0x2d4] sm:$0xf]
      %v6279 = vld [vmem:[%s6096 + $0x2d8] sm:$0xf]
      %v6280 = vld [vmem:[%s6096 + $0x2dc] sm:$0xf]
      %v6281 = vld [vmem:[%s6096 + $0x2e0] sm:$0xf]
      %v6282 = vld [vmem:[%s6096 + $0x2e4] sm:$0xf]
      %v6283 = vld [vmem:[%s6096 + $0x2e8] sm:$0xf]
      %v6284 = vld [vmem:[%s6096 + $0x2ec] sm:$0xf]
      %v6285 = vld [vmem:[%s6096 + $0x2f0] sm:$0xf]
      %v6286 = vld [vmem:[%s6096 + $0x2f4] sm:$0xf]
      %v6287 = vld [vmem:[%s6096 + $0x2f8] sm:$0xf]
      %v6288 = vld [vmem:[%s6096 + $0x2fc] sm:$0xf]
      %v6289 = vld [vmem:[%s6096 + $0x300] sm:$0xf]
      %v6290 = vld [vmem:[%s6096 + $0x304] sm:$0xf]
      %v6291 = vld [vmem:[%s6096 + $0x308] sm:$0xf]
      %v6292 = vld [vmem:[%s6096 + $0x30c] sm:$0xf]
      %v6293 = vld [vmem:[%s6096 + $0x310] sm:$0xf]
      %v6294 = vld [vmem:[%s6096 + $0x314] sm:$0xf]
      %v6295 = vld [vmem:[%s6096 + $0x318] sm:$0xf]
      %v6296 = vld [vmem:[%s6096 + $0x31c] sm:$0xf]
      %v6497 = vunpack.c.l.b16 %v6097
      %v6498 = vunpack.c.l.b16 %v6098
      %v6499 = vunpack.c.l.b16 %v6099
      %v6500 = vunpack.c.l.b16 %v6100
      %v6501 = vunpack.c.l.b16 %v6101
      %v6502 = vunpack.c.l.b16 %v6102
      %v6503 = vunpack.c.l.b16 %v6103
      %v6504 = vunpack.c.l.b16 %v6104
      %v6505 = vunpack.c.l.b16 %v6105
      %v6506 = vunpack.c.l.b16 %v6106
      %v6507 = vunpack.c.l.b16 %v6107
      %v6508 = vunpack.c.l.b16 %v6108
      %v6509 = vunpack.c.l.b16 %v6109
      %v6510 = vunpack.c.l.b16 %v6110
      %v6511 = vunpack.c.l.b16 %v6111
      %v6512 = vunpack.c.l.b16 %v6112
      %v6513 = vunpack.c.l.b16 %v6113
      %v6514 = vunpack.c.l.b16 %v6114
      %v6515 = vunpack.c.l.b16 %v6115
      %v6516 = vunpack.c.l.b16 %v6116
      %v6517 = vunpack.c.l.b16 %v6117
      %v6518 = vunpack.c.l.b16 %v6118
      %v6519 = vunpack.c.l.b16 %v6119
      %v6520 = vunpack.c.l.b16 %v6120
      %v6521 = vunpack.c.l.b16 %v6121
      %v6522 = vunpack.c.l.b16 %v6122
      %v6523 = vunpack.c.l.b16 %v6123
      %v6524 = vunpack.c.l.b16 %v6124
      %v6525 = vunpack.c.l.b16 %v6125
      %v6526 = vunpack.c.l.b16 %v6126
      %v6527 = vunpack.c.l.b16 %v6127
      %v6528 = vunpack.c.l.b16 %v6128
      %v6529 = vunpack.c.l.b16 %v6129
      %v6530 = vunpack.c.l.b16 %v6130
      %v6531 = vunpack.c.l.b16 %v6131
      %v6532 = vunpack.c.l.b16 %v6132
      %v6533 = vunpack.c.l.b16 %v6133
      %v6534 = vunpack.c.l.b16 %v6134
      %v6535 = vunpack.c.l.b16 %v6135
      %v6536 = vunpack.c.l.b16 %v6136
      %v6537 = vunpack.c.l.b16 %v6137
      %v6538 = vunpack.c.l.b16 %v6138
      %v6539 = vunpack.c.l.b16 %v6139
      %v6540 = vunpack.c.l.b16 %v6140
      %v6541 = vunpack.c.l.b16 %v6141
      %v6542 = vunpack.c.l.b16 %v6142
      %v6543 = vunpack.c.l.b16 %v6143
      %v6544 = vunpack.c.l.b16 %v6144
      %v6545 = vunpack.c.l.b16 %v6145
      %v6546 = vunpack.c.l.b16 %v6146
      %v6547 = vunpack.c.l.b16 %v6147
      %v6548 = vunpack.c.l.b16 %v6148
      %v6549 = vunpack.c.l.b16 %v6149
      %v6550 = vunpack.c.l.b16 %v6150
      %v6551 = vunpack.c.l.b16 %v6151
      %v6552 = vunpack.c.l.b16 %v6152
      %v6553 = vunpack.c.l.b16 %v6153
      %v6554 = vunpack.c.l.b16 %v6154
      %v6555 = vunpack.c.l.b16 %v6155
      %v6556 = vunpack.c.l.b16 %v6156
      %v6557 = vunpack.c.l.b16 %v6157
      %v6558 = vunpack.c.l.b16 %v6158
      %v6559 = vunpack.c.l.b16 %v6159
      %v6560 = vunpack.c.l.b16 %v6160
      %v6561 = vunpack.c.l.b16 %v6161
      %v6562 = vunpack.c.l.b16 %v6162
      %v6563 = vunpack.c.l.b16 %v6163
      %v6564 = vunpack.c.l.b16 %v6164
      %v6565 = vunpack.c.l.b16 %v6165
      %v6566 = vunpack.c.l.b16 %v6166
      %v6567 = vunpack.c.l.b16 %v6167
      %v6568 = vunpack.c.l.b16 %v6168
      %v6569 = vunpack.c.l.b16 %v6169
      %v6570 = vunpack.c.l.b16 %v6170
      %v6571 = vunpack.c.l.b16 %v6171
      %v6572 = vunpack.c.l.b16 %v6172
      %v6573 = vunpack.c.l.b16 %v6173
      %v6574 = vunpack.c.l.b16 %v6174
      %v6575 = vunpack.c.l.b16 %v6175
      %v6576 = vunpack.c.l.b16 %v6176
      %v6577 = vunpack.c.l.b16 %v6177
      %v6578 = vunpack.c.l.b16 %v6178
      %v6579 = vunpack.c.l.b16 %v6179
      %v6580 = vunpack.c.l.b16 %v6180
      %v6581 = vunpack.c.l.b16 %v6181
      %v6582 = vunpack.c.l.b16 %v6182
      %v6583 = vunpack.c.l.b16 %v6183
      %v6584 = vunpack.c.l.b16 %v6184
      %v6585 = vunpack.c.l.b16 %v6185
      %v6586 = vunpack.c.l.b16 %v6186
      %v6587 = vunpack.c.l.b16 %v6187
      %v6588 = vunpack.c.l.b16 %v6188
      %v6589 = vunpack.c.l.b16 %v6189
      %v6590 = vunpack.c.l.b16 %v6190
      %v6591 = vunpack.c.l.b16 %v6191
      %v6592 = vunpack.c.l.b16 %v6192
      %v6593 = vunpack.c.l.b16 %v6193
      %v6594 = vunpack.c.l.b16 %v6194
      %v6595 = vunpack.c.l.b16 %v6195
      %v6596 = vunpack.c.l.b16 %v6196
      %v6597 = vunpack.c.l.b16 %v6197
      %v6598 = vunpack.c.l.b16 %v6198
      %v6599 = vunpack.c.l.b16 %v6199
      %v6600 = vunpack.c.l.b16 %v6200
      %v6601 = vunpack.c.l.b16 %v6201
      %v6602 = vunpack.c.l.b16 %v6202
      %v6603 = vunpack.c.l.b16 %v6203
      %v6604 = vunpack.c.l.b16 %v6204
      %v6605 = vunpack.c.l.b16 %v6205
      %v6606 = vunpack.c.l.b16 %v6206
      %v6607 = vunpack.c.l.b16 %v6207
      %v6608 = vunpack.c.l.b16 %v6208
      %v6609 = vunpack.c.l.b16 %v6209
      %v6610 = vunpack.c.l.b16 %v6210
      %v6611 = vunpack.c.l.b16 %v6211
      %v6612 = vunpack.c.l.b16 %v6212
      %v6613 = vunpack.c.l.b16 %v6213
      %v6614 = vunpack.c.l.b16 %v6214
      %v6615 = vunpack.c.l.b16 %v6215
      %v6616 = vunpack.c.l.b16 %v6216
      %v6617 = vunpack.c.l.b16 %v6217
      %v6618 = vunpack.c.l.b16 %v6218
      %v6619 = vunpack.c.l.b16 %v6219
      %v6620 = vunpack.c.l.b16 %v6220
      %v6621 = vunpack.c.l.b16 %v6221
      %v6622 = vunpack.c.l.b16 %v6222
      %v6623 = vunpack.c.l.b16 %v6223
      %v6624 = vunpack.c.l.b16 %v6224
      %v6625 = vunpack.c.l.b16 %v6225
      %v6626 = vunpack.c.l.b16 %v6226
      %v6627 = vunpack.c.l.b16 %v6227
      %v6628 = vunpack.c.l.b16 %v6228
      %v6629 = vunpack.c.l.b16 %v6229
      %v6630 = vunpack.c.l.b16 %v6230
      %v6631 = vunpack.c.l.b16 %v6231
      %v6632 = vunpack.c.l.b16 %v6232
      %v6633 = vunpack.c.l.b16 %v6233
      %v6634 = vunpack.c.l.b16 %v6234
      %v6635 = vunpack.c.l.b16 %v6235
      %v6636 = vunpack.c.l.b16 %v6236
      %v6637 = vunpack.c.l.b16 %v6237
      %v6638 = vunpack.c.l.b16 %v6238
      %v6639 = vunpack.c.l.b16 %v6239
      %v6640 = vunpack.c.l.b16 %v6240
      %v6641 = vunpack.c.l.b16 %v6241
      %v6642 = vunpack.c.l.b16 %v6242
      %v6643 = vunpack.c.l.b16 %v6243
      %v6644 = vunpack.c.l.b16 %v6244
      %v6645 = vunpack.c.l.b16 %v6245
      %v6646 = vunpack.c.l.b16 %v6246
      %v6647 = vunpack.c.l.b16 %v6247
      %v6648 = vunpack.c.l.b16 %v6248
      %v6649 = vunpack.c.l.b16 %v6249
      %v6650 = vunpack.c.l.b16 %v6250
      %v6651 = vunpack.c.l.b16 %v6251
      %v6652 = vunpack.c.l.b16 %v6252
      %v6653 = vunpack.c.l.b16 %v6253
      %v6654 = vunpack.c.l.b16 %v6254
      %v6655 = vunpack.c.l.b16 %v6255
      %v6656 = vunpack.c.l.b16 %v6256
      %v6657 = vunpack.c.l.b16 %v6257
      %v6658 = vunpack.c.l.b16 %v6258
      %v6659 = vunpack.c.l.b16 %v6259
      %v6660 = vunpack.c.l.b16 %v6260
      %v6661 = vunpack.c.l.b16 %v6261
      %v6662 = vunpack.c.l.b16 %v6262
      %v6663 = vunpack.c.l.b16 %v6263
      %v6664 = vunpack.c.l.b16 %v6264
      %v6665 = vunpack.c.l.b16 %v6265
      %v6666 = vunpack.c.l.b16 %v6266
      %v6667 = vunpack.c.l.b16 %v6267
      %v6668 = vunpack.c.l.b16 %v6268
      %v6669 = vunpack.c.l.b16 %v6269
      %v6670 = vunpack.c.l.b16 %v6270
      %v6671 = vunpack.c.l.b16 %v6271
      %v6672 = vunpack.c.l.b16 %v6272
      %v6673 = vunpack.c.l.b16 %v6273
      %v6674 = vunpack.c.l.b16 %v6274
      %v6675 = vunpack.c.l.b16 %v6275
      %v6676 = vunpack.c.l.b16 %v6276
      %v6677 = vunpack.c.l.b16 %v6277
      %v6678 = vunpack.c.l.b16 %v6278
      %v6679 = vunpack.c.l.b16 %v6279
      %v6680 = vunpack.c.l.b16 %v6280
      %v6681 = vunpack.c.l.b16 %v6281
      %v6682 = vunpack.c.l.b16 %v6282
      %v6683 = vunpack.c.l.b16 %v6283
      %v6684 = vunpack.c.l.b16 %v6284
      %v6685 = vunpack.c.l.b16 %v6285
      %v6686 = vunpack.c.l.b16 %v6286
      %v6687 = vunpack.c.l.b16 %v6287
      %v6688 = vunpack.c.l.b16 %v6288
      %v6689 = vunpack.c.l.b16 %v6289
      %v6690 = vunpack.c.l.b16 %v6290
      %v6691 = vunpack.c.l.b16 %v6291
      %v6692 = vunpack.c.l.b16 %v6292
      %v6693 = vunpack.c.l.b16 %v6293
      %v6694 = vunpack.c.l.b16 %v6294
      %v6695 = vunpack.c.l.b16 %v6295
      %v6696 = vunpack.c.l.b16 %v6296
      %v6697 = vpack.c.b16 %v6498, %v6497
      %v6698 = vpack.c.b16 %v6500, %v6499
      %v6699 = vpack.c.b16 %v6502, %v6501
      %v6700 = vpack.c.b16 %v6504, %v6503
      %v6701 = vpack.c.b16 %v6506, %v6505
      %v6702 = vpack.c.b16 %v6508, %v6507
      %v6703 = vpack.c.b16 %v6510, %v6509
      %v6704 = vpack.c.b16 %v6512, %v6511
      %v6705 = vpack.c.b16 %v6514, %v6513
      %v6706 = vpack.c.b16 %v6516, %v6515
      %v6707 = vpack.c.b16 %v6518, %v6517
      %v6708 = vpack.c.b16 %v6520, %v6519
      %v6709 = vpack.c.b16 %v6522, %v6521
      %v6710 = vpack.c.b16 %v6524, %v6523
      %v6711 = vpack.c.b16 %v6526, %v6525
      %v6712 = vpack.c.b16 %v6528, %v6527
      %v6713 = vpack.c.b16 %v6530, %v6529
      %v6714 = vpack.c.b16 %v6532, %v6531
      %v6715 = vpack.c.b16 %v6534, %v6533
      %v6716 = vpack.c.b16 %v6536, %v6535
      %v6717 = vpack.c.b16 %v6538, %v6537
      %v6718 = vpack.c.b16 %v6540, %v6539
      %v6719 = vpack.c.b16 %v6542, %v6541
      %v6720 = vpack.c.b16 %v6544, %v6543
      %v6721 = vpack.c.b16 %v6546, %v6545
      %v6722 = vpack.c.b16 %v6548, %v6547
      %v6723 = vpack.c.b16 %v6550, %v6549
      %v6724 = vpack.c.b16 %v6552, %v6551
      %v6725 = vpack.c.b16 %v6554, %v6553
      %v6726 = vpack.c.b16 %v6556, %v6555
      %v6727 = vpack.c.b16 %v6558, %v6557
      %v6728 = vpack.c.b16 %v6560, %v6559
      %v6729 = vpack.c.b16 %v6562, %v6561
      %v6730 = vpack.c.b16 %v6564, %v6563
      %v6731 = vpack.c.b16 %v6566, %v6565
      %v6732 = vpack.c.b16 %v6568, %v6567
      %v6733 = vpack.c.b16 %v6570, %v6569
      %v6734 = vpack.c.b16 %v6572, %v6571
      %v6735 = vpack.c.b16 %v6574, %v6573
      %v6736 = vpack.c.b16 %v6576, %v6575
      %v6737 = vpack.c.b16 %v6578, %v6577
      %v6738 = vpack.c.b16 %v6580, %v6579
      %v6739 = vpack.c.b16 %v6582, %v6581
      %v6740 = vpack.c.b16 %v6584, %v6583
      %v6741 = vpack.c.b16 %v6586, %v6585
      %v6742 = vpack.c.b16 %v6588, %v6587
      %v6743 = vpack.c.b16 %v6590, %v6589
      %v6744 = vpack.c.b16 %v6592, %v6591
      %v6745 = vpack.c.b16 %v6594, %v6593
      %v6746 = vpack.c.b16 %v6596, %v6595
      %v6747 = vpack.c.b16 %v6598, %v6597
      %v6748 = vpack.c.b16 %v6600, %v6599
      %v6749 = vpack.c.b16 %v6602, %v6601
      %v6750 = vpack.c.b16 %v6604, %v6603
      %v6751 = vpack.c.b16 %v6606, %v6605
      %v6752 = vpack.c.b16 %v6608, %v6607
      %v6753 = vpack.c.b16 %v6610, %v6609
      %v6754 = vpack.c.b16 %v6612, %v6611
      %v6755 = vpack.c.b16 %v6614, %v6613
      %v6756 = vpack.c.b16 %v6616, %v6615
      %v6757 = vpack.c.b16 %v6618, %v6617
      %v6758 = vpack.c.b16 %v6620, %v6619
      %v6759 = vpack.c.b16 %v6622, %v6621
      %v6760 = vpack.c.b16 %v6624, %v6623
      %v6761 = vpack.c.b16 %v6626, %v6625
      %v6762 = vpack.c.b16 %v6628, %v6627
      %v6763 = vpack.c.b16 %v6630, %v6629
      %v6764 = vpack.c.b16 %v6632, %v6631
      %v6765 = vpack.c.b16 %v6634, %v6633
      %v6766 = vpack.c.b16 %v6636, %v6635
      %v6767 = vpack.c.b16 %v6638, %v6637
      %v6768 = vpack.c.b16 %v6640, %v6639
      %v6769 = vpack.c.b16 %v6642, %v6641
      %v6770 = vpack.c.b16 %v6644, %v6643
      %v6771 = vpack.c.b16 %v6646, %v6645
      %v6772 = vpack.c.b16 %v6648, %v6647
      %v6773 = vpack.c.b16 %v6650, %v6649
      %v6774 = vpack.c.b16 %v6652, %v6651
      %v6775 = vpack.c.b16 %v6654, %v6653
      %v6776 = vpack.c.b16 %v6656, %v6655
      %v6777 = vpack.c.b16 %v6658, %v6657
      %v6778 = vpack.c.b16 %v6660, %v6659
      %v6779 = vpack.c.b16 %v6662, %v6661
      %v6780 = vpack.c.b16 %v6664, %v6663
      %v6781 = vpack.c.b16 %v6666, %v6665
      %v6782 = vpack.c.b16 %v6668, %v6667
      %v6783 = vpack.c.b16 %v6670, %v6669
      %v6784 = vpack.c.b16 %v6672, %v6671
      %v6785 = vpack.c.b16 %v6674, %v6673
      %v6786 = vpack.c.b16 %v6676, %v6675
      %v6787 = vpack.c.b16 %v6678, %v6677
      %v6788 = vpack.c.b16 %v6680, %v6679
      %v6789 = vpack.c.b16 %v6682, %v6681
      %v6790 = vpack.c.b16 %v6684, %v6683
      %v6791 = vpack.c.b16 %v6686, %v6685
      %v6792 = vpack.c.b16 %v6688, %v6687
      %v6793 = vpack.c.b16 %v6690, %v6689
      %v6794 = vpack.c.b16 %v6692, %v6691
      %v6795 = vpack.c.b16 %v6694, %v6693
      %v6796 = vpack.c.b16 %v6696, %v6695
      %v6798 = vsel %vm887, %v6697, 0
      %v6801 = vsel %vm887, %v6698, 0
      %v6804 = vsel %vm887, %v6699, 0
      %v6807 = vsel %vm887, %v6700, 0
      %v6810 = vsel %vm887, %v6701, 0
      %v6813 = vsel %vm887, %v6702, 0
      %v6816 = vsel %vm887, %v6703, 0
      %v6819 = vsel %vm887, %v6704, 0
      %v6822 = vsel %vm887, %v6705, 0
      %v6825 = vsel %vm887, %v6706, 0
      %v6828 = vsel %vm887, %v6707, 0
      %v6831 = vsel %vm887, %v6708, 0
      %v6834 = vsel %vm887, %v6709, 0
      %v6837 = vsel %vm887, %v6710, 0
      %v6840 = vsel %vm887, %v6711, 0
      %v6843 = vsel %vm887, %v6712, 0
      %v6846 = vsel %vm887, %v6713, 0
      %v6849 = vsel %vm887, %v6714, 0
      %v6852 = vsel %vm887, %v6715, 0
      %v6855 = vsel %vm887, %v6716, 0
      %v6858 = vsel %vm887, %v6717, 0
      %v6861 = vsel %vm887, %v6718, 0
      %v6864 = vsel %vm887, %v6719, 0
      %v6867 = vsel %vm887, %v6720, 0
      %v6870 = vsel %vm887, %v6721, 0
      %v6873 = vsel %vm887, %v6722, 0
      %v6876 = vsel %vm887, %v6723, 0
      %v6879 = vsel %vm887, %v6724, 0
      %v6882 = vsel %vm887, %v6725, 0
      %v6885 = vsel %vm887, %v6726, 0
      %v6888 = vsel %vm887, %v6727, 0
      %v6891 = vsel %vm887, %v6728, 0
      %v6894 = vsel %vm887, %v6729, 0
      %v6897 = vsel %vm887, %v6730, 0
      %v6900 = vsel %vm887, %v6731, 0
      %v6903 = vsel %vm887, %v6732, 0
      %v6906 = vsel %vm887, %v6733, 0
      %v6909 = vsel %vm887, %v6734, 0
      %v6912 = vsel %vm887, %v6735, 0
      %v6915 = vsel %vm887, %v6736, 0
      %v6918 = vsel %vm887, %v6737, 0
      %v6921 = vsel %vm887, %v6738, 0
      %v6924 = vsel %vm887, %v6739, 0
      %v6927 = vsel %vm887, %v6740, 0
      %v6930 = vsel %vm887, %v6741, 0
      %v6933 = vsel %vm887, %v6742, 0
      %v6936 = vsel %vm887, %v6743, 0
      %v6939 = vsel %vm887, %v6744, 0
      %v6942 = vsel %vm887, %v6745, 0
      %v6945 = vsel %vm887, %v6746, 0
      %v6948 = vsel %vm887, %v6747, 0
      %v6951 = vsel %vm887, %v6748, 0
      %v6954 = vsel %vm887, %v6749, 0
      %v6957 = vsel %vm887, %v6750, 0
      %v6960 = vsel %vm887, %v6751, 0
      %v6963 = vsel %vm887, %v6752, 0
      %v6966 = vsel %vm887, %v6753, 0
      %v6969 = vsel %vm887, %v6754, 0
      %v6972 = vsel %vm887, %v6755, 0
      %v6975 = vsel %vm887, %v6756, 0
      %v6978 = vsel %vm887, %v6757, 0
      %v6981 = vsel %vm887, %v6758, 0
      %v6984 = vsel %vm887, %v6759, 0
      %v6987 = vsel %vm887, %v6760, 0
      %v6990 = vsel %vm887, %v6761, 0
      %v6993 = vsel %vm887, %v6762, 0
      %v6996 = vsel %vm887, %v6763, 0
      %v6999 = vsel %vm887, %v6764, 0
      %v7002 = vsel %vm887, %v6765, 0
      %v7005 = vsel %vm887, %v6766, 0
      %v7008 = vsel %vm887, %v6767, 0
      %v7011 = vsel %vm887, %v6768, 0
      %v7014 = vsel %vm887, %v6769, 0
      %v7017 = vsel %vm887, %v6770, 0
      %v7020 = vsel %vm887, %v6771, 0
      %v7023 = vsel %vm887, %v6772, 0
      %v7026 = vsel %vm887, %v6773, 0
      %v7029 = vsel %vm887, %v6774, 0
      %v7032 = vsel %vm887, %v6775, 0
      %v7035 = vsel %vm887, %v6776, 0
      %v7038 = vsel %vm887, %v6777, 0
      %v7041 = vsel %vm887, %v6778, 0
      %v7044 = vsel %vm887, %v6779, 0
      %v7047 = vsel %vm887, %v6780, 0
      %v7050 = vsel %vm887, %v6781, 0
      %v7053 = vsel %vm887, %v6782, 0
      %v7056 = vsel %vm887, %v6783, 0
      %v7059 = vsel %vm887, %v6784, 0
      %v7062 = vsel %vm887, %v6785, 0
      %v7065 = vsel %vm887, %v6786, 0
      %v7068 = vsel %vm887, %v6787, 0
      %v7071 = vsel %vm887, %v6788, 0
      %v7074 = vsel %vm887, %v6789, 0
      %v7077 = vsel %vm887, %v6790, 0
      %v7080 = vsel %vm887, %v6791, 0
      %v7083 = vsel %vm887, %v6792, 0
      %v7086 = vsel %vm887, %v6793, 0
      %v7089 = vsel %vm887, %v6794, 0
      %v7092 = vsel %vm887, %v6795, 0
      %v7095 = vsel %vm887, %v6796, 0
      %7097 = vmatprep.subr.bf16.mxu0 0
      %7098 = vmatpush1.bf16.msra.mxu0 %v884
      %7099 = vmatprep.subr.bf16.mxu0 0
      %7100 = vmatpush1.bf16.msra.mxu0 %v1193
      %7101 = vmatprep.subr.bf16.mxu0 0
      %7102 = vmatpush1.bf16.msra.mxu0 0
      %7103 = vmatprep.subr.bf16.mxu0 0
      %7104 = vmatpush1.bf16.msra.mxu0 0
      %7105 = vmatprep.subr.bf16.mxu0 0
      %7106 = vmatpush1.bf16.msra.mxu0 0
      %7107 = vmatprep.subr.bf16.mxu0 0
      %7108 = vmatpush1.bf16.msra.mxu0 0
      %7109 = vmatprep.subr.bf16.mxu0 0
      %7110 = vmatpush1.bf16.msra.mxu0 0
      %7111 = vmatprep.subr.bf16.mxu0 0
      %7112 = vmatpush1.bf16.msra.mxu0 0
      %7113 = vmatprep.subr.bf16.mxu0 0
      %7114 = vmatpush1.bf16.msra.mxu0 0
      %7115 = vmatprep.subr.bf16.mxu0 0
      %7116 = vmatpush1.bf16.msra.mxu0 0
      %7117 = vmatprep.subr.bf16.mxu0 0
      %7118 = vmatpush1.bf16.msra.mxu0 0
      %7119 = vmatprep.subr.bf16.mxu0 0
      %7120 = vmatpush1.bf16.msra.mxu0 0
      %7121 = vmatprep.subr.bf16.mxu0 0
      %7122 = vmatpush1.bf16.msra.mxu0 0
      %7123 = vmatprep.subr.bf16.mxu0 0
      %7124 = vmatpush1.bf16.msra.mxu0 0
      %7125 = vmatprep.subr.bf16.mxu0 0
      %7126 = vmatpush1.bf16.msra.mxu0 0
      %7127 = vmatprep.subr.bf16.mxu0 0
      %7128 = vmatpush1.bf16.msra.mxu0 0
      %7129 = vmatprep.mubr.bf16.mxu0 0
      %7130 = vmatmul.mubr.bf16.gmra.mrb[0].mxu0 %v6798
      %v7131 = vpop.f32.mrb[0].mxu0
      %v7132 = vadd.f32 0.0, %v7131
      %v7133 = vpop.f32.mrb[0].mxu0
      %v7134 = vpop.f32.mrb[0].mxu0
      %v7135 = vadd.f32 0.0, %v7134
      %v7136 = vpop.f32.mrb[0].mxu0
      %7137 = vmatprep.mubr.bf16.mxu0 0
      %7138 = vmatmul.mubr.bf16.gmra.mrb[0].mxu0 %v6801
      %v7139 = vpop.f32.mrb[0].mxu0
      %v7140 = vadd.f32 0.0, %v7139
      %v7141 = vpop.f32.mrb[0].mxu0
      %v7142 = vpop.f32.mrb[0].mxu0
      %v7143 = vadd.f32 0.0, %v7142
      %v7144 = vpop.f32.mrb[0].mxu0
      %7145 = vmatprep.mubr.bf16.mxu0 0
      %7146 = vmatmul.mubr.bf16.gmra.mrb[0].mxu0 %v6804
      %v7147 = vpop.f32.mrb[0].mxu0
      %v7148 = vadd.f32 0.0, %v7147
      %v7149 = vpop.f32.mrb[0].mxu0
      %v7150 = vpop.f32.mrb[0].mxu0
      %v7151 = vadd.f32 0.0, %v7150
      %v7152 = vpop.f32.mrb[0].mxu0
      %7153 = vmatprep.mubr.bf16.mxu0 0
      %7154 = vmatmul.mubr.bf16.gmra.mrb[0].mxu0 %v6807
      %v7155 = vpop.f32.mrb[0].mxu0
      %v7156 = vadd.f32 0.0, %v7155
      %v7157 = vpop.f32.mrb[0].mxu0
      %v7158 = vpop.f32.mrb[0].mxu0
      %v7159 = vadd.f32 0.0, %v7158
      %v7160 = vpop.f32.mrb[0].mxu0
      %7161 = vmatprep.mubr.bf16.mxu0 0
      %7162 = vmatmul.mubr.bf16.gmra.mrb[0].mxu0 %v6810
      %v7163 = vpop.f32.mrb[0].mxu0
      %v7164 = vadd.f32 0.0, %v7163
      %v7165 = vpop.f32.mrb[0].mxu0
      %v7166 = vpop.f32.mrb[0].mxu0
      %v7167 = vadd.f32 0.0, %v7166
      %v7168 = vpop.f32.mrb[0].mxu0
      %7169 = vmatprep.mubr.bf16.mxu0 0
      %7170 = vmatmul.mubr.bf16.gmra.mrb[0].mxu0 %v6813
      %v7171 = vpop.f32.mrb[0].mxu0
      %v7172 = vadd.f32 0.0, %v7171
      %v7173 = vpop.f32.mrb[0].mxu0
      %v7174 = vpop.f32.mrb[0].mxu0
      %v7175 = vadd.f32 0.0, %v7174
      %v7176 = vpop.f32.mrb[0].mxu0
      %7177 = vmatprep.mubr.bf16.mxu0 0
      %7178 = vmatmul.mubr.bf16.gmra.mrb[0].mxu0 %v6816
      %v7179 = vpop.f32.mrb[0].mxu0
      %v7180 = vadd.f32 0.0, %v7179
      %v7181 = vpop.f32.mrb[0].mxu0
      %v7182 = vpop.f32.mrb[0].mxu0
      %v7183 = vadd.f32 0.0, %v7182
      %v7184 = vpop.f32.mrb[0].mxu0
      %7185 = vmatprep.mubr.bf16.mxu0 0
      %7186 = vmatmul.mubr.bf16.gmra.mrb[0].mxu0 %v6819
      %v7187 = vpop.f32.mrb[0].mxu0
      %v7188 = vadd.f32 0.0, %v7187
      %v7189 = vpop.f32.mrb[0].mxu0
      %v7190 = vpop.f32.mrb[0].mxu0
      %v7191 = vadd.f32 0.0, %v7190
      %v7192 = vpop.f32.mrb[0].mxu0
      %7193 = vmatprep.mubr.bf16.mxu0 0
      %7194 = vmatmul.mubr.bf16.gmra.mrb[0].mxu0 %v6822
      %v7195 = vpop.f32.mrb[0].mxu0
      %v7196 = vadd.f32 0.0, %v7195
      %v7197 = vpop.f32.mrb[0].mxu0
      %v7198 = vpop.f32.mrb[0].mxu0
      %v7199 = vadd.f32 0.0, %v7198
      %v7200 = vpop.f32.mrb[0].mxu0
      %7201 = vmatprep.mubr.bf16.mxu0 0
      %7202 = vmatmul.mubr.bf16.gmra.mrb[0].mxu0 %v6825
      %v7203 = vpop.f32.mrb[0].mxu0
      %v7204 = vadd.f32 0.0, %v7203
      %v7205 = vpop.f32.mrb[0].mxu0
      %v7206 = vpop.f32.mrb[0].mxu0
      %v7207 = vadd.f32 0.0, %v7206
      %v7208 = vpop.f32.mrb[0].mxu0
      %7209 = vmatprep.mubr.bf16.mxu0 0
      %7210 = vmatmul.mubr.bf16.gmra.mrb[0].mxu0 %v6828
      %v7211 = vpop.f32.mrb[0].mxu0
      %v7212 = vadd.f32 0.0, %v7211
      %v7213 = vpop.f32.mrb[0].mxu0
      %v7214 = vpop.f32.mrb[0].mxu0
      %v7215 = vadd.f32 0.0, %v7214
      %v7216 = vpop.f32.mrb[0].mxu0
      %7217 = vmatprep.mubr.bf16.mxu0 0
      %7218 = vmatmul.mubr.bf16.gmra.mrb[0].mxu0 %v6831
      %v7219 = vpop.f32.mrb[0].mxu0
      %v7220 = vadd.f32 0.0, %v7219
      %v7221 = vpop.f32.mrb[0].mxu0
      %v7222 = vpop.f32.mrb[0].mxu0
      %v7223 = vadd.f32 0.0, %v7222
      %v7224 = vpop.f32.mrb[0].mxu0
      %7225 = vmatprep.mubr.bf16.mxu0 0
      %7226 = vmatmul.mubr.bf16.gmra.mrb[0].mxu0 %v6834
      %v7227 = vpop.f32.mrb[0].mxu0
      %v7228 = vadd.f32 0.0, %v7227
      %v7229 = vpop.f32.mrb[0].mxu0
      %v7230 = vpop.f32.mrb[0].mxu0
      %v7231 = vadd.f32 0.0, %v7230
      %v7232 = vpop.f32.mrb[0].mxu0
      %7233 = vmatprep.mubr.bf16.mxu0 0
      %7234 = vmatmul.mubr.bf16.gmra.mrb[0].mxu0 %v6837
      %v7235 = vpop.f32.mrb[0].mxu0
      %v7236 = vadd.f32 0.0, %v7235
      %v7237 = vpop.f32.mrb[0].mxu0
      %v7238 = vpop.f32.mrb[0].mxu0
      %v7239 = vadd.f32 0.0, %v7238
      %v7240 = vpop.f32.mrb[0].mxu0
      %7241 = vmatprep.mubr.bf16.mxu0 0
      %7242 = vmatmul.mubr.bf16.gmra.mrb[0].mxu0 %v6840
      %v7243 = vpop.f32.mrb[0].mxu0
      %v7244 = vadd.f32 0.0, %v7243
      %v7245 = vpop.f32.mrb[0].mxu0
      %v7246 = vpop.f32.mrb[0].mxu0
      %v7247 = vadd.f32 0.0, %v7246
      %v7248 = vpop.f32.mrb[0].mxu0
      %7249 = vmatprep.mubr.bf16.mxu0 0
      %7250 = vmatmul.mubr.bf16.gmra.mrb[0].mxu0 %v6843
      %v7251 = vpop.f32.mrb[0].mxu0
      %v7252 = vadd.f32 0.0, %v7251
      %v7253 = vpop.f32.mrb[0].mxu0
      %v7254 = vpop.f32.mrb[0].mxu0
      %v7255 = vadd.f32 0.0, %v7254
      %v7256 = vpop.f32.mrb[0].mxu0
      %7257 = vmatprep.mubr.bf16.mxu0 0
      %7258 = vmatmul.mubr.bf16.gmra.mrb[0].mxu0 %v6846
      %v7259 = vpop.f32.mrb[0].mxu0
      %v7260 = vadd.f32 0.0, %v7259
      %v7261 = vpop.f32.mrb[0].mxu0
      %v7262 = vpop.f32.mrb[0].mxu0
      %v7263 = vadd.f32 0.0, %v7262
      %v7264 = vpop.f32.mrb[0].mxu0
      %7265 = vmatprep.mubr.bf16.mxu0 0
      %7266 = vmatmul.mubr.bf16.gmra.mrb[0].mxu0 %v6849
      %v7267 = vpop.f32.mrb[0].mxu0
      %v7268 = vadd.f32 0.0, %v7267
      %v7269 = vpop.f32.mrb[0].mxu0
      %v7270 = vpop.f32.mrb[0].mxu0
      %v7271 = vadd.f32 0.0, %v7270
      %v7272 = vpop.f32.mrb[0].mxu0
      %7273 = vmatprep.mubr.bf16.mxu0 0
      %7274 = vmatmul.mubr.bf16.gmra.mrb[0].mxu0 %v6852
      %v7275 = vpop.f32.mrb[0].mxu0
      %v7276 = vadd.f32 0.0, %v7275
      %v7277 = vpop.f32.mrb[0].mxu0
      %v7278 = vpop.f32.mrb[0].mxu0
      %v7279 = vadd.f32 0.0, %v7278
      %v7280 = vpop.f32.mrb[0].mxu0
      %7281 = vmatprep.mubr.bf16.mxu0 0
      %7282 = vmatmul.mubr.bf16.gmra.mrb[0].mxu0 %v6855
      %v7283 = vpop.f32.mrb[0].mxu0
      %v7284 = vadd.f32 0.0, %v7283
      %v7285 = vpop.f32.mrb[0].mxu0
      %v7286 = vpop.f32.mrb[0].mxu0
      %v7287 = vadd.f32 0.0, %v7286
      %v7288 = vpop.f32.mrb[0].mxu0
      %7289 = vmatprep.mubr.bf16.mxu0 0
      %7290 = vmatmul.mubr.bf16.gmra.mrb[0].mxu0 %v6858
      %v7291 = vpop.f32.mrb[0].mxu0
      %v7292 = vadd.f32 0.0, %v7291
      %v7293 = vpop.f32.mrb[0].mxu0
      %v7294 = vpop.f32.mrb[0].mxu0
      %v7295 = vadd.f32 0.0, %v7294
      %v7296 = vpop.f32.mrb[0].mxu0
      %7297 = vmatprep.mubr.bf16.mxu0 0
      %7298 = vmatmul.mubr.bf16.gmra.mrb[0].mxu0 %v6861
      %v7299 = vpop.f32.mrb[0].mxu0
      %v7300 = vadd.f32 0.0, %v7299
      %v7301 = vpop.f32.mrb[0].mxu0
      %v7302 = vpop.f32.mrb[0].mxu0
      %v7303 = vadd.f32 0.0, %v7302
      %v7304 = vpop.f32.mrb[0].mxu0
      %7305 = vmatprep.mubr.bf16.mxu0 0
      %7306 = vmatmul.mubr.bf16.gmra.mrb[0].mxu0 %v6864
      %v7307 = vpop.f32.mrb[0].mxu0
      %v7308 = vadd.f32 0.0, %v7307
      %v7309 = vpop.f32.mrb[0].mxu0
      %v7310 = vpop.f32.mrb[0].mxu0
      %v7311 = vadd.f32 0.0, %v7310
      %v7312 = vpop.f32.mrb[0].mxu0
      %7313 = vmatprep.mubr.bf16.mxu0 0
      %7314 = vmatmul.mubr.bf16.gmra.mrb[0].mxu0 %v6867
      %v7315 = vpop.f32.mrb[0].mxu0
      %v7316 = vadd.f32 0.0, %v7315
      %v7317 = vpop.f32.mrb[0].mxu0
      %v7318 = vpop.f32.mrb[0].mxu0
      %v7319 = vadd.f32 0.0, %v7318
      %v7320 = vpop.f32.mrb[0].mxu0
      %7321 = vmatprep.mubr.bf16.mxu0 0
      %7322 = vmatmul.mubr.bf16.gmra.mrb[0].mxu0 %v6870
      %v7323 = vpop.f32.mrb[0].mxu0
      %v7324 = vadd.f32 0.0, %v7323
      %v7325 = vpop.f32.mrb[0].mxu0
      %v7326 = vpop.f32.mrb[0].mxu0
      %v7327 = vadd.f32 0.0, %v7326
      %v7328 = vpop.f32.mrb[0].mxu0
      %7329 = vmatprep.mubr.bf16.mxu0 0
      %7330 = vmatmul.mubr.bf16.gmra.mrb[0].mxu0 %v6873
      %v7331 = vpop.f32.mrb[0].mxu0
      %v7332 = vadd.f32 0.0, %v7331
      %v7333 = vpop.f32.mrb[0].mxu0
      %v7334 = vpop.f32.mrb[0].mxu0
      %v7335 = vadd.f32 0.0, %v7334
      %v7336 = vpop.f32.mrb[0].mxu0
      %7337 = vmatprep.mubr.bf16.mxu0 0
      %7338 = vmatmul.mubr.bf16.gmra.mrb[0].mxu0 %v6876
      %v7339 = vpop.f32.mrb[0].mxu0
      %v7340 = vadd.f32 0.0, %v7339
      %v7341 = vpop.f32.mrb[0].mxu0
      %v7342 = vpop.f32.mrb[0].mxu0
      %v7343 = vadd.f32 0.0, %v7342
      %v7344 = vpop.f32.mrb[0].mxu0
      %7345 = vmatprep.mubr.bf16.mxu0 0
      %7346 = vmatmul.mubr.bf16.gmra.mrb[0].mxu0 %v6879
      %v7347 = vpop.f32.mrb[0].mxu0
      %v7348 = vadd.f32 0.0, %v7347
      %v7349 = vpop.f32.mrb[0].mxu0
      %v7350 = vpop.f32.mrb[0].mxu0
      %v7351 = vadd.f32 0.0, %v7350
      %v7352 = vpop.f32.mrb[0].mxu0
      %7353 = vmatprep.mubr.bf16.mxu0 0
      %7354 = vmatmul.mubr.bf16.gmra.mrb[0].mxu0 %v6882
      %v7355 = vpop.f32.mrb[0].mxu0
      %v7356 = vadd.f32 0.0, %v7355
      %v7357 = vpop.f32.mrb[0].mxu0
      %v7358 = vpop.f32.mrb[0].mxu0
      %v7359 = vadd.f32 0.0, %v7358
      %v7360 = vpop.f32.mrb[0].mxu0
      %7361 = vmatprep.mubr.bf16.mxu0 0
      %7362 = vmatmul.mubr.bf16.gmra.mrb[0].mxu0 %v6885
      %v7363 = vpop.f32.mrb[0].mxu0
      %v7364 = vadd.f32 0.0, %v7363
      %v7365 = vpop.f32.mrb[0].mxu0
      %v7366 = vpop.f32.mrb[0].mxu0
      %v7367 = vadd.f32 0.0, %v7366
      %v7368 = vpop.f32.mrb[0].mxu0
      %7369 = vmatprep.mubr.bf16.mxu0 0
      %7370 = vmatmul.mubr.bf16.gmra.mrb[0].mxu0 %v6888
      %v7371 = vpop.f32.mrb[0].mxu0
      %v7372 = vadd.f32 0.0, %v7371
      %v7373 = vpop.f32.mrb[0].mxu0
      %v7374 = vpop.f32.mrb[0].mxu0
      %v7375 = vadd.f32 0.0, %v7374
      %v7376 = vpop.f32.mrb[0].mxu0
      %7377 = vmatprep.mubr.bf16.mxu0 0
      %7378 = vmatmul.mubr.bf16.gmra.mrb[0].mxu0 %v6891
      %v7379 = vpop.f32.mrb[0].mxu0
      %v7380 = vadd.f32 0.0, %v7379
      %v7381 = vpop.f32.mrb[0].mxu0
      %v7382 = vpop.f32.mrb[0].mxu0
      %v7383 = vadd.f32 0.0, %v7382
      %v7384 = vpop.f32.mrb[0].mxu0
      %7385 = vmatprep.mubr.bf16.mxu0 0
      %7386 = vmatmul.mubr.bf16.gmra.mrb[0].mxu0 %v6894
      %v7387 = vpop.f32.mrb[0].mxu0
      %v7388 = vadd.f32 0.0, %v7387
      %v7389 = vpop.f32.mrb[0].mxu0
      %v7390 = vpop.f32.mrb[0].mxu0
      %v7391 = vadd.f32 0.0, %v7390
      %v7392 = vpop.f32.mrb[0].mxu0
      %7393 = vmatprep.mubr.bf16.mxu0 0
      %7394 = vmatmul.mubr.bf16.gmra.mrb[0].mxu0 %v6897
      %v7395 = vpop.f32.mrb[0].mxu0
      %v7396 = vadd.f32 0.0, %v7395
      %v7397 = vpop.f32.mrb[0].mxu0
      %v7398 = vpop.f32.mrb[0].mxu0
      %v7399 = vadd.f32 0.0, %v7398
      %v7400 = vpop.f32.mrb[0].mxu0
      %7401 = vmatprep.mubr.bf16.mxu0 0
      %7402 = vmatmul.mubr.bf16.gmra.mrb[0].mxu0 %v6900
      %v7403 = vpop.f32.mrb[0].mxu0
      %v7404 = vadd.f32 0.0, %v7403
      %v7405 = vpop.f32.mrb[0].mxu0
      %v7406 = vpop.f32.mrb[0].mxu0
      %v7407 = vadd.f32 0.0, %v7406
      %v7408 = vpop.f32.mrb[0].mxu0
      %7409 = vmatprep.mubr.bf16.mxu0 0
      %7410 = vmatmul.mubr.bf16.gmra.mrb[0].mxu0 %v6903
      %v7411 = vpop.f32.mrb[0].mxu0
      %v7412 = vadd.f32 0.0, %v7411
      %v7413 = vpop.f32.mrb[0].mxu0
      %v7414 = vpop.f32.mrb[0].mxu0
      %v7415 = vadd.f32 0.0, %v7414
      %v7416 = vpop.f32.mrb[0].mxu0
      %7417 = vmatprep.mubr.bf16.mxu0 0
      %7418 = vmatmul.mubr.bf16.gmra.mrb[0].mxu0 %v6906
      %v7419 = vpop.f32.mrb[0].mxu0
      %v7420 = vadd.f32 0.0, %v7419
      %v7421 = vpop.f32.mrb[0].mxu0
      %v7422 = vpop.f32.mrb[0].mxu0
      %v7423 = vadd.f32 0.0, %v7422
      %v7424 = vpop.f32.mrb[0].mxu0
      %7425 = vmatprep.mubr.bf16.mxu0 0
      %7426 = vmatmul.mubr.bf16.gmra.mrb[0].mxu0 %v6909
      %v7427 = vpop.f32.mrb[0].mxu0
      %v7428 = vadd.f32 0.0, %v7427
      %v7429 = vpop.f32.mrb[0].mxu0
      %v7430 = vpop.f32.mrb[0].mxu0
      %v7431 = vadd.f32 0.0, %v7430
      %v7432 = vpop.f32.mrb[0].mxu0
      %7433 = vmatprep.mubr.bf16.mxu0 0
      %7434 = vmatmul.mubr.bf16.gmra.mrb[0].mxu0 %v6912
      %v7435 = vpop.f32.mrb[0].mxu0
      %v7436 = vadd.f32 0.0, %v7435
      %v7437 = vpop.f32.mrb[0].mxu0
      %v7438 = vpop.f32.mrb[0].mxu0
      %v7439 = vadd.f32 0.0, %v7438
      %v7440 = vpop.f32.mrb[0].mxu0
      %7441 = vmatprep.mubr.bf16.mxu0 0
      %7442 = vmatmul.mubr.bf16.gmra.mrb[0].mxu0 %v6915
      %v7443 = vpop.f32.mrb[0].mxu0
      %v7444 = vadd.f32 0.0, %v7443
      %v7445 = vpop.f32.mrb[0].mxu0
      %v7446 = vpop.f32.mrb[0].mxu0
      %v7447 = vadd.f32 0.0, %v7446
      %v7448 = vpop.f32.mrb[0].mxu0
      %7449 = vmatprep.mubr.bf16.mxu0 0
      %7450 = vmatmul.mubr.bf16.gmra.mrb[0].mxu0 %v6918
      %v7451 = vpop.f32.mrb[0].mxu0
      %v7452 = vadd.f32 0.0, %v7451
      %v7453 = vpop.f32.mrb[0].mxu0
      %v7454 = vpop.f32.mrb[0].mxu0
      %v7455 = vadd.f32 0.0, %v7454
      %v7456 = vpop.f32.mrb[0].mxu0
      %7457 = vmatprep.mubr.bf16.mxu0 0
      %7458 = vmatmul.mubr.bf16.gmra.mrb[0].mxu0 %v6921
      %v7459 = vpop.f32.mrb[0].mxu0
      %v7460 = vadd.f32 0.0, %v7459
      %v7461 = vpop.f32.mrb[0].mxu0
      %v7462 = vpop.f32.mrb[0].mxu0
      %v7463 = vadd.f32 0.0, %v7462
      %v7464 = vpop.f32.mrb[0].mxu0
      %7465 = vmatprep.mubr.bf16.mxu0 0
      %7466 = vmatmul.mubr.bf16.gmra.mrb[0].mxu0 %v6924
      %v7467 = vpop.f32.mrb[0].mxu0
      %v7468 = vadd.f32 0.0, %v7467
      %v7469 = vpop.f32.mrb[0].mxu0
      %v7470 = vpop.f32.mrb[0].mxu0
      %v7471 = vadd.f32 0.0, %v7470
      %v7472 = vpop.f32.mrb[0].mxu0
      %7473 = vmatprep.mubr.bf16.mxu0 0
      %7474 = vmatmul.mubr.bf16.gmra.mrb[0].mxu0 %v6927
      %v7475 = vpop.f32.mrb[0].mxu0
      %v7476 = vadd.f32 0.0, %v7475
      %v7477 = vpop.f32.mrb[0].mxu0
      %v7478 = vpop.f32.mrb[0].mxu0
      %v7479 = vadd.f32 0.0, %v7478
      %v7480 = vpop.f32.mrb[0].mxu0
      %7481 = vmatprep.mubr.bf16.mxu0 0
      %7482 = vmatmul.mubr.bf16.gmra.mrb[0].mxu0 %v6930
      %v7483 = vpop.f32.mrb[0].mxu0
      %v7484 = vadd.f32 0.0, %v7483
      %v7485 = vpop.f32.mrb[0].mxu0
      %v7486 = vpop.f32.mrb[0].mxu0
      %v7487 = vadd.f32 0.0, %v7486
      %v7488 = vpop.f32.mrb[0].mxu0
      %7489 = vmatprep.mubr.bf16.mxu0 0
      %7490 = vmatmul.mubr.bf16.gmra.mrb[0].mxu0 %v6933
      %v7491 = vpop.f32.mrb[0].mxu0
      %v7492 = vadd.f32 0.0, %v7491
      %v7493 = vpop.f32.mrb[0].mxu0
      %v7494 = vpop.f32.mrb[0].mxu0
      %v7495 = vadd.f32 0.0, %v7494
      %v7496 = vpop.f32.mrb[0].mxu0
      %7497 = vmatprep.mubr.bf16.mxu0 0
      %7498 = vmatmul.mubr.bf16.gmra.mrb[0].mxu0 %v6936
      %v7499 = vpop.f32.mrb[0].mxu0
      %v7500 = vadd.f32 0.0, %v7499
      %v7501 = vpop.f32.mrb[0].mxu0
      %v7502 = vpop.f32.mrb[0].mxu0
      %v7503 = vadd.f32 0.0, %v7502
      %v7504 = vpop.f32.mrb[0].mxu0
      %7505 = vmatprep.mubr.bf16.mxu0 0
      %7506 = vmatmul.mubr.bf16.gmra.mrb[0].mxu0 %v6939
      %v7507 = vpop.f32.mrb[0].mxu0
      %v7508 = vadd.f32 0.0, %v7507
      %v7509 = vpop.f32.mrb[0].mxu0
      %v7510 = vpop.f32.mrb[0].mxu0
      %v7511 = vadd.f32 0.0, %v7510
      %v7512 = vpop.f32.mrb[0].mxu0
      %7513 = vmatprep.mubr.bf16.mxu0 0
      %7514 = vmatmul.mubr.bf16.gmra.mrb[0].mxu0 %v6942
      %v7515 = vpop.f32.mrb[0].mxu0
      %v7516 = vadd.f32 0.0, %v7515
      %v7517 = vpop.f32.mrb[0].mxu0
      %v7518 = vpop.f32.mrb[0].mxu0
      %v7519 = vadd.f32 0.0, %v7518
      %v7520 = vpop.f32.mrb[0].mxu0
      %7521 = vmatprep.mubr.bf16.mxu0 0
      %7522 = vmatmul.mubr.bf16.gmra.mrb[0].mxu0 %v6945
      %v7523 = vpop.f32.mrb[0].mxu0
      %v7524 = vadd.f32 0.0, %v7523
      %v7525 = vpop.f32.mrb[0].mxu0
      %v7526 = vpop.f32.mrb[0].mxu0
      %v7527 = vadd.f32 0.0, %v7526
      %v7528 = vpop.f32.mrb[0].mxu0
      %7529 = vmatprep.mubr.bf16.mxu0 0
      %7530 = vmatmul.mubr.bf16.gmra.mrb[0].mxu0 %v6948
      %v7531 = vpop.f32.mrb[0].mxu0
      %v7532 = vadd.f32 0.0, %v7531
      %v7533 = vpop.f32.mrb[0].mxu0
      %v7534 = vpop.f32.mrb[0].mxu0
      %v7535 = vadd.f32 0.0, %v7534
      %v7536 = vpop.f32.mrb[0].mxu0
      %7537 = vmatprep.mubr.bf16.mxu0 0
      %7538 = vmatmul.mubr.bf16.gmra.mrb[0].mxu0 %v6951
      %v7539 = vpop.f32.mrb[0].mxu0
      %v7540 = vadd.f32 0.0, %v7539
      %v7541 = vpop.f32.mrb[0].mxu0
      %v7542 = vpop.f32.mrb[0].mxu0
      %v7543 = vadd.f32 0.0, %v7542
      %v7544 = vpop.f32.mrb[0].mxu0
      %7545 = vmatprep.mubr.bf16.mxu0 0
      %7546 = vmatmul.mubr.bf16.gmra.mrb[0].mxu0 %v6954
      %v7547 = vpop.f32.mrb[0].mxu0
      %v7548 = vadd.f32 0.0, %v7547
      %v7549 = vpop.f32.mrb[0].mxu0
      %v7550 = vpop.f32.mrb[0].mxu0
      %v7551 = vadd.f32 0.0, %v7550
      %v7552 = vpop.f32.mrb[0].mxu0
      %7553 = vmatprep.mubr.bf16.mxu0 0
      %7554 = vmatmul.mubr.bf16.gmra.mrb[0].mxu0 %v6957
      %v7555 = vpop.f32.mrb[0].mxu0
      %v7556 = vadd.f32 0.0, %v7555
      %v7557 = vpop.f32.mrb[0].mxu0
      %v7558 = vpop.f32.mrb[0].mxu0
      %v7559 = vadd.f32 0.0, %v7558
      %v7560 = vpop.f32.mrb[0].mxu0
      %7561 = vmatprep.mubr.bf16.mxu0 0
      %7562 = vmatmul.mubr.bf16.gmra.mrb[0].mxu0 %v6960
      %v7563 = vpop.f32.mrb[0].mxu0
      %v7564 = vadd.f32 0.0, %v7563
      %v7565 = vpop.f32.mrb[0].mxu0
      %v7566 = vpop.f32.mrb[0].mxu0
      %v7567 = vadd.f32 0.0, %v7566
      %v7568 = vpop.f32.mrb[0].mxu0
      %7569 = vmatprep.mubr.bf16.mxu0 0
      %7570 = vmatmul.mubr.bf16.gmra.mrb[0].mxu0 %v6963
      %v7571 = vpop.f32.mrb[0].mxu0
      %v7572 = vadd.f32 0.0, %v7571
      %v7573 = vpop.f32.mrb[0].mxu0
      %v7574 = vpop.f32.mrb[0].mxu0
      %v7575 = vadd.f32 0.0, %v7574
      %v7576 = vpop.f32.mrb[0].mxu0
      %7577 = vmatprep.mubr.bf16.mxu0 0
      %7578 = vmatmul.mubr.bf16.gmra.mrb[0].mxu0 %v6966
      %v7579 = vpop.f32.mrb[0].mxu0
      %v7580 = vadd.f32 0.0, %v7579
      %v7581 = vpop.f32.mrb[0].mxu0
      %v7582 = vpop.f32.mrb[0].mxu0
      %v7583 = vadd.f32 0.0, %v7582
      %v7584 = vpop.f32.mrb[0].mxu0
      %7585 = vmatprep.mubr.bf16.mxu0 0
      %7586 = vmatmul.mubr.bf16.gmra.mrb[0].mxu0 %v6969
      %v7587 = vpop.f32.mrb[0].mxu0
      %v7588 = vadd.f32 0.0, %v7587
      %v7589 = vpop.f32.mrb[0].mxu0
      %v7590 = vpop.f32.mrb[0].mxu0
      %v7591 = vadd.f32 0.0, %v7590
      %v7592 = vpop.f32.mrb[0].mxu0
      %7593 = vmatprep.mubr.bf16.mxu0 0
      %7594 = vmatmul.mubr.bf16.gmra.mrb[0].mxu0 %v6972
      %v7595 = vpop.f32.mrb[0].mxu0
      %v7596 = vadd.f32 0.0, %v7595
      %v7597 = vpop.f32.mrb[0].mxu0
      %v7598 = vpop.f32.mrb[0].mxu0
      %v7599 = vadd.f32 0.0, %v7598
      %v7600 = vpop.f32.mrb[0].mxu0
      %7601 = vmatprep.mubr.bf16.mxu0 0
      %7602 = vmatmul.mubr.bf16.gmra.mrb[0].mxu0 %v6975
      %v7603 = vpop.f32.mrb[0].mxu0
      %v7604 = vadd.f32 0.0, %v7603
      %v7605 = vpop.f32.mrb[0].mxu0
      %v7606 = vpop.f32.mrb[0].mxu0
      %v7607 = vadd.f32 0.0, %v7606
      %v7608 = vpop.f32.mrb[0].mxu0
      %7609 = vmatprep.mubr.bf16.mxu0 0
      %7610 = vmatmul.mubr.bf16.gmra.mrb[0].mxu0 %v6978
      %v7611 = vpop.f32.mrb[0].mxu0
      %v7612 = vadd.f32 0.0, %v7611
      %v7613 = vpop.f32.mrb[0].mxu0
      %v7614 = vpop.f32.mrb[0].mxu0
      %v7615 = vadd.f32 0.0, %v7614
      %v7616 = vpop.f32.mrb[0].mxu0
      %7617 = vmatprep.mubr.bf16.mxu0 0
      %7618 = vmatmul.mubr.bf16.gmra.mrb[0].mxu0 %v6981
      %v7619 = vpop.f32.mrb[0].mxu0
      %v7620 = vadd.f32 0.0, %v7619
      %v7621 = vpop.f32.mrb[0].mxu0
      %v7622 = vpop.f32.mrb[0].mxu0
      %v7623 = vadd.f32 0.0, %v7622
      %v7624 = vpop.f32.mrb[0].mxu0
      %7625 = vmatprep.mubr.bf16.mxu0 0
      %7626 = vmatmul.mubr.bf16.gmra.mrb[0].mxu0 %v6984
      %v7627 = vpop.f32.mrb[0].mxu0
      %v7628 = vadd.f32 0.0, %v7627
      %v7629 = vpop.f32.mrb[0].mxu0
      %v7630 = vpop.f32.mrb[0].mxu0
      %v7631 = vadd.f32 0.0, %v7630
      %v7632 = vpop.f32.mrb[0].mxu0
      %7633 = vmatprep.mubr.bf16.mxu0 0
      %7634 = vmatmul.mubr.bf16.gmra.mrb[0].mxu0 %v6987
      %v7635 = vpop.f32.mrb[0].mxu0
      %v7636 = vadd.f32 0.0, %v7635
      %v7637 = vpop.f32.mrb[0].mxu0
      %v7638 = vpop.f32.mrb[0].mxu0
      %v7639 = vadd.f32 0.0, %v7638
      %v7640 = vpop.f32.mrb[0].mxu0
      %7641 = vmatprep.mubr.bf16.mxu0 0
      %7642 = vmatmul.mubr.bf16.gmra.mrb[0].mxu0 %v6990
      %v7643 = vpop.f32.mrb[0].mxu0
      %v7644 = vadd.f32 0.0, %v7643
      %v7645 = vpop.f32.mrb[0].mxu0
      %v7646 = vpop.f32.mrb[0].mxu0
      %v7647 = vadd.f32 0.0, %v7646
      %v7648 = vpop.f32.mrb[0].mxu0
      %7649 = vmatprep.mubr.bf16.mxu0 0
      %7650 = vmatmul.mubr.bf16.gmra.mrb[0].mxu0 %v6993
      %v7651 = vpop.f32.mrb[0].mxu0
      %v7652 = vadd.f32 0.0, %v7651
      %v7653 = vpop.f32.mrb[0].mxu0
      %v7654 = vpop.f32.mrb[0].mxu0
      %v7655 = vadd.f32 0.0, %v7654
      %v7656 = vpop.f32.mrb[0].mxu0
      %7657 = vmatprep.mubr.bf16.mxu0 0
      %7658 = vmatmul.mubr.bf16.gmra.mrb[0].mxu0 %v6996
      %v7659 = vpop.f32.mrb[0].mxu0
      %v7660 = vadd.f32 0.0, %v7659
      %v7661 = vpop.f32.mrb[0].mxu0
      %v7662 = vpop.f32.mrb[0].mxu0
      %v7663 = vadd.f32 0.0, %v7662
      %v7664 = vpop.f32.mrb[0].mxu0
      %7665 = vmatprep.mubr.bf16.mxu0 0
      %7666 = vmatmul.mubr.bf16.gmra.mrb[0].mxu0 %v6999
      %v7667 = vpop.f32.mrb[0].mxu0
      %v7668 = vadd.f32 0.0, %v7667
      %v7669 = vpop.f32.mrb[0].mxu0
      %v7670 = vpop.f32.mrb[0].mxu0
      %v7671 = vadd.f32 0.0, %v7670
      %v7672 = vpop.f32.mrb[0].mxu0
      %7673 = vmatprep.mubr.bf16.mxu0 0
      %7674 = vmatmul.mubr.bf16.gmra.mrb[0].mxu0 %v7002
      %v7675 = vpop.f32.mrb[0].mxu0
      %v7676 = vadd.f32 0.0, %v7675
      %v7677 = vpop.f32.mrb[0].mxu0
      %v7678 = vpop.f32.mrb[0].mxu0
      %v7679 = vadd.f32 0.0, %v7678
      %v7680 = vpop.f32.mrb[0].mxu0
      %7681 = vmatprep.mubr.bf16.mxu0 0
      %7682 = vmatmul.mubr.bf16.gmra.mrb[0].mxu0 %v7005
      %v7683 = vpop.f32.mrb[0].mxu0
      %v7684 = vadd.f32 0.0, %v7683
      %v7685 = vpop.f32.mrb[0].mxu0
      %v7686 = vpop.f32.mrb[0].mxu0
      %v7687 = vadd.f32 0.0, %v7686
      %v7688 = vpop.f32.mrb[0].mxu0
      %7689 = vmatprep.mubr.bf16.mxu0 0
      %7690 = vmatmul.mubr.bf16.gmra.mrb[0].mxu0 %v7008
      %v7691 = vpop.f32.mrb[0].mxu0
      %v7692 = vadd.f32 0.0, %v7691
      %v7693 = vpop.f32.mrb[0].mxu0
      %v7694 = vpop.f32.mrb[0].mxu0
      %v7695 = vadd.f32 0.0, %v7694
      %v7696 = vpop.f32.mrb[0].mxu0
      %7697 = vmatprep.mubr.bf16.mxu0 0
      %7698 = vmatmul.mubr.bf16.gmra.mrb[0].mxu0 %v7011
      %v7699 = vpop.f32.mrb[0].mxu0
      %v7700 = vadd.f32 0.0, %v7699
      %v7701 = vpop.f32.mrb[0].mxu0
      %v7702 = vpop.f32.mrb[0].mxu0
      %v7703 = vadd.f32 0.0, %v7702
      %v7704 = vpop.f32.mrb[0].mxu0
      %7705 = vmatprep.mubr.bf16.mxu0 0
      %7706 = vmatmul.mubr.bf16.gmra.mrb[0].mxu0 %v7014
      %v7707 = vpop.f32.mrb[0].mxu0
      %v7708 = vadd.f32 0.0, %v7707
      %v7709 = vpop.f32.mrb[0].mxu0
      %v7710 = vpop.f32.mrb[0].mxu0
      %v7711 = vadd.f32 0.0, %v7710
      %v7712 = vpop.f32.mrb[0].mxu0
      %7713 = vmatprep.mubr.bf16.mxu0 0
      %7714 = vmatmul.mubr.bf16.gmra.mrb[0].mxu0 %v7017
      %v7715 = vpop.f32.mrb[0].mxu0
      %v7716 = vadd.f32 0.0, %v7715
      %v7717 = vpop.f32.mrb[0].mxu0
      %v7718 = vpop.f32.mrb[0].mxu0
      %v7719 = vadd.f32 0.0, %v7718
      %v7720 = vpop.f32.mrb[0].mxu0
      %7721 = vmatprep.mubr.bf16.mxu0 0
      %7722 = vmatmul.mubr.bf16.gmra.mrb[0].mxu0 %v7020
      %v7723 = vpop.f32.mrb[0].mxu0
      %v7724 = vadd.f32 0.0, %v7723
      %v7725 = vpop.f32.mrb[0].mxu0
      %v7726 = vpop.f32.mrb[0].mxu0
      %v7727 = vadd.f32 0.0, %v7726
      %v7728 = vpop.f32.mrb[0].mxu0
      %7729 = vmatprep.mubr.bf16.mxu0 0
      %7730 = vmatmul.mubr.bf16.gmra.mrb[0].mxu0 %v7023
      %v7731 = vpop.f32.mrb[0].mxu0
      %v7732 = vadd.f32 0.0, %v7731
      %v7733 = vpop.f32.mrb[0].mxu0
      %v7734 = vpop.f32.mrb[0].mxu0
      %v7735 = vadd.f32 0.0, %v7734
      %v7736 = vpop.f32.mrb[0].mxu0
      %7737 = vmatprep.mubr.bf16.mxu0 0
      %7738 = vmatmul.mubr.bf16.gmra.mrb[0].mxu0 %v7026
      %v7739 = vpop.f32.mrb[0].mxu0
      %v7740 = vadd.f32 0.0, %v7739
      %v7741 = vpop.f32.mrb[0].mxu0
      %v7742 = vpop.f32.mrb[0].mxu0
      %v7743 = vadd.f32 0.0, %v7742
      %v7744 = vpop.f32.mrb[0].mxu0
      %7745 = vmatprep.mubr.bf16.mxu0 0
      %7746 = vmatmul.mubr.bf16.gmra.mrb[0].mxu0 %v7029
      %v7747 = vpop.f32.mrb[0].mxu0
      %v7748 = vadd.f32 0.0, %v7747
      %v7749 = vpop.f32.mrb[0].mxu0
      %v7750 = vpop.f32.mrb[0].mxu0
      %v7751 = vadd.f32 0.0, %v7750
      %v7752 = vpop.f32.mrb[0].mxu0
      %7753 = vmatprep.mubr.bf16.mxu0 0
      %7754 = vmatmul.mubr.bf16.gmra.mrb[0].mxu0 %v7032
      %v7755 = vpop.f32.mrb[0].mxu0
      %v7756 = vadd.f32 0.0, %v7755
      %v7757 = vpop.f32.mrb[0].mxu0
      %v7758 = vpop.f32.mrb[0].mxu0
      %v7759 = vadd.f32 0.0, %v7758
      %v7760 = vpop.f32.mrb[0].mxu0
      %7761 = vmatprep.mubr.bf16.mxu0 0
      %7762 = vmatmul.mubr.bf16.gmra.mrb[0].mxu0 %v7035
      %v7763 = vpop.f32.mrb[0].mxu0
      %v7764 = vadd.f32 0.0, %v7763
      %v7765 = vpop.f32.mrb[0].mxu0
      %v7766 = vpop.f32.mrb[0].mxu0
      %v7767 = vadd.f32 0.0, %v7766
      %v7768 = vpop.f32.mrb[0].mxu0
      %7769 = vmatprep.mubr.bf16.mxu0 0
      %7770 = vmatmul.mubr.bf16.gmra.mrb[0].mxu0 %v7038
      %v7771 = vpop.f32.mrb[0].mxu0
      %v7772 = vadd.f32 0.0, %v7771
      %v7773 = vpop.f32.mrb[0].mxu0
      %v7774 = vpop.f32.mrb[0].mxu0
      %v7775 = vadd.f32 0.0, %v7774
      %v7776 = vpop.f32.mrb[0].mxu0
      %7777 = vmatprep.mubr.bf16.mxu0 0
      %7778 = vmatmul.mubr.bf16.gmra.mrb[0].mxu0 %v7041
      %v7779 = vpop.f32.mrb[0].mxu0
      %v7780 = vadd.f32 0.0, %v7779
      %v7781 = vpop.f32.mrb[0].mxu0
      %v7782 = vpop.f32.mrb[0].mxu0
      %v7783 = vadd.f32 0.0, %v7782
      %v7784 = vpop.f32.mrb[0].mxu0
      %7785 = vmatprep.mubr.bf16.mxu0 0
      %7786 = vmatmul.mubr.bf16.gmra.mrb[0].mxu0 %v7044
      %v7787 = vpop.f32.mrb[0].mxu0
      %v7788 = vadd.f32 0.0, %v7787
      %v7789 = vpop.f32.mrb[0].mxu0
      %v7790 = vpop.f32.mrb[0].mxu0
      %v7791 = vadd.f32 0.0, %v7790
      %v7792 = vpop.f32.mrb[0].mxu0
      %7793 = vmatprep.mubr.bf16.mxu0 0
      %7794 = vmatmul.mubr.bf16.gmra.mrb[0].mxu0 %v7047
      %v7795 = vpop.f32.mrb[0].mxu0
      %v7796 = vadd.f32 0.0, %v7795
      %v7797 = vpop.f32.mrb[0].mxu0
      %v7798 = vpop.f32.mrb[0].mxu0
      %v7799 = vadd.f32 0.0, %v7798
      %v7800 = vpop.f32.mrb[0].mxu0
      %7801 = vmatprep.mubr.bf16.mxu0 0
      %7802 = vmatmul.mubr.bf16.gmra.mrb[0].mxu0 %v7050
      %v7803 = vpop.f32.mrb[0].mxu0
      %v7804 = vadd.f32 0.0, %v7803
      %v7805 = vpop.f32.mrb[0].mxu0
      %v7806 = vpop.f32.mrb[0].mxu0
      %v7807 = vadd.f32 0.0, %v7806
      %v7808 = vpop.f32.mrb[0].mxu0
      %7809 = vmatprep.mubr.bf16.mxu0 0
      %7810 = vmatmul.mubr.bf16.gmra.mrb[0].mxu0 %v7053
      %v7811 = vpop.f32.mrb[0].mxu0
      %v7812 = vadd.f32 0.0, %v7811
      %v7813 = vpop.f32.mrb[0].mxu0
      %v7814 = vpop.f32.mrb[0].mxu0
      %v7815 = vadd.f32 0.0, %v7814
      %v7816 = vpop.f32.mrb[0].mxu0
      %7817 = vmatprep.mubr.bf16.mxu0 0
      %7818 = vmatmul.mubr.bf16.gmra.mrb[0].mxu0 %v7056
      %v7819 = vpop.f32.mrb[0].mxu0
      %v7820 = vadd.f32 0.0, %v7819
      %v7821 = vpop.f32.mrb[0].mxu0
      %v7822 = vpop.f32.mrb[0].mxu0
      %v7823 = vadd.f32 0.0, %v7822
      %v7824 = vpop.f32.mrb[0].mxu0
      %7825 = vmatprep.mubr.bf16.mxu0 0
      %7826 = vmatmul.mubr.bf16.gmra.mrb[0].mxu0 %v7059
      %v7827 = vpop.f32.mrb[0].mxu0
      %v7828 = vadd.f32 0.0, %v7827
      %v7829 = vpop.f32.mrb[0].mxu0
      %v7830 = vpop.f32.mrb[0].mxu0
      %v7831 = vadd.f32 0.0, %v7830
      %v7832 = vpop.f32.mrb[0].mxu0
      %7833 = vmatprep.mubr.bf16.mxu0 0
      %7834 = vmatmul.mubr.bf16.gmra.mrb[0].mxu0 %v7062
      %v7835 = vpop.f32.mrb[0].mxu0
      %v7836 = vadd.f32 0.0, %v7835
      %v7837 = vpop.f32.mrb[0].mxu0
      %v7838 = vpop.f32.mrb[0].mxu0
      %v7839 = vadd.f32 0.0, %v7838
      %v7840 = vpop.f32.mrb[0].mxu0
      %7841 = vmatprep.mubr.bf16.mxu0 0
      %7842 = vmatmul.mubr.bf16.gmra.mrb[0].mxu0 %v7065
      %v7843 = vpop.f32.mrb[0].mxu0
      %v7844 = vadd.f32 0.0, %v7843
      %v7845 = vpop.f32.mrb[0].mxu0
      %v7846 = vpop.f32.mrb[0].mxu0
      %v7847 = vadd.f32 0.0, %v7846
      %v7848 = vpop.f32.mrb[0].mxu0
      %7849 = vmatprep.mubr.bf16.mxu0 0
      %7850 = vmatmul.mubr.bf16.gmra.mrb[0].mxu0 %v7068
      %v7851 = vpop.f32.mrb[0].mxu0
      %v7852 = vadd.f32 0.0, %v7851
      %v7853 = vpop.f32.mrb[0].mxu0
      %v7854 = vpop.f32.mrb[0].mxu0
      %v7855 = vadd.f32 0.0, %v7854
      %v7856 = vpop.f32.mrb[0].mxu0
      %7857 = vmatprep.mubr.bf16.mxu0 0
      %7858 = vmatmul.mubr.bf16.gmra.mrb[0].mxu0 %v7071
      %v7859 = vpop.f32.mrb[0].mxu0
      %v7860 = vadd.f32 0.0, %v7859
      %v7861 = vpop.f32.mrb[0].mxu0
      %v7862 = vpop.f32.mrb[0].mxu0
      %v7863 = vadd.f32 0.0, %v7862
      %v7864 = vpop.f32.mrb[0].mxu0
      %7865 = vmatprep.mubr.bf16.mxu0 0
      %7866 = vmatmul.mubr.bf16.gmra.mrb[0].mxu0 %v7074
      %v7867 = vpop.f32.mrb[0].mxu0
      %v7868 = vadd.f32 0.0, %v7867
      %v7869 = vpop.f32.mrb[0].mxu0
      %v7870 = vpop.f32.mrb[0].mxu0
      %v7871 = vadd.f32 0.0, %v7870
      %v7872 = vpop.f32.mrb[0].mxu0
      %7873 = vmatprep.mubr.bf16.mxu0 0
      %7874 = vmatmul.mubr.bf16.gmra.mrb[0].mxu0 %v7077
      %v7875 = vpop.f32.mrb[0].mxu0
      %v7876 = vadd.f32 0.0, %v7875
      %v7877 = vpop.f32.mrb[0].mxu0
      %v7878 = vpop.f32.mrb[0].mxu0
      %v7879 = vadd.f32 0.0, %v7878
      %v7880 = vpop.f32.mrb[0].mxu0
      %7881 = vmatprep.mubr.bf16.mxu0 0
      %7882 = vmatmul.mubr.bf16.gmra.mrb[0].mxu0 %v7080
      %v7883 = vpop.f32.mrb[0].mxu0
      %v7884 = vadd.f32 0.0, %v7883
      %v7885 = vpop.f32.mrb[0].mxu0
      %v7886 = vpop.f32.mrb[0].mxu0
      %v7887 = vadd.f32 0.0, %v7886
      %v7888 = vpop.f32.mrb[0].mxu0
      %7889 = vmatprep.mubr.bf16.mxu0 0
      %7890 = vmatmul.mubr.bf16.gmra.mrb[0].mxu0 %v7083
      %v7891 = vpop.f32.mrb[0].mxu0
      %v7892 = vadd.f32 0.0, %v7891
      %v7893 = vpop.f32.mrb[0].mxu0
      %v7894 = vpop.f32.mrb[0].mxu0
      %v7895 = vadd.f32 0.0, %v7894
      %v7896 = vpop.f32.mrb[0].mxu0
      %7897 = vmatprep.mubr.bf16.mxu0 0
      %7898 = vmatmul.mubr.bf16.gmra.mrb[0].mxu0 %v7086
      %v7899 = vpop.f32.mrb[0].mxu0
      %v7900 = vadd.f32 0.0, %v7899
      %v7901 = vpop.f32.mrb[0].mxu0
      %v7902 = vpop.f32.mrb[0].mxu0
      %v7903 = vadd.f32 0.0, %v7902
      %v7904 = vpop.f32.mrb[0].mxu0
      %7905 = vmatprep.mubr.bf16.mxu0 0
      %7906 = vmatmul.mubr.bf16.gmra.mrb[0].mxu0 %v7089
      %v7907 = vpop.f32.mrb[0].mxu0
      %v7908 = vadd.f32 0.0, %v7907
      %v7909 = vpop.f32.mrb[0].mxu0
      %v7910 = vpop.f32.mrb[0].mxu0
      %v7911 = vadd.f32 0.0, %v7910
      %v7912 = vpop.f32.mrb[0].mxu0
      %7913 = vmatprep.mubr.bf16.mxu0 0
      %7914 = vmatmul.mubr.bf16.gmra.mrb[0].mxu0 %v7092
      %v7915 = vpop.f32.mrb[0].mxu0
      %v7916 = vadd.f32 0.0, %v7915
      %v7917 = vpop.f32.mrb[0].mxu0
      %v7918 = vpop.f32.mrb[0].mxu0
      %v7919 = vadd.f32 0.0, %v7918
      %v7920 = vpop.f32.mrb[0].mxu0
      %7921 = vmatprep.mubr.bf16.mxu0 0
      %7922 = vmatmul.mubr.bf16.gmra.mrb[0].mxu0 %v7095
      %v7923 = vpop.f32.mrb[0].mxu0
      %v7924 = vadd.f32 0.0, %v7923
      %v7925 = vpop.f32.mrb[0].mxu0
      %v7926 = vpop.f32.mrb[0].mxu0
      %v7927 = vadd.f32 0.0, %v7926
      %v7928 = vpop.f32.mrb[0].mxu0
      %7929 = vdwg.mxu0
      %v7930 = vmax.f32 %v5896, %v7132
      %v7931 = vmax.f32 %v5897, %v7135
      %v7932 = vmax.f32 %v5898, %v7140
      %v7933 = vmax.f32 %v5899, %v7143
      %v7934 = vmax.f32 %v5900, %v7148
      %v7935 = vmax.f32 %v5901, %v7151
      %v7936 = vmax.f32 %v5902, %v7156
      %v7937 = vmax.f32 %v5903, %v7159
      %v7938 = vmax.f32 %v5904, %v7164
      %v7939 = vmax.f32 %v5905, %v7167
      %v7940 = vmax.f32 %v5906, %v7172
      %v7941 = vmax.f32 %v5907, %v7175
      %v7942 = vmax.f32 %v5908, %v7180
      %v7943 = vmax.f32 %v5909, %v7183
      %v7944 = vmax.f32 %v5910, %v7188
      %v7945 = vmax.f32 %v5911, %v7191
      %v7946 = vmax.f32 %v5912, %v7196
      %v7947 = vmax.f32 %v5913, %v7199
      %v7948 = vmax.f32 %v5914, %v7204
      %v7949 = vmax.f32 %v5915, %v7207
      %v7950 = vmax.f32 %v5916, %v7212
      %v7951 = vmax.f32 %v5917, %v7215
      %v7952 = vmax.f32 %v5918, %v7220
      %v7953 = vmax.f32 %v5919, %v7223
      %v7954 = vmax.f32 %v5920, %v7228
      %v7955 = vmax.f32 %v5921, %v7231
      %v7956 = vmax.f32 %v5922, %v7236
      %v7957 = vmax.f32 %v5923, %v7239
      %v7958 = vmax.f32 %v5924, %v7244
      %v7959 = vmax.f32 %v5925, %v7247
      %v7960 = vmax.f32 %v5926, %v7252
      %v7961 = vmax.f32 %v5927, %v7255
      %v7962 = vmax.f32 %v5928, %v7260
      %v7963 = vmax.f32 %v5929, %v7263
      %v7964 = vmax.f32 %v5930, %v7268
      %v7965 = vmax.f32 %v5931, %v7271
      %v7966 = vmax.f32 %v5932, %v7276
      %v7967 = vmax.f32 %v5933, %v7279
      %v7968 = vmax.f32 %v5934, %v7284
      %v7969 = vmax.f32 %v5935, %v7287
      %v7970 = vmax.f32 %v5936, %v7292
      %v7971 = vmax.f32 %v5937, %v7295
      %v7972 = vmax.f32 %v5938, %v7300
      %v7973 = vmax.f32 %v5939, %v7303
      %v7974 = vmax.f32 %v5940, %v7308
      %v7975 = vmax.f32 %v5941, %v7311
      %v7976 = vmax.f32 %v5942, %v7316
      %v7977 = vmax.f32 %v5943, %v7319
      %v7978 = vmax.f32 %v5944, %v7324
      %v7979 = vmax.f32 %v5945, %v7327
      %v7980 = vmax.f32 %v5946, %v7332
      %v7981 = vmax.f32 %v5947, %v7335
      %v7982 = vmax.f32 %v5948, %v7340
      %v7983 = vmax.f32 %v5949, %v7343
      %v7984 = vmax.f32 %v5950, %v7348
      %v7985 = vmax.f32 %v5951, %v7351
      %v7986 = vmax.f32 %v5952, %v7356
      %v7987 = vmax.f32 %v5953, %v7359
      %v7988 = vmax.f32 %v5954, %v7364
      %v7989 = vmax.f32 %v5955, %v7367
      %v7990 = vmax.f32 %v5956, %v7372
      %v7991 = vmax.f32 %v5957, %v7375
      %v7992 = vmax.f32 %v5958, %v7380
      %v7993 = vmax.f32 %v5959, %v7383
      %v7994 = vmax.f32 %v5960, %v7388
      %v7995 = vmax.f32 %v5961, %v7391
      %v7996 = vmax.f32 %v5962, %v7396
      %v7997 = vmax.f32 %v5963, %v7399
      %v7998 = vmax.f32 %v5964, %v7404
      %v7999 = vmax.f32 %v5965, %v7407
      %v8000 = vmax.f32 %v5966, %v7412
      %v8001 = vmax.f32 %v5967, %v7415
      %v8002 = vmax.f32 %v5968, %v7420
      %v8003 = vmax.f32 %v5969, %v7423
      %v8004 = vmax.f32 %v5970, %v7428
      %v8005 = vmax.f32 %v5971, %v7431
      %v8006 = vmax.f32 %v5972, %v7436
      %v8007 = vmax.f32 %v5973, %v7439
      %v8008 = vmax.f32 %v5974, %v7444
      %v8009 = vmax.f32 %v5975, %v7447
      %v8010 = vmax.f32 %v5976, %v7452
      %v8011 = vmax.f32 %v5977, %v7455
      %v8012 = vmax.f32 %v5978, %v7460
      %v8013 = vmax.f32 %v5979, %v7463
      %v8014 = vmax.f32 %v5980, %v7468
      %v8015 = vmax.f32 %v5981, %v7471
      %v8016 = vmax.f32 %v5982, %v7476
      %v8017 = vmax.f32 %v5983, %v7479
      %v8018 = vmax.f32 %v5984, %v7484
      %v8019 = vmax.f32 %v5985, %v7487
      %v8020 = vmax.f32 %v5986, %v7492
      %v8021 = vmax.f32 %v5987, %v7495
      %v8022 = vmax.f32 %v5988, %v7500
      %v8023 = vmax.f32 %v5989, %v7503
      %v8024 = vmax.f32 %v5990, %v7508
      %v8025 = vmax.f32 %v5991, %v7511
      %v8026 = vmax.f32 %v5992, %v7516
      %v8027 = vmax.f32 %v5993, %v7519
      %v8028 = vmax.f32 %v5994, %v7524
      %v8029 = vmax.f32 %v5995, %v7527
      %v8030 = vmax.f32 %v5996, %v7532
      %v8031 = vmax.f32 %v5997, %v7535
      %v8032 = vmax.f32 %v5998, %v7540
      %v8033 = vmax.f32 %v5999, %v7543
      %v8034 = vmax.f32 %v6000, %v7548
      %v8035 = vmax.f32 %v6001, %v7551
      %v8036 = vmax.f32 %v6002, %v7556
      %v8037 = vmax.f32 %v6003, %v7559
      %v8038 = vmax.f32 %v6004, %v7564
      %v8039 = vmax.f32 %v6005, %v7567
      %v8040 = vmax.f32 %v6006, %v7572
      %v8041 = vmax.f32 %v6007, %v7575
      %v8042 = vmax.f32 %v6008, %v7580
      %v8043 = vmax.f32 %v6009, %v7583
      %v8044 = vmax.f32 %v6010, %v7588
      %v8045 = vmax.f32 %v6011, %v7591
      %v8046 = vmax.f32 %v6012, %v7596
      %v8047 = vmax.f32 %v6013, %v7599
      %v8048 = vmax.f32 %v6014, %v7604
      %v8049 = vmax.f32 %v6015, %v7607
      %v8050 = vmax.f32 %v6016, %v7612
      %v8051 = vmax.f32 %v6017, %v7615
      %v8052 = vmax.f32 %v6018, %v7620
      %v8053 = vmax.f32 %v6019, %v7623
      %v8054 = vmax.f32 %v6020, %v7628
      %v8055 = vmax.f32 %v6021, %v7631
      %v8056 = vmax.f32 %v6022, %v7636
      %v8057 = vmax.f32 %v6023, %v7639
      %v8058 = vmax.f32 %v6024, %v7644
      %v8059 = vmax.f32 %v6025, %v7647
      %v8060 = vmax.f32 %v6026, %v7652
      %v8061 = vmax.f32 %v6027, %v7655
      %v8062 = vmax.f32 %v6028, %v7660
      %v8063 = vmax.f32 %v6029, %v7663
      %v8064 = vmax.f32 %v6030, %v7668
      %v8065 = vmax.f32 %v6031, %v7671
      %v8066 = vmax.f32 %v6032, %v7676
      %v8067 = vmax.f32 %v6033, %v7679
      %v8068 = vmax.f32 %v6034, %v7684
      %v8069 = vmax.f32 %v6035, %v7687
      %v8070 = vmax.f32 %v6036, %v7692
      %v8071 = vmax.f32 %v6037, %v7695
      %v8072 = vmax.f32 %v6038, %v7700
      %v8073 = vmax.f32 %v6039, %v7703
      %v8074 = vmax.f32 %v6040, %v7708
      %v8075 = vmax.f32 %v6041, %v7711
      %v8076 = vmax.f32 %v6042, %v7716
      %v8077 = vmax.f32 %v6043, %v7719
      %v8078 = vmax.f32 %v6044, %v7724
      %v8079 = vmax.f32 %v6045, %v7727
      %v8080 = vmax.f32 %v6046, %v7732
      %v8081 = vmax.f32 %v6047, %v7735
      %v8082 = vmax.f32 %v6048, %v7740
      %v8083 = vmax.f32 %v6049, %v7743
      %v8084 = vmax.f32 %v6050, %v7748
      %v8085 = vmax.f32 %v6051, %v7751
      %v8086 = vmax.f32 %v6052, %v7756
      %v8087 = vmax.f32 %v6053, %v7759
      %v8088 = vmax.f32 %v6054, %v7764
      %v8089 = vmax.f32 %v6055, %v7767
      %v8090 = vmax.f32 %v6056, %v7772
      %v8091 = vmax.f32 %v6057, %v7775
      %v8092 = vmax.f32 %v6058, %v7780
      %v8093 = vmax.f32 %v6059, %v7783
      %v8094 = vmax.f32 %v6060, %v7788
      %v8095 = vmax.f32 %v6061, %v7791
      %v8096 = vmax.f32 %v6062, %v7796
      %v8097 = vmax.f32 %v6063, %v7799
      %v8098 = vmax.f32 %v6064, %v7804
      %v8099 = vmax.f32 %v6065, %v7807
      %v8100 = vmax.f32 %v6066, %v7812
      %v8101 = vmax.f32 %v6067, %v7815
      %v8102 = vmax.f32 %v6068, %v7820
      %v8103 = vmax.f32 %v6069, %v7823
      %v8104 = vmax.f32 %v6070, %v7828
      %v8105 = vmax.f32 %v6071, %v7831
      %v8106 = vmax.f32 %v6072, %v7836
      %v8107 = vmax.f32 %v6073, %v7839
      %v8108 = vmax.f32 %v6074, %v7844
      %v8109 = vmax.f32 %v6075, %v7847
      %v8110 = vmax.f32 %v6076, %v7852
      %v8111 = vmax.f32 %v6077, %v7855
      %v8112 = vmax.f32 %v6078, %v7860
      %v8113 = vmax.f32 %v6079, %v7863
      %v8114 = vmax.f32 %v6080, %v7868
      %v8115 = vmax.f32 %v6081, %v7871
      %v8116 = vmax.f32 %v6082, %v7876
      %v8117 = vmax.f32 %v6083, %v7879
      %v8118 = vmax.f32 %v6084, %v7884
      %v8119 = vmax.f32 %v6085, %v7887
      %v8120 = vmax.f32 %v6086, %v7892
      %v8121 = vmax.f32 %v6087, %v7895
      %v8122 = vmax.f32 %v6088, %v7900
      %v8123 = vmax.f32 %v6089, %v7903
      %v8124 = vmax.f32 %v6090, %v7908
      %v8125 = vmax.f32 %v6091, %v7911
      %v8126 = vmax.f32 %v6092, %v7916
      %v8127 = vmax.f32 %v6093, %v7919
      %v8128 = vmax.f32 %v6094, %v7924
      %v8129 = vmax.f32 %v6095, %v7927
      %v8130 = vld [vmem:[%s2] sm:$0x1]
      %v8132 = vlaneseq
      %v8133 = vshrl.u32 %v8132, 7
      %v8134 = vsub.s32 0, %v8133
      %v8135 = vrot.slane %v8130, %v8134
      %v8137 = vadd.f32 %v7930, %v8135
      %v8138 = vadd.f32 %v7931, %v8135
      %v8139 = vadd.f32 %v7932, %v8135
      %v8140 = vadd.f32 %v7933, %v8135
      %v8141 = vadd.f32 %v7934, %v8135
      %v8142 = vadd.f32 %v7935, %v8135
      %v8143 = vadd.f32 %v7936, %v8135
      %v8144 = vadd.f32 %v7937, %v8135
      %v8145 = vadd.f32 %v7938, %v8135
      %v8146 = vadd.f32 %v7939, %v8135
      %v8147 = vadd.f32 %v7940, %v8135
      %v8148 = vadd.f32 %v7941, %v8135
      %v8149 = vadd.f32 %v7942, %v8135
      %v8150 = vadd.f32 %v7943, %v8135
      %v8151 = vadd.f32 %v7944, %v8135
      %v8152 = vadd.f32 %v7945, %v8135
      %v8153 = vadd.f32 %v7946, %v8135
      %v8154 = vadd.f32 %v7947, %v8135
      %v8155 = vadd.f32 %v7948, %v8135
      %v8156 = vadd.f32 %v7949, %v8135
      %v8157 = vadd.f32 %v7950, %v8135
      %v8158 = vadd.f32 %v7951, %v8135
      %v8159 = vadd.f32 %v7952, %v8135
      %v8160 = vadd.f32 %v7953, %v8135
      %v8161 = vadd.f32 %v7954, %v8135
      %v8162 = vadd.f32 %v7955, %v8135
      %v8163 = vadd.f32 %v7956, %v8135
      %v8164 = vadd.f32 %v7957, %v8135
      %v8165 = vadd.f32 %v7958, %v8135
      %v8166 = vadd.f32 %v7959, %v8135
      %v8167 = vadd.f32 %v7960, %v8135
      %v8168 = vadd.f32 %v7961, %v8135
      %v8169 = vadd.f32 %v7962, %v8135
      %v8170 = vadd.f32 %v7963, %v8135
      %v8171 = vadd.f32 %v7964, %v8135
      %v8172 = vadd.f32 %v7965, %v8135
      %v8173 = vadd.f32 %v7966, %v8135
      %v8174 = vadd.f32 %v7967, %v8135
      %v8175 = vadd.f32 %v7968, %v8135
      %v8176 = vadd.f32 %v7969, %v8135
      %v8177 = vadd.f32 %v7970, %v8135
      %v8178 = vadd.f32 %v7971, %v8135
      %v8179 = vadd.f32 %v7972, %v8135
      %v8180 = vadd.f32 %v7973, %v8135
      %v8181 = vadd.f32 %v7974, %v8135
      %v8182 = vadd.f32 %v7975, %v8135
      %v8183 = vadd.f32 %v7976, %v8135
      %v8184 = vadd.f32 %v7977, %v8135
      %v8185 = vadd.f32 %v7978, %v8135
      %v8186 = vadd.f32 %v7979, %v8135
      %v8187 = vadd.f32 %v7980, %v8135
      %v8188 = vadd.f32 %v7981, %v8135
      %v8189 = vadd.f32 %v7982, %v8135
      %v8190 = vadd.f32 %v7983, %v8135
      %v8191 = vadd.f32 %v7984, %v8135
      %v8192 = vadd.f32 %v7985, %v8135
      %v8193 = vadd.f32 %v7986, %v8135
      %v8194 = vadd.f32 %v7987, %v8135
      %v8195 = vadd.f32 %v7988, %v8135
      %v8196 = vadd.f32 %v7989, %v8135
      %v8197 = vadd.f32 %v7990, %v8135
      %v8198 = vadd.f32 %v7991, %v8135
      %v8199 = vadd.f32 %v7992, %v8135
      %v8200 = vadd.f32 %v7993, %v8135
      %v8201 = vadd.f32 %v7994, %v8135
      %v8202 = vadd.f32 %v7995, %v8135
      %v8203 = vadd.f32 %v7996, %v8135
      %v8204 = vadd.f32 %v7997, %v8135
      %v8205 = vadd.f32 %v7998, %v8135
      %v8206 = vadd.f32 %v7999, %v8135
      %v8207 = vadd.f32 %v8000, %v8135
      %v8208 = vadd.f32 %v8001, %v8135
      %v8209 = vadd.f32 %v8002, %v8135
      %v8210 = vadd.f32 %v8003, %v8135
      %v8211 = vadd.f32 %v8004, %v8135
      %v8212 = vadd.f32 %v8005, %v8135
      %v8213 = vadd.f32 %v8006, %v8135
      %v8214 = vadd.f32 %v8007, %v8135
      %v8215 = vadd.f32 %v8008, %v8135
      %v8216 = vadd.f32 %v8009, %v8135
      %v8217 = vadd.f32 %v8010, %v8135
      %v8218 = vadd.f32 %v8011, %v8135
      %v8219 = vadd.f32 %v8012, %v8135
      %v8220 = vadd.f32 %v8013, %v8135
      %v8221 = vadd.f32 %v8014, %v8135
      %v8222 = vadd.f32 %v8015, %v8135
      %v8223 = vadd.f32 %v8016, %v8135
      %v8224 = vadd.f32 %v8017, %v8135
      %v8225 = vadd.f32 %v8018, %v8135
      %v8226 = vadd.f32 %v8019, %v8135
      %v8227 = vadd.f32 %v8020, %v8135
      %v8228 = vadd.f32 %v8021, %v8135
      %v8229 = vadd.f32 %v8022, %v8135
      %v8230 = vadd.f32 %v8023, %v8135
      %v8231 = vadd.f32 %v8024, %v8135
      %v8232 = vadd.f32 %v8025, %v8135
      %v8233 = vadd.f32 %v8026, %v8135
      %v8234 = vadd.f32 %v8027, %v8135
      %v8235 = vadd.f32 %v8028, %v8135
      %v8236 = vadd.f32 %v8029, %v8135
      %v8237 = vadd.f32 %v8030, %v8135
      %v8238 = vadd.f32 %v8031, %v8135
      %v8239 = vadd.f32 %v8032, %v8135
      %v8240 = vadd.f32 %v8033, %v8135
      %v8241 = vadd.f32 %v8034, %v8135
      %v8242 = vadd.f32 %v8035, %v8135
      %v8243 = vadd.f32 %v8036, %v8135
      %v8244 = vadd.f32 %v8037, %v8135
      %v8245 = vadd.f32 %v8038, %v8135
      %v8246 = vadd.f32 %v8039, %v8135
      %v8247 = vadd.f32 %v8040, %v8135
      %v8248 = vadd.f32 %v8041, %v8135
      %v8249 = vadd.f32 %v8042, %v8135
      %v8250 = vadd.f32 %v8043, %v8135
      %v8251 = vadd.f32 %v8044, %v8135
      %v8252 = vadd.f32 %v8045, %v8135
      %v8253 = vadd.f32 %v8046, %v8135
      %v8254 = vadd.f32 %v8047, %v8135
      %v8255 = vadd.f32 %v8048, %v8135
      %v8256 = vadd.f32 %v8049, %v8135
      %v8257 = vadd.f32 %v8050, %v8135
      %v8258 = vadd.f32 %v8051, %v8135
      %v8259 = vadd.f32 %v8052, %v8135
      %v8260 = vadd.f32 %v8053, %v8135
      %v8261 = vadd.f32 %v8054, %v8135
      %v8262 = vadd.f32 %v8055, %v8135
      %v8263 = vadd.f32 %v8056, %v8135
      %v8264 = vadd.f32 %v8057, %v8135
      %v8265 = vadd.f32 %v8058, %v8135
      %v8266 = vadd.f32 %v8059, %v8135
      %v8267 = vadd.f32 %v8060, %v8135
      %v8268 = vadd.f32 %v8061, %v8135
      %v8269 = vadd.f32 %v8062, %v8135
      %v8270 = vadd.f32 %v8063, %v8135
      %v8271 = vadd.f32 %v8064, %v8135
      %v8272 = vadd.f32 %v8065, %v8135
      %v8273 = vadd.f32 %v8066, %v8135
      %v8274 = vadd.f32 %v8067, %v8135
      %v8275 = vadd.f32 %v8068, %v8135
      %v8276 = vadd.f32 %v8069, %v8135
      %v8277 = vadd.f32 %v8070, %v8135
      %v8278 = vadd.f32 %v8071, %v8135
      %v8279 = vadd.f32 %v8072, %v8135
      %v8280 = vadd.f32 %v8073, %v8135
      %v8281 = vadd.f32 %v8074, %v8135
      %v8282 = vadd.f32 %v8075, %v8135
      %v8283 = vadd.f32 %v8076, %v8135
      %v8284 = vadd.f32 %v8077, %v8135
      %v8285 = vadd.f32 %v8078, %v8135
      %v8286 = vadd.f32 %v8079, %v8135
      %v8287 = vadd.f32 %v8080, %v8135
      %v8288 = vadd.f32 %v8081, %v8135
      %v8289 = vadd.f32 %v8082, %v8135
      %v8290 = vadd.f32 %v8083, %v8135
      %v8291 = vadd.f32 %v8084, %v8135
      %v8292 = vadd.f32 %v8085, %v8135
      %v8293 = vadd.f32 %v8086, %v8135
      %v8294 = vadd.f32 %v8087, %v8135
      %v8295 = vadd.f32 %v8088, %v8135
      %v8296 = vadd.f32 %v8089, %v8135
      %v8297 = vadd.f32 %v8090, %v8135
      %v8298 = vadd.f32 %v8091, %v8135
      %v8299 = vadd.f32 %v8092, %v8135
      %v8300 = vadd.f32 %v8093, %v8135
      %v8301 = vadd.f32 %v8094, %v8135
      %v8302 = vadd.f32 %v8095, %v8135
      %v8303 = vadd.f32 %v8096, %v8135
      %v8304 = vadd.f32 %v8097, %v8135
      %v8305 = vadd.f32 %v8098, %v8135
      %v8306 = vadd.f32 %v8099, %v8135
      %v8307 = vadd.f32 %v8100, %v8135
      %v8308 = vadd.f32 %v8101, %v8135
      %v8309 = vadd.f32 %v8102, %v8135
      %v8310 = vadd.f32 %v8103, %v8135
      %v8311 = vadd.f32 %v8104, %v8135
      %v8312 = vadd.f32 %v8105, %v8135
      %v8313 = vadd.f32 %v8106, %v8135
      %v8314 = vadd.f32 %v8107, %v8135
      %v8315 = vadd.f32 %v8108, %v8135
      %v8316 = vadd.f32 %v8109, %v8135
      %v8317 = vadd.f32 %v8110, %v8135
      %v8318 = vadd.f32 %v8111, %v8135
      %v8319 = vadd.f32 %v8112, %v8135
      %v8320 = vadd.f32 %v8113, %v8135
      %v8321 = vadd.f32 %v8114, %v8135
      %v8322 = vadd.f32 %v8115, %v8135
      %v8323 = vadd.f32 %v8116, %v8135
      %v8324 = vadd.f32 %v8117, %v8135
      %v8325 = vadd.f32 %v8118, %v8135
      %v8326 = vadd.f32 %v8119, %v8135
      %v8327 = vadd.f32 %v8120, %v8135
      %v8328 = vadd.f32 %v8121, %v8135
      %v8329 = vadd.f32 %v8122, %v8135
      %v8330 = vadd.f32 %v8123, %v8135
      %v8331 = vadd.f32 %v8124, %v8135
      %v8332 = vadd.f32 %v8125, %v8135
      %v8333 = vadd.f32 %v8126, %v8135
      %v8334 = vadd.f32 %v8127, %v8135
      %v8335 = vadd.f32 %v8128, %v8135
      %v8336 = vadd.f32 %v8129, %v8135
      %v8337 = vmax.f32 %v8137, 0.0
      %v8338 = vmax.f32 %v8138, 0.0
      %v8339 = vmax.f32 %v8139, 0.0
      %v8340 = vmax.f32 %v8140, 0.0
      %v8341 = vmax.f32 %v8141, 0.0
      %v8342 = vmax.f32 %v8142, 0.0
      %v8343 = vmax.f32 %v8143, 0.0
      %v8344 = vmax.f32 %v8144, 0.0
      %v8345 = vmax.f32 %v8145, 0.0
      %v8346 = vmax.f32 %v8146, 0.0
      %v8347 = vmax.f32 %v8147, 0.0
      %v8348 = vmax.f32 %v8148, 0.0
      %v8349 = vmax.f32 %v8149, 0.0
      %v8350 = vmax.f32 %v8150, 0.0
      %v8351 = vmax.f32 %v8151, 0.0
      %v8352 = vmax.f32 %v8152, 0.0
      %v8353 = vmax.f32 %v8153, 0.0
      %v8354 = vmax.f32 %v8154, 0.0
      %v8355 = vmax.f32 %v8155, 0.0
      %v8356 = vmax.f32 %v8156, 0.0
      %v8357 = vmax.f32 %v8157, 0.0
      %v8358 = vmax.f32 %v8158, 0.0
      %v8359 = vmax.f32 %v8159, 0.0
      %v8360 = vmax.f32 %v8160, 0.0
      %v8361 = vmax.f32 %v8161, 0.0
      %v8362 = vmax.f32 %v8162, 0.0
      %v8363 = vmax.f32 %v8163, 0.0
      %v8364 = vmax.f32 %v8164, 0.0
      %v8365 = vmax.f32 %v8165, 0.0
      %v8366 = vmax.f32 %v8166, 0.0
      %v8367 = vmax.f32 %v8167, 0.0
      %v8368 = vmax.f32 %v8168, 0.0
      %v8369 = vmax.f32 %v8169, 0.0
      %v8370 = vmax.f32 %v8170, 0.0
      %v8371 = vmax.f32 %v8171, 0.0
      %v8372 = vmax.f32 %v8172, 0.0
      %v8373 = vmax.f32 %v8173, 0.0
      %v8374 = vmax.f32 %v8174, 0.0
      %v8375 = vmax.f32 %v8175, 0.0
      %v8376 = vmax.f32 %v8176, 0.0
      %v8377 = vmax.f32 %v8177, 0.0
      %v8378 = vmax.f32 %v8178, 0.0
      %v8379 = vmax.f32 %v8179, 0.0
      %v8380 = vmax.f32 %v8180, 0.0
      %v8381 = vmax.f32 %v8181, 0.0
      %v8382 = vmax.f32 %v8182, 0.0
      %v8383 = vmax.f32 %v8183, 0.0
      %v8384 = vmax.f32 %v8184, 0.0
      %v8385 = vmax.f32 %v8185, 0.0
      %v8386 = vmax.f32 %v8186, 0.0
      %v8387 = vmax.f32 %v8187, 0.0
      %v8388 = vmax.f32 %v8188, 0.0
      %v8389 = vmax.f32 %v8189, 0.0
      %v8390 = vmax.f32 %v8190, 0.0
      %v8391 = vmax.f32 %v8191, 0.0
      %v8392 = vmax.f32 %v8192, 0.0
      %v8393 = vmax.f32 %v8193, 0.0
      %v8394 = vmax.f32 %v8194, 0.0
      %v8395 = vmax.f32 %v8195, 0.0
      %v8396 = vmax.f32 %v8196, 0.0
      %v8397 = vmax.f32 %v8197, 0.0
      %v8398 = vmax.f32 %v8198, 0.0
      %v8399 = vmax.f32 %v8199, 0.0
      %v8400 = vmax.f32 %v8200, 0.0
      %v8401 = vmax.f32 %v8201, 0.0
      %v8402 = vmax.f32 %v8202, 0.0
      %v8403 = vmax.f32 %v8203, 0.0
      %v8404 = vmax.f32 %v8204, 0.0
      %v8405 = vmax.f32 %v8205, 0.0
      %v8406 = vmax.f32 %v8206, 0.0
      %v8407 = vmax.f32 %v8207, 0.0
      %v8408 = vmax.f32 %v8208, 0.0
      %v8409 = vmax.f32 %v8209, 0.0
      %v8410 = vmax.f32 %v8210, 0.0
      %v8411 = vmax.f32 %v8211, 0.0
      %v8412 = vmax.f32 %v8212, 0.0
      %v8413 = vmax.f32 %v8213, 0.0
      %v8414 = vmax.f32 %v8214, 0.0
      %v8415 = vmax.f32 %v8215, 0.0
      %v8416 = vmax.f32 %v8216, 0.0
      %v8417 = vmax.f32 %v8217, 0.0
      %v8418 = vmax.f32 %v8218, 0.0
      %v8419 = vmax.f32 %v8219, 0.0
      %v8420 = vmax.f32 %v8220, 0.0
      %v8421 = vmax.f32 %v8221, 0.0
      %v8422 = vmax.f32 %v8222, 0.0
      %v8423 = vmax.f32 %v8223, 0.0
      %v8424 = vmax.f32 %v8224, 0.0
      %v8425 = vmax.f32 %v8225, 0.0
      %v8426 = vmax.f32 %v8226, 0.0
      %v8427 = vmax.f32 %v8227, 0.0
      %v8428 = vmax.f32 %v8228, 0.0
      %v8429 = vmax.f32 %v8229, 0.0
      %v8430 = vmax.f32 %v8230, 0.0
      %v8431 = vmax.f32 %v8231, 0.0
      %v8432 = vmax.f32 %v8232, 0.0
      %v8433 = vmax.f32 %v8233, 0.0
      %v8434 = vmax.f32 %v8234, 0.0
      %v8435 = vmax.f32 %v8235, 0.0
      %v8436 = vmax.f32 %v8236, 0.0
      %v8437 = vmax.f32 %v8237, 0.0
      %v8438 = vmax.f32 %v8238, 0.0
      %v8439 = vmax.f32 %v8239, 0.0
      %v8440 = vmax.f32 %v8240, 0.0
      %v8441 = vmax.f32 %v8241, 0.0
      %v8442 = vmax.f32 %v8242, 0.0
      %v8443 = vmax.f32 %v8243, 0.0
      %v8444 = vmax.f32 %v8244, 0.0
      %v8445 = vmax.f32 %v8245, 0.0
      %v8446 = vmax.f32 %v8246, 0.0
      %v8447 = vmax.f32 %v8247, 0.0
      %v8448 = vmax.f32 %v8248, 0.0
      %v8449 = vmax.f32 %v8249, 0.0
      %v8450 = vmax.f32 %v8250, 0.0
      %v8451 = vmax.f32 %v8251, 0.0
      %v8452 = vmax.f32 %v8252, 0.0
      %v8453 = vmax.f32 %v8253, 0.0
      %v8454 = vmax.f32 %v8254, 0.0
      %v8455 = vmax.f32 %v8255, 0.0
      %v8456 = vmax.f32 %v8256, 0.0
      %v8457 = vmax.f32 %v8257, 0.0
      %v8458 = vmax.f32 %v8258, 0.0
      %v8459 = vmax.f32 %v8259, 0.0
      %v8460 = vmax.f32 %v8260, 0.0
      %v8461 = vmax.f32 %v8261, 0.0
      %v8462 = vmax.f32 %v8262, 0.0
      %v8463 = vmax.f32 %v8263, 0.0
      %v8464 = vmax.f32 %v8264, 0.0
      %v8465 = vmax.f32 %v8265, 0.0
      %v8466 = vmax.f32 %v8266, 0.0
      %v8467 = vmax.f32 %v8267, 0.0
      %v8468 = vmax.f32 %v8268, 0.0
      %v8469 = vmax.f32 %v8269, 0.0
      %v8470 = vmax.f32 %v8270, 0.0
      %v8471 = vmax.f32 %v8271, 0.0
      %v8472 = vmax.f32 %v8272, 0.0
      %v8473 = vmax.f32 %v8273, 0.0
      %v8474 = vmax.f32 %v8274, 0.0
      %v8475 = vmax.f32 %v8275, 0.0
      %v8476 = vmax.f32 %v8276, 0.0
      %v8477 = vmax.f32 %v8277, 0.0
      %v8478 = vmax.f32 %v8278, 0.0
      %v8479 = vmax.f32 %v8279, 0.0
      %v8480 = vmax.f32 %v8280, 0.0
      %v8481 = vmax.f32 %v8281, 0.0
      %v8482 = vmax.f32 %v8282, 0.0
      %v8483 = vmax.f32 %v8283, 0.0
      %v8484 = vmax.f32 %v8284, 0.0
      %v8485 = vmax.f32 %v8285, 0.0
      %v8486 = vmax.f32 %v8286, 0.0
      %v8487 = vmax.f32 %v8287, 0.0
      %v8488 = vmax.f32 %v8288, 0.0
      %v8489 = vmax.f32 %v8289, 0.0
      %v8490 = vmax.f32 %v8290, 0.0
      %v8491 = vmax.f32 %v8291, 0.0
      %v8492 = vmax.f32 %v8292, 0.0
      %v8493 = vmax.f32 %v8293, 0.0
      %v8494 = vmax.f32 %v8294, 0.0
      %v8495 = vmax.f32 %v8295, 0.0
      %v8496 = vmax.f32 %v8296, 0.0
      %v8497 = vmax.f32 %v8297, 0.0
      %v8498 = vmax.f32 %v8298, 0.0
      %v8499 = vmax.f32 %v8299, 0.0
      %v8500 = vmax.f32 %v8300, 0.0
      %v8501 = vmax.f32 %v8301, 0.0
      %v8502 = vmax.f32 %v8302, 0.0
      %v8503 = vmax.f32 %v8303, 0.0
      %v8504 = vmax.f32 %v8304, 0.0
      %v8505 = vmax.f32 %v8305, 0.0
      %v8506 = vmax.f32 %v8306, 0.0
      %v8507 = vmax.f32 %v8307, 0.0
      %v8508 = vmax.f32 %v8308, 0.0
      %v8509 = vmax.f32 %v8309, 0.0
      %v8510 = vmax.f32 %v8310, 0.0
      %v8511 = vmax.f32 %v8311, 0.0
      %v8512 = vmax.f32 %v8312, 0.0
      %v8513 = vmax.f32 %v8313, 0.0
      %v8514 = vmax.f32 %v8314, 0.0
      %v8515 = vmax.f32 %v8315, 0.0
      %v8516 = vmax.f32 %v8316, 0.0
      %v8517 = vmax.f32 %v8317, 0.0
      %v8518 = vmax.f32 %v8318, 0.0
      %v8519 = vmax.f32 %v8319, 0.0
      %v8520 = vmax.f32 %v8320, 0.0
      %v8521 = vmax.f32 %v8321, 0.0
      %v8522 = vmax.f32 %v8322, 0.0
      %v8523 = vmax.f32 %v8323, 0.0
      %v8524 = vmax.f32 %v8324, 0.0
      %v8525 = vmax.f32 %v8325, 0.0
      %v8526 = vmax.f32 %v8326, 0.0
      %v8527 = vmax.f32 %v8327, 0.0
      %v8528 = vmax.f32 %v8328, 0.0
      %v8529 = vmax.f32 %v8329, 0.0
      %v8530 = vmax.f32 %v8330, 0.0
      %v8531 = vmax.f32 %v8331, 0.0
      %v8532 = vmax.f32 %v8332, 0.0
      %v8533 = vmax.f32 %v8333, 0.0
      %v8534 = vmax.f32 %v8334, 0.0
      %v8535 = vmax.f32 %v8335, 0.0
      %v8536 = vmax.f32 %v8336, 0.0
      %vm8537 = vcmask 130048
      %8538 = vst.msk [vmem:[%s170] sm:$0xff] %vm8537, %v8337
      %8539 = vst.msk [vmem:[%s170 + $0x8] sm:$0xff] %vm8537, %v8338
      %8540 = vst.msk [vmem:[%s170 + $0x10] sm:$0xff] %vm8537, %v8339
      %8541 = vst.msk [vmem:[%s170 + $0x18] sm:$0xff] %vm8537, %v8340
      %8542 = vst.msk [vmem:[%s170 + $0x20] sm:$0xff] %vm8537, %v8341
      %8543 = vst.msk [vmem:[%s170 + $0x28] sm:$0xff] %vm8537, %v8342
      %8544 = vst.msk [vmem:[%s170 + $0x30] sm:$0xff] %vm8537, %v8343
      %8545 = vst.msk [vmem:[%s170 + $0x38] sm:$0xff] %vm8537, %v8344
      %8546 = vst.msk [vmem:[%s170 + $0x40] sm:$0xff] %vm8537, %v8345
      %8547 = vst.msk [vmem:[%s170 + $0x48] sm:$0xff] %vm8537, %v8346
      %8548 = vst.msk [vmem:[%s170 + $0x50] sm:$0xff] %vm8537, %v8347
      %8549 = vst.msk [vmem:[%s170 + $0x58] sm:$0xff] %vm8537, %v8348
      %8550 = vst.msk [vmem:[%s170 + $0x60] sm:$0xff] %vm8537, %v8349
      %8551 = vst.msk [vmem:[%s170 + $0x68] sm:$0xff] %vm8537, %v8350
      %8552 = vst.msk [vmem:[%s170 + $0x70] sm:$0xff] %vm8537, %v8351
      %8553 = vst.msk [vmem:[%s170 + $0x78] sm:$0xff] %vm8537, %v8352
      %8554 = vst.msk [vmem:[%s170 + $0x80] sm:$0xff] %vm8537, %v8353
      %8555 = vst.msk [vmem:[%s170 + $0x88] sm:$0xff] %vm8537, %v8354
      %8556 = vst.msk [vmem:[%s170 + $0x90] sm:$0xff] %vm8537, %v8355
      %8557 = vst.msk [vmem:[%s170 + $0x98] sm:$0xff] %vm8537, %v8356
      %8558 = vst.msk [vmem:[%s170 + $0xa0] sm:$0xff] %vm8537, %v8357
      %8559 = vst.msk [vmem:[%s170 + $0xa8] sm:$0xff] %vm8537, %v8358
      %8560 = vst.msk [vmem:[%s170 + $0xb0] sm:$0xff] %vm8537, %v8359
      %8561 = vst.msk [vmem:[%s170 + $0xb8] sm:$0xff] %vm8537, %v8360
      %8562 = vst.msk [vmem:[%s170 + $0xc0] sm:$0xff] %vm8537, %v8361
      %8563 = vst.msk [vmem:[%s170 + $0xc8] sm:$0xff] %vm8537, %v8362
      %8564 = vst.msk [vmem:[%s170 + $0xd0] sm:$0xff] %vm8537, %v8363
      %8565 = vst.msk [vmem:[%s170 + $0xd8] sm:$0xff] %vm8537, %v8364
      %8566 = vst.msk [vmem:[%s170 + $0xe0] sm:$0xff] %vm8537, %v8365
      %8567 = vst.msk [vmem:[%s170 + $0xe8] sm:$0xff] %vm8537, %v8366
      %8568 = vst.msk [vmem:[%s170 + $0xf0] sm:$0xff] %vm8537, %v8367
      %8569 = vst.msk [vmem:[%s170 + $0xf8] sm:$0xff] %vm8537, %v8368
      %8570 = vst.msk [vmem:[%s170 + $0x100] sm:$0xff] %vm8537, %v8369
      %8571 = vst.msk [vmem:[%s170 + $0x108] sm:$0xff] %vm8537, %v8370
      %8572 = vst.msk [vmem:[%s170 + $0x110] sm:$0xff] %vm8537, %v8371
      %8573 = vst.msk [vmem:[%s170 + $0x118] sm:$0xff] %vm8537, %v8372
      %8574 = vst.msk [vmem:[%s170 + $0x120] sm:$0xff] %vm8537, %v8373
      %8575 = vst.msk [vmem:[%s170 + $0x128] sm:$0xff] %vm8537, %v8374
      %8576 = vst.msk [vmem:[%s170 + $0x130] sm:$0xff] %vm8537, %v8375
      %8577 = vst.msk [vmem:[%s170 + $0x138] sm:$0xff] %vm8537, %v8376
      %8578 = vst.msk [vmem:[%s170 + $0x140] sm:$0xff] %vm8537, %v8377
      %8579 = vst.msk [vmem:[%s170 + $0x148] sm:$0xff] %vm8537, %v8378
      %8580 = vst.msk [vmem:[%s170 + $0x150] sm:$0xff] %vm8537, %v8379
      %8581 = vst.msk [vmem:[%s170 + $0x158] sm:$0xff] %vm8537, %v8380
      %8582 = vst.msk [vmem:[%s170 + $0x160] sm:$0xff] %vm8537, %v8381
      %8583 = vst.msk [vmem:[%s170 + $0x168] sm:$0xff] %vm8537, %v8382
      %8584 = vst.msk [vmem:[%s170 + $0x170] sm:$0xff] %vm8537, %v8383
      %8585 = vst.msk [vmem:[%s170 + $0x178] sm:$0xff] %vm8537, %v8384
      %8586 = vst.msk [vmem:[%s170 + $0x180] sm:$0xff] %vm8537, %v8385
      %8587 = vst.msk [vmem:[%s170 + $0x188] sm:$0xff] %vm8537, %v8386
      %8588 = vst.msk [vmem:[%s170 + $0x190] sm:$0xff] %vm8537, %v8387
      %8589 = vst.msk [vmem:[%s170 + $0x198] sm:$0xff] %vm8537, %v8388
      %8590 = vst.msk [vmem:[%s170 + $0x1a0] sm:$0xff] %vm8537, %v8389
      %8591 = vst.msk [vmem:[%s170 + $0x1a8] sm:$0xff] %vm8537, %v8390
      %8592 = vst.msk [vmem:[%s170 + $0x1b0] sm:$0xff] %vm8537, %v8391
      %8593 = vst.msk [vmem:[%s170 + $0x1b8] sm:$0xff] %vm8537, %v8392
      %8594 = vst.msk [vmem:[%s170 + $0x1c0] sm:$0xff] %vm8537, %v8393
      %8595 = vst.msk [vmem:[%s170 + $0x1c8] sm:$0xff] %vm8537, %v8394
      %8596 = vst.msk [vmem:[%s170 + $0x1d0] sm:$0xff] %vm8537, %v8395
      %8597 = vst.msk [vmem:[%s170 + $0x1d8] sm:$0xff] %vm8537, %v8396
      %8598 = vst.msk [vmem:[%s170 + $0x1e0] sm:$0xff] %vm8537, %v8397
      %8599 = vst.msk [vmem:[%s170 + $0x1e8] sm:$0xff] %vm8537, %v8398
      %8600 = vst.msk [vmem:[%s170 + $0x1f0] sm:$0xff] %vm8537, %v8399
      %8601 = vst.msk [vmem:[%s170 + $0x1f8] sm:$0xff] %vm8537, %v8400
      %8602 = vst.msk [vmem:[%s170 + $0x200] sm:$0xff] %vm8537, %v8401
      %8603 = vst.msk [vmem:[%s170 + $0x208] sm:$0xff] %vm8537, %v8402
      %8604 = vst.msk [vmem:[%s170 + $0x210] sm:$0xff] %vm8537, %v8403
      %8605 = vst.msk [vmem:[%s170 + $0x218] sm:$0xff] %vm8537, %v8404
      %8606 = vst.msk [vmem:[%s170 + $0x220] sm:$0xff] %vm8537, %v8405
      %8607 = vst.msk [vmem:[%s170 + $0x228] sm:$0xff] %vm8537, %v8406
      %8608 = vst.msk [vmem:[%s170 + $0x230] sm:$0xff] %vm8537, %v8407
      %8609 = vst.msk [vmem:[%s170 + $0x238] sm:$0xff] %vm8537, %v8408
      %8610 = vst.msk [vmem:[%s170 + $0x240] sm:$0xff] %vm8537, %v8409
      %8611 = vst.msk [vmem:[%s170 + $0x248] sm:$0xff] %vm8537, %v8410
      %8612 = vst.msk [vmem:[%s170 + $0x250] sm:$0xff] %vm8537, %v8411
      %8613 = vst.msk [vmem:[%s170 + $0x258] sm:$0xff] %vm8537, %v8412
      %8614 = vst.msk [vmem:[%s170 + $0x260] sm:$0xff] %vm8537, %v8413
      %8615 = vst.msk [vmem:[%s170 + $0x268] sm:$0xff] %vm8537, %v8414
      %8616 = vst.msk [vmem:[%s170 + $0x270] sm:$0xff] %vm8537, %v8415
      %8617 = vst.msk [vmem:[%s170 + $0x278] sm:$0xff] %vm8537, %v8416
      %8618 = vst.msk [vmem:[%s170 + $0x280] sm:$0xff] %vm8537, %v8417
      %8619 = vst.msk [vmem:[%s170 + $0x288] sm:$0xff] %vm8537, %v8418
      %8620 = vst.msk [vmem:[%s170 + $0x290] sm:$0xff] %vm8537, %v8419
      %8621 = vst.msk [vmem:[%s170 + $0x298] sm:$0xff] %vm8537, %v8420
      %8622 = vst.msk [vmem:[%s170 + $0x2a0] sm:$0xff] %vm8537, %v8421
      %8623 = vst.msk [vmem:[%s170 + $0x2a8] sm:$0xff] %vm8537, %v8422
      %8624 = vst.msk [vmem:[%s170 + $0x2b0] sm:$0xff] %vm8537, %v8423
      %8625 = vst.msk [vmem:[%s170 + $0x2b8] sm:$0xff] %vm8537, %v8424
      %8626 = vst.msk [vmem:[%s170 + $0x2c0] sm:$0xff] %vm8537, %v8425
      %8627 = vst.msk [vmem:[%s170 + $0x2c8] sm:$0xff] %vm8537, %v8426
      %8628 = vst.msk [vmem:[%s170 + $0x2d0] sm:$0xff] %vm8537, %v8427
      %8629 = vst.msk [vmem:[%s170 + $0x2d8] sm:$0xff] %vm8537, %v8428
      %8630 = vst.msk [vmem:[%s170 + $0x2e0] sm:$0xff] %vm8537, %v8429
      %8631 = vst.msk [vmem:[%s170 + $0x2e8] sm:$0xff] %vm8537, %v8430
      %8632 = vst.msk [vmem:[%s170 + $0x2f0] sm:$0xff] %vm8537, %v8431
      %8633 = vst.msk [vmem:[%s170 + $0x2f8] sm:$0xff] %vm8537, %v8432
      %8634 = vst.msk [vmem:[%s170 + $0x300] sm:$0xff] %vm8537, %v8433
      %8635 = vst.msk [vmem:[%s170 + $0x308] sm:$0xff] %vm8537, %v8434
      %8636 = vst.msk [vmem:[%s170 + $0x310] sm:$0xff] %vm8537, %v8435
      %8637 = vst.msk [vmem:[%s170 + $0x318] sm:$0xff] %vm8537, %v8436
      %8638 = vst.msk [vmem:[%s170 + $0x320] sm:$0xff] %vm8537, %v8437
      %8639 = vst.msk [vmem:[%s170 + $0x328] sm:$0xff] %vm8537, %v8438
      %8640 = vst.msk [vmem:[%s170 + $0x330] sm:$0xff] %vm8537, %v8439
      %8641 = vst.msk [vmem:[%s170 + $0x338] sm:$0xff] %vm8537, %v8440
      %8642 = vst.msk [vmem:[%s170 + $0x340] sm:$0xff] %vm8537, %v8441
      %8643 = vst.msk [vmem:[%s170 + $0x348] sm:$0xff] %vm8537, %v8442
      %8644 = vst.msk [vmem:[%s170 + $0x350] sm:$0xff] %vm8537, %v8443
      %8645 = vst.msk [vmem:[%s170 + $0x358] sm:$0xff] %vm8537, %v8444
      %8646 = vst.msk [vmem:[%s170 + $0x360] sm:$0xff] %vm8537, %v8445
      %8647 = vst.msk [vmem:[%s170 + $0x368] sm:$0xff] %vm8537, %v8446
      %8648 = vst.msk [vmem:[%s170 + $0x370] sm:$0xff] %vm8537, %v8447
      %8649 = vst.msk [vmem:[%s170 + $0x378] sm:$0xff] %vm8537, %v8448
      %8650 = vst.msk [vmem:[%s170 + $0x380] sm:$0xff] %vm8537, %v8449
      %8651 = vst.msk [vmem:[%s170 + $0x388] sm:$0xff] %vm8537, %v8450
      %8652 = vst.msk [vmem:[%s170 + $0x390] sm:$0xff] %vm8537, %v8451
      %8653 = vst.msk [vmem:[%s170 + $0x398] sm:$0xff] %vm8537, %v8452
      %8654 = vst.msk [vmem:[%s170 + $0x3a0] sm:$0xff] %vm8537, %v8453
      %8655 = vst.msk [vmem:[%s170 + $0x3a8] sm:$0xff] %vm8537, %v8454
      %8656 = vst.msk [vmem:[%s170 + $0x3b0] sm:$0xff] %vm8537, %v8455
      %8657 = vst.msk [vmem:[%s170 + $0x3b8] sm:$0xff] %vm8537, %v8456
      %8658 = vst.msk [vmem:[%s170 + $0x3c0] sm:$0xff] %vm8537, %v8457
      %8659 = vst.msk [vmem:[%s170 + $0x3c8] sm:$0xff] %vm8537, %v8458
      %8660 = vst.msk [vmem:[%s170 + $0x3d0] sm:$0xff] %vm8537, %v8459
      %8661 = vst.msk [vmem:[%s170 + $0x3d8] sm:$0xff] %vm8537, %v8460
      %8662 = vst.msk [vmem:[%s170 + $0x3e0] sm:$0xff] %vm8537, %v8461
      %8663 = vst.msk [vmem:[%s170 + $0x3e8] sm:$0xff] %vm8537, %v8462
      %8664 = vst.msk [vmem:[%s170 + $0x3f0] sm:$0xff] %vm8537, %v8463
      %8665 = vst.msk [vmem:[%s170 + $0x3f8] sm:$0xff] %vm8537, %v8464
      %8666 = vst.msk [vmem:[%s170 + $0x400] sm:$0xff] %vm8537, %v8465
      %8667 = vst.msk [vmem:[%s170 + $0x408] sm:$0xff] %vm8537, %v8466
      %8668 = vst.msk [vmem:[%s170 + $0x410] sm:$0xff] %vm8537, %v8467
      %8669 = vst.msk [vmem:[%s170 + $0x418] sm:$0xff] %vm8537, %v8468
      %8670 = vst.msk [vmem:[%s170 + $0x420] sm:$0xff] %vm8537, %v8469
      %8671 = vst.msk [vmem:[%s170 + $0x428] sm:$0xff] %vm8537, %v8470
      %8672 = vst.msk [vmem:[%s170 + $0x430] sm:$0xff] %vm8537, %v8471
      %8673 = vst.msk [vmem:[%s170 + $0x438] sm:$0xff] %vm8537, %v8472
      %8674 = vst.msk [vmem:[%s170 + $0x440] sm:$0xff] %vm8537, %v8473
      %8675 = vst.msk [vmem:[%s170 + $0x448] sm:$0xff] %vm8537, %v8474
      %8676 = vst.msk [vmem:[%s170 + $0x450] sm:$0xff] %vm8537, %v8475
      %8677 = vst.msk [vmem:[%s170 + $0x458] sm:$0xff] %vm8537, %v8476
      %8678 = vst.msk [vmem:[%s170 + $0x460] sm:$0xff] %vm8537, %v8477
      %8679 = vst.msk [vmem:[%s170 + $0x468] sm:$0xff] %vm8537, %v8478
      %8680 = vst.msk [vmem:[%s170 + $0x470] sm:$0xff] %vm8537, %v8479
      %8681 = vst.msk [vmem:[%s170 + $0x478] sm:$0xff] %vm8537, %v8480
      %8682 = vst.msk [vmem:[%s170 + $0x480] sm:$0xff] %vm8537, %v8481
      %8683 = vst.msk [vmem:[%s170 + $0x488] sm:$0xff] %vm8537, %v8482
      %8684 = vst.msk [vmem:[%s170 + $0x490] sm:$0xff] %vm8537, %v8483
      %8685 = vst.msk [vmem:[%s170 + $0x498] sm:$0xff] %vm8537, %v8484
      %8686 = vst.msk [vmem:[%s170 + $0x4a0] sm:$0xff] %vm8537, %v8485
      %8687 = vst.msk [vmem:[%s170 + $0x4a8] sm:$0xff] %vm8537, %v8486
      %8688 = vst.msk [vmem:[%s170 + $0x4b0] sm:$0xff] %vm8537, %v8487
      %8689 = vst.msk [vmem:[%s170 + $0x4b8] sm:$0xff] %vm8537, %v8488
      %8690 = vst.msk [vmem:[%s170 + $0x4c0] sm:$0xff] %vm8537, %v8489
      %8691 = vst.msk [vmem:[%s170 + $0x4c8] sm:$0xff] %vm8537, %v8490
      %8692 = vst.msk [vmem:[%s170 + $0x4d0] sm:$0xff] %vm8537, %v8491
      %8693 = vst.msk [vmem:[%s170 + $0x4d8] sm:$0xff] %vm8537, %v8492
      %8694 = vst.msk [vmem:[%s170 + $0x4e0] sm:$0xff] %vm8537, %v8493
      %8695 = vst.msk [vmem:[%s170 + $0x4e8] sm:$0xff] %vm8537, %v8494
      %8696 = vst.msk [vmem:[%s170 + $0x4f0] sm:$0xff] %vm8537, %v8495
      %8697 = vst.msk [vmem:[%s170 + $0x4f8] sm:$0xff] %vm8537, %v8496
      %8698 = vst.msk [vmem:[%s170 + $0x500] sm:$0xff] %vm8537, %v8497
      %8699 = vst.msk [vmem:[%s170 + $0x508] sm:$0xff] %vm8537, %v8498
      %8700 = vst.msk [vmem:[%s170 + $0x510] sm:$0xff] %vm8537, %v8499
      %8701 = vst.msk [vmem:[%s170 + $0x518] sm:$0xff] %vm8537, %v8500
      %8702 = vst.msk [vmem:[%s170 + $0x520] sm:$0xff] %vm8537, %v8501
      %8703 = vst.msk [vmem:[%s170 + $0x528] sm:$0xff] %vm8537, %v8502
      %8704 = vst.msk [vmem:[%s170 + $0x530] sm:$0xff] %vm8537, %v8503
      %8705 = vst.msk [vmem:[%s170 + $0x538] sm:$0xff] %vm8537, %v8504
      %8706 = vst.msk [vmem:[%s170 + $0x540] sm:$0xff] %vm8537, %v8505
      %8707 = vst.msk [vmem:[%s170 + $0x548] sm:$0xff] %vm8537, %v8506
      %8708 = vst.msk [vmem:[%s170 + $0x550] sm:$0xff] %vm8537, %v8507
      %8709 = vst.msk [vmem:[%s170 + $0x558] sm:$0xff] %vm8537, %v8508
      %8710 = vst.msk [vmem:[%s170 + $0x560] sm:$0xff] %vm8537, %v8509
      %8711 = vst.msk [vmem:[%s170 + $0x568] sm:$0xff] %vm8537, %v8510
      %8712 = vst.msk [vmem:[%s170 + $0x570] sm:$0xff] %vm8537, %v8511
      %8713 = vst.msk [vmem:[%s170 + $0x578] sm:$0xff] %vm8537, %v8512
      %8714 = vst.msk [vmem:[%s170 + $0x580] sm:$0xff] %vm8537, %v8513
      %8715 = vst.msk [vmem:[%s170 + $0x588] sm:$0xff] %vm8537, %v8514
      %8716 = vst.msk [vmem:[%s170 + $0x590] sm:$0xff] %vm8537, %v8515
      %8717 = vst.msk [vmem:[%s170 + $0x598] sm:$0xff] %vm8537, %v8516
      %8718 = vst.msk [vmem:[%s170 + $0x5a0] sm:$0xff] %vm8537, %v8517
      %8719 = vst.msk [vmem:[%s170 + $0x5a8] sm:$0xff] %vm8537, %v8518
      %8720 = vst.msk [vmem:[%s170 + $0x5b0] sm:$0xff] %vm8537, %v8519
      %8721 = vst.msk [vmem:[%s170 + $0x5b8] sm:$0xff] %vm8537, %v8520
      %8722 = vst.msk [vmem:[%s170 + $0x5c0] sm:$0xff] %vm8537, %v8521
      %8723 = vst.msk [vmem:[%s170 + $0x5c8] sm:$0xff] %vm8537, %v8522
      %8724 = vst.msk [vmem:[%s170 + $0x5d0] sm:$0xff] %vm8537, %v8523
      %8725 = vst.msk [vmem:[%s170 + $0x5d8] sm:$0xff] %vm8537, %v8524
      %8726 = vst.msk [vmem:[%s170 + $0x5e0] sm:$0xff] %vm8537, %v8525
      %8727 = vst.msk [vmem:[%s170 + $0x5e8] sm:$0xff] %vm8537, %v8526
      %8728 = vst.msk [vmem:[%s170 + $0x5f0] sm:$0xff] %vm8537, %v8527
      %8729 = vst.msk [vmem:[%s170 + $0x5f8] sm:$0xff] %vm8537, %v8528
      %8730 = vst.msk [vmem:[%s170 + $0x600] sm:$0xff] %vm8537, %v8529
      %8731 = vst.msk [vmem:[%s170 + $0x608] sm:$0xff] %vm8537, %v8530
      %8732 = vst.msk [vmem:[%s170 + $0x610] sm:$0xff] %vm8537, %v8531
      %8733 = vst.msk [vmem:[%s170 + $0x618] sm:$0xff] %vm8537, %v8532
      %8734 = vst.msk [vmem:[%s170 + $0x620] sm:$0xff] %vm8537, %v8533
      %8735 = vst.msk [vmem:[%s170 + $0x628] sm:$0xff] %vm8537, %v8534
      %8736 = vst.msk [vmem:[%s170 + $0x630] sm:$0xff] %vm8537, %v8535
      %8737 = vst.msk [vmem:[%s170 + $0x638] sm:$0xff] %vm8537, %v8536
      %p8738 = scmp.lt.s32.totalorder %s14, 1
      %s8739 = scalar_select %p8738, %s14, 1
      %s8740 = smul.addr %s8739, 200
      %s8741 = smul.addr %s8740, 8
      %s8742 = scalar_lea.vmem %s3, %s8741
      // Predicated region
      $region33: #{net_forward.4} parent=31 // pred_check
        %p8743 = pneg %p100
      $region34: #{net_forward.4} parent=31 // pred_check_branch
        %8745 = sbr.rel (%p8743) target = $region36
      $region35: #{net_forward.4} parent=31 // pred_region
        _
      $region36: #{net_forward.4} parent=31 // pred_fallthru
        _
    $region32: #{net_forward.4} parent=5 // pred_fallthru
      _
    %p8746 = scmp.le.s32.totalorder 2, %s9
    // Predicated region
    $region37: #{net_forward.4} parent=5 // pred_check
      %p8747 = pneg %p8746
    $region38: #{net_forward.4} parent=5 // pred_check_branch
      %8749 = sbr.rel (%p8747) target = $region40
    $region39: #{net_forward.4} parent=5 // pred_region
      %s8750 = ssub.s32 %s9, 2
      // Predicated region
      $region41: #{net_forward.4} parent=39 // pred_check
        %p8751 = pneg %p106
      $region42: #{net_forward.4} parent=39 // pred_check_branch
        %8753 = sbr.rel (%p8751) target = $region44
      $region43: #{net_forward.4} parent=39 // pred_region
        %p8754 = scmp.lt.s32.totalorder %s15, 1
        %s8755 = scalar_select %p8754, %s15, 1
        %s8756 = smul.addr %s8755, 200
        %s8757 = smul.addr %s8756, 8
        %s8758 = scalar_lea.vmem %s3, %s8757
      $region44: #{net_forward.4} parent=39 // pred_fallthru
        _
    $region40: #{net_forward.4} parent=5 // pred_fallthru
      _
  $region6: #{net_forward.4} parent=0 // loop_footer
    %s13 = sadd.s32 1, %s9
  $region7: #{net_forward.4} parent=0 // loop_footer_branch
    %8 = sbr.rel target = $region3
  $region8: #{net_forward.4} parent=0 // loop_exit
    _

// kernel: net_forward.5
$region0: #{net_forward.5}
  #allocation0 [shape = 'u32[]', space=smem, size = 0x4, offset = 0x4, fixed_abs, tag = 'smem constant byte address 0x4 - core index']
  #allocation1 [shape = 'u32[144,128]{1,0:T(1,128)}', space=vmem, size = 0x12000, scoped, tag = 'internal scratch']
  %s0 = inlined_call_operand.vmem [shape: bf16[2,4,324,256], index: 0, kind: input, shape index: {}]
  %s1 = inlined_call_operand.vmem [shape: bf16[256,32], index: 1, kind: input, shape index: {}]
  %s2 = inlined_call_operand.vmem [shape: f32[1,32], index: 2, kind: input, shape index: {}]
  %s3 = inlined_call_operand.vmem [shape: f32[2,324,32], index: 3, kind: output, shape index: {}]
  %s4 = sld [smem:[#allocation0]]
  $region45: #{net_forward.5} parent=0
    _
  %s6 = ssub.s32 1, %s4
  %s7 = scalar_select 0, %s6, %s4
  loop: start=0, step=1, limit=4
  $region2: #{net_forward.5} parent=0 // loop_pre_header
    _
  $region3: #{net_forward.5} parent=0 // loop_header
    %s9 = sphi 0, %s13
    %p10 = scmp.ge.s32.totalorder %s9, 4
    %s19 = sphi 0, %s21
    %s22 = sphi 0, %s19
    %s23 = sphi 0, %s22
    %s39 = sphi 0, %s23
    %s43 = sphi 0, %s43
    %s45 = sphi 0, %s43
    %s46 = sphi 0, %s45
    %s60 = sphi 0, %s46
    %s64 = sphi 0, %s64
    %s66 = sphi 0, %s64
    %s67 = sphi 0, %s66
    %s81 = sphi 0, %s67
    %s87 = sphi 0, %s89
    %s90 = sphi 0, %s87
    %s91 = sphi 0, %s90
    %s107 = sphi 0, %s91
  $region4: #{net_forward.5} parent=0 // loop_header_branch
    %12 = sbr.rel (%p10) target = $region8
  $region5: #{net_forward.5} parent=0 // loop_body
    %s14 = ssub.s32 %s9, 1
    %s15 = ssub.s32 %s9, 2
    %s16 = sadd.s32 %s9, 1
    %s17 = ssub.s32 %s9, %s16
    %p18 = scmp.eq.s32.totalorder %s17, 0
    %s20 = sadd.s32 %s19, 1
    %s21 = scalar_select %p18, %s19, %s20
    %p24 = pneg %p18
    %p25 = scmp.eq.s32.totalorder %s9, 1
    %p26 = por %p24, %p25
    %p27 = scmp.ne.s32.totalorder %s19, %s22
    %p28 = scmp.eq.s32.totalorder %s9, 0
    %p29 = por %p27, %p28
    %p30 = scmp.ne.s32.totalorder %s19, %s22
    %p31 = scmp.eq.s32.totalorder %s14, 1
    %p32 = por %p30, %p31
    %p33 = scmp.ne.s32.totalorder %s22, %s23
    %p34 = scmp.eq.s32.totalorder %s14, 0
    %p35 = por %p33, %p34
    %p36 = scmp.ne.s32.totalorder %s22, %s23
    %p37 = scmp.eq.s32.totalorder %s15, 1
    %p38 = por %p36, %p37
    %p40 = scmp.ne.s32.totalorder %s23, %s39
    %p41 = scmp.eq.s32.totalorder %s15, 0
    %p42 = por %p40, %p41
    %s44 = sadd.s32 %s43, 1
    %p47 = scmp.eq.s32.totalorder %s9, 1
    %p48 = scmp.ne.s32.totalorder %s43, %s45
    %p49 = scmp.eq.s32.totalorder %s9, 0
    %p50 = por %p48, %p49
    %p51 = scmp.ne.s32.totalorder %s43, %s45
    %p52 = scmp.eq.s32.totalorder %s14, 1
    %p53 = por %p51, %p52
    %p54 = scmp.ne.s32.totalorder %s45, %s46
    %p55 = scmp.eq.s32.totalorder %s14, 0
    %p56 = por %p54, %p55
    %p57 = scmp.ne.s32.totalorder %s45, %s46
    %p58 = scmp.eq.s32.totalorder %s15, 1
    %p59 = por %p57, %p58
    %p61 = scmp.ne.s32.totalorder %s46, %s60
    %p62 = scmp.eq.s32.totalorder %s15, 0
    %p63 = por %p61, %p62
    %s65 = sadd.s32 %s64, 1
    %p68 = scmp.eq.s32.totalorder %s9, 1
    %p69 = scmp.ne.s32.totalorder %s64, %s66
    %p70 = scmp.eq.s32.totalorder %s9, 0
    %p71 = por %p69, %p70
    %p72 = scmp.ne.s32.totalorder %s64, %s66
    %p73 = scmp.eq.s32.totalorder %s14, 1
    %p74 = por %p72, %p73
    %p75 = scmp.ne.s32.totalorder %s66, %s67
    %p76 = scmp.eq.s32.totalorder %s14, 0
    %p77 = por %p75, %p76
    %p78 = scmp.ne.s32.totalorder %s66, %s67
    %p79 = scmp.eq.s32.totalorder %s15, 1
    %p80 = por %p78, %p79
    %p82 = scmp.ne.s32.totalorder %s67, %s81
    %p83 = scmp.eq.s32.totalorder %s15, 0
    %p84 = por %p82, %p83
    %s85 = ssub.s32 %s9, %s16
    %p86 = scmp.eq.s32.totalorder %s85, 0
    %s88 = sadd.s32 %s87, 1
    %s89 = scalar_select %p86, %s87, %s88
    %p92 = pneg %p86
    %p93 = scmp.eq.s32.totalorder %s9, 1
    %p94 = por %p92, %p93
    %p95 = scmp.ne.s32.totalorder %s87, %s90
    %p96 = scmp.eq.s32.totalorder %s9, 0
    %p97 = por %p95, %p96
    %p98 = scmp.ne.s32.totalorder %s87, %s90
    %p99 = scmp.eq.s32.totalorder %s14, 1
    %p100 = por %p98, %p99
    %p101 = scmp.ne.s32.totalorder %s90, %s91
    %p102 = scmp.eq.s32.totalorder %s14, 0
    %p103 = por %p101, %p102
    %p104 = scmp.ne.s32.totalorder %s90, %s91
    %p105 = scmp.eq.s32.totalorder %s15, 1
    %p106 = por %p104, %p105
    %p108 = scmp.ne.s32.totalorder %s91, %s107
    %p109 = scmp.eq.s32.totalorder %s15, 0
    %p110 = por %p108, %p109
    %p111 = scmp.le.s32.totalorder 1, %s9
    %p112 = scmp.lt.s32.totalorder %s9, 3
    %p113 = pnand %p111, %p112
    %p114 = pneg %p113
    // Predicated region
    $region9: #{net_forward.5} parent=5 // pred_check
      _
    $region10: #{net_forward.5} parent=5 // pred_check_branch
      %116 = sbr.rel (%p113) target = $region12
    $region11: #{net_forward.5} parent=5 // pred_region
      %s117 = ssub.s32 %s9, 1
      // Predicated region
      $region13: #{net_forward.5} parent=11 // pred_check
        %p118 = pneg %p56
      $region14: #{net_forward.5} parent=11 // pred_check_branch
        %120 = sbr.rel (%p118) target = $region16
      $region15: #{net_forward.5} parent=11 // pred_region
        _
      $region16: #{net_forward.5} parent=11 // pred_fallthru
        _
      // Predicated region
      $region17: #{net_forward.5} parent=11 // pred_check
        %p121 = pneg %p77
      $region18: #{net_forward.5} parent=11 // pred_check_branch
        %123 = sbr.rel (%p121) target = $region20
      $region19: #{net_forward.5} parent=11 // pred_region
        _
      $region20: #{net_forward.5} parent=11 // pred_fallthru
        _
    $region12: #{net_forward.5} parent=5 // pred_fallthru
      _
    %p124 = scmp.lt.s32.totalorder %s9, 2
    // Predicated region
    $region21: #{net_forward.5} parent=5 // pred_check
      %p125 = pneg %p124
    $region22: #{net_forward.5} parent=5 // pred_check_branch
      %127 = sbr.rel (%p125) target = $region24
    $region23: #{net_forward.5} parent=5 // pred_region
      // Predicated region
      $region25: #{net_forward.5} parent=23 // pred_check
        %p128 = pneg %p29
      $region26: #{net_forward.5} parent=23 // pred_check_branch
        %130 = sbr.rel (%p128) target = $region28
      $region27: #{net_forward.5} parent=23 // pred_region
        %p131 = scmp.lt.s32.totalorder %s9, 1
        %s132 = scalar_select %p131, %s9, 1
        %s133 = smul.addr %s132, 328
        %s134 = smul.addr %s133, 4
        %s135 = scalar_lea.vmem %s0, %s134
      $region28: #{net_forward.5} parent=23 // pred_fallthru
        _
    $region24: #{net_forward.5} parent=5 // pred_fallthru
      _
    %p136 = scmp.le.s32.totalorder 1, %s9
    %p137 = scmp.lt.s32.totalorder %s9, 3
    %p138 = pnand %p136, %p137
    %p139 = pneg %p138
    // Predicated region
    $region29: #{net_forward.5} parent=5 // pred_check
      _
    $region30: #{net_forward.5} parent=5 // pred_check_branch
      %141 = sbr.rel (%p138) target = $region32
    $region31: #{net_forward.5} parent=5 // pred_region
      %s142 = ssub.s32 %s9, 1
      %p143 = scmp.lt.s32.totalorder %s14, 1
      %s144 = scalar_select %p143, %s14, 1
      %s145 = smul.addr %s144, 328
      %s146 = smul.addr %s145, 4
      %s147 = scalar_lea.vmem %s0, %s146
      %p148 = pneg %p35
      %p149 = pneg %p32
      %p150 = pneg %p56
      %p151 = pneg %p53
      %p152 = pneg %p77
      %p153 = pneg %p74
      %p154 = pneg %p103
      %p155 = pneg %p100
      %p156 = scmp.lt.s32.totalorder %s14, 1
      %s157 = scalar_select %p156, %s14, 1
      %s158 = smul.addr %s157, 41
      %s159 = smul.addr %s158, 8
      %s160 = scalar_lea.vmem %s3, %s159
      %p161 = scmp.lt.s32.totalorder %s14, 1
      %s162 = scalar_select %p161, %s14, 1
      %s163 = smul.addr %s162, 328
      %s164 = smul.addr %s163, 4
      %s165 = scalar_lea.vmem %s0, %s164
      %p166 = scmp.lt.s32.totalorder %s14, 1
      %s167 = scalar_select %p166, %s14, 1
      %s168 = smul.addr %s167, 41
      %s169 = smul.addr %s168, 8
      %s170 = scalar_lea.vmem %s3, %s169
      %v172 = vld [vmem:[%s1] sm:$0xf]
      %v173 = vld [vmem:[%s1 + $0x4] sm:$0xf]
      %v174 = vld [vmem:[%s1 + $0x8] sm:$0xf]
      %v175 = vld [vmem:[%s1 + $0xc] sm:$0xf]
      %v176 = vld [vmem:[%s1 + $0x10] sm:$0xf]
      %v177 = vld [vmem:[%s1 + $0x14] sm:$0xf]
      %v178 = vld [vmem:[%s1 + $0x18] sm:$0xf]
      %v179 = vld [vmem:[%s1 + $0x1c] sm:$0xf]
      %v180 = vld [vmem:[%s1 + $0x20] sm:$0xf]
      %v181 = vld [vmem:[%s1 + $0x24] sm:$0xf]
      %v182 = vld [vmem:[%s1 + $0x28] sm:$0xf]
      %v183 = vld [vmem:[%s1 + $0x2c] sm:$0xf]
      %v184 = vld [vmem:[%s1 + $0x30] sm:$0xf]
      %v185 = vld [vmem:[%s1 + $0x34] sm:$0xf]
      %v186 = vld [vmem:[%s1 + $0x38] sm:$0xf]
      %v187 = vld [vmem:[%s1 + $0x3c] sm:$0xf]
      %v188 = vld [vmem:[%s1 + $0x40] sm:$0xf]
      %v189 = vld [vmem:[%s1 + $0x44] sm:$0xf]
      %v190 = vld [vmem:[%s1 + $0x48] sm:$0xf]
      %v191 = vld [vmem:[%s1 + $0x4c] sm:$0xf]
      %v192 = vld [vmem:[%s1 + $0x50] sm:$0xf]
      %v193 = vld [vmem:[%s1 + $0x54] sm:$0xf]
      %v194 = vld [vmem:[%s1 + $0x58] sm:$0xf]
      %v195 = vld [vmem:[%s1 + $0x5c] sm:$0xf]
      %v196 = vld [vmem:[%s1 + $0x60] sm:$0xf]
      %v197 = vld [vmem:[%s1 + $0x64] sm:$0xf]
      %v198 = vld [vmem:[%s1 + $0x68] sm:$0xf]
      %v199 = vld [vmem:[%s1 + $0x6c] sm:$0xf]
      %v200 = vld [vmem:[%s1 + $0x70] sm:$0xf]
      %v201 = vld [vmem:[%s1 + $0x74] sm:$0xf]
      %v202 = vld [vmem:[%s1 + $0x78] sm:$0xf]
      %v203 = vld [vmem:[%s1 + $0x7c] sm:$0xf]
      %v204 = vld [vmem:[%s165] sm:$0xff]
      %v205 = vld [vmem:[%s165 + $0x8] sm:$0xff]
      %v206 = vld [vmem:[%s165 + $0x10] sm:$0xff]
      %v207 = vld [vmem:[%s165 + $0x18] sm:$0xff]
      %v208 = vld [vmem:[%s165 + $0x20] sm:$0xff]
      %v209 = vld [vmem:[%s165 + $0x28] sm:$0xff]
      %v210 = vld [vmem:[%s165 + $0x30] sm:$0xff]
      %v211 = vld [vmem:[%s165 + $0x38] sm:$0xff]
      %v212 = vld [vmem:[%s165 + $0x40] sm:$0xff]
      %v213 = vld [vmem:[%s165 + $0x48] sm:$0xff]
      %v214 = vld [vmem:[%s165 + $0x50] sm:$0xff]
      %v215 = vld [vmem:[%s165 + $0x58] sm:$0xff]
      %v216 = vld [vmem:[%s165 + $0x60] sm:$0xff]
      %v217 = vld [vmem:[%s165 + $0x68] sm:$0xff]
      %v218 = vld [vmem:[%s165 + $0x70] sm:$0xff]
      %v219 = vld [vmem:[%s165 + $0x78] sm:$0xff]
      %v220 = vld [vmem:[%s165 + $0x80] sm:$0xff]
      %v221 = vld [vmem:[%s165 + $0x88] sm:$0xff]
      %v222 = vld [vmem:[%s165 + $0x90] sm:$0xff]
      %v223 = vld [vmem:[%s165 + $0x98] sm:$0xff]
      %v224 = vld [vmem:[%s165 + $0xa0] sm:$0xff]
      %v225 = vld [vmem:[%s165 + $0xa8] sm:$0xff]
      %v226 = vld [vmem:[%s165 + $0xb0] sm:$0xff]
      %v227 = vld [vmem:[%s165 + $0xb8] sm:$0xff]
      %v228 = vld [vmem:[%s165 + $0xc0] sm:$0xff]
      %v229 = vld [vmem:[%s165 + $0xc8] sm:$0xff]
      %v230 = vld [vmem:[%s165 + $0xd0] sm:$0xff]
      %v231 = vld [vmem:[%s165 + $0xd8] sm:$0xff]
      %v232 = vld [vmem:[%s165 + $0xe0] sm:$0xff]
      %v233 = vld [vmem:[%s165 + $0xe8] sm:$0xff]
      %v234 = vld [vmem:[%s165 + $0xf0] sm:$0xff]
      %v235 = vld [vmem:[%s165 + $0xf8] sm:$0xff]
      %v236 = vld [vmem:[%s165 + $0x100] sm:$0xff]
      %v237 = vld [vmem:[%s165 + $0x108] sm:$0xff]
      %v238 = vld [vmem:[%s165 + $0x110] sm:$0xff]
      %v239 = vld [vmem:[%s165 + $0x118] sm:$0xff]
      %v240 = vld [vmem:[%s165 + $0x120] sm:$0xff]
      %v241 = vld [vmem:[%s165 + $0x128] sm:$0xff]
      %v242 = vld [vmem:[%s165 + $0x130] sm:$0xff]
      %v243 = vld [vmem:[%s165 + $0x138] sm:$0xff]
      %v244 = vld [vmem:[%s165 + $0x140] sm:$0x33]
      %v286 = vunpack.c.l.b16 %v204
      %v287 = vunpack.c.h.b16 %v204
      %v288 = vunpack.c.l.b16 %v205
      %v289 = vunpack.c.h.b16 %v205
      %v290 = vunpack.c.l.b16 %v206
      %v291 = vunpack.c.h.b16 %v206
      %v292 = vunpack.c.l.b16 %v207
      %v293 = vunpack.c.h.b16 %v207
      %v294 = vunpack.c.l.b16 %v208
      %v295 = vunpack.c.h.b16 %v208
      %v296 = vunpack.c.l.b16 %v209
      %v297 = vunpack.c.h.b16 %v209
      %v298 = vunpack.c.l.b16 %v210
      %v299 = vunpack.c.h.b16 %v210
      %v300 = vunpack.c.l.b16 %v211
      %v301 = vunpack.c.h.b16 %v211
      %v302 = vunpack.c.l.b16 %v212
      %v303 = vunpack.c.h.b16 %v212
      %v304 = vunpack.c.l.b16 %v213
      %v305 = vunpack.c.h.b16 %v213
      %v306 = vunpack.c.l.b16 %v214
      %v307 = vunpack.c.h.b16 %v214
      %v308 = vunpack.c.l.b16 %v215
      %v309 = vunpack.c.h.b16 %v215
      %v310 = vunpack.c.l.b16 %v216
      %v311 = vunpack.c.h.b16 %v216
      %v312 = vunpack.c.l.b16 %v217
      %v313 = vunpack.c.h.b16 %v217
      %v314 = vunpack.c.l.b16 %v218
      %v315 = vunpack.c.h.b16 %v218
      %v316 = vunpack.c.l.b16 %v219
      %v317 = vunpack.c.h.b16 %v219
      %v318 = vunpack.c.l.b16 %v220
      %v319 = vunpack.c.h.b16 %v220
      %v320 = vunpack.c.l.b16 %v221
      %v321 = vunpack.c.h.b16 %v221
      %v322 = vunpack.c.l.b16 %v222
      %v323 = vunpack.c.h.b16 %v222
      %v324 = vunpack.c.l.b16 %v223
      %v325 = vunpack.c.h.b16 %v223
      %v326 = vunpack.c.l.b16 %v224
      %v327 = vunpack.c.h.b16 %v224
      %v328 = vunpack.c.l.b16 %v225
      %v329 = vunpack.c.h.b16 %v225
      %v330 = vunpack.c.l.b16 %v226
      %v331 = vunpack.c.h.b16 %v226
      %v332 = vunpack.c.l.b16 %v227
      %v333 = vunpack.c.h.b16 %v227
      %v334 = vunpack.c.l.b16 %v228
      %v335 = vunpack.c.h.b16 %v228
      %v336 = vunpack.c.l.b16 %v229
      %v337 = vunpack.c.h.b16 %v229
      %v338 = vunpack.c.l.b16 %v230
      %v339 = vunpack.c.h.b16 %v230
      %v340 = vunpack.c.l.b16 %v231
      %v341 = vunpack.c.h.b16 %v231
      %v342 = vunpack.c.l.b16 %v232
      %v343 = vunpack.c.h.b16 %v232
      %v344 = vunpack.c.l.b16 %v233
      %v345 = vunpack.c.h.b16 %v233
      %v346 = vunpack.c.l.b16 %v234
      %v347 = vunpack.c.h.b16 %v234
      %v348 = vunpack.c.l.b16 %v235
      %v349 = vunpack.c.h.b16 %v235
      %v350 = vunpack.c.l.b16 %v236
      %v351 = vunpack.c.h.b16 %v236
      %v352 = vunpack.c.l.b16 %v237
      %v353 = vunpack.c.h.b16 %v237
      %v354 = vunpack.c.l.b16 %v238
      %v355 = vunpack.c.h.b16 %v238
      %v356 = vunpack.c.l.b16 %v239
      %v357 = vunpack.c.h.b16 %v239
      %v358 = vunpack.c.l.b16 %v240
      %v359 = vunpack.c.h.b16 %v240
      %v360 = vunpack.c.l.b16 %v241
      %v361 = vunpack.c.h.b16 %v241
      %v362 = vunpack.c.l.b16 %v242
      %v363 = vunpack.c.h.b16 %v242
      %v364 = vunpack.c.l.b16 %v243
      %v365 = vunpack.c.h.b16 %v243
      %v366 = vunpack.c.l.b16 %v244
      %v367 = vunpack.c.h.b16 %v244
      %v368 = vpack.c.b16 %v288, %v286
      %v369 = vpack.c.b16 %v289, %v287
      %v370 = vpack.c.b16 %v292, %v290
      %v371 = vpack.c.b16 %v293, %v291
      %v372 = vpack.c.b16 %v296, %v294
      %v373 = vpack.c.b16 %v297, %v295
      %v374 = vpack.c.b16 %v300, %v298
      %v375 = vpack.c.b16 %v301, %v299
      %v376 = vpack.c.b16 %v304, %v302
      %v377 = vpack.c.b16 %v305, %v303
      %v378 = vpack.c.b16 %v308, %v306
      %v379 = vpack.c.b16 %v309, %v307
      %v380 = vpack.c.b16 %v312, %v310
      %v381 = vpack.c.b16 %v313, %v311
      %v382 = vpack.c.b16 %v316, %v314
      %v383 = vpack.c.b16 %v317, %v315
      %v384 = vpack.c.b16 %v320, %v318
      %v385 = vpack.c.b16 %v321, %v319
      %v386 = vpack.c.b16 %v324, %v322
      %v387 = vpack.c.b16 %v325, %v323
      %v388 = vpack.c.b16 %v328, %v326
      %v389 = vpack.c.b16 %v329, %v327
      %v390 = vpack.c.b16 %v332, %v330
      %v391 = vpack.c.b16 %v333, %v331
      %v392 = vpack.c.b16 %v336, %v334
      %v393 = vpack.c.b16 %v337, %v335
      %v394 = vpack.c.b16 %v340, %v338
      %v395 = vpack.c.b16 %v341, %v339
      %v396 = vpack.c.b16 %v344, %v342
      %v397 = vpack.c.b16 %v345, %v343
      %v398 = vpack.c.b16 %v348, %v346
      %v399 = vpack.c.b16 %v349, %v347
      %v400 = vpack.c.b16 %v352, %v350
      %v401 = vpack.c.b16 %v353, %v351
      %v402 = vpack.c.b16 %v356, %v354
      %v403 = vpack.c.b16 %v357, %v355
      %v404 = vpack.c.b16 %v360, %v358
      %v405 = vpack.c.b16 %v361, %v359
      %v406 = vpack.c.b16 %v364, %v362
      %v407 = vpack.c.b16 %v365, %v363
      %v408 = vpack.c.b16 %v366, %v366
      %v409 = vpack.c.b16 %v367, %v367
      %v484 = vunpack.c.l.b16 %v172
      %v485 = vunpack.c.l.b16 %v173
      %v486 = vunpack.c.l.b16 %v174
      %v487 = vunpack.c.l.b16 %v175
      %v488 = vunpack.c.l.b16 %v176
      %v489 = vunpack.c.l.b16 %v177
      %v490 = vunpack.c.l.b16 %v178
      %v491 = vunpack.c.l.b16 %v179
      %v492 = vunpack.c.l.b16 %v180
      %v493 = vunpack.c.l.b16 %v181
      %v494 = vunpack.c.l.b16 %v182
      %v495 = vunpack.c.l.b16 %v183
      %v496 = vunpack.c.l.b16 %v184
      %v497 = vunpack.c.l.b16 %v185
      %v498 = vunpack.c.l.b16 %v186
      %v499 = vunpack.c.l.b16 %v187
      %v500 = vunpack.c.l.b16 %v188
      %v501 = vunpack.c.l.b16 %v189
      %v502 = vunpack.c.l.b16 %v190
      %v503 = vunpack.c.l.b16 %v191
      %v504 = vunpack.c.l.b16 %v192
      %v505 = vunpack.c.l.b16 %v193
      %v506 = vunpack.c.l.b16 %v194
      %v507 = vunpack.c.l.b16 %v195
      %v508 = vunpack.c.l.b16 %v196
      %v509 = vunpack.c.l.b16 %v197
      %v510 = vunpack.c.l.b16 %v198
      %v511 = vunpack.c.l.b16 %v199
      %v512 = vunpack.c.l.b16 %v200
      %v513 = vunpack.c.l.b16 %v201
      %v514 = vunpack.c.l.b16 %v202
      %v515 = vunpack.c.l.b16 %v203
      %v516 = vpack.c.b16 %v485, %v484
      %v517 = vpack.c.b16 %v487, %v486
      %v518 = vpack.c.b16 %v489, %v488
      %v519 = vpack.c.b16 %v491, %v490
      %v520 = vpack.c.b16 %v493, %v492
      %v521 = vpack.c.b16 %v495, %v494
      %v522 = vpack.c.b16 %v497, %v496
      %v523 = vpack.c.b16 %v499, %v498
      %v524 = vpack.c.b16 %v501, %v500
      %v525 = vpack.c.b16 %v503, %v502
      %v526 = vpack.c.b16 %v505, %v504
      %v527 = vpack.c.b16 %v507, %v506
      %v528 = vpack.c.b16 %v509, %v508
      %v529 = vpack.c.b16 %v511, %v510
      %v530 = vpack.c.b16 %v513, %v512
      %v531 = vpack.c.b16 %v515, %v514
      %548 = vmatprep.subr.bf16.mxu0 0
      %549 = vmatpush1.bf16.msra.mxu0 %v516
      %550 = vmatprep.subr.bf16.mxu0 0
      %551 = vmatpush1.bf16.msra.mxu0 %v517
      %552 = vmatprep.subr.bf16.mxu0 0
      %553 = vmatpush1.bf16.msra.mxu0 %v518
      %554 = vmatprep.subr.bf16.mxu0 0
      %555 = vmatpush1.bf16.msra.mxu0 %v519
      %556 = vmatprep.subr.bf16.mxu0 0
      %557 = vmatpush1.bf16.msra.mxu0 %v520
      %558 = vmatprep.subr.bf16.mxu0 0
      %559 = vmatpush1.bf16.msra.mxu0 %v521
      %560 = vmatprep.subr.bf16.mxu0 0
      %561 = vmatpush1.bf16.msra.mxu0 %v522
      %562 = vmatprep.subr.bf16.mxu0 0
      %563 = vmatpush1.bf16.msra.mxu0 %v523
      %564 = vmatprep.subr.bf16.mxu0 0
      %565 = vmatpush1.bf16.msra.mxu0 %v524
      %566 = vmatprep.subr.bf16.mxu0 0
      %567 = vmatpush1.bf16.msra.mxu0 %v525
      %568 = vmatprep.subr.bf16.mxu0 0
      %569 = vmatpush1.bf16.msra.mxu0 %v526
      %570 = vmatprep.subr.bf16.mxu0 0
      %571 = vmatpush1.bf16.msra.mxu0 %v527
      %572 = vmatprep.subr.bf16.mxu0 0
      %573 = vmatpush1.bf16.msra.mxu0 %v528
      %574 = vmatprep.subr.bf16.mxu0 0
      %575 = vmatpush1.bf16.msra.mxu0 %v529
      %576 = vmatprep.subr.bf16.mxu0 0
      %577 = vmatpush1.bf16.msra.mxu0 %v530
      %578 = vmatprep.subr.bf16.mxu0 0
      %579 = vmatpush1.bf16.msra.mxu0 %v531
      %580 = vmatprep.mubr.bf16.mxu0 %v369
      %581 = vmatmul.mubr.bf16.gmra.mrb[0].mxu0 %v368
      %v582 = vpop.f32.mrb[0].mxu0
      %v583 = vadd.f32 0.0, %v582
      %v584 = vpop.f32.mrb[0].mxu0
      %v585 = vpop.f32.mrb[0].mxu0
      %v586 = vadd.f32 0.0, %v585
      %v587 = vpop.f32.mrb[0].mxu0
      %588 = vmatprep.mubr.bf16.mxu0 %v371
      %589 = vmatmul.mubr.bf16.gmra.mrb[0].mxu0 %v370
      %v590 = vpop.f32.mrb[0].mxu0
      %v591 = vadd.f32 0.0, %v590
      %v592 = vpop.f32.mrb[0].mxu0
      %v593 = vpop.f32.mrb[0].mxu0
      %v594 = vadd.f32 0.0, %v593
      %v595 = vpop.f32.mrb[0].mxu0
      %596 = vmatprep.mubr.bf16.mxu0 %v373
      %597 = vmatmul.mubr.bf16.gmra.mrb[0].mxu0 %v372
      %v598 = vpop.f32.mrb[0].mxu0
      %v599 = vadd.f32 0.0, %v598
      %v600 = vpop.f32.mrb[0].mxu0
      %v601 = vpop.f32.mrb[0].mxu0
      %v602 = vadd.f32 0.0, %v601
      %v603 = vpop.f32.mrb[0].mxu0
      %604 = vmatprep.mubr.bf16.mxu0 %v375
      %605 = vmatmul.mubr.bf16.gmra.mrb[0].mxu0 %v374
      %v606 = vpop.f32.mrb[0].mxu0
      %v607 = vadd.f32 0.0, %v606
      %v608 = vpop.f32.mrb[0].mxu0
      %v609 = vpop.f32.mrb[0].mxu0
      %v610 = vadd.f32 0.0, %v609
      %v611 = vpop.f32.mrb[0].mxu0
      %612 = vmatprep.mubr.bf16.mxu0 %v377
      %613 = vmatmul.mubr.bf16.gmra.mrb[0].mxu0 %v376
      %v614 = vpop.f32.mrb[0].mxu0
      %v615 = vadd.f32 0.0, %v614
      %v616 = vpop.f32.mrb[0].mxu0
      %v617 = vpop.f32.mrb[0].mxu0
      %v618 = vadd.f32 0.0, %v617
      %v619 = vpop.f32.mrb[0].mxu0
      %620 = vmatprep.mubr.bf16.mxu0 %v379
      %621 = vmatmul.mubr.bf16.gmra.mrb[0].mxu0 %v378
      %v622 = vpop.f32.mrb[0].mxu0
      %v623 = vadd.f32 0.0, %v622
      %v624 = vpop.f32.mrb[0].mxu0
      %v625 = vpop.f32.mrb[0].mxu0
      %v626 = vadd.f32 0.0, %v625
      %v627 = vpop.f32.mrb[0].mxu0
      %628 = vmatprep.mubr.bf16.mxu0 %v381
      %629 = vmatmul.mubr.bf16.gmra.mrb[0].mxu0 %v380
      %v630 = vpop.f32.mrb[0].mxu0
      %v631 = vadd.f32 0.0, %v630
      %v632 = vpop.f32.mrb[0].mxu0
      %v633 = vpop.f32.mrb[0].mxu0
      %v634 = vadd.f32 0.0, %v633
      %v635 = vpop.f32.mrb[0].mxu0
      %636 = vmatprep.mubr.bf16.mxu0 %v383
      %637 = vmatmul.mubr.bf16.gmra.mrb[0].mxu0 %v382
      %v638 = vpop.f32.mrb[0].mxu0
      %v639 = vadd.f32 0.0, %v638
      %v640 = vpop.f32.mrb[0].mxu0
      %v641 = vpop.f32.mrb[0].mxu0
      %v642 = vadd.f32 0.0, %v641
      %v643 = vpop.f32.mrb[0].mxu0
      %644 = vmatprep.mubr.bf16.mxu0 %v385
      %645 = vmatmul.mubr.bf16.gmra.mrb[0].mxu0 %v384
      %v646 = vpop.f32.mrb[0].mxu0
      %v647 = vadd.f32 0.0, %v646
      %v648 = vpop.f32.mrb[0].mxu0
      %v649 = vpop.f32.mrb[0].mxu0
      %v650 = vadd.f32 0.0, %v649
      %v651 = vpop.f32.mrb[0].mxu0
      %652 = vmatprep.mubr.bf16.mxu0 %v387
      %653 = vmatmul.mubr.bf16.gmra.mrb[0].mxu0 %v386
      %v654 = vpop.f32.mrb[0].mxu0
      %v655 = vadd.f32 0.0, %v654
      %v656 = vpop.f32.mrb[0].mxu0
      %v657 = vpop.f32.mrb[0].mxu0
      %v658 = vadd.f32 0.0, %v657
      %v659 = vpop.f32.mrb[0].mxu0
      %660 = vmatprep.mubr.bf16.mxu0 %v389
      %661 = vmatmul.mubr.bf16.gmra.mrb[0].mxu0 %v388
      %v662 = vpop.f32.mrb[0].mxu0
      %v663 = vadd.f32 0.0, %v662
      %v664 = vpop.f32.mrb[0].mxu0
      %v665 = vpop.f32.mrb[0].mxu0
      %v666 = vadd.f32 0.0, %v665
      %v667 = vpop.f32.mrb[0].mxu0
      %668 = vmatprep.mubr.bf16.mxu0 %v391
      %669 = vmatmul.mubr.bf16.gmra.mrb[0].mxu0 %v390
      %v670 = vpop.f32.mrb[0].mxu0
      %v671 = vadd.f32 0.0, %v670
      %v672 = vpop.f32.mrb[0].mxu0
      %v673 = vpop.f32.mrb[0].mxu0
      %v674 = vadd.f32 0.0, %v673
      %v675 = vpop.f32.mrb[0].mxu0
      %676 = vmatprep.mubr.bf16.mxu0 %v393
      %677 = vmatmul.mubr.bf16.gmra.mrb[0].mxu0 %v392
      %v678 = vpop.f32.mrb[0].mxu0
      %v679 = vadd.f32 0.0, %v678
      %v680 = vpop.f32.mrb[0].mxu0
      %v681 = vpop.f32.mrb[0].mxu0
      %v682 = vadd.f32 0.0, %v681
      %v683 = vpop.f32.mrb[0].mxu0
      %684 = vmatprep.mubr.bf16.mxu0 %v395
      %685 = vmatmul.mubr.bf16.gmra.mrb[0].mxu0 %v394
      %v686 = vpop.f32.mrb[0].mxu0
      %v687 = vadd.f32 0.0, %v686
      %v688 = vpop.f32.mrb[0].mxu0
      %v689 = vpop.f32.mrb[0].mxu0
      %v690 = vadd.f32 0.0, %v689
      %v691 = vpop.f32.mrb[0].mxu0
      %692 = vmatprep.mubr.bf16.mxu0 %v397
      %693 = vmatmul.mubr.bf16.gmra.mrb[0].mxu0 %v396
      %v694 = vpop.f32.mrb[0].mxu0
      %v695 = vadd.f32 0.0, %v694
      %v696 = vpop.f32.mrb[0].mxu0
      %v697 = vpop.f32.mrb[0].mxu0
      %v698 = vadd.f32 0.0, %v697
      %v699 = vpop.f32.mrb[0].mxu0
      %700 = vmatprep.mubr.bf16.mxu0 %v399
      %701 = vmatmul.mubr.bf16.gmra.mrb[0].mxu0 %v398
      %v702 = vpop.f32.mrb[0].mxu0
      %v703 = vadd.f32 0.0, %v702
      %v704 = vpop.f32.mrb[0].mxu0
      %v705 = vpop.f32.mrb[0].mxu0
      %v706 = vadd.f32 0.0, %v705
      %v707 = vpop.f32.mrb[0].mxu0
      %708 = vmatprep.mubr.bf16.mxu0 %v401
      %709 = vmatmul.mubr.bf16.gmra.mrb[0].mxu0 %v400
      %v710 = vpop.f32.mrb[0].mxu0
      %v711 = vadd.f32 0.0, %v710
      %v712 = vpop.f32.mrb[0].mxu0
      %v713 = vpop.f32.mrb[0].mxu0
      %v714 = vadd.f32 0.0, %v713
      %v715 = vpop.f32.mrb[0].mxu0
      %716 = vmatprep.mubr.bf16.mxu0 %v403
      %717 = vmatmul.mubr.bf16.gmra.mrb[0].mxu0 %v402
      %v718 = vpop.f32.mrb[0].mxu0
      %v719 = vadd.f32 0.0, %v718
      %v720 = vpop.f32.mrb[0].mxu0
      %v721 = vpop.f32.mrb[0].mxu0
      %v722 = vadd.f32 0.0, %v721
      %v723 = vpop.f32.mrb[0].mxu0
      %724 = vmatprep.mubr.bf16.mxu0 %v405
      %725 = vmatmul.mubr.bf16.gmra.mrb[0].mxu0 %v404
      %v726 = vpop.f32.mrb[0].mxu0
      %v727 = vadd.f32 0.0, %v726
      %v728 = vpop.f32.mrb[0].mxu0
      %v729 = vpop.f32.mrb[0].mxu0
      %v730 = vadd.f32 0.0, %v729
      %v731 = vpop.f32.mrb[0].mxu0
      %732 = vmatprep.mubr.bf16.mxu0 %v407
      %733 = vmatmul.mubr.bf16.gmra.mrb[0].mxu0 %v406
      %v734 = vpop.f32.mrb[0].mxu0
      %v735 = vadd.f32 0.0, %v734
      %v736 = vpop.f32.mrb[0].mxu0
      %v737 = vpop.f32.mrb[0].mxu0
      %v738 = vadd.f32 0.0, %v737
      %v739 = vpop.f32.mrb[0].mxu0
      %740 = vmatprep.mubr.bf16.mxu0 %v409
      %741 = vmatmul.mubr.bf16.gmra.mrb[0].mxu0 %v408
      %v742 = vpop.f32.mrb[0].mxu0
      %v743 = vadd.f32 0.0, %v742
      %v744 = vpop.f32.mrb[0].mxu0
      %v745 = vpop.f32.mrb[0].mxu0
      %v746 = vpop.f32.mrb[0].mxu0
      %747 = vdwg.mxu0
      %s748 = scalar_lea.vmem %s165, 328
      %v749 = vld [vmem:[%s748] sm:$0xff]
      %v750 = vld [vmem:[%s748 + $0x8] sm:$0xff]
      %v751 = vld [vmem:[%s748 + $0x10] sm:$0xff]
      %v752 = vld [vmem:[%s748 + $0x18] sm:$0xff]
      %v753 = vld [vmem:[%s748 + $0x20] sm:$0xff]
      %v754 = vld [vmem:[%s748 + $0x28] sm:$0xff]
      %v755 = vld [vmem:[%s748 + $0x30] sm:$0xff]
      %v756 = vld [vmem:[%s748 + $0x38] sm:$0xff]
      %v757 = vld [vmem:[%s748 + $0x40] sm:$0xff]
      %v758 = vld [vmem:[%s748 + $0x48] sm:$0xff]
      %v759 = vld [vmem:[%s748 + $0x50] sm:$0xff]
      %v760 = vld [vmem:[%s748 + $0x58] sm:$0xff]
      %v761 = vld [vmem:[%s748 + $0x60] sm:$0xff]
      %v762 = vld [vmem:[%s748 + $0x68] sm:$0xff]
      %v763 = vld [vmem:[%s748 + $0x70] sm:$0xff]
      %v764 = vld [vmem:[%s748 + $0x78] sm:$0xff]
      %v765 = vld [vmem:[%s748 + $0x80] sm:$0xff]
      %v766 = vld [vmem:[%s748 + $0x88] sm:$0xff]
      %v767 = vld [vmem:[%s748 + $0x90] sm:$0xff]
      %v768 = vld [vmem:[%s748 + $0x98] sm:$0xff]
      %v769 = vld [vmem:[%s748 + $0xa0] sm:$0xff]
      %v770 = vld [vmem:[%s748 + $0xa8] sm:$0xff]
      %v771 = vld [vmem:[%s748 + $0xb0] sm:$0xff]
      %v772 = vld [vmem:[%s748 + $0xb8] sm:$0xff]
      %v773 = vld [vmem:[%s748 + $0xc0] sm:$0xff]
      %v774 = vld [vmem:[%s748 + $0xc8] sm:$0xff]
      %v775 = vld [vmem:[%s748 + $0xd0] sm:$0xff]
      %v776 = vld [vmem:[%s748 + $0xd8] sm:$0xff]
      %v777 = vld [vmem:[%s748 + $0xe0] sm:$0xff]
      %v778 = vld [vmem:[%s748 + $0xe8] sm:$0xff]
      %v779 = vld [vmem:[%s748 + $0xf0] sm:$0xff]
      %v780 = vld [vmem:[%s748 + $0xf8] sm:$0xff]
      %v781 = vld [vmem:[%s748 + $0x100] sm:$0xff]
      %v782 = vld [vmem:[%s748 + $0x108] sm:$0xff]
      %v783 = vld [vmem:[%s748 + $0x110] sm:$0xff]
      %v784 = vld [vmem:[%s748 + $0x118] sm:$0xff]
      %v785 = vld [vmem:[%s748 + $0x120] sm:$0xff]
      %v786 = vld [vmem:[%s748 + $0x128] sm:$0xff]
      %v787 = vld [vmem:[%s748 + $0x130] sm:$0xff]
      %v788 = vld [vmem:[%s748 + $0x138] sm:$0xff]
      %v789 = vld [vmem:[%s748 + $0x140] sm:$0x33]
      %v831 = vunpack.c.l.b16 %v749
      %v832 = vunpack.c.h.b16 %v749
      %v833 = vunpack.c.l.b16 %v750
      %v834 = vunpack.c.h.b16 %v750
      %v835 = vunpack.c.l.b16 %v751
      %v836 = vunpack.c.h.b16 %v751
      %v837 = vunpack.c.l.b16 %v752
      %v838 = vunpack.c.h.b16 %v752
      %v839 = vunpack.c.l.b16 %v753
      %v840 = vunpack.c.h.b16 %v753
      %v841 = vunpack.c.l.b16 %v754
      %v842 = vunpack.c.h.b16 %v754
      %v843 = vunpack.c.l.b16 %v755
      %v844 = vunpack.c.h.b16 %v755
      %v845 = vunpack.c.l.b16 %v756
      %v846 = vunpack.c.h.b16 %v756
      %v847 = vunpack.c.l.b16 %v757
      %v848 = vunpack.c.h.b16 %v757
      %v849 = vunpack.c.l.b16 %v758
      %v850 = vunpack.c.h.b16 %v758
      %v851 = vunpack.c.l.b16 %v759
      %v852 = vunpack.c.h.b16 %v759
      %v853 = vunpack.c.l.b16 %v760
      %v854 = vunpack.c.h.b16 %v760
      %v855 = vunpack.c.l.b16 %v761
      %v856 = vunpack.c.h.b16 %v761
      %v857 = vunpack.c.l.b16 %v762
      %v858 = vunpack.c.h.b16 %v762
      %v859 = vunpack.c.l.b16 %v763
      %v860 = vunpack.c.h.b16 %v763
      %v861 = vunpack.c.l.b16 %v764
      %v862 = vunpack.c.h.b16 %v764
      %v863 = vunpack.c.l.b16 %v765
      %v864 = vunpack.c.h.b16 %v765
      %v865 = vunpack.c.l.b16 %v766
      %v866 = vunpack.c.h.b16 %v766
      %v867 = vunpack.c.l.b16 %v767
      %v868 = vunpack.c.h.b16 %v767
      %v869 = vunpack.c.l.b16 %v768
      %v870 = vunpack.c.h.b16 %v768
      %v871 = vunpack.c.l.b16 %v769
      %v872 = vunpack.c.h.b16 %v769
      %v873 = vunpack.c.l.b16 %v770
      %v874 = vunpack.c.h.b16 %v770
      %v875 = vunpack.c.l.b16 %v771
      %v876 = vunpack.c.h.b16 %v771
      %v877 = vunpack.c.l.b16 %v772
      %v878 = vunpack.c.h.b16 %v772
      %v879 = vunpack.c.l.b16 %v773
      %v880 = vunpack.c.h.b16 %v773
      %v881 = vunpack.c.l.b16 %v774
      %v882 = vunpack.c.h.b16 %v774
      %v883 = vunpack.c.l.b16 %v775
      %v884 = vunpack.c.h.b16 %v775
      %v885 = vunpack.c.l.b16 %v776
      %v886 = vunpack.c.h.b16 %v776
      %v887 = vunpack.c.l.b16 %v777
      %v888 = vunpack.c.h.b16 %v777
      %v889 = vunpack.c.l.b16 %v778
      %v890 = vunpack.c.h.b16 %v778
      %v891 = vunpack.c.l.b16 %v779
      %v892 = vunpack.c.h.b16 %v779
      %v893 = vunpack.c.l.b16 %v780
      %v894 = vunpack.c.h.b16 %v780
      %v895 = vunpack.c.l.b16 %v781
      %v896 = vunpack.c.h.b16 %v781
      %v897 = vunpack.c.l.b16 %v782
      %v898 = vunpack.c.h.b16 %v782
      %v899 = vunpack.c.l.b16 %v783
      %v900 = vunpack.c.h.b16 %v783
      %v901 = vunpack.c.l.b16 %v784
      %v902 = vunpack.c.h.b16 %v784
      %v903 = vunpack.c.l.b16 %v785
      %v904 = vunpack.c.h.b16 %v785
      %v905 = vunpack.c.l.b16 %v786
      %v906 = vunpack.c.h.b16 %v786
      %v907 = vunpack.c.l.b16 %v787
      %v908 = vunpack.c.h.b16 %v787
      %v909 = vunpack.c.l.b16 %v788
      %v910 = vunpack.c.h.b16 %v788
      %v911 = vunpack.c.l.b16 %v789
      %v912 = vunpack.c.h.b16 %v789
      %v913 = vpack.c.b16 %v833, %v831
      %v914 = vpack.c.b16 %v834, %v832
      %v915 = vpack.c.b16 %v837, %v835
      %v916 = vpack.c.b16 %v838, %v836
      %v917 = vpack.c.b16 %v841, %v839
      %v918 = vpack.c.b16 %v842, %v840
      %v919 = vpack.c.b16 %v845, %v843
      %v920 = vpack.c.b16 %v846, %v844
      %v921 = vpack.c.b16 %v849, %v847
      %v922 = vpack.c.b16 %v850, %v848
      %v923 = vpack.c.b16 %v853, %v851
      %v924 = vpack.c.b16 %v854, %v852
      %v925 = vpack.c.b16 %v857, %v855
      %v926 = vpack.c.b16 %v858, %v856
      %v927 = vpack.c.b16 %v861, %v859
      %v928 = vpack.c.b16 %v862, %v860
      %v929 = vpack.c.b16 %v865, %v863
      %v930 = vpack.c.b16 %v866, %v864
      %v931 = vpack.c.b16 %v869, %v867
      %v932 = vpack.c.b16 %v870, %v868
      %v933 = vpack.c.b16 %v873, %v871
      %v934 = vpack.c.b16 %v874, %v872
      %v935 = vpack.c.b16 %v877, %v875
      %v936 = vpack.c.b16 %v878, %v876
      %v937 = vpack.c.b16 %v881, %v879
      %v938 = vpack.c.b16 %v882, %v880
      %v939 = vpack.c.b16 %v885, %v883
      %v940 = vpack.c.b16 %v886, %v884
      %v941 = vpack.c.b16 %v889, %v887
      %v942 = vpack.c.b16 %v890, %v888
      %v943 = vpack.c.b16 %v893, %v891
      %v944 = vpack.c.b16 %v894, %v892
      %v945 = vpack.c.b16 %v897, %v895
      %v946 = vpack.c.b16 %v898, %v896
      %v947 = vpack.c.b16 %v901, %v899
      %v948 = vpack.c.b16 %v902, %v900
      %v949 = vpack.c.b16 %v905, %v903
      %v950 = vpack.c.b16 %v906, %v904
      %v951 = vpack.c.b16 %v909, %v907
      %v952 = vpack.c.b16 %v910, %v908
      %v953 = vpack.c.b16 %v911, %v911
      %v954 = vpack.c.b16 %v912, %v912
      %997 = vmatprep.subr.bf16.mxu0 0
      %998 = vmatpush1.bf16.msra.mxu0 %v516
      %999 = vmatprep.subr.bf16.mxu0 0
      %1000 = vmatpush1.bf16.msra.mxu0 %v517
      %1001 = vmatprep.subr.bf16.mxu0 0
      %1002 = vmatpush1.bf16.msra.mxu0 %v518
      %1003 = vmatprep.subr.bf16.mxu0 0
      %1004 = vmatpush1.bf16.msra.mxu0 %v519
      %1005 = vmatprep.subr.bf16.mxu0 0
      %1006 = vmatpush1.bf16.msra.mxu0 %v520
      %1007 = vmatprep.subr.bf16.mxu0 0
      %1008 = vmatpush1.bf16.msra.mxu0 %v521
      %1009 = vmatprep.subr.bf16.mxu0 0
      %1010 = vmatpush1.bf16.msra.mxu0 %v522
      %1011 = vmatprep.subr.bf16.mxu0 0
      %1012 = vmatpush1.bf16.msra.mxu0 %v523
      %1013 = vmatprep.subr.bf16.mxu0 0
      %1014 = vmatpush1.bf16.msra.mxu0 %v524
      %1015 = vmatprep.subr.bf16.mxu0 0
      %1016 = vmatpush1.bf16.msra.mxu0 %v525
      %1017 = vmatprep.subr.bf16.mxu0 0
      %1018 = vmatpush1.bf16.msra.mxu0 %v526
      %1019 = vmatprep.subr.bf16.mxu0 0
      %1020 = vmatpush1.bf16.msra.mxu0 %v527
      %1021 = vmatprep.subr.bf16.mxu0 0
      %1022 = vmatpush1.bf16.msra.mxu0 %v528
      %1023 = vmatprep.subr.bf16.mxu0 0
      %1024 = vmatpush1.bf16.msra.mxu0 %v529
      %1025 = vmatprep.subr.bf16.mxu0 0
      %1026 = vmatpush1.bf16.msra.mxu0 %v530
      %1027 = vmatprep.subr.bf16.mxu0 0
      %1028 = vmatpush1.bf16.msra.mxu0 %v531
      %1029 = vmatprep.mubr.bf16.mxu0 %v914
      %1030 = vmatmul.mubr.bf16.gmra.mrb[0].mxu0 %v913
      %v1031 = vpop.f32.mrb[0].mxu0
      %v1032 = vadd.f32 0.0, %v1031
      %v1033 = vpop.f32.mrb[0].mxu0
      %v1034 = vpop.f32.mrb[0].mxu0
      %v1035 = vadd.f32 0.0, %v1034
      %v1036 = vpop.f32.mrb[0].mxu0
      %1037 = vmatprep.mubr.bf16.mxu0 %v916
      %1038 = vmatmul.mubr.bf16.gmra.mrb[0].mxu0 %v915
      %v1039 = vpop.f32.mrb[0].mxu0
      %v1040 = vadd.f32 0.0, %v1039
      %v1041 = vpop.f32.mrb[0].mxu0
      %v1042 = vpop.f32.mrb[0].mxu0
      %v1043 = vadd.f32 0.0, %v1042
      %v1044 = vpop.f32.mrb[0].mxu0
      %1045 = vmatprep.mubr.bf16.mxu0 %v918
      %1046 = vmatmul.mubr.bf16.gmra.mrb[0].mxu0 %v917
      %v1047 = vpop.f32.mrb[0].mxu0
      %v1048 = vadd.f32 0.0, %v1047
      %v1049 = vpop.f32.mrb[0].mxu0
      %v1050 = vpop.f32.mrb[0].mxu0
      %v1051 = vadd.f32 0.0, %v1050
      %v1052 = vpop.f32.mrb[0].mxu0
      %1053 = vmatprep.mubr.bf16.mxu0 %v920
      %1054 = vmatmul.mubr.bf16.gmra.mrb[0].mxu0 %v919
      %v1055 = vpop.f32.mrb[0].mxu0
      %v1056 = vadd.f32 0.0, %v1055
      %v1057 = vpop.f32.mrb[0].mxu0
      %v1058 = vpop.f32.mrb[0].mxu0
      %v1059 = vadd.f32 0.0, %v1058
      %v1060 = vpop.f32.mrb[0].mxu0
      %1061 = vmatprep.mubr.bf16.mxu0 %v922
      %1062 = vmatmul.mubr.bf16.gmra.mrb[0].mxu0 %v921
      %v1063 = vpop.f32.mrb[0].mxu0
      %v1064 = vadd.f32 0.0, %v1063
      %v1065 = vpop.f32.mrb[0].mxu0
      %v1066 = vpop.f32.mrb[0].mxu0
      %v1067 = vadd.f32 0.0, %v1066
      %v1068 = vpop.f32.mrb[0].mxu0
      %1069 = vmatprep.mubr.bf16.mxu0 %v924
      %1070 = vmatmul.mubr.bf16.gmra.mrb[0].mxu0 %v923
      %v1071 = vpop.f32.mrb[0].mxu0
      %v1072 = vadd.f32 0.0, %v1071
      %v1073 = vpop.f32.mrb[0].mxu0
      %v1074 = vpop.f32.mrb[0].mxu0
      %v1075 = vadd.f32 0.0, %v1074
      %v1076 = vpop.f32.mrb[0].mxu0
      %1077 = vmatprep.mubr.bf16.mxu0 %v926
      %1078 = vmatmul.mubr.bf16.gmra.mrb[0].mxu0 %v925
      %v1079 = vpop.f32.mrb[0].mxu0
      %v1080 = vadd.f32 0.0, %v1079
      %v1081 = vpop.f32.mrb[0].mxu0
      %v1082 = vpop.f32.mrb[0].mxu0
      %v1083 = vadd.f32 0.0, %v1082
      %v1084 = vpop.f32.mrb[0].mxu0
      %1085 = vmatprep.mubr.bf16.mxu0 %v928
      %1086 = vmatmul.mubr.bf16.gmra.mrb[0].mxu0 %v927
      %v1087 = vpop.f32.mrb[0].mxu0
      %v1088 = vadd.f32 0.0, %v1087
      %v1089 = vpop.f32.mrb[0].mxu0
      %v1090 = vpop.f32.mrb[0].mxu0
      %v1091 = vadd.f32 0.0, %v1090
      %v1092 = vpop.f32.mrb[0].mxu0
      %1093 = vmatprep.mubr.bf16.mxu0 %v930
      %1094 = vmatmul.mubr.bf16.gmra.mrb[0].mxu0 %v929
      %v1095 = vpop.f32.mrb[0].mxu0
      %v1096 = vadd.f32 0.0, %v1095
      %v1097 = vpop.f32.mrb[0].mxu0
      %v1098 = vpop.f32.mrb[0].mxu0
      %v1099 = vadd.f32 0.0, %v1098
      %v1100 = vpop.f32.mrb[0].mxu0
      %1101 = vmatprep.mubr.bf16.mxu0 %v932
      %1102 = vmatmul.mubr.bf16.gmra.mrb[0].mxu0 %v931
      %v1103 = vpop.f32.mrb[0].mxu0
      %v1104 = vadd.f32 0.0, %v1103
      %v1105 = vpop.f32.mrb[0].mxu0
      %v1106 = vpop.f32.mrb[0].mxu0
      %v1107 = vadd.f32 0.0, %v1106
      %v1108 = vpop.f32.mrb[0].mxu0
      %1109 = vmatprep.mubr.bf16.mxu0 %v934
      %1110 = vmatmul.mubr.bf16.gmra.mrb[0].mxu0 %v933
      %v1111 = vpop.f32.mrb[0].mxu0
      %v1112 = vadd.f32 0.0, %v1111
      %v1113 = vpop.f32.mrb[0].mxu0
      %v1114 = vpop.f32.mrb[0].mxu0
      %v1115 = vadd.f32 0.0, %v1114
      %v1116 = vpop.f32.mrb[0].mxu0
      %1117 = vmatprep.mubr.bf16.mxu0 %v936
      %1118 = vmatmul.mubr.bf16.gmra.mrb[0].mxu0 %v935
      %v1119 = vpop.f32.mrb[0].mxu0
      %v1120 = vadd.f32 0.0, %v1119
      %v1121 = vpop.f32.mrb[0].mxu0
      %v1122 = vpop.f32.mrb[0].mxu0
      %v1123 = vadd.f32 0.0, %v1122
      %v1124 = vpop.f32.mrb[0].mxu0
      %1125 = vmatprep.mubr.bf16.mxu0 %v938
      %1126 = vmatmul.mubr.bf16.gmra.mrb[0].mxu0 %v937
      %v1127 = vpop.f32.mrb[0].mxu0
      %v1128 = vadd.f32 0.0, %v1127
      %v1129 = vpop.f32.mrb[0].mxu0
      %v1130 = vpop.f32.mrb[0].mxu0
      %v1131 = vadd.f32 0.0, %v1130
      %v1132 = vpop.f32.mrb[0].mxu0
      %1133 = vmatprep.mubr.bf16.mxu0 %v940
      %1134 = vmatmul.mubr.bf16.gmra.mrb[0].mxu0 %v939
      %v1135 = vpop.f32.mrb[0].mxu0
      %v1136 = vadd.f32 0.0, %v1135
      %v1137 = vpop.f32.mrb[0].mxu0
      %v1138 = vpop.f32.mrb[0].mxu0
      %v1139 = vadd.f32 0.0, %v1138
      %v1140 = vpop.f32.mrb[0].mxu0
      %1141 = vmatprep.mubr.bf16.mxu0 %v942
      %1142 = vmatmul.mubr.bf16.gmra.mrb[0].mxu0 %v941
      %v1143 = vpop.f32.mrb[0].mxu0
      %v1144 = vadd.f32 0.0, %v1143
      %v1145 = vpop.f32.mrb[0].mxu0
      %v1146 = vpop.f32.mrb[0].mxu0
      %v1147 = vadd.f32 0.0, %v1146
      %v1148 = vpop.f32.mrb[0].mxu0
      %1149 = vmatprep.mubr.bf16.mxu0 %v944
      %1150 = vmatmul.mubr.bf16.gmra.mrb[0].mxu0 %v943
      %v1151 = vpop.f32.mrb[0].mxu0
      %v1152 = vadd.f32 0.0, %v1151
      %v1153 = vpop.f32.mrb[0].mxu0
      %v1154 = vpop.f32.mrb[0].mxu0
      %v1155 = vadd.f32 0.0, %v1154
      %v1156 = vpop.f32.mrb[0].mxu0
      %1157 = vmatprep.mubr.bf16.mxu0 %v946
      %1158 = vmatmul.mubr.bf16.gmra.mrb[0].mxu0 %v945
      %v1159 = vpop.f32.mrb[0].mxu0
      %v1160 = vadd.f32 0.0, %v1159
      %v1161 = vpop.f32.mrb[0].mxu0
      %v1162 = vpop.f32.mrb[0].mxu0
      %v1163 = vadd.f32 0.0, %v1162
      %v1164 = vpop.f32.mrb[0].mxu0
      %1165 = vmatprep.mubr.bf16.mxu0 %v948
      %1166 = vmatmul.mubr.bf16.gmra.mrb[0].mxu0 %v947
      %v1167 = vpop.f32.mrb[0].mxu0
      %v1168 = vadd.f32 0.0, %v1167
      %v1169 = vpop.f32.mrb[0].mxu0
      %v1170 = vpop.f32.mrb[0].mxu0
      %v1171 = vadd.f32 0.0, %v1170
      %v1172 = vpop.f32.mrb[0].mxu0
      %1173 = vmatprep.mubr.bf16.mxu0 %v950
      %1174 = vmatmul.mubr.bf16.gmra.mrb[0].mxu0 %v949
      %v1175 = vpop.f32.mrb[0].mxu0
      %v1176 = vadd.f32 0.0, %v1175
      %v1177 = vpop.f32.mrb[0].mxu0
      %v1178 = vpop.f32.mrb[0].mxu0
      %v1179 = vadd.f32 0.0, %v1178
      %v1180 = vpop.f32.mrb[0].mxu0
      %1181 = vmatprep.mubr.bf16.mxu0 %v952
      %1182 = vmatmul.mubr.bf16.gmra.mrb[0].mxu0 %v951
      %v1183 = vpop.f32.mrb[0].mxu0
      %v1184 = vadd.f32 0.0, %v1183
      %v1185 = vpop.f32.mrb[0].mxu0
      %v1186 = vpop.f32.mrb[0].mxu0
      %v1187 = vadd.f32 0.0, %v1186
      %v1188 = vpop.f32.mrb[0].mxu0
      %1189 = vmatprep.mubr.bf16.mxu0 %v954
      %1190 = vmatmul.mubr.bf16.gmra.mrb[0].mxu0 %v953
      %v1191 = vpop.f32.mrb[0].mxu0
      %v1192 = vadd.f32 0.0, %v1191
      %v1193 = vpop.f32.mrb[0].mxu0
      %v1194 = vpop.f32.mrb[0].mxu0
      %v1195 = vpop.f32.mrb[0].mxu0
      %1196 = vdwg.mxu0
      %v1197 = vmax.f32 %v583, %v1032
      %v1198 = vmax.f32 %v586, %v1035
      %v1199 = vmax.f32 %v591, %v1040
      %v1200 = vmax.f32 %v594, %v1043
      %v1201 = vmax.f32 %v599, %v1048
      %v1202 = vmax.f32 %v602, %v1051
      %v1203 = vmax.f32 %v607, %v1056
      %v1204 = vmax.f32 %v610, %v1059
      %v1205 = vmax.f32 %v615, %v1064
      %v1206 = vmax.f32 %v618, %v1067
      %v1207 = vmax.f32 %v623, %v1072
      %v1208 = vmax.f32 %v626, %v1075
      %v1209 = vmax.f32 %v631, %v1080
      %v1210 = vmax.f32 %v634, %v1083
      %v1211 = vmax.f32 %v639, %v1088
      %v1212 = vmax.f32 %v642, %v1091
      %v1213 = vmax.f32 %v647, %v1096
      %v1214 = vmax.f32 %v650, %v1099
      %v1215 = vmax.f32 %v655, %v1104
      %v1216 = vmax.f32 %v658, %v1107
      %v1217 = vmax.f32 %v663, %v1112
      %v1218 = vmax.f32 %v666, %v1115
      %v1219 = vmax.f32 %v671, %v1120
      %v1220 = vmax.f32 %v674, %v1123
      %v1221 = vmax.f32 %v679, %v1128
      %v1222 = vmax.f32 %v682, %v1131
      %v1223 = vmax.f32 %v687, %v1136
      %v1224 = vmax.f32 %v690, %v1139
      %v1225 = vmax.f32 %v695, %v1144
      %v1226 = vmax.f32 %v698, %v1147
      %v1227 = vmax.f32 %v703, %v1152
      %v1228 = vmax.f32 %v706, %v1155
      %v1229 = vmax.f32 %v711, %v1160
      %v1230 = vmax.f32 %v714, %v1163
      %v1231 = vmax.f32 %v719, %v1168
      %v1232 = vmax.f32 %v722, %v1171
      %v1233 = vmax.f32 %v727, %v1176
      %v1234 = vmax.f32 %v730, %v1179
      %v1235 = vmax.f32 %v735, %v1184
      %v1236 = vmax.f32 %v738, %v1187
      %v1237 = vmax.f32 %v743, %v1192
      %s1238 = scalar_lea.vmem %s165, 656
      %v1239 = vld [vmem:[%s1238] sm:$0xff]
      %v1240 = vld [vmem:[%s1238 + $0x8] sm:$0xff]
      %v1241 = vld [vmem:[%s1238 + $0x10] sm:$0xff]
      %v1242 = vld [vmem:[%s1238 + $0x18] sm:$0xff]
      %v1243 = vld [vmem:[%s1238 + $0x20] sm:$0xff]
      %v1244 = vld [vmem:[%s1238 + $0x28] sm:$0xff]
      %v1245 = vld [vmem:[%s1238 + $0x30] sm:$0xff]
      %v1246 = vld [vmem:[%s1238 + $0x38] sm:$0xff]
      %v1247 = vld [vmem:[%s1238 + $0x40] sm:$0xff]
      %v1248 = vld [vmem:[%s1238 + $0x48] sm:$0xff]
      %v1249 = vld [vmem:[%s1238 + $0x50] sm:$0xff]
      %v1250 = vld [vmem:[%s1238 + $0x58] sm:$0xff]
      %v1251 = vld [vmem:[%s1238 + $0x60] sm:$0xff]
      %v1252 = vld [vmem:[%s1238 + $0x68] sm:$0xff]
      %v1253 = vld [vmem:[%s1238 + $0x70] sm:$0xff]
      %v1254 = vld [vmem:[%s1238 + $0x78] sm:$0xff]
      %v1255 = vld [vmem:[%s1238 + $0x80] sm:$0xff]
      %v1256 = vld [vmem:[%s1238 + $0x88] sm:$0xff]
      %v1257 = vld [vmem:[%s1238 + $0x90] sm:$0xff]
      %v1258 = vld [vmem:[%s1238 + $0x98] sm:$0xff]
      %v1259 = vld [vmem:[%s1238 + $0xa0] sm:$0xff]
      %v1260 = vld [vmem:[%s1238 + $0xa8] sm:$0xff]
      %v1261 = vld [vmem:[%s1238 + $0xb0] sm:$0xff]
      %v1262 = vld [vmem:[%s1238 + $0xb8] sm:$0xff]
      %v1263 = vld [vmem:[%s1238 + $0xc0] sm:$0xff]
      %v1264 = vld [vmem:[%s1238 + $0xc8] sm:$0xff]
      %v1265 = vld [vmem:[%s1238 + $0xd0] sm:$0xff]
      %v1266 = vld [vmem:[%s1238 + $0xd8] sm:$0xff]
      %v1267 = vld [vmem:[%s1238 + $0xe0] sm:$0xff]
      %v1268 = vld [vmem:[%s1238 + $0xe8] sm:$0xff]
      %v1269 = vld [vmem:[%s1238 + $0xf0] sm:$0xff]
      %v1270 = vld [vmem:[%s1238 + $0xf8] sm:$0xff]
      %v1271 = vld [vmem:[%s1238 + $0x100] sm:$0xff]
      %v1272 = vld [vmem:[%s1238 + $0x108] sm:$0xff]
      %v1273 = vld [vmem:[%s1238 + $0x110] sm:$0xff]
      %v1274 = vld [vmem:[%s1238 + $0x118] sm:$0xff]
      %v1275 = vld [vmem:[%s1238 + $0x120] sm:$0xff]
      %v1276 = vld [vmem:[%s1238 + $0x128] sm:$0xff]
      %v1277 = vld [vmem:[%s1238 + $0x130] sm:$0xff]
      %v1278 = vld [vmem:[%s1238 + $0x138] sm:$0xff]
      %v1279 = vld [vmem:[%s1238 + $0x140] sm:$0x33]
      %v1321 = vunpack.c.l.b16 %v1239
      %v1322 = vunpack.c.h.b16 %v1239
      %v1323 = vunpack.c.l.b16 %v1240
      %v1324 = vunpack.c.h.b16 %v1240
      %v1325 = vunpack.c.l.b16 %v1241
      %v1326 = vunpack.c.h.b16 %v1241
      %v1327 = vunpack.c.l.b16 %v1242
      %v1328 = vunpack.c.h.b16 %v1242
      %v1329 = vunpack.c.l.b16 %v1243
      %v1330 = vunpack.c.h.b16 %v1243
      %v1331 = vunpack.c.l.b16 %v1244
      %v1332 = vunpack.c.h.b16 %v1244
      %v1333 = vunpack.c.l.b16 %v1245
      %v1334 = vunpack.c.h.b16 %v1245
      %v1335 = vunpack.c.l.b16 %v1246
      %v1336 = vunpack.c.h.b16 %v1246
      %v1337 = vunpack.c.l.b16 %v1247
      %v1338 = vunpack.c.h.b16 %v1247
      %v1339 = vunpack.c.l.b16 %v1248
      %v1340 = vunpack.c.h.b16 %v1248
      %v1341 = vunpack.c.l.b16 %v1249
      %v1342 = vunpack.c.h.b16 %v1249
      %v1343 = vunpack.c.l.b16 %v1250
      %v1344 = vunpack.c.h.b16 %v1250
      %v1345 = vunpack.c.l.b16 %v1251
      %v1346 = vunpack.c.h.b16 %v1251
      %v1347 = vunpack.c.l.b16 %v1252
      %v1348 = vunpack.c.h.b16 %v1252
      %v1349 = vunpack.c.l.b16 %v1253
      %v1350 = vunpack.c.h.b16 %v1253
      %v1351 = vunpack.c.l.b16 %v1254
      %v1352 = vunpack.c.h.b16 %v1254
      %v1353 = vunpack.c.l.b16 %v1255
      %v1354 = vunpack.c.h.b16 %v1255
      %v1355 = vunpack.c.l.b16 %v1256
      %v1356 = vunpack.c.h.b16 %v1256
      %v1357 = vunpack.c.l.b16 %v1257
      %v1358 = vunpack.c.h.b16 %v1257
      %v1359 = vunpack.c.l.b16 %v1258
      %v1360 = vunpack.c.h.b16 %v1258
      %v1361 = vunpack.c.l.b16 %v1259
      %v1362 = vunpack.c.h.b16 %v1259
      %v1363 = vunpack.c.l.b16 %v1260
      %v1364 = vunpack.c.h.b16 %v1260
      %v1365 = vunpack.c.l.b16 %v1261
      %v1366 = vunpack.c.h.b16 %v1261
      %v1367 = vunpack.c.l.b16 %v1262
      %v1368 = vunpack.c.h.b16 %v1262
      %v1369 = vunpack.c.l.b16 %v1263
      %v1370 = vunpack.c.h.b16 %v1263
      %v1371 = vunpack.c.l.b16 %v1264
      %v1372 = vunpack.c.h.b16 %v1264
      %v1373 = vunpack.c.l.b16 %v1265
      %v1374 = vunpack.c.h.b16 %v1265
      %v1375 = vunpack.c.l.b16 %v1266
      %v1376 = vunpack.c.h.b16 %v1266
      %v1377 = vunpack.c.l.b16 %v1267
      %v1378 = vunpack.c.h.b16 %v1267
      %v1379 = vunpack.c.l.b16 %v1268
      %v1380 = vunpack.c.h.b16 %v1268
      %v1381 = vunpack.c.l.b16 %v1269
      %v1382 = vunpack.c.h.b16 %v1269
      %v1383 = vunpack.c.l.b16 %v1270
      %v1384 = vunpack.c.h.b16 %v1270
      %v1385 = vunpack.c.l.b16 %v1271
      %v1386 = vunpack.c.h.b16 %v1271
      %v1387 = vunpack.c.l.b16 %v1272
      %v1388 = vunpack.c.h.b16 %v1272
      %v1389 = vunpack.c.l.b16 %v1273
      %v1390 = vunpack.c.h.b16 %v1273
      %v1391 = vunpack.c.l.b16 %v1274
      %v1392 = vunpack.c.h.b16 %v1274
      %v1393 = vunpack.c.l.b16 %v1275
      %v1394 = vunpack.c.h.b16 %v1275
      %v1395 = vunpack.c.l.b16 %v1276
      %v1396 = vunpack.c.h.b16 %v1276
      %v1397 = vunpack.c.l.b16 %v1277
      %v1398 = vunpack.c.h.b16 %v1277
      %v1399 = vunpack.c.l.b16 %v1278
      %v1400 = vunpack.c.h.b16 %v1278
      %v1401 = vunpack.c.l.b16 %v1279
      %v1402 = vunpack.c.h.b16 %v1279
      %v1403 = vpack.c.b16 %v1323, %v1321
      %v1404 = vpack.c.b16 %v1324, %v1322
      %v1405 = vpack.c.b16 %v1327, %v1325
      %v1406 = vpack.c.b16 %v1328, %v1326
      %v1407 = vpack.c.b16 %v1331, %v1329
      %v1408 = vpack.c.b16 %v1332, %v1330
      %v1409 = vpack.c.b16 %v1335, %v1333
      %v1410 = vpack.c.b16 %v1336, %v1334
      %v1411 = vpack.c.b16 %v1339, %v1337
      %v1412 = vpack.c.b16 %v1340, %v1338
      %v1413 = vpack.c.b16 %v1343, %v1341
      %v1414 = vpack.c.b16 %v1344, %v1342
      %v1415 = vpack.c.b16 %v1347, %v1345
      %v1416 = vpack.c.b16 %v1348, %v1346
      %v1417 = vpack.c.b16 %v1351, %v1349
      %v1418 = vpack.c.b16 %v1352, %v1350
      %v1419 = vpack.c.b16 %v1355, %v1353
      %v1420 = vpack.c.b16 %v1356, %v1354
      %v1421 = vpack.c.b16 %v1359, %v1357
      %v1422 = vpack.c.b16 %v1360, %v1358
      %v1423 = vpack.c.b16 %v1363, %v1361
      %v1424 = vpack.c.b16 %v1364, %v1362
      %v1425 = vpack.c.b16 %v1367, %v1365
      %v1426 = vpack.c.b16 %v1368, %v1366
      %v1427 = vpack.c.b16 %v1371, %v1369
      %v1428 = vpack.c.b16 %v1372, %v1370
      %v1429 = vpack.c.b16 %v1375, %v1373
      %v1430 = vpack.c.b16 %v1376, %v1374
      %v1431 = vpack.c.b16 %v1379, %v1377
      %v1432 = vpack.c.b16 %v1380, %v1378
      %v1433 = vpack.c.b16 %v1383, %v1381
      %v1434 = vpack.c.b16 %v1384, %v1382
      %v1435 = vpack.c.b16 %v1387, %v1385
      %v1436 = vpack.c.b16 %v1388, %v1386
      %v1437 = vpack.c.b16 %v1391, %v1389
      %v1438 = vpack.c.b16 %v1392, %v1390
      %v1439 = vpack.c.b16 %v1395, %v1393
      %v1440 = vpack.c.b16 %v1396, %v1394
      %v1441 = vpack.c.b16 %v1399, %v1397
      %v1442 = vpack.c.b16 %v1400, %v1398
      %v1443 = vpack.c.b16 %v1401, %v1401
      %v1444 = vpack.c.b16 %v1402, %v1402
      %1487 = vmatprep.subr.bf16.mxu0 0
      %1488 = vmatpush1.bf16.msra.mxu0 %v516
      %1489 = vmatprep.subr.bf16.mxu0 0
      %1490 = vmatpush1.bf16.msra.mxu0 %v517
      %1491 = vmatprep.subr.bf16.mxu0 0
      %1492 = vmatpush1.bf16.msra.mxu0 %v518
      %1493 = vmatprep.subr.bf16.mxu0 0
      %1494 = vmatpush1.bf16.msra.mxu0 %v519
      %1495 = vmatprep.subr.bf16.mxu0 0
      %1496 = vmatpush1.bf16.msra.mxu0 %v520
      %1497 = vmatprep.subr.bf16.mxu0 0
      %1498 = vmatpush1.bf16.msra.mxu0 %v521
      %1499 = vmatprep.subr.bf16.mxu0 0
      %1500 = vmatpush1.bf16.msra.mxu0 %v522
      %1501 = vmatprep.subr.bf16.mxu0 0
      %1502 = vmatpush1.bf16.msra.mxu0 %v523
      %1503 = vmatprep.subr.bf16.mxu0 0
      %1504 = vmatpush1.bf16.msra.mxu0 %v524
      %1505 = vmatprep.subr.bf16.mxu0 0
      %1506 = vmatpush1.bf16.msra.mxu0 %v525
      %1507 = vmatprep.subr.bf16.mxu0 0
      %1508 = vmatpush1.bf16.msra.mxu0 %v526
      %1509 = vmatprep.subr.bf16.mxu0 0
      %1510 = vmatpush1.bf16.msra.mxu0 %v527
      %1511 = vmatprep.subr.bf16.mxu0 0
      %1512 = vmatpush1.bf16.msra.mxu0 %v528
      %1513 = vmatprep.subr.bf16.mxu0 0
      %1514 = vmatpush1.bf16.msra.mxu0 %v529
      %1515 = vmatprep.subr.bf16.mxu0 0
      %1516 = vmatpush1.bf16.msra.mxu0 %v530
      %1517 = vmatprep.subr.bf16.mxu0 0
      %1518 = vmatpush1.bf16.msra.mxu0 %v531
      %1519 = vmatprep.mubr.bf16.mxu0 %v1404
      %1520 = vmatmul.mubr.bf16.gmra.mrb[0].mxu0 %v1403
      %v1521 = vpop.f32.mrb[0].mxu0
      %v1522 = vadd.f32 0.0, %v1521
      %v1523 = vpop.f32.mrb[0].mxu0
      %v1524 = vpop.f32.mrb[0].mxu0
      %v1525 = vadd.f32 0.0, %v1524
      %v1526 = vpop.f32.mrb[0].mxu0
      %1527 = vmatprep.mubr.bf16.mxu0 %v1406
      %1528 = vmatmul.mubr.bf16.gmra.mrb[0].mxu0 %v1405
      %v1529 = vpop.f32.mrb[0].mxu0
      %v1530 = vadd.f32 0.0, %v1529
      %v1531 = vpop.f32.mrb[0].mxu0
      %v1532 = vpop.f32.mrb[0].mxu0
      %v1533 = vadd.f32 0.0, %v1532
      %v1534 = vpop.f32.mrb[0].mxu0
      %1535 = vmatprep.mubr.bf16.mxu0 %v1408
      %1536 = vmatmul.mubr.bf16.gmra.mrb[0].mxu0 %v1407
      %v1537 = vpop.f32.mrb[0].mxu0
      %v1538 = vadd.f32 0.0, %v1537
      %v1539 = vpop.f32.mrb[0].mxu0
      %v1540 = vpop.f32.mrb[0].mxu0
      %v1541 = vadd.f32 0.0, %v1540
      %v1542 = vpop.f32.mrb[0].mxu0
      %1543 = vmatprep.mubr.bf16.mxu0 %v1410
      %1544 = vmatmul.mubr.bf16.gmra.mrb[0].mxu0 %v1409
      %v1545 = vpop.f32.mrb[0].mxu0
      %v1546 = vadd.f32 0.0, %v1545
      %v1547 = vpop.f32.mrb[0].mxu0
      %v1548 = vpop.f32.mrb[0].mxu0
      %v1549 = vadd.f32 0.0, %v1548
      %v1550 = vpop.f32.mrb[0].mxu0
      %1551 = vmatprep.mubr.bf16.mxu0 %v1412
      %1552 = vmatmul.mubr.bf16.gmra.mrb[0].mxu0 %v1411
      %v1553 = vpop.f32.mrb[0].mxu0
      %v1554 = vadd.f32 0.0, %v1553
      %v1555 = vpop.f32.mrb[0].mxu0
      %v1556 = vpop.f32.mrb[0].mxu0
      %v1557 = vadd.f32 0.0, %v1556
      %v1558 = vpop.f32.mrb[0].mxu0
      %1559 = vmatprep.mubr.bf16.mxu0 %v1414
      %1560 = vmatmul.mubr.bf16.gmra.mrb[0].mxu0 %v1413
      %v1561 = vpop.f32.mrb[0].mxu0
      %v1562 = vadd.f32 0.0, %v1561
      %v1563 = vpop.f32.mrb[0].mxu0
      %v1564 = vpop.f32.mrb[0].mxu0
      %v1565 = vadd.f32 0.0, %v1564
      %v1566 = vpop.f32.mrb[0].mxu0
      %1567 = vmatprep.mubr.bf16.mxu0 %v1416
      %1568 = vmatmul.mubr.bf16.gmra.mrb[0].mxu0 %v1415
      %v1569 = vpop.f32.mrb[0].mxu0
      %v1570 = vadd.f32 0.0, %v1569
      %v1571 = vpop.f32.mrb[0].mxu0
      %v1572 = vpop.f32.mrb[0].mxu0
      %v1573 = vadd.f32 0.0, %v1572
      %v1574 = vpop.f32.mrb[0].mxu0
      %1575 = vmatprep.mubr.bf16.mxu0 %v1418
      %1576 = vmatmul.mubr.bf16.gmra.mrb[0].mxu0 %v1417
      %v1577 = vpop.f32.mrb[0].mxu0
      %v1578 = vadd.f32 0.0, %v1577
      %v1579 = vpop.f32.mrb[0].mxu0
      %v1580 = vpop.f32.mrb[0].mxu0
      %v1581 = vadd.f32 0.0, %v1580
      %v1582 = vpop.f32.mrb[0].mxu0
      %1583 = vmatprep.mubr.bf16.mxu0 %v1420
      %1584 = vmatmul.mubr.bf16.gmra.mrb[0].mxu0 %v1419
      %v1585 = vpop.f32.mrb[0].mxu0
      %v1586 = vadd.f32 0.0, %v1585
      %v1587 = vpop.f32.mrb[0].mxu0
      %v1588 = vpop.f32.mrb[0].mxu0
      %v1589 = vadd.f32 0.0, %v1588
      %v1590 = vpop.f32.mrb[0].mxu0
      %1591 = vmatprep.mubr.bf16.mxu0 %v1422
      %1592 = vmatmul.mubr.bf16.gmra.mrb[0].mxu0 %v1421
      %v1593 = vpop.f32.mrb[0].mxu0
      %v1594 = vadd.f32 0.0, %v1593
      %v1595 = vpop.f32.mrb[0].mxu0
      %v1596 = vpop.f32.mrb[0].mxu0
      %v1597 = vadd.f32 0.0, %v1596
      %v1598 = vpop.f32.mrb[0].mxu0
      %1599 = vmatprep.mubr.bf16.mxu0 %v1424
      %1600 = vmatmul.mubr.bf16.gmra.mrb[0].mxu0 %v1423
      %v1601 = vpop.f32.mrb[0].mxu0
      %v1602 = vadd.f32 0.0, %v1601
      %v1603 = vpop.f32.mrb[0].mxu0
      %v1604 = vpop.f32.mrb[0].mxu0
      %v1605 = vadd.f32 0.0, %v1604
      %v1606 = vpop.f32.mrb[0].mxu0
      %1607 = vmatprep.mubr.bf16.mxu0 %v1426
      %1608 = vmatmul.mubr.bf16.gmra.mrb[0].mxu0 %v1425
      %v1609 = vpop.f32.mrb[0].mxu0
      %v1610 = vadd.f32 0.0, %v1609
      %v1611 = vpop.f32.mrb[0].mxu0
      %v1612 = vpop.f32.mrb[0].mxu0
      %v1613 = vadd.f32 0.0, %v1612
      %v1614 = vpop.f32.mrb[0].mxu0
      %1615 = vmatprep.mubr.bf16.mxu0 %v1428
      %1616 = vmatmul.mubr.bf16.gmra.mrb[0].mxu0 %v1427
      %v1617 = vpop.f32.mrb[0].mxu0
      %v1618 = vadd.f32 0.0, %v1617
      %v1619 = vpop.f32.mrb[0].mxu0
      %v1620 = vpop.f32.mrb[0].mxu0
      %v1621 = vadd.f32 0.0, %v1620
      %v1622 = vpop.f32.mrb[0].mxu0
      %1623 = vmatprep.mubr.bf16.mxu0 %v1430
      %1624 = vmatmul.mubr.bf16.gmra.mrb[0].mxu0 %v1429
      %v1625 = vpop.f32.mrb[0].mxu0
      %v1626 = vadd.f32 0.0, %v1625
      %v1627 = vpop.f32.mrb[0].mxu0
      %v1628 = vpop.f32.mrb[0].mxu0
      %v1629 = vadd.f32 0.0, %v1628
      %v1630 = vpop.f32.mrb[0].mxu0
      %1631 = vmatprep.mubr.bf16.mxu0 %v1432
      %1632 = vmatmul.mubr.bf16.gmra.mrb[0].mxu0 %v1431
      %v1633 = vpop.f32.mrb[0].mxu0
      %v1634 = vadd.f32 0.0, %v1633
      %v1635 = vpop.f32.mrb[0].mxu0
      %v1636 = vpop.f32.mrb[0].mxu0
      %v1637 = vadd.f32 0.0, %v1636
      %v1638 = vpop.f32.mrb[0].mxu0
      %1639 = vmatprep.mubr.bf16.mxu0 %v1434
      %1640 = vmatmul.mubr.bf16.gmra.mrb[0].mxu0 %v1433
      %v1641 = vpop.f32.mrb[0].mxu0
      %v1642 = vadd.f32 0.0, %v1641
      %v1643 = vpop.f32.mrb[0].mxu0
      %v1644 = vpop.f32.mrb[0].mxu0
      %v1645 = vadd.f32 0.0, %v1644
      %v1646 = vpop.f32.mrb[0].mxu0
      %1647 = vmatprep.mubr.bf16.mxu0 %v1436
      %1648 = vmatmul.mubr.bf16.gmra.mrb[0].mxu0 %v1435
      %v1649 = vpop.f32.mrb[0].mxu0
      %v1650 = vadd.f32 0.0, %v1649
      %v1651 = vpop.f32.mrb[0].mxu0
      %v1652 = vpop.f32.mrb[0].mxu0
      %v1653 = vadd.f32 0.0, %v1652
      %v1654 = vpop.f32.mrb[0].mxu0
      %1655 = vmatprep.mubr.bf16.mxu0 %v1438
      %1656 = vmatmul.mubr.bf16.gmra.mrb[0].mxu0 %v1437
      %v1657 = vpop.f32.mrb[0].mxu0
      %v1658 = vadd.f32 0.0, %v1657
      %v1659 = vpop.f32.mrb[0].mxu0
      %v1660 = vpop.f32.mrb[0].mxu0
      %v1661 = vadd.f32 0.0, %v1660
      %v1662 = vpop.f32.mrb[0].mxu0
      %1663 = vmatprep.mubr.bf16.mxu0 %v1440
      %1664 = vmatmul.mubr.bf16.gmra.mrb[0].mxu0 %v1439
      %v1665 = vpop.f32.mrb[0].mxu0
      %v1666 = vadd.f32 0.0, %v1665
      %v1667 = vpop.f32.mrb[0].mxu0
      %v1668 = vpop.f32.mrb[0].mxu0
      %v1669 = vadd.f32 0.0, %v1668
      %v1670 = vpop.f32.mrb[0].mxu0
      %1671 = vmatprep.mubr.bf16.mxu0 %v1442
      %1672 = vmatmul.mubr.bf16.gmra.mrb[0].mxu0 %v1441
      %v1673 = vpop.f32.mrb[0].mxu0
      %v1674 = vadd.f32 0.0, %v1673
      %v1675 = vpop.f32.mrb[0].mxu0
      %v1676 = vpop.f32.mrb[0].mxu0
      %v1677 = vadd.f32 0.0, %v1676
      %v1678 = vpop.f32.mrb[0].mxu0
      %1679 = vmatprep.mubr.bf16.mxu0 %v1444
      %1680 = vmatmul.mubr.bf16.gmra.mrb[0].mxu0 %v1443
      %v1681 = vpop.f32.mrb[0].mxu0
      %v1682 = vadd.f32 0.0, %v1681
      %v1683 = vpop.f32.mrb[0].mxu0
      %v1684 = vpop.f32.mrb[0].mxu0
      %v1685 = vpop.f32.mrb[0].mxu0
      %1686 = vdwg.mxu0
      %v1687 = vmax.f32 %v1197, %v1522
      %v1688 = vmax.f32 %v1198, %v1525
      %v1689 = vmax.f32 %v1199, %v1530
      %v1690 = vmax.f32 %v1200, %v1533
      %v1691 = vmax.f32 %v1201, %v1538
      %v1692 = vmax.f32 %v1202, %v1541
      %v1693 = vmax.f32 %v1203, %v1546
      %v1694 = vmax.f32 %v1204, %v1549
      %v1695 = vmax.f32 %v1205, %v1554
      %v1696 = vmax.f32 %v1206, %v1557
      %v1697 = vmax.f32 %v1207, %v1562
      %v1698 = vmax.f32 %v1208, %v1565
      %v1699 = vmax.f32 %v1209, %v1570
      %v1700 = vmax.f32 %v1210, %v1573
      %v1701 = vmax.f32 %v1211, %v1578
      %v1702 = vmax.f32 %v1212, %v1581
      %v1703 = vmax.f32 %v1213, %v1586
      %v1704 = vmax.f32 %v1214, %v1589
      %v1705 = vmax.f32 %v1215, %v1594
      %v1706 = vmax.f32 %v1216, %v1597
      %v1707 = vmax.f32 %v1217, %v1602
      %v1708 = vmax.f32 %v1218, %v1605
      %v1709 = vmax.f32 %v1219, %v1610
      %v1710 = vmax.f32 %v1220, %v1613
      %v1711 = vmax.f32 %v1221, %v1618
      %v1712 = vmax.f32 %v1222, %v1621
      %v1713 = vmax.f32 %v1223, %v1626
      %v1714 = vmax.f32 %v1224, %v1629
      %v1715 = vmax.f32 %v1225, %v1634
      %v1716 = vmax.f32 %v1226, %v1637
      %v1717 = vmax.f32 %v1227, %v1642
      %v1718 = vmax.f32 %v1228, %v1645
      %v1719 = vmax.f32 %v1229, %v1650
      %v1720 = vmax.f32 %v1230, %v1653
      %v1721 = vmax.f32 %v1231, %v1658
      %v1722 = vmax.f32 %v1232, %v1661
      %v1723 = vmax.f32 %v1233, %v1666
      %v1724 = vmax.f32 %v1234, %v1669
      %v1725 = vmax.f32 %v1235, %v1674
      %v1726 = vmax.f32 %v1236, %v1677
      %v1727 = vmax.f32 %v1237, %v1682
      %s1728 = scalar_lea.vmem %s165, 984
      %v1729 = vld [vmem:[%s1728] sm:$0xff]
      %v1730 = vld [vmem:[%s1728 + $0x8] sm:$0xff]
      %v1731 = vld [vmem:[%s1728 + $0x10] sm:$0xff]
      %v1732 = vld [vmem:[%s1728 + $0x18] sm:$0xff]
      %v1733 = vld [vmem:[%s1728 + $0x20] sm:$0xff]
      %v1734 = vld [vmem:[%s1728 + $0x28] sm:$0xff]
      %v1735 = vld [vmem:[%s1728 + $0x30] sm:$0xff]
      %v1736 = vld [vmem:[%s1728 + $0x38] sm:$0xff]
      %v1737 = vld [vmem:[%s1728 + $0x40] sm:$0xff]
      %v1738 = vld [vmem:[%s1728 + $0x48] sm:$0xff]
      %v1739 = vld [vmem:[%s1728 + $0x50] sm:$0xff]
      %v1740 = vld [vmem:[%s1728 + $0x58] sm:$0xff]
      %v1741 = vld [vmem:[%s1728 + $0x60] sm:$0xff]
      %v1742 = vld [vmem:[%s1728 + $0x68] sm:$0xff]
      %v1743 = vld [vmem:[%s1728 + $0x70] sm:$0xff]
      %v1744 = vld [vmem:[%s1728 + $0x78] sm:$0xff]
      %v1745 = vld [vmem:[%s1728 + $0x80] sm:$0xff]
      %v1746 = vld [vmem:[%s1728 + $0x88] sm:$0xff]
      %v1747 = vld [vmem:[%s1728 + $0x90] sm:$0xff]
      %v1748 = vld [vmem:[%s1728 + $0x98] sm:$0xff]
      %v1749 = vld [vmem:[%s1728 + $0xa0] sm:$0xff]
      %v1750 = vld [vmem:[%s1728 + $0xa8] sm:$0xff]
      %v1751 = vld [vmem:[%s1728 + $0xb0] sm:$0xff]
      %v1752 = vld [vmem:[%s1728 + $0xb8] sm:$0xff]
      %v1753 = vld [vmem:[%s1728 + $0xc0] sm:$0xff]
      %v1754 = vld [vmem:[%s1728 + $0xc8] sm:$0xff]
      %v1755 = vld [vmem:[%s1728 + $0xd0] sm:$0xff]
      %v1756 = vld [vmem:[%s1728 + $0xd8] sm:$0xff]
      %v1757 = vld [vmem:[%s1728 + $0xe0] sm:$0xff]
      %v1758 = vld [vmem:[%s1728 + $0xe8] sm:$0xff]
      %v1759 = vld [vmem:[%s1728 + $0xf0] sm:$0xff]
      %v1760 = vld [vmem:[%s1728 + $0xf8] sm:$0xff]
      %v1761 = vld [vmem:[%s1728 + $0x100] sm:$0xff]
      %v1762 = vld [vmem:[%s1728 + $0x108] sm:$0xff]
      %v1763 = vld [vmem:[%s1728 + $0x110] sm:$0xff]
      %v1764 = vld [vmem:[%s1728 + $0x118] sm:$0xff]
      %v1765 = vld [vmem:[%s1728 + $0x120] sm:$0xff]
      %v1766 = vld [vmem:[%s1728 + $0x128] sm:$0xff]
      %v1767 = vld [vmem:[%s1728 + $0x130] sm:$0xff]
      %v1768 = vld [vmem:[%s1728 + $0x138] sm:$0xff]
      %v1769 = vld [vmem:[%s1728 + $0x140] sm:$0x33]
      %v1811 = vunpack.c.l.b16 %v1729
      %v1812 = vunpack.c.h.b16 %v1729
      %v1813 = vunpack.c.l.b16 %v1730
      %v1814 = vunpack.c.h.b16 %v1730
      %v1815 = vunpack.c.l.b16 %v1731
      %v1816 = vunpack.c.h.b16 %v1731
      %v1817 = vunpack.c.l.b16 %v1732
      %v1818 = vunpack.c.h.b16 %v1732
      %v1819 = vunpack.c.l.b16 %v1733
      %v1820 = vunpack.c.h.b16 %v1733
      %v1821 = vunpack.c.l.b16 %v1734
      %v1822 = vunpack.c.h.b16 %v1734
      %v1823 = vunpack.c.l.b16 %v1735
      %v1824 = vunpack.c.h.b16 %v1735
      %v1825 = vunpack.c.l.b16 %v1736
      %v1826 = vunpack.c.h.b16 %v1736
      %v1827 = vunpack.c.l.b16 %v1737
      %v1828 = vunpack.c.h.b16 %v1737
      %v1829 = vunpack.c.l.b16 %v1738
      %v1830 = vunpack.c.h.b16 %v1738
      %v1831 = vunpack.c.l.b16 %v1739
      %v1832 = vunpack.c.h.b16 %v1739
      %v1833 = vunpack.c.l.b16 %v1740
      %v1834 = vunpack.c.h.b16 %v1740
      %v1835 = vunpack.c.l.b16 %v1741
      %v1836 = vunpack.c.h.b16 %v1741
      %v1837 = vunpack.c.l.b16 %v1742
      %v1838 = vunpack.c.h.b16 %v1742
      %v1839 = vunpack.c.l.b16 %v1743
      %v1840 = vunpack.c.h.b16 %v1743
      %v1841 = vunpack.c.l.b16 %v1744
      %v1842 = vunpack.c.h.b16 %v1744
      %v1843 = vunpack.c.l.b16 %v1745
      %v1844 = vunpack.c.h.b16 %v1745
      %v1845 = vunpack.c.l.b16 %v1746
      %v1846 = vunpack.c.h.b16 %v1746
      %v1847 = vunpack.c.l.b16 %v1747
      %v1848 = vunpack.c.h.b16 %v1747
      %v1849 = vunpack.c.l.b16 %v1748
      %v1850 = vunpack.c.h.b16 %v1748
      %v1851 = vunpack.c.l.b16 %v1749
      %v1852 = vunpack.c.h.b16 %v1749
      %v1853 = vunpack.c.l.b16 %v1750
      %v1854 = vunpack.c.h.b16 %v1750
      %v1855 = vunpack.c.l.b16 %v1751
      %v1856 = vunpack.c.h.b16 %v1751
      %v1857 = vunpack.c.l.b16 %v1752
      %v1858 = vunpack.c.h.b16 %v1752
      %v1859 = vunpack.c.l.b16 %v1753
      %v1860 = vunpack.c.h.b16 %v1753
      %v1861 = vunpack.c.l.b16 %v1754
      %v1862 = vunpack.c.h.b16 %v1754
      %v1863 = vunpack.c.l.b16 %v1755
      %v1864 = vunpack.c.h.b16 %v1755
      %v1865 = vunpack.c.l.b16 %v1756
      %v1866 = vunpack.c.h.b16 %v1756
      %v1867 = vunpack.c.l.b16 %v1757
      %v1868 = vunpack.c.h.b16 %v1757
      %v1869 = vunpack.c.l.b16 %v1758
      %v1870 = vunpack.c.h.b16 %v1758
      %v1871 = vunpack.c.l.b16 %v1759
      %v1872 = vunpack.c.h.b16 %v1759
      %v1873 = vunpack.c.l.b16 %v1760
      %v1874 = vunpack.c.h.b16 %v1760
      %v1875 = vunpack.c.l.b16 %v1761
      %v1876 = vunpack.c.h.b16 %v1761
      %v1877 = vunpack.c.l.b16 %v1762
      %v1878 = vunpack.c.h.b16 %v1762
      %v1879 = vunpack.c.l.b16 %v1763
      %v1880 = vunpack.c.h.b16 %v1763
      %v1881 = vunpack.c.l.b16 %v1764
      %v1882 = vunpack.c.h.b16 %v1764
      %v1883 = vunpack.c.l.b16 %v1765
      %v1884 = vunpack.c.h.b16 %v1765
      %v1885 = vunpack.c.l.b16 %v1766
      %v1886 = vunpack.c.h.b16 %v1766
      %v1887 = vunpack.c.l.b16 %v1767
      %v1888 = vunpack.c.h.b16 %v1767
      %v1889 = vunpack.c.l.b16 %v1768
      %v1890 = vunpack.c.h.b16 %v1768
      %v1891 = vunpack.c.l.b16 %v1769
      %v1892 = vunpack.c.h.b16 %v1769
      %v1893 = vpack.c.b16 %v1813, %v1811
      %v1894 = vpack.c.b16 %v1814, %v1812
      %v1895 = vpack.c.b16 %v1817, %v1815
      %v1896 = vpack.c.b16 %v1818, %v1816
      %v1897 = vpack.c.b16 %v1821, %v1819
      %v1898 = vpack.c.b16 %v1822, %v1820
      %v1899 = vpack.c.b16 %v1825, %v1823
      %v1900 = vpack.c.b16 %v1826, %v1824
      %v1901 = vpack.c.b16 %v1829, %v1827
      %v1902 = vpack.c.b16 %v1830, %v1828
      %v1903 = vpack.c.b16 %v1833, %v1831
      %v1904 = vpack.c.b16 %v1834, %v1832
      %v1905 = vpack.c.b16 %v1837, %v1835
      %v1906 = vpack.c.b16 %v1838, %v1836
      %v1907 = vpack.c.b16 %v1841, %v1839
      %v1908 = vpack.c.b16 %v1842, %v1840
      %v1909 = vpack.c.b16 %v1845, %v1843
      %v1910 = vpack.c.b16 %v1846, %v1844
      %v1911 = vpack.c.b16 %v1849, %v1847
      %v1912 = vpack.c.b16 %v1850, %v1848
      %v1913 = vpack.c.b16 %v1853, %v1851
      %v1914 = vpack.c.b16 %v1854, %v1852
      %v1915 = vpack.c.b16 %v1857, %v1855
      %v1916 = vpack.c.b16 %v1858, %v1856
      %v1917 = vpack.c.b16 %v1861, %v1859
      %v1918 = vpack.c.b16 %v1862, %v1860
      %v1919 = vpack.c.b16 %v1865, %v1863
      %v1920 = vpack.c.b16 %v1866, %v1864
      %v1921 = vpack.c.b16 %v1869, %v1867
      %v1922 = vpack.c.b16 %v1870, %v1868
      %v1923 = vpack.c.b16 %v1873, %v1871
      %v1924 = vpack.c.b16 %v1874, %v1872
      %v1925 = vpack.c.b16 %v1877, %v1875
      %v1926 = vpack.c.b16 %v1878, %v1876
      %v1927 = vpack.c.b16 %v1881, %v1879
      %v1928 = vpack.c.b16 %v1882, %v1880
      %v1929 = vpack.c.b16 %v1885, %v1883
      %v1930 = vpack.c.b16 %v1886, %v1884
      %v1931 = vpack.c.b16 %v1889, %v1887
      %v1932 = vpack.c.b16 %v1890, %v1888
      %v1933 = vpack.c.b16 %v1891, %v1891
      %v1934 = vpack.c.b16 %v1892, %v1892
      %1977 = vmatprep.subr.bf16.mxu0 0
      %1978 = vmatpush1.bf16.msra.mxu0 %v516
      %1979 = vmatprep.subr.bf16.mxu0 0
      %1980 = vmatpush1.bf16.msra.mxu0 %v517
      %1981 = vmatprep.subr.bf16.mxu0 0
      %1982 = vmatpush1.bf16.msra.mxu0 %v518
      %1983 = vmatprep.subr.bf16.mxu0 0
      %1984 = vmatpush1.bf16.msra.mxu0 %v519
      %1985 = vmatprep.subr.bf16.mxu0 0
      %1986 = vmatpush1.bf16.msra.mxu0 %v520
      %1987 = vmatprep.subr.bf16.mxu0 0
      %1988 = vmatpush1.bf16.msra.mxu0 %v521
      %1989 = vmatprep.subr.bf16.mxu0 0
      %1990 = vmatpush1.bf16.msra.mxu0 %v522
      %1991 = vmatprep.subr.bf16.mxu0 0
      %1992 = vmatpush1.bf16.msra.mxu0 %v523
      %1993 = vmatprep.subr.bf16.mxu0 0
      %1994 = vmatpush1.bf16.msra.mxu0 %v524
      %1995 = vmatprep.subr.bf16.mxu0 0
      %1996 = vmatpush1.bf16.msra.mxu0 %v525
      %1997 = vmatprep.subr.bf16.mxu0 0
      %1998 = vmatpush1.bf16.msra.mxu0 %v526
      %1999 = vmatprep.subr.bf16.mxu0 0
      %2000 = vmatpush1.bf16.msra.mxu0 %v527
      %2001 = vmatprep.subr.bf16.mxu0 0
      %2002 = vmatpush1.bf16.msra.mxu0 %v528
      %2003 = vmatprep.subr.bf16.mxu0 0
      %2004 = vmatpush1.bf16.msra.mxu0 %v529
      %2005 = vmatprep.subr.bf16.mxu0 0
      %2006 = vmatpush1.bf16.msra.mxu0 %v530
      %2007 = vmatprep.subr.bf16.mxu0 0
      %2008 = vmatpush1.bf16.msra.mxu0 %v531
      %2009 = vmatprep.mubr.bf16.mxu0 %v1894
      %2010 = vmatmul.mubr.bf16.gmra.mrb[0].mxu0 %v1893
      %v2011 = vpop.f32.mrb[0].mxu0
      %v2012 = vadd.f32 0.0, %v2011
      %v2013 = vpop.f32.mrb[0].mxu0
      %v2014 = vpop.f32.mrb[0].mxu0
      %v2015 = vadd.f32 0.0, %v2014
      %v2016 = vpop.f32.mrb[0].mxu0
      %2017 = vmatprep.mubr.bf16.mxu0 %v1896
      %2018 = vmatmul.mubr.bf16.gmra.mrb[0].mxu0 %v1895
      %v2019 = vpop.f32.mrb[0].mxu0
      %v2020 = vadd.f32 0.0, %v2019
      %v2021 = vpop.f32.mrb[0].mxu0
      %v2022 = vpop.f32.mrb[0].mxu0
      %v2023 = vadd.f32 0.0, %v2022
      %v2024 = vpop.f32.mrb[0].mxu0
      %2025 = vmatprep.mubr.bf16.mxu0 %v1898
      %2026 = vmatmul.mubr.bf16.gmra.mrb[0].mxu0 %v1897
      %v2027 = vpop.f32.mrb[0].mxu0
      %v2028 = vadd.f32 0.0, %v2027
      %v2029 = vpop.f32.mrb[0].mxu0
      %v2030 = vpop.f32.mrb[0].mxu0
      %v2031 = vadd.f32 0.0, %v2030
      %v2032 = vpop.f32.mrb[0].mxu0
      %2033 = vmatprep.mubr.bf16.mxu0 %v1900
      %2034 = vmatmul.mubr.bf16.gmra.mrb[0].mxu0 %v1899
      %v2035 = vpop.f32.mrb[0].mxu0
      %v2036 = vadd.f32 0.0, %v2035
      %v2037 = vpop.f32.mrb[0].mxu0
      %v2038 = vpop.f32.mrb[0].mxu0
      %v2039 = vadd.f32 0.0, %v2038
      %v2040 = vpop.f32.mrb[0].mxu0
      %2041 = vmatprep.mubr.bf16.mxu0 %v1902
      %2042 = vmatmul.mubr.bf16.gmra.mrb[0].mxu0 %v1901
      %v2043 = vpop.f32.mrb[0].mxu0
      %v2044 = vadd.f32 0.0, %v2043
      %v2045 = vpop.f32.mrb[0].mxu0
      %v2046 = vpop.f32.mrb[0].mxu0
      %v2047 = vadd.f32 0.0, %v2046
      %v2048 = vpop.f32.mrb[0].mxu0
      %2049 = vmatprep.mubr.bf16.mxu0 %v1904
      %2050 = vmatmul.mubr.bf16.gmra.mrb[0].mxu0 %v1903
      %v2051 = vpop.f32.mrb[0].mxu0
      %v2052 = vadd.f32 0.0, %v2051
      %v2053 = vpop.f32.mrb[0].mxu0
      %v2054 = vpop.f32.mrb[0].mxu0
      %v2055 = vadd.f32 0.0, %v2054
      %v2056 = vpop.f32.mrb[0].mxu0
      %2057 = vmatprep.mubr.bf16.mxu0 %v1906
      %2058 = vmatmul.mubr.bf16.gmra.mrb[0].mxu0 %v1905
      %v2059 = vpop.f32.mrb[0].mxu0
      %v2060 = vadd.f32 0.0, %v2059
      %v2061 = vpop.f32.mrb[0].mxu0
      %v2062 = vpop.f32.mrb[0].mxu0
      %v2063 = vadd.f32 0.0, %v2062
      %v2064 = vpop.f32.mrb[0].mxu0
      %2065 = vmatprep.mubr.bf16.mxu0 %v1908
      %2066 = vmatmul.mubr.bf16.gmra.mrb[0].mxu0 %v1907
      %v2067 = vpop.f32.mrb[0].mxu0
      %v2068 = vadd.f32 0.0, %v2067
      %v2069 = vpop.f32.mrb[0].mxu0
      %v2070 = vpop.f32.mrb[0].mxu0
      %v2071 = vadd.f32 0.0, %v2070
      %v2072 = vpop.f32.mrb[0].mxu0
      %2073 = vmatprep.mubr.bf16.mxu0 %v1910
      %2074 = vmatmul.mubr.bf16.gmra.mrb[0].mxu0 %v1909
      %v2075 = vpop.f32.mrb[0].mxu0
      %v2076 = vadd.f32 0.0, %v2075
      %v2077 = vpop.f32.mrb[0].mxu0
      %v2078 = vpop.f32.mrb[0].mxu0
      %v2079 = vadd.f32 0.0, %v2078
      %v2080 = vpop.f32.mrb[0].mxu0
      %2081 = vmatprep.mubr.bf16.mxu0 %v1912
      %2082 = vmatmul.mubr.bf16.gmra.mrb[0].mxu0 %v1911
      %v2083 = vpop.f32.mrb[0].mxu0
      %v2084 = vadd.f32 0.0, %v2083
      %v2085 = vpop.f32.mrb[0].mxu0
      %v2086 = vpop.f32.mrb[0].mxu0
      %v2087 = vadd.f32 0.0, %v2086
      %v2088 = vpop.f32.mrb[0].mxu0
      %2089 = vmatprep.mubr.bf16.mxu0 %v1914
      %2090 = vmatmul.mubr.bf16.gmra.mrb[0].mxu0 %v1913
      %v2091 = vpop.f32.mrb[0].mxu0
      %v2092 = vadd.f32 0.0, %v2091
      %v2093 = vpop.f32.mrb[0].mxu0
      %v2094 = vpop.f32.mrb[0].mxu0
      %v2095 = vadd.f32 0.0, %v2094
      %v2096 = vpop.f32.mrb[0].mxu0
      %2097 = vmatprep.mubr.bf16.mxu0 %v1916
      %2098 = vmatmul.mubr.bf16.gmra.mrb[0].mxu0 %v1915
      %v2099 = vpop.f32.mrb[0].mxu0
      %v2100 = vadd.f32 0.0, %v2099
      %v2101 = vpop.f32.mrb[0].mxu0
      %v2102 = vpop.f32.mrb[0].mxu0
      %v2103 = vadd.f32 0.0, %v2102
      %v2104 = vpop.f32.mrb[0].mxu0
      %2105 = vmatprep.mubr.bf16.mxu0 %v1918
      %2106 = vmatmul.mubr.bf16.gmra.mrb[0].mxu0 %v1917
      %v2107 = vpop.f32.mrb[0].mxu0
      %v2108 = vadd.f32 0.0, %v2107
      %v2109 = vpop.f32.mrb[0].mxu0
      %v2110 = vpop.f32.mrb[0].mxu0
      %v2111 = vadd.f32 0.0, %v2110
      %v2112 = vpop.f32.mrb[0].mxu0
      %2113 = vmatprep.mubr.bf16.mxu0 %v1920
      %2114 = vmatmul.mubr.bf16.gmra.mrb[0].mxu0 %v1919
      %v2115 = vpop.f32.mrb[0].mxu0
      %v2116 = vadd.f32 0.0, %v2115
      %v2117 = vpop.f32.mrb[0].mxu0
      %v2118 = vpop.f32.mrb[0].mxu0
      %v2119 = vadd.f32 0.0, %v2118
      %v2120 = vpop.f32.mrb[0].mxu0
      %2121 = vmatprep.mubr.bf16.mxu0 %v1922
      %2122 = vmatmul.mubr.bf16.gmra.mrb[0].mxu0 %v1921
      %v2123 = vpop.f32.mrb[0].mxu0
      %v2124 = vadd.f32 0.0, %v2123
      %v2125 = vpop.f32.mrb[0].mxu0
      %v2126 = vpop.f32.mrb[0].mxu0
      %v2127 = vadd.f32 0.0, %v2126
      %v2128 = vpop.f32.mrb[0].mxu0
      %2129 = vmatprep.mubr.bf16.mxu0 %v1924
      %2130 = vmatmul.mubr.bf16.gmra.mrb[0].mxu0 %v1923
      %v2131 = vpop.f32.mrb[0].mxu0
      %v2132 = vadd.f32 0.0, %v2131
      %v2133 = vpop.f32.mrb[0].mxu0
      %v2134 = vpop.f32.mrb[0].mxu0
      %v2135 = vadd.f32 0.0, %v2134
      %v2136 = vpop.f32.mrb[0].mxu0
      %2137 = vmatprep.mubr.bf16.mxu0 %v1926
      %2138 = vmatmul.mubr.bf16.gmra.mrb[0].mxu0 %v1925
      %v2139 = vpop.f32.mrb[0].mxu0
      %v2140 = vadd.f32 0.0, %v2139
      %v2141 = vpop.f32.mrb[0].mxu0
      %v2142 = vpop.f32.mrb[0].mxu0
      %v2143 = vadd.f32 0.0, %v2142
      %v2144 = vpop.f32.mrb[0].mxu0
      %2145 = vmatprep.mubr.bf16.mxu0 %v1928
      %2146 = vmatmul.mubr.bf16.gmra.mrb[0].mxu0 %v1927
      %v2147 = vpop.f32.mrb[0].mxu0
      %v2148 = vadd.f32 0.0, %v2147
      %v2149 = vpop.f32.mrb[0].mxu0
      %v2150 = vpop.f32.mrb[0].mxu0
      %v2151 = vadd.f32 0.0, %v2150
      %v2152 = vpop.f32.mrb[0].mxu0
      %2153 = vmatprep.mubr.bf16.mxu0 %v1930
      %2154 = vmatmul.mubr.bf16.gmra.mrb[0].mxu0 %v1929
      %v2155 = vpop.f32.mrb[0].mxu0
      %v2156 = vadd.f32 0.0, %v2155
      %v2157 = vpop.f32.mrb[0].mxu0
      %v2158 = vpop.f32.mrb[0].mxu0
      %v2159 = vadd.f32 0.0, %v2158
      %v2160 = vpop.f32.mrb[0].mxu0
      %2161 = vmatprep.mubr.bf16.mxu0 %v1932
      %2162 = vmatmul.mubr.bf16.gmra.mrb[0].mxu0 %v1931
      %v2163 = vpop.f32.mrb[0].mxu0
      %v2164 = vadd.f32 0.0, %v2163
      %v2165 = vpop.f32.mrb[0].mxu0
      %v2166 = vpop.f32.mrb[0].mxu0
      %v2167 = vadd.f32 0.0, %v2166
      %v2168 = vpop.f32.mrb[0].mxu0
      %2169 = vmatprep.mubr.bf16.mxu0 %v1934
      %2170 = vmatmul.mubr.bf16.gmra.mrb[0].mxu0 %v1933
      %v2171 = vpop.f32.mrb[0].mxu0
      %v2172 = vadd.f32 0.0, %v2171
      %v2173 = vpop.f32.mrb[0].mxu0
      %v2174 = vpop.f32.mrb[0].mxu0
      %v2175 = vpop.f32.mrb[0].mxu0
      %2176 = vdwg.mxu0
      %v2177 = vmax.f32 %v1687, %v2012
      %v2178 = vmax.f32 %v1688, %v2015
      %v2179 = vmax.f32 %v1689, %v2020
      %v2180 = vmax.f32 %v1690, %v2023
      %v2181 = vmax.f32 %v1691, %v2028
      %v2182 = vmax.f32 %v1692, %v2031
      %v2183 = vmax.f32 %v1693, %v2036
      %v2184 = vmax.f32 %v1694, %v2039
      %v2185 = vmax.f32 %v1695, %v2044
      %v2186 = vmax.f32 %v1696, %v2047
      %v2187 = vmax.f32 %v1697, %v2052
      %v2188 = vmax.f32 %v1698, %v2055
      %v2189 = vmax.f32 %v1699, %v2060
      %v2190 = vmax.f32 %v1700, %v2063
      %v2191 = vmax.f32 %v1701, %v2068
      %v2192 = vmax.f32 %v1702, %v2071
      %v2193 = vmax.f32 %v1703, %v2076
      %v2194 = vmax.f32 %v1704, %v2079
      %v2195 = vmax.f32 %v1705, %v2084
      %v2196 = vmax.f32 %v1706, %v2087
      %v2197 = vmax.f32 %v1707, %v2092
      %v2198 = vmax.f32 %v1708, %v2095
      %v2199 = vmax.f32 %v1709, %v2100
      %v2200 = vmax.f32 %v1710, %v2103
      %v2201 = vmax.f32 %v1711, %v2108
      %v2202 = vmax.f32 %v1712, %v2111
      %v2203 = vmax.f32 %v1713, %v2116
      %v2204 = vmax.f32 %v1714, %v2119
      %v2205 = vmax.f32 %v1715, %v2124
      %v2206 = vmax.f32 %v1716, %v2127
      %v2207 = vmax.f32 %v1717, %v2132
      %v2208 = vmax.f32 %v1718, %v2135
      %v2209 = vmax.f32 %v1719, %v2140
      %v2210 = vmax.f32 %v1720, %v2143
      %v2211 = vmax.f32 %v1721, %v2148
      %v2212 = vmax.f32 %v1722, %v2151
      %v2213 = vmax.f32 %v1723, %v2156
      %v2214 = vmax.f32 %v1724, %v2159
      %v2215 = vmax.f32 %v1725, %v2164
      %v2216 = vmax.f32 %v1726, %v2167
      %v2217 = vmax.f32 %v1727, %v2172
      %v2218 = vld [vmem:[%s2] sm:$0x1]
      %v2220 = vlaneseq
      %v2221 = vshrl.u32 %v2220, 7
      %v2222 = vsub.s32 0, %v2221
      %v2223 = vrot.slane %v2218, %v2222
      %v2225 = vadd.f32 %v2177, %v2223
      %v2226 = vadd.f32 %v2178, %v2223
      %v2227 = vadd.f32 %v2179, %v2223
      %v2228 = vadd.f32 %v2180, %v2223
      %v2229 = vadd.f32 %v2181, %v2223
      %v2230 = vadd.f32 %v2182, %v2223
      %v2231 = vadd.f32 %v2183, %v2223
      %v2232 = vadd.f32 %v2184, %v2223
      %v2233 = vadd.f32 %v2185, %v2223
      %v2234 = vadd.f32 %v2186, %v2223
      %v2235 = vadd.f32 %v2187, %v2223
      %v2236 = vadd.f32 %v2188, %v2223
      %v2237 = vadd.f32 %v2189, %v2223
      %v2238 = vadd.f32 %v2190, %v2223
      %v2239 = vadd.f32 %v2191, %v2223
      %v2240 = vadd.f32 %v2192, %v2223
      %v2241 = vadd.f32 %v2193, %v2223
      %v2242 = vadd.f32 %v2194, %v2223
      %v2243 = vadd.f32 %v2195, %v2223
      %v2244 = vadd.f32 %v2196, %v2223
      %v2245 = vadd.f32 %v2197, %v2223
      %v2246 = vadd.f32 %v2198, %v2223
      %v2247 = vadd.f32 %v2199, %v2223
      %v2248 = vadd.f32 %v2200, %v2223
      %v2249 = vadd.f32 %v2201, %v2223
      %v2250 = vadd.f32 %v2202, %v2223
      %v2251 = vadd.f32 %v2203, %v2223
      %v2252 = vadd.f32 %v2204, %v2223
      %v2253 = vadd.f32 %v2205, %v2223
      %v2254 = vadd.f32 %v2206, %v2223
      %v2255 = vadd.f32 %v2207, %v2223
      %v2256 = vadd.f32 %v2208, %v2223
      %v2257 = vadd.f32 %v2209, %v2223
      %v2258 = vadd.f32 %v2210, %v2223
      %v2259 = vadd.f32 %v2211, %v2223
      %v2260 = vadd.f32 %v2212, %v2223
      %v2261 = vadd.f32 %v2213, %v2223
      %v2262 = vadd.f32 %v2214, %v2223
      %v2263 = vadd.f32 %v2215, %v2223
      %v2264 = vadd.f32 %v2216, %v2223
      %v2265 = vadd.f32 %v2217, %v2223
      %v2266 = vmax.f32 %v2225, 0.0
      %v2267 = vmax.f32 %v2226, 0.0
      %v2268 = vmax.f32 %v2227, 0.0
      %v2269 = vmax.f32 %v2228, 0.0
      %v2270 = vmax.f32 %v2229, 0.0
      %v2271 = vmax.f32 %v2230, 0.0
      %v2272 = vmax.f32 %v2231, 0.0
      %v2273 = vmax.f32 %v2232, 0.0
      %v2274 = vmax.f32 %v2233, 0.0
      %v2275 = vmax.f32 %v2234, 0.0
      %v2276 = vmax.f32 %v2235, 0.0
      %v2277 = vmax.f32 %v2236, 0.0
      %v2278 = vmax.f32 %v2237, 0.0
      %v2279 = vmax.f32 %v2238, 0.0
      %v2280 = vmax.f32 %v2239, 0.0
      %v2281 = vmax.f32 %v2240, 0.0
      %v2282 = vmax.f32 %v2241, 0.0
      %v2283 = vmax.f32 %v2242, 0.0
      %v2284 = vmax.f32 %v2243, 0.0
      %v2285 = vmax.f32 %v2244, 0.0
      %v2286 = vmax.f32 %v2245, 0.0
      %v2287 = vmax.f32 %v2246, 0.0
      %v2288 = vmax.f32 %v2247, 0.0
      %v2289 = vmax.f32 %v2248, 0.0
      %v2290 = vmax.f32 %v2249, 0.0
      %v2291 = vmax.f32 %v2250, 0.0
      %v2292 = vmax.f32 %v2251, 0.0
      %v2293 = vmax.f32 %v2252, 0.0
      %v2294 = vmax.f32 %v2253, 0.0
      %v2295 = vmax.f32 %v2254, 0.0
      %v2296 = vmax.f32 %v2255, 0.0
      %v2297 = vmax.f32 %v2256, 0.0
      %v2298 = vmax.f32 %v2257, 0.0
      %v2299 = vmax.f32 %v2258, 0.0
      %v2300 = vmax.f32 %v2259, 0.0
      %v2301 = vmax.f32 %v2260, 0.0
      %v2302 = vmax.f32 %v2261, 0.0
      %v2303 = vmax.f32 %v2262, 0.0
      %v2304 = vmax.f32 %v2263, 0.0
      %v2305 = vmax.f32 %v2264, 0.0
      %v2306 = vmax.f32 %v2265, 0.0
      %vm2307 = vcmask 261120
      %2308 = vst.msk [vmem:[%s170] sm:$0xff] %vm2307, %v2266
      %2309 = vst.msk [vmem:[%s170 + $0x8] sm:$0xff] %vm2307, %v2267
      %2310 = vst.msk [vmem:[%s170 + $0x10] sm:$0xff] %vm2307, %v2268
      %2311 = vst.msk [vmem:[%s170 + $0x18] sm:$0xff] %vm2307, %v2269
      %2312 = vst.msk [vmem:[%s170 + $0x20] sm:$0xff] %vm2307, %v2270
      %2313 = vst.msk [vmem:[%s170 + $0x28] sm:$0xff] %vm2307, %v2271
      %2314 = vst.msk [vmem:[%s170 + $0x30] sm:$0xff] %vm2307, %v2272
      %2315 = vst.msk [vmem:[%s170 + $0x38] sm:$0xff] %vm2307, %v2273
      %2316 = vst.msk [vmem:[%s170 + $0x40] sm:$0xff] %vm2307, %v2274
      %2317 = vst.msk [vmem:[%s170 + $0x48] sm:$0xff] %vm2307, %v2275
      %2318 = vst.msk [vmem:[%s170 + $0x50] sm:$0xff] %vm2307, %v2276
      %2319 = vst.msk [vmem:[%s170 + $0x58] sm:$0xff] %vm2307, %v2277
      %2320 = vst.msk [vmem:[%s170 + $0x60] sm:$0xff] %vm2307, %v2278
      %2321 = vst.msk [vmem:[%s170 + $0x68] sm:$0xff] %vm2307, %v2279
      %2322 = vst.msk [vmem:[%s170 + $0x70] sm:$0xff] %vm2307, %v2280
      %2323 = vst.msk [vmem:[%s170 + $0x78] sm:$0xff] %vm2307, %v2281
      %2324 = vst.msk [vmem:[%s170 + $0x80] sm:$0xff] %vm2307, %v2282
      %2325 = vst.msk [vmem:[%s170 + $0x88] sm:$0xff] %vm2307, %v2283
      %2326 = vst.msk [vmem:[%s170 + $0x90] sm:$0xff] %vm2307, %v2284
      %2327 = vst.msk [vmem:[%s170 + $0x98] sm:$0xff] %vm2307, %v2285
      %2328 = vst.msk [vmem:[%s170 + $0xa0] sm:$0xff] %vm2307, %v2286
      %2329 = vst.msk [vmem:[%s170 + $0xa8] sm:$0xff] %vm2307, %v2287
      %2330 = vst.msk [vmem:[%s170 + $0xb0] sm:$0xff] %vm2307, %v2288
      %2331 = vst.msk [vmem:[%s170 + $0xb8] sm:$0xff] %vm2307, %v2289
      %2332 = vst.msk [vmem:[%s170 + $0xc0] sm:$0xff] %vm2307, %v2290
      %2333 = vst.msk [vmem:[%s170 + $0xc8] sm:$0xff] %vm2307, %v2291
      %2334 = vst.msk [vmem:[%s170 + $0xd0] sm:$0xff] %vm2307, %v2292
      %2335 = vst.msk [vmem:[%s170 + $0xd8] sm:$0xff] %vm2307, %v2293
      %2336 = vst.msk [vmem:[%s170 + $0xe0] sm:$0xff] %vm2307, %v2294
      %2337 = vst.msk [vmem:[%s170 + $0xe8] sm:$0xff] %vm2307, %v2295
      %2338 = vst.msk [vmem:[%s170 + $0xf0] sm:$0xff] %vm2307, %v2296
      %2339 = vst.msk [vmem:[%s170 + $0xf8] sm:$0xff] %vm2307, %v2297
      %2340 = vst.msk [vmem:[%s170 + $0x100] sm:$0xff] %vm2307, %v2298
      %2341 = vst.msk [vmem:[%s170 + $0x108] sm:$0xff] %vm2307, %v2299
      %2342 = vst.msk [vmem:[%s170 + $0x110] sm:$0xff] %vm2307, %v2300
      %2343 = vst.msk [vmem:[%s170 + $0x118] sm:$0xff] %vm2307, %v2301
      %2344 = vst.msk [vmem:[%s170 + $0x120] sm:$0xff] %vm2307, %v2302
      %2345 = vst.msk [vmem:[%s170 + $0x128] sm:$0xff] %vm2307, %v2303
      %2346 = vst.msk [vmem:[%s170 + $0x130] sm:$0xff] %vm2307, %v2304
      %2347 = vst.msk [vmem:[%s170 + $0x138] sm:$0xff] %vm2307, %v2305
      %vm2348 = vcmask 257024
      %2349 = vst.msk [vmem:[%s170 + $0x140] sm:$0xf] %vm2348, %v2306
      %p2350 = scmp.lt.s32.totalorder %s14, 1
      %s2351 = scalar_select %p2350, %s14, 1
      %s2352 = smul.addr %s2351, 41
      %s2353 = smul.addr %s2352, 8
      %s2354 = scalar_lea.vmem %s3, %s2353
      // Predicated region
      $region33: #{net_forward.5} parent=31 // pred_check
        %p2355 = pneg %p100
      $region34: #{net_forward.5} parent=31 // pred_check_branch
        %2357 = sbr.rel (%p2355) target = $region36
      $region35: #{net_forward.5} parent=31 // pred_region
        _
      $region36: #{net_forward.5} parent=31 // pred_fallthru
        _
    $region32: #{net_forward.5} parent=5 // pred_fallthru
      _
    %p2358 = scmp.le.s32.totalorder 2, %s9
    // Predicated region
    $region37: #{net_forward.5} parent=5 // pred_check
      %p2359 = pneg %p2358
    $region38: #{net_forward.5} parent=5 // pred_check_branch
      %2361 = sbr.rel (%p2359) target = $region40
    $region39: #{net_forward.5} parent=5 // pred_region
      %s2362 = ssub.s32 %s9, 2
      // Predicated region
      $region41: #{net_forward.5} parent=39 // pred_check
        %p2363 = pneg %p106
      $region42: #{net_forward.5} parent=39 // pred_check_branch
        %2365 = sbr.rel (%p2363) target = $region44
      $region43: #{net_forward.5} parent=39 // pred_region
        %p2366 = scmp.lt.s32.totalorder %s15, 1
        %s2367 = scalar_select %p2366, %s15, 1
        %s2368 = smul.addr %s2367, 41
        %s2369 = smul.addr %s2368, 8
        %s2370 = scalar_lea.vmem %s3, %s2369
      $region44: #{net_forward.5} parent=39 // pred_fallthru
        _
    $region40: #{net_forward.5} parent=5 // pred_fallthru
      _
  $region6: #{net_forward.5} parent=0 // loop_footer
    %s13 = sadd.s32 1, %s9
  $region7: #{net_forward.5} parent=0 // loop_footer_branch
    %8 = sbr.rel target = $region3
  $region8: #{net_forward.5} parent=0 // loop_exit
    _

// kernel: net_forward.6
$region0: #{net_forward.6}
  #allocation0 [shape = 'u32[]', space=smem, size = 0x4, offset = 0x4, fixed_abs, tag = 'smem constant byte address 0x4 - core index']
  #allocation1 [shape = 'u32[144,128]{1,0:T(1,128)}', space=vmem, size = 0x12000, scoped, tag = 'internal scratch']
  %s0 = inlined_call_operand.vmem [shape: bf16[2,4,9,288], index: 0, kind: input, shape index: {}]
  %s1 = inlined_call_operand.vmem [shape: bf16[288,64], index: 1, kind: input, shape index: {}]
  %s2 = inlined_call_operand.vmem [shape: f32[1,64], index: 2, kind: input, shape index: {}]
  %s3 = inlined_call_operand.vmem [shape: f32[2,9,64], index: 3, kind: output, shape index: {}]
  %s4 = sld [smem:[#allocation0]]
  $region45: #{net_forward.6} parent=0
    _
  %s6 = ssub.s32 1, %s4
  %s7 = scalar_select 0, %s6, %s4
  loop: start=0, step=1, limit=4
  $region2: #{net_forward.6} parent=0 // loop_pre_header
    _
  $region3: #{net_forward.6} parent=0 // loop_header
    %s9 = sphi 0, %s13
    %p10 = scmp.ge.s32.totalorder %s9, 4
    %s19 = sphi 0, %s21
    %s22 = sphi 0, %s19
    %s23 = sphi 0, %s22
    %s39 = sphi 0, %s23
    %s43 = sphi 0, %s43
    %s45 = sphi 0, %s43
    %s46 = sphi 0, %s45
    %s60 = sphi 0, %s46
    %s64 = sphi 0, %s64
    %s66 = sphi 0, %s64
    %s67 = sphi 0, %s66
    %s81 = sphi 0, %s67
    %s87 = sphi 0, %s89
    %s90 = sphi 0, %s87
    %s91 = sphi 0, %s90
    %s107 = sphi 0, %s91
  $region4: #{net_forward.6} parent=0 // loop_header_branch
    %12 = sbr.rel (%p10) target = $region8
  $region5: #{net_forward.6} parent=0 // loop_body
    %s14 = ssub.s32 %s9, 1
    %s15 = ssub.s32 %s9, 2
    %s16 = sadd.s32 %s9, 1
    %s17 = ssub.s32 %s9, %s16
    %p18 = scmp.eq.s32.totalorder %s17, 0
    %s20 = sadd.s32 %s19, 1
    %s21 = scalar_select %p18, %s19, %s20
    %p24 = pneg %p18
    %p25 = scmp.eq.s32.totalorder %s9, 1
    %p26 = por %p24, %p25
    %p27 = scmp.ne.s32.totalorder %s19, %s22
    %p28 = scmp.eq.s32.totalorder %s9, 0
    %p29 = por %p27, %p28
    %p30 = scmp.ne.s32.totalorder %s19, %s22
    %p31 = scmp.eq.s32.totalorder %s14, 1
    %p32 = por %p30, %p31
    %p33 = scmp.ne.s32.totalorder %s22, %s23
    %p34 = scmp.eq.s32.totalorder %s14, 0
    %p35 = por %p33, %p34
    %p36 = scmp.ne.s32.totalorder %s22, %s23
    %p37 = scmp.eq.s32.totalorder %s15, 1
    %p38 = por %p36, %p37
    %p40 = scmp.ne.s32.totalorder %s23, %s39
    %p41 = scmp.eq.s32.totalorder %s15, 0
    %p42 = por %p40, %p41
    %s44 = sadd.s32 %s43, 1
    %p47 = scmp.eq.s32.totalorder %s9, 1
    %p48 = scmp.ne.s32.totalorder %s43, %s45
    %p49 = scmp.eq.s32.totalorder %s9, 0
    %p50 = por %p48, %p49
    %p51 = scmp.ne.s32.totalorder %s43, %s45
    %p52 = scmp.eq.s32.totalorder %s14, 1
    %p53 = por %p51, %p52
    %p54 = scmp.ne.s32.totalorder %s45, %s46
    %p55 = scmp.eq.s32.totalorder %s14, 0
    %p56 = por %p54, %p55
    %p57 = scmp.ne.s32.totalorder %s45, %s46
    %p58 = scmp.eq.s32.totalorder %s15, 1
    %p59 = por %p57, %p58
    %p61 = scmp.ne.s32.totalorder %s46, %s60
    %p62 = scmp.eq.s32.totalorder %s15, 0
    %p63 = por %p61, %p62
    %s65 = sadd.s32 %s64, 1
    %p68 = scmp.eq.s32.totalorder %s9, 1
    %p69 = scmp.ne.s32.totalorder %s64, %s66
    %p70 = scmp.eq.s32.totalorder %s9, 0
    %p71 = por %p69, %p70
    %p72 = scmp.ne.s32.totalorder %s64, %s66
    %p73 = scmp.eq.s32.totalorder %s14, 1
    %p74 = por %p72, %p73
    %p75 = scmp.ne.s32.totalorder %s66, %s67
    %p76 = scmp.eq.s32.totalorder %s14, 0
    %p77 = por %p75, %p76
    %p78 = scmp.ne.s32.totalorder %s66, %s67
    %p79 = scmp.eq.s32.totalorder %s15, 1
    %p80 = por %p78, %p79
    %p82 = scmp.ne.s32.totalorder %s67, %s81
    %p83 = scmp.eq.s32.totalorder %s15, 0
    %p84 = por %p82, %p83
    %s85 = ssub.s32 %s9, %s16
    %p86 = scmp.eq.s32.totalorder %s85, 0
    %s88 = sadd.s32 %s87, 1
    %s89 = scalar_select %p86, %s87, %s88
    %p92 = pneg %p86
    %p93 = scmp.eq.s32.totalorder %s9, 1
    %p94 = por %p92, %p93
    %p95 = scmp.ne.s32.totalorder %s87, %s90
    %p96 = scmp.eq.s32.totalorder %s9, 0
    %p97 = por %p95, %p96
    %p98 = scmp.ne.s32.totalorder %s87, %s90
    %p99 = scmp.eq.s32.totalorder %s14, 1
    %p100 = por %p98, %p99
    %p101 = scmp.ne.s32.totalorder %s90, %s91
    %p102 = scmp.eq.s32.totalorder %s14, 0
    %p103 = por %p101, %p102
    %p104 = scmp.ne.s32.totalorder %s90, %s91
    %p105 = scmp.eq.s32.totalorder %s15, 1
    %p106 = por %p104, %p105
    %p108 = scmp.ne.s32.totalorder %s91, %s107
    %p109 = scmp.eq.s32.totalorder %s15, 0
    %p110 = por %p108, %p109
    %p111 = scmp.le.s32.totalorder 1, %s9
    %p112 = scmp.lt.s32.totalorder %s9, 3
    %p113 = pnand %p111, %p112
    %p114 = pneg %p113
    // Predicated region
    $region9: #{net_forward.6} parent=5 // pred_check
      _
    $region10: #{net_forward.6} parent=5 // pred_check_branch
      %116 = sbr.rel (%p113) target = $region12
    $region11: #{net_forward.6} parent=5 // pred_region
      %s117 = ssub.s32 %s9, 1
      // Predicated region
      $region13: #{net_forward.6} parent=11 // pred_check
        %p118 = pneg %p56
      $region14: #{net_forward.6} parent=11 // pred_check_branch
        %120 = sbr.rel (%p118) target = $region16
      $region15: #{net_forward.6} parent=11 // pred_region
        _
      $region16: #{net_forward.6} parent=11 // pred_fallthru
        _
      // Predicated region
      $region17: #{net_forward.6} parent=11 // pred_check
        %p121 = pneg %p77
      $region18: #{net_forward.6} parent=11 // pred_check_branch
        %123 = sbr.rel (%p121) target = $region20
      $region19: #{net_forward.6} parent=11 // pred_region
        _
      $region20: #{net_forward.6} parent=11 // pred_fallthru
        _
    $region12: #{net_forward.6} parent=5 // pred_fallthru
      _
    %p124 = scmp.lt.s32.totalorder %s9, 2
    // Predicated region
    $region21: #{net_forward.6} parent=5 // pred_check
      %p125 = pneg %p124
    $region22: #{net_forward.6} parent=5 // pred_check_branch
      %127 = sbr.rel (%p125) target = $region24
    $region23: #{net_forward.6} parent=5 // pred_region
      // Predicated region
      $region25: #{net_forward.6} parent=23 // pred_check
        %p128 = pneg %p29
      $region26: #{net_forward.6} parent=23 // pred_check_branch
        %130 = sbr.rel (%p128) target = $region28
      $region27: #{net_forward.6} parent=23 // pred_region
        %p131 = scmp.lt.s32.totalorder %s9, 1
        %s132 = scalar_select %p131, %s9, 1
        %s133 = smul.addr %s132, 24
        %s134 = smul.addr %s133, 4
        %s135 = scalar_lea.vmem %s0, %s134
      $region28: #{net_forward.6} parent=23 // pred_fallthru
        _
    $region24: #{net_forward.6} parent=5 // pred_fallthru
      _
    %p136 = scmp.le.s32.totalorder 1, %s9
    %p137 = scmp.lt.s32.totalorder %s9, 3
    %p138 = pnand %p136, %p137
    %p139 = pneg %p138
    // Predicated region
    $region29: #{net_forward.6} parent=5 // pred_check
      _
    $region30: #{net_forward.6} parent=5 // pred_check_branch
      %141 = sbr.rel (%p138) target = $region32
    $region31: #{net_forward.6} parent=5 // pred_region
      %s142 = ssub.s32 %s9, 1
      %p143 = scmp.lt.s32.totalorder %s14, 1
      %s144 = scalar_select %p143, %s14, 1
      %s145 = smul.addr %s144, 24
      %s146 = smul.addr %s145, 4
      %s147 = scalar_lea.vmem %s0, %s146
      %p148 = pneg %p35
      %p149 = pneg %p32
      %p150 = pneg %p56
      %p151 = pneg %p53
      %p152 = pneg %p77
      %p153 = pneg %p74
      %p154 = pneg %p103
      %p155 = pneg %p100
      %p156 = scmp.lt.s32.totalorder %s14, 1
      %s157 = scalar_select %p156, %s14, 1
      %s158 = smul.addr %s157, 2
      %s159 = smul.addr %s158, 8
      %s160 = scalar_lea.vmem %s3, %s159
      %p161 = scmp.lt.s32.totalorder %s14, 1
      %s162 = scalar_select %p161, %s14, 1
      %s163 = smul.addr %s162, 24
      %s164 = smul.addr %s163, 4
      %s165 = scalar_lea.vmem %s0, %s164
      %p166 = scmp.lt.s32.totalorder %s14, 1
      %s167 = scalar_select %p166, %s14, 1
      %s168 = smul.addr %s167, 2
      %s169 = smul.addr %s168, 8
      %s170 = scalar_lea.vmem %s3, %s169
      %v172 = vld [vmem:[%s1] sm:$0xf]
      %v173 = vld [vmem:[%s1 + $0x4] sm:$0xf]
      %v174 = vld [vmem:[%s1 + $0x8] sm:$0xf]
      %v175 = vld [vmem:[%s1 + $0xc] sm:$0xf]
      %v176 = vld [vmem:[%s1 + $0x10] sm:$0xf]
      %v177 = vld [vmem:[%s1 + $0x14] sm:$0xf]
      %v178 = vld [vmem:[%s1 + $0x18] sm:$0xf]
      %v179 = vld [vmem:[%s1 + $0x1c] sm:$0xf]
      %v180 = vld [vmem:[%s1 + $0x20] sm:$0xf]
      %v181 = vld [vmem:[%s1 + $0x24] sm:$0xf]
      %v182 = vld [vmem:[%s1 + $0x28] sm:$0xf]
      %v183 = vld [vmem:[%s1 + $0x2c] sm:$0xf]
      %v184 = vld [vmem:[%s1 + $0x30] sm:$0xf]
      %v185 = vld [vmem:[%s1 + $0x34] sm:$0xf]
      %v186 = vld [vmem:[%s1 + $0x38] sm:$0xf]
      %v187 = vld [vmem:[%s1 + $0x3c] sm:$0xf]
      %v188 = vld [vmem:[%s1 + $0x40] sm:$0xf]
      %v189 = vld [vmem:[%s1 + $0x44] sm:$0xf]
      %v190 = vld [vmem:[%s1 + $0x48] sm:$0xf]
      %v191 = vld [vmem:[%s1 + $0x4c] sm:$0xf]
      %v192 = vld [vmem:[%s1 + $0x50] sm:$0xf]
      %v193 = vld [vmem:[%s1 + $0x54] sm:$0xf]
      %v194 = vld [vmem:[%s1 + $0x58] sm:$0xf]
      %v195 = vld [vmem:[%s1 + $0x5c] sm:$0xf]
      %v196 = vld [vmem:[%s1 + $0x60] sm:$0xf]
      %v197 = vld [vmem:[%s1 + $0x64] sm:$0xf]
      %v198 = vld [vmem:[%s1 + $0x68] sm:$0xf]
      %v199 = vld [vmem:[%s1 + $0x6c] sm:$0xf]
      %v200 = vld [vmem:[%s1 + $0x70] sm:$0xf]
      %v201 = vld [vmem:[%s1 + $0x74] sm:$0xf]
      %v202 = vld [vmem:[%s1 + $0x78] sm:$0xf]
      %v203 = vld [vmem:[%s1 + $0x7c] sm:$0xf]
      %v204 = vld [vmem:[%s1 + $0x80] sm:$0xf]
      %v205 = vld [vmem:[%s1 + $0x84] sm:$0xf]
      %v206 = vld [vmem:[%s1 + $0x88] sm:$0xf]
      %v207 = vld [vmem:[%s1 + $0x8c] sm:$0xf]
      %v208 = vld [vmem:[%s165] sm:$0xff]
      %v209 = vld [vmem:[%s165 + $0x8] sm:$0xf]
      %v210 = vld [vmem:[%s165 + $0xc] sm:$0x11]
      %v211 = vld [vmem:[%s165 + $0x14] sm:$0x1]
      %v216 = vunpack.c.l.b16 %v208
      %v217 = vunpack.c.h.b16 %v208
      %v218 = vunpack.c.l.b16 %v209
      %v219 = vunpack.c.l.b16 %v210
      %v220 = vunpack.c.h.b16 %v210
      %v221 = vunpack.c.l.b16 %v211
      %v222 = vpack.c.b16 %v219, %v216
      %v223 = vpack.c.b16 %v220, %v217
      %v224 = vpack.c.b16 %v221, %v218
      %v263 = vunpack.c.l.b16 %v172
      %v264 = vunpack.c.l.b16 %v173
      %v265 = vunpack.c.l.b16 %v174
      %v266 = vunpack.c.l.b16 %v175
      %v267 = vunpack.c.l.b16 %v176
      %v268 = vunpack.c.l.b16 %v177
      %v269 = vunpack.c.l.b16 %v178
      %v270 = vunpack.c.l.b16 %v179
      %v271 = vunpack.c.l.b16 %v180
      %v272 = vunpack.c.l.b16 %v181
      %v273 = vunpack.c.l.b16 %v182
      %v274 = vunpack.c.l.b16 %v183
      %v275 = vunpack.c.l.b16 %v184
      %v276 = vunpack.c.l.b16 %v185
      %v277 = vunpack.c.l.b16 %v186
      %v278 = vunpack.c.l.b16 %v187
      %v279 = vunpack.c.l.b16 %v188
      %v280 = vunpack.c.l.b16 %v189
      %v281 = vunpack.c.l.b16 %v190
      %v282 = vunpack.c.l.b16 %v191
      %v283 = vunpack.c.l.b16 %v192
      %v284 = vunpack.c.l.b16 %v193
      %v285 = vunpack.c.l.b16 %v194
      %v286 = vunpack.c.l.b16 %v195
      %v287 = vunpack.c.l.b16 %v196
      %v288 = vunpack.c.l.b16 %v197
      %v289 = vunpack.c.l.b16 %v198
      %v290 = vunpack.c.l.b16 %v199
      %v291 = vunpack.c.l.b16 %v200
      %v292 = vunpack.c.l.b16 %v201
      %v293 = vunpack.c.l.b16 %v202
      %v294 = vunpack.c.l.b16 %v203
      %v295 = vunpack.c.l.b16 %v204
      %v296 = vunpack.c.l.b16 %v205
      %v297 = vunpack.c.l.b16 %v206
      %v298 = vunpack.c.l.b16 %v207
      %v299 = vpack.c.b16 %v264, %v263
      %v300 = vpack.c.b16 %v266, %v265
      %v301 = vpack.c.b16 %v268, %v267
      %v302 = vpack.c.b16 %v270, %v269
      %v303 = vpack.c.b16 %v272, %v271
      %v304 = vpack.c.b16 %v274, %v273
      %v305 = vpack.c.b16 %v276, %v275
      %v306 = vpack.c.b16 %v278, %v277
      %v307 = vpack.c.b16 %v280, %v279
      %v308 = vpack.c.b16 %v282, %v281
      %v309 = vpack.c.b16 %v284, %v283
      %v310 = vpack.c.b16 %v286, %v285
      %v311 = vpack.c.b16 %v288, %v287
      %v312 = vpack.c.b16 %v290, %v289
      %v313 = vpack.c.b16 %v292, %v291
      %v314 = vpack.c.b16 %v294, %v293
      %v315 = vpack.c.b16 %v296, %v295
      %v316 = vpack.c.b16 %v298, %v297
      %vm335 = vcmask 261120
      %v337 = vsel %vm335, %v224, 0
      %339 = vmatprep.subr.bf16.mxu0 0
      %340 = vmatpush1.bf16.msra.mxu0 %v299
      %341 = vmatprep.subr.bf16.mxu0 0
      %342 = vmatpush1.bf16.msra.mxu0 %v300
      %343 = vmatprep.subr.bf16.mxu0 0
      %344 = vmatpush1.bf16.msra.mxu0 %v301
      %345 = vmatprep.subr.bf16.mxu0 0
      %346 = vmatpush1.bf16.msra.mxu0 %v302
      %347 = vmatprep.subr.bf16.mxu0 0
      %348 = vmatpush1.bf16.msra.mxu0 %v303
      %349 = vmatprep.subr.bf16.mxu0 0
      %350 = vmatpush1.bf16.msra.mxu0 %v304
      %351 = vmatprep.subr.bf16.mxu0 0
      %352 = vmatpush1.bf16.msra.mxu0 %v305
      %353 = vmatprep.subr.bf16.mxu0 0
      %354 = vmatpush1.bf16.msra.mxu0 %v306
      %355 = vmatprep.subr.bf16.mxu0 0
      %356 = vmatpush1.bf16.msra.mxu0 %v307
      %357 = vmatprep.subr.bf16.mxu0 0
      %358 = vmatpush1.bf16.msra.mxu0 %v308
      %359 = vmatprep.subr.bf16.mxu0 0
      %360 = vmatpush1.bf16.msra.mxu0 %v309
      %361 = vmatprep.subr.bf16.mxu0 0
      %362 = vmatpush1.bf16.msra.mxu0 %v310
      %363 = vmatprep.subr.bf16.mxu0 0
      %364 = vmatpush1.bf16.msra.mxu0 %v311
      %365 = vmatprep.subr.bf16.mxu0 0
      %366 = vmatpush1.bf16.msra.mxu0 %v312
      %367 = vmatprep.subr.bf16.mxu0 0
      %368 = vmatpush1.bf16.msra.mxu0 %v313
      %369 = vmatprep.subr.bf16.mxu0 0
      %370 = vmatpush1.bf16.msra.mxu0 %v314
      %371 = vmatprep.mubr.bf16.mxu0 %v223
      %372 = vmatmul.mubr.bf16.gmra.mrb[0].mxu0 %v222
      %v373 = vpop.f32.mrb[0].mxu0
      %v374 = vadd.f32 0.0, %v373
      %v375 = vpop.f32.mrb[0].mxu0
      %v376 = vpop.f32.mrb[0].mxu0
      %v377 = vadd.f32 0.0, %v376
      %v378 = vpop.f32.mrb[0].mxu0
      %379 = vdwg.mxu0
      %380 = vmatprep.subr.bf16.mxu0 0
      %381 = vmatpush1.bf16.msra.mxu0 %v315
      %382 = vmatprep.subr.bf16.mxu0 0
      %383 = vmatpush1.bf16.msra.mxu0 %v316
      %384 = vmatprep.subr.bf16.mxu0 0
      %385 = vmatpush1.bf16.msra.mxu0 0
      %386 = vmatprep.subr.bf16.mxu0 0
      %387 = vmatpush1.bf16.msra.mxu0 0
      %388 = vmatprep.subr.bf16.mxu0 0
      %389 = vmatpush1.bf16.msra.mxu0 0
      %390 = vmatprep.subr.bf16.mxu0 0
      %391 = vmatpush1.bf16.msra.mxu0 0
      %392 = vmatprep.subr.bf16.mxu0 0
      %393 = vmatpush1.bf16.msra.mxu0 0
      %394 = vmatprep.subr.bf16.mxu0 0
      %395 = vmatpush1.bf16.msra.mxu0 0
      %396 = vmatprep.subr.bf16.mxu0 0
      %397 = vmatpush1.bf16.msra.mxu0 0
      %398 = vmatprep.subr.bf16.mxu0 0
      %399 = vmatpush1.bf16.msra.mxu0 0
      %400 = vmatprep.subr.bf16.mxu0 0
      %401 = vmatpush1.bf16.msra.mxu0 0
      %402 = vmatprep.subr.bf16.mxu0 0
      %403 = vmatpush1.bf16.msra.mxu0 0
      %404 = vmatprep.subr.bf16.mxu0 0
      %405 = vmatpush1.bf16.msra.mxu0 0
      %406 = vmatprep.subr.bf16.mxu0 0
      %407 = vmatpush1.bf16.msra.mxu0 0
      %408 = vmatprep.subr.bf16.mxu0 0
      %409 = vmatpush1.bf16.msra.mxu0 0
      %410 = vmatprep.subr.bf16.mxu0 0
      %411 = vmatpush1.bf16.msra.mxu0 0
      %412 = vmatprep.mubr.bf16.mxu0 0
      %413 = vmatmul.mubr.bf16.gmra.mrb[0].mxu0 %v337
      %v414 = vpop.f32.mrb[0].mxu0
      %v415 = vadd.f32 %v374, %v414
      %v416 = vpop.f32.mrb[0].mxu0
      %v417 = vpop.f32.mrb[0].mxu0
      %v418 = vadd.f32 %v377, %v417
      %v419 = vpop.f32.mrb[0].mxu0
      %420 = vdwg.mxu0
      %s421 = scalar_lea.vmem %s165, 24
      %v422 = vld [vmem:[%s421] sm:$0xff]
      %v423 = vld [vmem:[%s421 + $0x8] sm:$0xf]
      %v424 = vld [vmem:[%s421 + $0xc] sm:$0x11]
      %v425 = vld [vmem:[%s421 + $0x14] sm:$0x1]
      %v430 = vunpack.c.l.b16 %v422
      %v431 = vunpack.c.h.b16 %v422
      %v432 = vunpack.c.l.b16 %v423
      %v433 = vunpack.c.l.b16 %v424
      %v434 = vunpack.c.h.b16 %v424
      %v435 = vunpack.c.l.b16 %v425
      %v436 = vpack.c.b16 %v433, %v430
      %v437 = vpack.c.b16 %v434, %v431
      %v438 = vpack.c.b16 %v435, %v432
      %v442 = vsel %vm335, %v438, 0
      %444 = vmatprep.subr.bf16.mxu0 0
      %445 = vmatpush1.bf16.msra.mxu0 %v299
      %446 = vmatprep.subr.bf16.mxu0 0
      %447 = vmatpush1.bf16.msra.mxu0 %v300
      %448 = vmatprep.subr.bf16.mxu0 0
      %449 = vmatpush1.bf16.msra.mxu0 %v301
      %450 = vmatprep.subr.bf16.mxu0 0
      %451 = vmatpush1.bf16.msra.mxu0 %v302
      %452 = vmatprep.subr.bf16.mxu0 0
      %453 = vmatpush1.bf16.msra.mxu0 %v303
      %454 = vmatprep.subr.bf16.mxu0 0
      %455 = vmatpush1.bf16.msra.mxu0 %v304
      %456 = vmatprep.subr.bf16.mxu0 0
      %457 = vmatpush1.bf16.msra.mxu0 %v305
      %458 = vmatprep.subr.bf16.mxu0 0
      %459 = vmatpush1.bf16.msra.mxu0 %v306
      %460 = vmatprep.subr.bf16.mxu0 0
      %461 = vmatpush1.bf16.msra.mxu0 %v307
      %462 = vmatprep.subr.bf16.mxu0 0
      %463 = vmatpush1.bf16.msra.mxu0 %v308
      %464 = vmatprep.subr.bf16.mxu0 0
      %465 = vmatpush1.bf16.msra.mxu0 %v309
      %466 = vmatprep.subr.bf16.mxu0 0
      %467 = vmatpush1.bf16.msra.mxu0 %v310
      %468 = vmatprep.subr.bf16.mxu0 0
      %469 = vmatpush1.bf16.msra.mxu0 %v311
      %470 = vmatprep.subr.bf16.mxu0 0
      %471 = vmatpush1.bf16.msra.mxu0 %v312
      %472 = vmatprep.subr.bf16.mxu0 0
      %473 = vmatpush1.bf16.msra.mxu0 %v313
      %474 = vmatprep.subr.bf16.mxu0 0
      %475 = vmatpush1.bf16.msra.mxu0 %v314
      %476 = vmatprep.mubr.bf16.mxu0 %v437
      %477 = vmatmul.mubr.bf16.gmra.mrb[0].mxu0 %v436
      %v478 = vpop.f32.mrb[0].mxu0
      %v479 = vadd.f32 0.0, %v478
      %v480 = vpop.f32.mrb[0].mxu0
      %v481 = vpop.f32.mrb[0].mxu0
      %v482 = vadd.f32 0.0, %v481
      %v483 = vpop.f32.mrb[0].mxu0
      %484 = vdwg.mxu0
      %485 = vmatprep.subr.bf16.mxu0 0
      %486 = vmatpush1.bf16.msra.mxu0 %v315
      %487 = vmatprep.subr.bf16.mxu0 0
      %488 = vmatpush1.bf16.msra.mxu0 %v316
      %489 = vmatprep.subr.bf16.mxu0 0
      %490 = vmatpush1.bf16.msra.mxu0 0
      %491 = vmatprep.subr.bf16.mxu0 0
      %492 = vmatpush1.bf16.msra.mxu0 0
      %493 = vmatprep.subr.bf16.mxu0 0
      %494 = vmatpush1.bf16.msra.mxu0 0
      %495 = vmatprep.subr.bf16.mxu0 0
      %496 = vmatpush1.bf16.msra.mxu0 0
      %497 = vmatprep.subr.bf16.mxu0 0
      %498 = vmatpush1.bf16.msra.mxu0 0
      %499 = vmatprep.subr.bf16.mxu0 0
      %500 = vmatpush1.bf16.msra.mxu0 0
      %501 = vmatprep.subr.bf16.mxu0 0
      %502 = vmatpush1.bf16.msra.mxu0 0
      %503 = vmatprep.subr.bf16.mxu0 0
      %504 = vmatpush1.bf16.msra.mxu0 0
      %505 = vmatprep.subr.bf16.mxu0 0
      %506 = vmatpush1.bf16.msra.mxu0 0
      %507 = vmatprep.subr.bf16.mxu0 0
      %508 = vmatpush1.bf16.msra.mxu0 0
      %509 = vmatprep.subr.bf16.mxu0 0
      %510 = vmatpush1.bf16.msra.mxu0 0
      %511 = vmatprep.subr.bf16.mxu0 0
      %512 = vmatpush1.bf16.msra.mxu0 0
      %513 = vmatprep.subr.bf16.mxu0 0
      %514 = vmatpush1.bf16.msra.mxu0 0
      %515 = vmatprep.subr.bf16.mxu0 0
      %516 = vmatpush1.bf16.msra.mxu0 0
      %517 = vmatprep.mubr.bf16.mxu0 0
      %518 = vmatmul.mubr.bf16.gmra.mrb[0].mxu0 %v442
      %v519 = vpop.f32.mrb[0].mxu0
      %v520 = vadd.f32 %v479, %v519
      %v521 = vpop.f32.mrb[0].mxu0
      %v522 = vpop.f32.mrb[0].mxu0
      %v523 = vadd.f32 %v482, %v522
      %v524 = vpop.f32.mrb[0].mxu0
      %525 = vdwg.mxu0
      %v526 = vmax.f32 %v415, %v520
      %v527 = vmax.f32 %v418, %v523
      %s528 = scalar_lea.vmem %s165, 48
      %v529 = vld [vmem:[%s528] sm:$0xff]
      %v530 = vld [vmem:[%s528 + $0x8] sm:$0xf]
      %v531 = vld [vmem:[%s528 + $0xc] sm:$0x11]
      %v532 = vld [vmem:[%s528 + $0x14] sm:$0x1]
      %v537 = vunpack.c.l.b16 %v529
      %v538 = vunpack.c.h.b16 %v529
      %v539 = vunpack.c.l.b16 %v530
      %v540 = vunpack.c.l.b16 %v531
      %v541 = vunpack.c.h.b16 %v531
      %v542 = vunpack.c.l.b16 %v532
      %v543 = vpack.c.b16 %v540, %v537
      %v544 = vpack.c.b16 %v541, %v538
      %v545 = vpack.c.b16 %v542, %v539
      %v549 = vsel %vm335, %v545, 0
      %551 = vmatprep.subr.bf16.mxu0 0
      %552 = vmatpush1.bf16.msra.mxu0 %v299
      %553 = vmatprep.subr.bf16.mxu0 0
      %554 = vmatpush1.bf16.msra.mxu0 %v300
      %555 = vmatprep.subr.bf16.mxu0 0
      %556 = vmatpush1.bf16.msra.mxu0 %v301
      %557 = vmatprep.subr.bf16.mxu0 0
      %558 = vmatpush1.bf16.msra.mxu0 %v302
      %559 = vmatprep.subr.bf16.mxu0 0
      %560 = vmatpush1.bf16.msra.mxu0 %v303
      %561 = vmatprep.subr.bf16.mxu0 0
      %562 = vmatpush1.bf16.msra.mxu0 %v304
      %563 = vmatprep.subr.bf16.mxu0 0
      %564 = vmatpush1.bf16.msra.mxu0 %v305
      %565 = vmatprep.subr.bf16.mxu0 0
      %566 = vmatpush1.bf16.msra.mxu0 %v306
      %567 = vmatprep.subr.bf16.mxu0 0
      %568 = vmatpush1.bf16.msra.mxu0 %v307
      %569 = vmatprep.subr.bf16.mxu0 0
      %570 = vmatpush1.bf16.msra.mxu0 %v308
      %571 = vmatprep.subr.bf16.mxu0 0
      %572 = vmatpush1.bf16.msra.mxu0 %v309
      %573 = vmatprep.subr.bf16.mxu0 0
      %574 = vmatpush1.bf16.msra.mxu0 %v310
      %575 = vmatprep.subr.bf16.mxu0 0
      %576 = vmatpush1.bf16.msra.mxu0 %v311
      %577 = vmatprep.subr.bf16.mxu0 0
      %578 = vmatpush1.bf16.msra.mxu0 %v312
      %579 = vmatprep.subr.bf16.mxu0 0
      %580 = vmatpush1.bf16.msra.mxu0 %v313
      %581 = vmatprep.subr.bf16.mxu0 0
      %582 = vmatpush1.bf16.msra.mxu0 %v314
      %583 = vmatprep.mubr.bf16.mxu0 %v544
      %584 = vmatmul.mubr.bf16.gmra.mrb[0].mxu0 %v543
      %v585 = vpop.f32.mrb[0].mxu0
      %v586 = vadd.f32 0.0, %v585
      %v587 = vpop.f32.mrb[0].mxu0
      %v588 = vpop.f32.mrb[0].mxu0
      %v589 = vadd.f32 0.0, %v588
      %v590 = vpop.f32.mrb[0].mxu0
      %591 = vdwg.mxu0
      %592 = vmatprep.subr.bf16.mxu0 0
      %593 = vmatpush1.bf16.msra.mxu0 %v315
      %594 = vmatprep.subr.bf16.mxu0 0
      %595 = vmatpush1.bf16.msra.mxu0 %v316
      %596 = vmatprep.subr.bf16.mxu0 0
      %597 = vmatpush1.bf16.msra.mxu0 0
      %598 = vmatprep.subr.bf16.mxu0 0
      %599 = vmatpush1.bf16.msra.mxu0 0
      %600 = vmatprep.subr.bf16.mxu0 0
      %601 = vmatpush1.bf16.msra.mxu0 0
      %602 = vmatprep.subr.bf16.mxu0 0
      %603 = vmatpush1.bf16.msra.mxu0 0
      %604 = vmatprep.subr.bf16.mxu0 0
      %605 = vmatpush1.bf16.msra.mxu0 0
      %606 = vmatprep.subr.bf16.mxu0 0
      %607 = vmatpush1.bf16.msra.mxu0 0
      %608 = vmatprep.subr.bf16.mxu0 0
      %609 = vmatpush1.bf16.msra.mxu0 0
      %610 = vmatprep.subr.bf16.mxu0 0
      %611 = vmatpush1.bf16.msra.mxu0 0
      %612 = vmatprep.subr.bf16.mxu0 0
      %613 = vmatpush1.bf16.msra.mxu0 0
      %614 = vmatprep.subr.bf16.mxu0 0
      %615 = vmatpush1.bf16.msra.mxu0 0
      %616 = vmatprep.subr.bf16.mxu0 0
      %617 = vmatpush1.bf16.msra.mxu0 0
      %618 = vmatprep.subr.bf16.mxu0 0
      %619 = vmatpush1.bf16.msra.mxu0 0
      %620 = vmatprep.subr.bf16.mxu0 0
      %621 = vmatpush1.bf16.msra.mxu0 0
      %622 = vmatprep.subr.bf16.mxu0 0
      %623 = vmatpush1.bf16.msra.mxu0 0
      %624 = vmatprep.mubr.bf16.mxu0 0
      %625 = vmatmul.mubr.bf16.gmra.mrb[0].mxu0 %v549
      %v626 = vpop.f32.mrb[0].mxu0
      %v627 = vadd.f32 %v586, %v626
      %v628 = vpop.f32.mrb[0].mxu0
      %v629 = vpop.f32.mrb[0].mxu0
      %v630 = vadd.f32 %v589, %v629
      %v631 = vpop.f32.mrb[0].mxu0
      %632 = vdwg.mxu0
      %v633 = vmax.f32 %v526, %v627
      %v634 = vmax.f32 %v527, %v630
      %s635 = scalar_lea.vmem %s165, 72
      %v636 = vld [vmem:[%s635] sm:$0xff]
      %v637 = vld [vmem:[%s635 + $0x8] sm:$0xf]
      %v638 = vld [vmem:[%s635 + $0xc] sm:$0x11]
      %v639 = vld [vmem:[%s635 + $0x14] sm:$0x1]
      %v644 = vunpack.c.l.b16 %v636
      %v645 = vunpack.c.h.b16 %v636
      %v646 = vunpack.c.l.b16 %v637
      %v647 = vunpack.c.l.b16 %v638
      %v648 = vunpack.c.h.b16 %v638
      %v649 = vunpack.c.l.b16 %v639
      %v650 = vpack.c.b16 %v647, %v644
      %v651 = vpack.c.b16 %v648, %v645
      %v652 = vpack.c.b16 %v649, %v646
      %v656 = vsel %vm335, %v652, 0
      %658 = vmatprep.subr.bf16.mxu0 0
      %659 = vmatpush1.bf16.msra.mxu0 %v299
      %660 = vmatprep.subr.bf16.mxu0 0
      %661 = vmatpush1.bf16.msra.mxu0 %v300
      %662 = vmatprep.subr.bf16.mxu0 0
      %663 = vmatpush1.bf16.msra.mxu0 %v301
      %664 = vmatprep.subr.bf16.mxu0 0
      %665 = vmatpush1.bf16.msra.mxu0 %v302
      %666 = vmatprep.subr.bf16.mxu0 0
      %667 = vmatpush1.bf16.msra.mxu0 %v303
      %668 = vmatprep.subr.bf16.mxu0 0
      %669 = vmatpush1.bf16.msra.mxu0 %v304
      %670 = vmatprep.subr.bf16.mxu0 0
      %671 = vmatpush1.bf16.msra.mxu0 %v305
      %672 = vmatprep.subr.bf16.mxu0 0
      %673 = vmatpush1.bf16.msra.mxu0 %v306
      %674 = vmatprep.subr.bf16.mxu0 0
      %675 = vmatpush1.bf16.msra.mxu0 %v307
      %676 = vmatprep.subr.bf16.mxu0 0
      %677 = vmatpush1.bf16.msra.mxu0 %v308
      %678 = vmatprep.subr.bf16.mxu0 0
      %679 = vmatpush1.bf16.msra.mxu0 %v309
      %680 = vmatprep.subr.bf16.mxu0 0
      %681 = vmatpush1.bf16.msra.mxu0 %v310
      %682 = vmatprep.subr.bf16.mxu0 0
      %683 = vmatpush1.bf16.msra.mxu0 %v311
      %684 = vmatprep.subr.bf16.mxu0 0
      %685 = vmatpush1.bf16.msra.mxu0 %v312
      %686 = vmatprep.subr.bf16.mxu0 0
      %687 = vmatpush1.bf16.msra.mxu0 %v313
      %688 = vmatprep.subr.bf16.mxu0 0
      %689 = vmatpush1.bf16.msra.mxu0 %v314
      %690 = vmatprep.mubr.bf16.mxu0 %v651
      %691 = vmatmul.mubr.bf16.gmra.mrb[0].mxu0 %v650
      %v692 = vpop.f32.mrb[0].mxu0
      %v693 = vadd.f32 0.0, %v692
      %v694 = vpop.f32.mrb[0].mxu0
      %v695 = vpop.f32.mrb[0].mxu0
      %v696 = vadd.f32 0.0, %v695
      %v697 = vpop.f32.mrb[0].mxu0
      %698 = vdwg.mxu0
      %699 = vmatprep.subr.bf16.mxu0 0
      %700 = vmatpush1.bf16.msra.mxu0 %v315
      %701 = vmatprep.subr.bf16.mxu0 0
      %702 = vmatpush1.bf16.msra.mxu0 %v316
      %703 = vmatprep.subr.bf16.mxu0 0
      %704 = vmatpush1.bf16.msra.mxu0 0
      %705 = vmatprep.subr.bf16.mxu0 0
      %706 = vmatpush1.bf16.msra.mxu0 0
      %707 = vmatprep.subr.bf16.mxu0 0
      %708 = vmatpush1.bf16.msra.mxu0 0
      %709 = vmatprep.subr.bf16.mxu0 0
      %710 = vmatpush1.bf16.msra.mxu0 0
      %711 = vmatprep.subr.bf16.mxu0 0
      %712 = vmatpush1.bf16.msra.mxu0 0
      %713 = vmatprep.subr.bf16.mxu0 0
      %714 = vmatpush1.bf16.msra.mxu0 0
      %715 = vmatprep.subr.bf16.mxu0 0
      %716 = vmatpush1.bf16.msra.mxu0 0
      %717 = vmatprep.subr.bf16.mxu0 0
      %718 = vmatpush1.bf16.msra.mxu0 0
      %719 = vmatprep.subr.bf16.mxu0 0
      %720 = vmatpush1.bf16.msra.mxu0 0
      %721 = vmatprep.subr.bf16.mxu0 0
      %722 = vmatpush1.bf16.msra.mxu0 0
      %723 = vmatprep.subr.bf16.mxu0 0
      %724 = vmatpush1.bf16.msra.mxu0 0
      %725 = vmatprep.subr.bf16.mxu0 0
      %726 = vmatpush1.bf16.msra.mxu0 0
      %727 = vmatprep.subr.bf16.mxu0 0
      %728 = vmatpush1.bf16.msra.mxu0 0
      %729 = vmatprep.subr.bf16.mxu0 0
      %730 = vmatpush1.bf16.msra.mxu0 0
      %731 = vmatprep.mubr.bf16.mxu0 0
      %732 = vmatmul.mubr.bf16.gmra.mrb[0].mxu0 %v656
      %v733 = vpop.f32.mrb[0].mxu0
      %v734 = vadd.f32 %v693, %v733
      %v735 = vpop.f32.mrb[0].mxu0
      %v736 = vpop.f32.mrb[0].mxu0
      %v737 = vadd.f32 %v696, %v736
      %v738 = vpop.f32.mrb[0].mxu0
      %739 = vdwg.mxu0
      %v740 = vmax.f32 %v633, %v734
      %v741 = vmax.f32 %v634, %v737
      %v742 = vld [vmem:[%s2] sm:$0x1]
      %v744 = vlaneseq
      %v745 = vshrl.u32 %v744, 7
      %v746 = vsub.s32 0, %v745
      %v747 = vrot.slane %v742, %v746
      %v749 = vadd.f32 %v740, %v747
      %v750 = vadd.f32 %v741, %v747
      %v751 = vmax.f32 %v749, 0.0
      %v752 = vmax.f32 %v750, 0.0
      %vm753 = vcmask 523264
      %754 = vst.msk [vmem:[%s170] sm:$0xff] %vm753, %v751
      %vm755 = vcmask 516096
      %756 = vst.msk [vmem:[%s170 + $0x8] sm:$0x1] %vm755, %v752
      %p757 = scmp.lt.s32.totalorder %s14, 1
      %s758 = scalar_select %p757, %s14, 1
      %s759 = smul.addr %s758, 2
      %s760 = smul.addr %s759, 8
      %s761 = scalar_lea.vmem %s3, %s760
      // Predicated region
      $region33: #{net_forward.6} parent=31 // pred_check
        %p762 = pneg %p100
      $region34: #{net_forward.6} parent=31 // pred_check_branch
        %764 = sbr.rel (%p762) target = $region36
      $region35: #{net_forward.6} parent=31 // pred_region
        _
      $region36: #{net_forward.6} parent=31 // pred_fallthru
        _
    $region32: #{net_forward.6} parent=5 // pred_fallthru
      _
    %p765 = scmp.le.s32.totalorder 2, %s9
    // Predicated region
    $region37: #{net_forward.6} parent=5 // pred_check
      %p766 = pneg %p765
    $region38: #{net_forward.6} parent=5 // pred_check_branch
      %768 = sbr.rel (%p766) target = $region40
    $region39: #{net_forward.6} parent=5 // pred_region
      %s769 = ssub.s32 %s9, 2
      // Predicated region
      $region41: #{net_forward.6} parent=39 // pred_check
        %p770 = pneg %p106
      $region42: #{net_forward.6} parent=39 // pred_check_branch
        %772 = sbr.rel (%p770) target = $region44
      $region43: #{net_forward.6} parent=39 // pred_region
        %p773 = scmp.lt.s32.totalorder %s15, 1
        %s774 = scalar_select %p773, %s15, 1
        %s775 = smul.addr %s774, 2
        %s776 = smul.addr %s775, 8
        %s777 = scalar_lea.vmem %s3, %s776
      $region44: #{net_forward.6} parent=39 // pred_fallthru
        _
    $region40: #{net_forward.6} parent=5 // pred_fallthru
      _
  $region6: #{net_forward.6} parent=0 // loop_footer
    %s13 = sadd.s32 1, %s9
  $region7: #{net_forward.6} parent=0 // loop_footer_branch
    %8 = sbr.rel target = $region3
  $region8: #{net_forward.6} parent=0 // loop_exit
    _

// kernel: net_forward.7
$region0: #{net_forward.7}
  #allocation0 [shape = 'u32[]', space=smem, size = 0x4, offset = 0x4, fixed_abs, tag = 'smem constant byte address 0x4 - core index']
  #allocation1 [shape = 'u32[144,128]{1,0:T(1,128)}', space=vmem, size = 0x12000, scoped, tag = 'internal scratch']
  %s0 = inlined_call_operand.vmem [shape: bf16[8,576], index: 0, kind: input, shape index: {}]
  %s1 = inlined_call_operand.vmem [shape: bf16[576,256], index: 1, kind: input, shape index: {}]
  %s2 = inlined_call_operand.vmem [shape: f32[1,256], index: 2, kind: input, shape index: {}]
  %s3 = inlined_call_operand.vmem [shape: bf16[256,128], index: 3, kind: input, shape index: {}]
  %s4 = inlined_call_operand.vmem [shape: f32[1,128], index: 4, kind: input, shape index: {}]
  %s5 = inlined_call_operand.vmem [shape: bf16[128,5], index: 5, kind: input, shape index: {}]
  %s6 = inlined_call_operand.vmem [shape: f32[1,5], index: 6, kind: input, shape index: {}]
  %s7 = inlined_call_operand.vmem [shape: f32[8,5], index: 7, kind: output, shape index: {}]
  %s8 = sld [smem:[#allocation0]]
  $region38: #{net_forward.7} parent=0
    _
  %s10 = ssub.s32 1, %s8
  %s11 = scalar_select 0, %s10, %s8
  // Predicated region
  $region2: #{net_forward.7} parent=0 // pred_check
    _
  $region3: #{net_forward.7} parent=0 // pred_check_branch
    %13 = sbr.rel (0) target = $region5
  $region4: #{net_forward.7} parent=0 // pred_region
    _
  $region5: #{net_forward.7} parent=0 // pred_fallthru
    _
  // Predicated region
  $region6: #{net_forward.7} parent=0 // pred_check
    _
  $region7: #{net_forward.7} parent=0 // pred_check_branch
    %15 = sbr.rel (0) target = $region9
  $region8: #{net_forward.7} parent=0 // pred_region
    _
  $region9: #{net_forward.7} parent=0 // pred_fallthru
    _
  // Predicated region
  $region10: #{net_forward.7} parent=0 // pred_check
    _
  $region11: #{net_forward.7} parent=0 // pred_check_branch
    %17 = sbr.rel (0) target = $region13
  $region12: #{net_forward.7} parent=0 // pred_region
    _
  $region13: #{net_forward.7} parent=0 // pred_fallthru
    _
  // Predicated region
  $region14: #{net_forward.7} parent=0 // pred_check
    _
  $region15: #{net_forward.7} parent=0 // pred_check_branch
    %19 = sbr.rel (0) target = $region17
  $region16: #{net_forward.7} parent=0 // pred_region
    _
  $region17: #{net_forward.7} parent=0 // pred_fallthru
    _
  // Predicated region
  $region18: #{net_forward.7} parent=0 // pred_check
    _
  $region19: #{net_forward.7} parent=0 // pred_check_branch
    %21 = sbr.rel (0) target = $region21
  $region20: #{net_forward.7} parent=0 // pred_region
    _
  $region21: #{net_forward.7} parent=0 // pred_fallthru
    _
  // Predicated region
  $region22: #{net_forward.7} parent=0 // pred_check
    _
  $region23: #{net_forward.7} parent=0 // pred_check_branch
    %23 = sbr.rel (0) target = $region25
  $region24: #{net_forward.7} parent=0 // pred_region
    _
  $region25: #{net_forward.7} parent=0 // pred_fallthru
    _
  // Predicated region
  $region26: #{net_forward.7} parent=0 // pred_check
    _
  $region27: #{net_forward.7} parent=0 // pred_check_branch
    %25 = sbr.rel (0) target = $region29
  $region28: #{net_forward.7} parent=0 // pred_region
    _
  $region29: #{net_forward.7} parent=0 // pred_fallthru
    _
  %v27 = vld [vmem:[%s0] sm:$0xff]
  %v28 = vld [vmem:[%s0 + $0x8] sm:$0xff]
  %v29 = vld [vmem:[%s0 + $0x10] sm:$0xf]
  %v30 = vld [vmem:[%s1] sm:$0xff]
  %v31 = vld [vmem:[%s1 + $0x8] sm:$0xff]
  %v32 = vld [vmem:[%s1 + $0x10] sm:$0xff]
  %v33 = vld [vmem:[%s1 + $0x18] sm:$0xff]
  %v34 = vld [vmem:[%s1 + $0x20] sm:$0xff]
  %v35 = vld [vmem:[%s1 + $0x28] sm:$0xff]
  %v36 = vld [vmem:[%s1 + $0x30] sm:$0xff]
  %v37 = vld [vmem:[%s1 + $0x38] sm:$0xff]
  %v38 = vld [vmem:[%s1 + $0x40] sm:$0xff]
  %v39 = vld [vmem:[%s1 + $0x48] sm:$0xff]
  %v40 = vld [vmem:[%s1 + $0x50] sm:$0xff]
  %v41 = vld [vmem:[%s1 + $0x58] sm:$0xff]
  %v42 = vld [vmem:[%s1 + $0x60] sm:$0xff]
  %v43 = vld [vmem:[%s1 + $0x68] sm:$0xff]
  %v44 = vld [vmem:[%s1 + $0x70] sm:$0xff]
  %v45 = vld [vmem:[%s1 + $0x78] sm:$0xff]
  %v46 = vld [vmem:[%s1 + $0x80] sm:$0xff]
  %v47 = vld [vmem:[%s1 + $0x88] sm:$0xff]
  %v48 = vld [vmem:[%s1 + $0x90] sm:$0xff]
  %v49 = vld [vmem:[%s1 + $0x98] sm:$0xff]
  %v50 = vld [vmem:[%s1 + $0xa0] sm:$0xff]
  %v51 = vld [vmem:[%s1 + $0xa8] sm:$0xff]
  %v52 = vld [vmem:[%s1 + $0xb0] sm:$0xff]
  %v53 = vld [vmem:[%s1 + $0xb8] sm:$0xff]
  %v54 = vld [vmem:[%s1 + $0xc0] sm:$0xff]
  %v55 = vld [vmem:[%s1 + $0xc8] sm:$0xff]
  %v56 = vld [vmem:[%s1 + $0xd0] sm:$0xff]
  %v57 = vld [vmem:[%s1 + $0xd8] sm:$0xff]
  %v58 = vld [vmem:[%s1 + $0xe0] sm:$0xff]
  %v59 = vld [vmem:[%s1 + $0xe8] sm:$0xff]
  %v60 = vld [vmem:[%s1 + $0xf0] sm:$0xff]
  %v61 = vld [vmem:[%s1 + $0xf8] sm:$0xff]
  %v62 = vld [vmem:[%s1 + $0x100] sm:$0xff]
  %v63 = vld [vmem:[%s1 + $0x108] sm:$0xff]
  %v64 = vld [vmem:[%s1 + $0x110] sm:$0xff]
  %v65 = vld [vmem:[%s1 + $0x118] sm:$0xff]
  %v66 = vld [vmem:[%s1 + $0x120] sm:$0xff]
  %v67 = vld [vmem:[%s1 + $0x128] sm:$0xff]
  %v68 = vld [vmem:[%s1 + $0x130] sm:$0xff]
  %v69 = vld [vmem:[%s1 + $0x138] sm:$0xff]
  %v70 = vld [vmem:[%s1 + $0x140] sm:$0xff]
  %v71 = vld [vmem:[%s1 + $0x148] sm:$0xff]
  %v72 = vld [vmem:[%s1 + $0x150] sm:$0xff]
  %v73 = vld [vmem:[%s1 + $0x158] sm:$0xff]
  %v74 = vld [vmem:[%s1 + $0x160] sm:$0xff]
  %v75 = vld [vmem:[%s1 + $0x168] sm:$0xff]
  %v76 = vld [vmem:[%s1 + $0x170] sm:$0xff]
  %v77 = vld [vmem:[%s1 + $0x178] sm:$0xff]
  %v78 = vld [vmem:[%s1 + $0x180] sm:$0xff]
  %v79 = vld [vmem:[%s1 + $0x188] sm:$0xff]
  %v80 = vld [vmem:[%s1 + $0x190] sm:$0xff]
  %v81 = vld [vmem:[%s1 + $0x198] sm:$0xff]
  %v82 = vld [vmem:[%s1 + $0x1a0] sm:$0xff]
  %v83 = vld [vmem:[%s1 + $0x1a8] sm:$0xff]
  %v84 = vld [vmem:[%s1 + $0x1b0] sm:$0xff]
  %v85 = vld [vmem:[%s1 + $0x1b8] sm:$0xff]
  %v86 = vld [vmem:[%s1 + $0x1c0] sm:$0xff]
  %v87 = vld [vmem:[%s1 + $0x1c8] sm:$0xff]
  %v88 = vld [vmem:[%s1 + $0x1d0] sm:$0xff]
  %v89 = vld [vmem:[%s1 + $0x1d8] sm:$0xff]
  %v90 = vld [vmem:[%s1 + $0x1e0] sm:$0xff]
  %v91 = vld [vmem:[%s1 + $0x1e8] sm:$0xff]
  %v92 = vld [vmem:[%s1 + $0x1f0] sm:$0xff]
  %v93 = vld [vmem:[%s1 + $0x1f8] sm:$0xff]
  %v94 = vld [vmem:[%s1 + $0x200] sm:$0xff]
  %v95 = vld [vmem:[%s1 + $0x208] sm:$0xff]
  %v96 = vld [vmem:[%s1 + $0x210] sm:$0xff]
  %v97 = vld [vmem:[%s1 + $0x218] sm:$0xff]
  %v98 = vld [vmem:[%s1 + $0x220] sm:$0xff]
  %v99 = vld [vmem:[%s1 + $0x228] sm:$0xff]
  %v100 = vld [vmem:[%s1 + $0x230] sm:$0xff]
  %v101 = vld [vmem:[%s1 + $0x238] sm:$0xff]
  %v102 = vld [vmem:[%s2] sm:$0x3]
  %v104 = vlaneseq
  %v105 = vshrl.u32 %v104, 7
  %v106 = vsub.s32 0, %v105
  %v107 = vrot.slane %v102, %v106
  %v108 = vlaneseq
  %v109 = vshrl.u32 %v108, 7
  %v110 = vsub.s32 1, %v109
  %v111 = vrot.slane %v102, %v110
  %v117 = vunpack.c.l.b16 %v27
  %v118 = vunpack.c.h.b16 %v27
  %v119 = vunpack.c.l.b16 %v28
  %v120 = vunpack.c.h.b16 %v28
  %v121 = vunpack.c.l.b16 %v29
  %v122 = vpack.c.b16 %v117, %v117
  %v123 = vpack.c.b16 %v118, %v118
  %v124 = vpack.c.b16 %v119, %v119
  %v125 = vpack.c.b16 %v120, %v120
  %v126 = vpack.c.b16 %v121, %v121
  %v203 = vunpack.c.l.b16 %v30
  %v204 = vunpack.c.h.b16 %v30
  %v205 = vunpack.c.l.b16 %v31
  %v206 = vunpack.c.h.b16 %v31
  %v207 = vunpack.c.l.b16 %v32
  %v208 = vunpack.c.h.b16 %v32
  %v209 = vunpack.c.l.b16 %v33
  %v210 = vunpack.c.h.b16 %v33
  %v211 = vunpack.c.l.b16 %v34
  %v212 = vunpack.c.h.b16 %v34
  %v213 = vunpack.c.l.b16 %v35
  %v214 = vunpack.c.h.b16 %v35
  %v215 = vunpack.c.l.b16 %v36
  %v216 = vunpack.c.h.b16 %v36
  %v217 = vunpack.c.l.b16 %v37
  %v218 = vunpack.c.h.b16 %v37
  %v219 = vunpack.c.l.b16 %v38
  %v220 = vunpack.c.h.b16 %v38
  %v221 = vunpack.c.l.b16 %v39
  %v222 = vunpack.c.h.b16 %v39
  %v223 = vunpack.c.l.b16 %v40
  %v224 = vunpack.c.h.b16 %v40
  %v225 = vunpack.c.l.b16 %v41
  %v226 = vunpack.c.h.b16 %v41
  %v227 = vunpack.c.l.b16 %v42
  %v228 = vunpack.c.h.b16 %v42
  %v229 = vunpack.c.l.b16 %v43
  %v230 = vunpack.c.h.b16 %v43
  %v231 = vunpack.c.l.b16 %v44
  %v232 = vunpack.c.h.b16 %v44
  %v233 = vunpack.c.l.b16 %v45
  %v234 = vunpack.c.h.b16 %v45
  %v235 = vunpack.c.l.b16 %v46
  %v236 = vunpack.c.h.b16 %v46
  %v237 = vunpack.c.l.b16 %v47
  %v238 = vunpack.c.h.b16 %v47
  %v239 = vunpack.c.l.b16 %v48
  %v240 = vunpack.c.h.b16 %v48
  %v241 = vunpack.c.l.b16 %v49
  %v242 = vunpack.c.h.b16 %v49
  %v243 = vunpack.c.l.b16 %v50
  %v244 = vunpack.c.h.b16 %v50
  %v245 = vunpack.c.l.b16 %v51
  %v246 = vunpack.c.h.b16 %v51
  %v247 = vunpack.c.l.b16 %v52
  %v248 = vunpack.c.h.b16 %v52
  %v249 = vunpack.c.l.b16 %v53
  %v250 = vunpack.c.h.b16 %v53
  %v251 = vunpack.c.l.b16 %v54
  %v252 = vunpack.c.h.b16 %v54
  %v253 = vunpack.c.l.b16 %v55
  %v254 = vunpack.c.h.b16 %v55
  %v255 = vunpack.c.l.b16 %v56
  %v256 = vunpack.c.h.b16 %v56
  %v257 = vunpack.c.l.b16 %v57
  %v258 = vunpack.c.h.b16 %v57
  %v259 = vunpack.c.l.b16 %v58
  %v260 = vunpack.c.h.b16 %v58
  %v261 = vunpack.c.l.b16 %v59
  %v262 = vunpack.c.h.b16 %v59
  %v263 = vunpack.c.l.b16 %v60
  %v264 = vunpack.c.h.b16 %v60
  %v265 = vunpack.c.l.b16 %v61
  %v266 = vunpack.c.h.b16 %v61
  %v267 = vunpack.c.l.b16 %v62
  %v268 = vunpack.c.h.b16 %v62
  %v269 = vunpack.c.l.b16 %v63
  %v270 = vunpack.c.h.b16 %v63
  %v271 = vunpack.c.l.b16 %v64
  %v272 = vunpack.c.h.b16 %v64
  %v273 = vunpack.c.l.b16 %v65
  %v274 = vunpack.c.h.b16 %v65
  %v275 = vunpack.c.l.b16 %v66
  %v276 = vunpack.c.h.b16 %v66
  %v277 = vunpack.c.l.b16 %v67
  %v278 = vunpack.c.h.b16 %v67
  %v279 = vunpack.c.l.b16 %v68
  %v280 = vunpack.c.h.b16 %v68
  %v281 = vunpack.c.l.b16 %v69
  %v282 = vunpack.c.h.b16 %v69
  %v283 = vunpack.c.l.b16 %v70
  %v284 = vunpack.c.h.b16 %v70
  %v285 = vunpack.c.l.b16 %v71
  %v286 = vunpack.c.h.b16 %v71
  %v287 = vunpack.c.l.b16 %v72
  %v288 = vunpack.c.h.b16 %v72
  %v289 = vunpack.c.l.b16 %v73
  %v290 = vunpack.c.h.b16 %v73
  %v291 = vunpack.c.l.b16 %v74
  %v292 = vunpack.c.h.b16 %v74
  %v293 = vunpack.c.l.b16 %v75
  %v294 = vunpack.c.h.b16 %v75
  %v295 = vunpack.c.l.b16 %v76
  %v296 = vunpack.c.h.b16 %v76
  %v297 = vunpack.c.l.b16 %v77
  %v298 = vunpack.c.h.b16 %v77
  %v299 = vunpack.c.l.b16 %v78
  %v300 = vunpack.c.h.b16 %v78
  %v301 = vunpack.c.l.b16 %v79
  %v302 = vunpack.c.h.b16 %v79
  %v303 = vunpack.c.l.b16 %v80
  %v304 = vunpack.c.h.b16 %v80
  %v305 = vunpack.c.l.b16 %v81
  %v306 = vunpack.c.h.b16 %v81
  %v307 = vunpack.c.l.b16 %v82
  %v308 = vunpack.c.h.b16 %v82
  %v309 = vunpack.c.l.b16 %v83
  %v310 = vunpack.c.h.b16 %v83
  %v311 = vunpack.c.l.b16 %v84
  %v312 = vunpack.c.h.b16 %v84
  %v313 = vunpack.c.l.b16 %v85
  %v314 = vunpack.c.h.b16 %v85
  %v315 = vunpack.c.l.b16 %v86
  %v316 = vunpack.c.h.b16 %v86
  %v317 = vunpack.c.l.b16 %v87
  %v318 = vunpack.c.h.b16 %v87
  %v319 = vunpack.c.l.b16 %v88
  %v320 = vunpack.c.h.b16 %v88
  %v321 = vunpack.c.l.b16 %v89
  %v322 = vunpack.c.h.b16 %v89
  %v323 = vunpack.c.l.b16 %v90
  %v324 = vunpack.c.h.b16 %v90
  %v325 = vunpack.c.l.b16 %v91
  %v326 = vunpack.c.h.b16 %v91
  %v327 = vunpack.c.l.b16 %v92
  %v328 = vunpack.c.h.b16 %v92
  %v329 = vunpack.c.l.b16 %v93
  %v330 = vunpack.c.h.b16 %v93
  %v331 = vunpack.c.l.b16 %v94
  %v332 = vunpack.c.h.b16 %v94
  %v333 = vunpack.c.l.b16 %v95
  %v334 = vunpack.c.h.b16 %v95
  %v335 = vunpack.c.l.b16 %v96
  %v336 = vunpack.c.h.b16 %v96
  %v337 = vunpack.c.l.b16 %v97
  %v338 = vunpack.c.h.b16 %v97
  %v339 = vunpack.c.l.b16 %v98
  %v340 = vunpack.c.h.b16 %v98
  %v341 = vunpack.c.l.b16 %v99
  %v342 = vunpack.c.h.b16 %v99
  %v343 = vunpack.c.l.b16 %v100
  %v344 = vunpack.c.h.b16 %v100
  %v345 = vunpack.c.l.b16 %v101
  %v346 = vunpack.c.h.b16 %v101
  %v347 = vpack.c.b16 %v205, %v203
  %v348 = vpack.c.b16 %v206, %v204
  %v349 = vpack.c.b16 %v209, %v207
  %v350 = vpack.c.b16 %v210, %v208
  %v351 = vpack.c.b16 %v213, %v211
  %v352 = vpack.c.b16 %v214, %v212
  %v353 = vpack.c.b16 %v217, %v215
  %v354 = vpack.c.b16 %v218, %v216
  %v355 = vpack.c.b16 %v221, %v219
  %v356 = vpack.c.b16 %v222, %v220
  %v357 = vpack.c.b16 %v225, %v223
  %v358 = vpack.c.b16 %v226, %v224
  %v359 = vpack.c.b16 %v229, %v227
  %v360 = vpack.c.b16 %v230, %v228
  %v361 = vpack.c.b16 %v233, %v231
  %v362 = vpack.c.b16 %v234, %v232
  %v363 = vpack.c.b16 %v237, %v235
  %v364 = vpack.c.b16 %v238, %v236
  %v365 = vpack.c.b16 %v241, %v239
  %v366 = vpack.c.b16 %v242, %v240
  %v367 = vpack.c.b16 %v245, %v243
  %v368 = vpack.c.b16 %v246, %v244
  %v369 = vpack.c.b16 %v249, %v247
  %v370 = vpack.c.b16 %v250, %v248
  %v371 = vpack.c.b16 %v253, %v251
  %v372 = vpack.c.b16 %v254, %v252
  %v373 = vpack.c.b16 %v257, %v255
  %v374 = vpack.c.b16 %v258, %v256
  %v375 = vpack.c.b16 %v261, %v259
  %v376 = vpack.c.b16 %v262, %v260
  %v377 = vpack.c.b16 %v265, %v263
  %v378 = vpack.c.b16 %v266, %v264
  %v379 = vpack.c.b16 %v269, %v267
  %v380 = vpack.c.b16 %v270, %v268
  %v381 = vpack.c.b16 %v273, %v271
  %v382 = vpack.c.b16 %v274, %v272
  %v383 = vpack.c.b16 %v277, %v275
  %v384 = vpack.c.b16 %v278, %v276
  %v385 = vpack.c.b16 %v281, %v279
  %v386 = vpack.c.b16 %v282, %v280
  %v387 = vpack.c.b16 %v285, %v283
  %v388 = vpack.c.b16 %v286, %v284
  %v389 = vpack.c.b16 %v289, %v287
  %v390 = vpack.c.b16 %v290, %v288
  %v391 = vpack.c.b16 %v293, %v291
  %v392 = vpack.c.b16 %v294, %v292
  %v393 = vpack.c.b16 %v297, %v295
  %v394 = vpack.c.b16 %v298, %v296
  %v395 = vpack.c.b16 %v301, %v299
  %v396 = vpack.c.b16 %v302, %v300
  %v397 = vpack.c.b16 %v305, %v303
  %v398 = vpack.c.b16 %v306, %v304
  %v399 = vpack.c.b16 %v309, %v307
  %v400 = vpack.c.b16 %v310, %v308
  %v401 = vpack.c.b16 %v313, %v311
  %v402 = vpack.c.b16 %v314, %v312
  %v403 = vpack.c.b16 %v317, %v315
  %v404 = vpack.c.b16 %v318, %v316
  %v405 = vpack.c.b16 %v321, %v319
  %v406 = vpack.c.b16 %v322, %v320
  %v407 = vpack.c.b16 %v325, %v323
  %v408 = vpack.c.b16 %v326, %v324
  %v409 = vpack.c.b16 %v329, %v327
  %v410 = vpack.c.b16 %v330, %v328
  %v411 = vpack.c.b16 %v333, %v331
  %v412 = vpack.c.b16 %v334, %v332
  %v413 = vpack.c.b16 %v337, %v335
  %v414 = vpack.c.b16 %v338, %v336
  %v415 = vpack.c.b16 %v341, %v339
  %v416 = vpack.c.b16 %v342, %v340
  %v417 = vpack.c.b16 %v345, %v343
  %v418 = vpack.c.b16 %v346, %v344
  %vm491 = vcmask 523264
  %v493 = vsel %vm491, %v126, 0
  %495 = vmatprep.subr.bf16.mxu0 %v348
  %496 = vmatpush1.bf16.msra.mxu0 %v347
  %497 = vmatprep.subr.bf16.mxu0 %v350
  %498 = vmatpush1.bf16.msra.mxu0 %v349
  %499 = vmatprep.subr.bf16.mxu0 %v352
  %500 = vmatpush1.bf16.msra.mxu0 %v351
  %501 = vmatprep.subr.bf16.mxu0 %v354
  %502 = vmatpush1.bf16.msra.mxu0 %v353
  %503 = vmatprep.subr.bf16.mxu0 %v356
  %504 = vmatpush1.bf16.msra.mxu0 %v355
  %505 = vmatprep.subr.bf16.mxu0 %v358
  %506 = vmatpush1.bf16.msra.mxu0 %v357
  %507 = vmatprep.subr.bf16.mxu0 %v360
  %508 = vmatpush1.bf16.msra.mxu0 %v359
  %509 = vmatprep.subr.bf16.mxu0 %v362
  %510 = vmatpush1.bf16.msra.mxu0 %v361
  %511 = vmatprep.subr.bf16.mxu0 %v364
  %512 = vmatpush1.bf16.msra.mxu0 %v363
  %513 = vmatprep.subr.bf16.mxu0 %v366
  %514 = vmatpush1.bf16.msra.mxu0 %v365
  %515 = vmatprep.subr.bf16.mxu0 %v368
  %516 = vmatpush1.bf16.msra.mxu0 %v367
  %517 = vmatprep.subr.bf16.mxu0 %v370
  %518 = vmatpush1.bf16.msra.mxu0 %v369
  %519 = vmatprep.subr.bf16.mxu0 %v372
  %520 = vmatpush1.bf16.msra.mxu0 %v371
  %521 = vmatprep.subr.bf16.mxu0 %v374
  %522 = vmatpush1.bf16.msra.mxu0 %v373
  %523 = vmatprep.subr.bf16.mxu0 %v376
  %524 = vmatpush1.bf16.msra.mxu0 %v375
  %525 = vmatprep.subr.bf16.mxu0 %v378
  %526 = vmatpush1.bf16.msra.mxu0 %v377
  %527 = vmatprep.mubr.bf16.mxu0 %v123
  %528 = vmatmul.mubr.bf16.gmra.mrb[0].mxu0 %v122
  %v529 = vpop.f32.mrb[0].mxu0
  %v530 = vadd.f32 %v107, %v529
  %v531 = vpop.f32.mrb[0].mxu0
  %v532 = vadd.f32 %v111, %v531
  %v533 = vpop.f32.mrb[0].mxu0
  %v534 = vpop.f32.mrb[0].mxu0
  %535 = vdwg.mxu0
  %536 = vmatprep.subr.bf16.mxu0 %v380
  %537 = vmatpush1.bf16.msra.mxu0 %v379
  %538 = vmatprep.subr.bf16.mxu0 %v382
  %539 = vmatpush1.bf16.msra.mxu0 %v381
  %540 = vmatprep.subr.bf16.mxu0 %v384
  %541 = vmatpush1.bf16.msra.mxu0 %v383
  %542 = vmatprep.subr.bf16.mxu0 %v386
  %543 = vmatpush1.bf16.msra.mxu0 %v385
  %544 = vmatprep.subr.bf16.mxu0 %v388
  %545 = vmatpush1.bf16.msra.mxu0 %v387
  %546 = vmatprep.subr.bf16.mxu0 %v390
  %547 = vmatpush1.bf16.msra.mxu0 %v389
  %548 = vmatprep.subr.bf16.mxu0 %v392
  %549 = vmatpush1.bf16.msra.mxu0 %v391
  %550 = vmatprep.subr.bf16.mxu0 %v394
  %551 = vmatpush1.bf16.msra.mxu0 %v393
  %552 = vmatprep.subr.bf16.mxu0 %v396
  %553 = vmatpush1.bf16.msra.mxu0 %v395
  %554 = vmatprep.subr.bf16.mxu0 %v398
  %555 = vmatpush1.bf16.msra.mxu0 %v397
  %556 = vmatprep.subr.bf16.mxu0 %v400
  %557 = vmatpush1.bf16.msra.mxu0 %v399
  %558 = vmatprep.subr.bf16.mxu0 %v402
  %559 = vmatpush1.bf16.msra.mxu0 %v401
  %560 = vmatprep.subr.bf16.mxu0 %v404
  %561 = vmatpush1.bf16.msra.mxu0 %v403
  %562 = vmatprep.subr.bf16.mxu0 %v406
  %563 = vmatpush1.bf16.msra.mxu0 %v405
  %564 = vmatprep.subr.bf16.mxu0 %v408
  %565 = vmatpush1.bf16.msra.mxu0 %v407
  %566 = vmatprep.subr.bf16.mxu0 %v410
  %567 = vmatpush1.bf16.msra.mxu0 %v409
  %568 = vmatprep.mubr.bf16.mxu0 %v125
  %569 = vmatmul.mubr.bf16.gmra.mrb[0].mxu0 %v124
  %v570 = vpop.f32.mrb[0].mxu0
  %v571 = vadd.f32 %v530, %v570
  %v572 = vpop.f32.mrb[0].mxu0
  %v573 = vadd.f32 %v532, %v572
  %v574 = vpop.f32.mrb[0].mxu0
  %v575 = vpop.f32.mrb[0].mxu0
  %576 = vdwg.mxu0
  %577 = vmatprep.subr.bf16.mxu0 %v412
  %578 = vmatpush1.bf16.msra.mxu0 %v411
  %579 = vmatprep.subr.bf16.mxu0 %v414
  %580 = vmatpush1.bf16.msra.mxu0 %v413
  %581 = vmatprep.subr.bf16.mxu0 %v416
  %582 = vmatpush1.bf16.msra.mxu0 %v415
  %583 = vmatprep.subr.bf16.mxu0 %v418
  %584 = vmatpush1.bf16.msra.mxu0 %v417
  %585 = vmatprep.subr.bf16.mxu0 0
  %586 = vmatpush1.bf16.msra.mxu0 0
  %587 = vmatprep.subr.bf16.mxu0 0
  %588 = vmatpush1.bf16.msra.mxu0 0
  %589 = vmatprep.subr.bf16.mxu0 0
  %590 = vmatpush1.bf16.msra.mxu0 0
  %591 = vmatprep.subr.bf16.mxu0 0
  %592 = vmatpush1.bf16.msra.mxu0 0
  %593 = vmatprep.subr.bf16.mxu0 0
  %594 = vmatpush1.bf16.msra.mxu0 0
  %595 = vmatprep.subr.bf16.mxu0 0
  %596 = vmatpush1.bf16.msra.mxu0 0
  %597 = vmatprep.subr.bf16.mxu0 0
  %598 = vmatpush1.bf16.msra.mxu0 0
  %599 = vmatprep.subr.bf16.mxu0 0
  %600 = vmatpush1.bf16.msra.mxu0 0
  %601 = vmatprep.subr.bf16.mxu0 0
  %602 = vmatpush1.bf16.msra.mxu0 0
  %603 = vmatprep.subr.bf16.mxu0 0
  %604 = vmatpush1.bf16.msra.mxu0 0
  %605 = vmatprep.subr.bf16.mxu0 0
  %606 = vmatpush1.bf16.msra.mxu0 0
  %607 = vmatprep.subr.bf16.mxu0 0
  %608 = vmatpush1.bf16.msra.mxu0 0
  %609 = vmatprep.mubr.bf16.mxu0 0
  %610 = vmatmul.mubr.bf16.gmra.mrb[0].mxu0 %v493
  %v611 = vpop.f32.mrb[0].mxu0
  %v612 = vadd.f32 %v571, %v611
  %v613 = vpop.f32.mrb[0].mxu0
  %v614 = vadd.f32 %v573, %v613
  %v615 = vpop.f32.mrb[0].mxu0
  %v616 = vpop.f32.mrb[0].mxu0
  %617 = vdwg.mxu0
  %v618 = vmax.f32 %v612, 0.0
  %v619 = vmax.f32 %v614, 0.0
  %v620 = vpack.c.bf16 %v618, %v618
  %v621 = vpack.c.bf16 %v619, %v619
  %v622 = vld [vmem:[%s3] sm:$0xf]
  %v623 = vld [vmem:[%s3 + $0x4] sm:$0xf]
  %v624 = vld [vmem:[%s3 + $0x8] sm:$0xf]
  %v625 = vld [vmem:[%s3 + $0xc] sm:$0xf]
  %v626 = vld [vmem:[%s3 + $0x10] sm:$0xf]
  %v627 = vld [vmem:[%s3 + $0x14] sm:$0xf]
  %v628 = vld [vmem:[%s3 + $0x18] sm:$0xf]
  %v629 = vld [vmem:[%s3 + $0x1c] sm:$0xf]
  %v630 = vld [vmem:[%s3 + $0x20] sm:$0xf]
  %v631 = vld [vmem:[%s3 + $0x24] sm:$0xf]
  %v632 = vld [vmem:[%s3 + $0x28] sm:$0xf]
  %v633 = vld [vmem:[%s3 + $0x2c] sm:$0xf]
  %v634 = vld [vmem:[%s3 + $0x30] sm:$0xf]
  %v635 = vld [vmem:[%s3 + $0x34] sm:$0xf]
  %v636 = vld [vmem:[%s3 + $0x38] sm:$0xf]
  %v637 = vld [vmem:[%s3 + $0x3c] sm:$0xf]
  %v638 = vld [vmem:[%s3 + $0x40] sm:$0xf]
  %v639 = vld [vmem:[%s3 + $0x44] sm:$0xf]
  %v640 = vld [vmem:[%s3 + $0x48] sm:$0xf]
  %v641 = vld [vmem:[%s3 + $0x4c] sm:$0xf]
  %v642 = vld [vmem:[%s3 + $0x50] sm:$0xf]
  %v643 = vld [vmem:[%s3 + $0x54] sm:$0xf]
  %v644 = vld [vmem:[%s3 + $0x58] sm:$0xf]
  %v645 = vld [vmem:[%s3 + $0x5c] sm:$0xf]
  %v646 = vld [vmem:[%s3 + $0x60] sm:$0xf]
  %v647 = vld [vmem:[%s3 + $0x64] sm:$0xf]
  %v648 = vld [vmem:[%s3 + $0x68] sm:$0xf]
  %v649 = vld [vmem:[%s3 + $0x6c] sm:$0xf]
  %v650 = vld [vmem:[%s3 + $0x70] sm:$0xf]
  %v651 = vld [vmem:[%s3 + $0x74] sm:$0xf]
  %v652 = vld [vmem:[%s3 + $0x78] sm:$0xf]
  %v653 = vld [vmem:[%s3 + $0x7c] sm:$0xf]
  %v654 = vld [vmem:[%s4] sm:$0x1]
  %v656 = vlaneseq
  %v657 = vshrl.u32 %v656, 7
  %v658 = vsub.s32 0, %v657
  %v659 = vrot.slane %v654, %v658
  %v693 = vunpack.c.l.b16 %v622
  %v694 = vunpack.c.l.b16 %v623
  %v695 = vunpack.c.l.b16 %v624
  %v696 = vunpack.c.l.b16 %v625
  %v697 = vunpack.c.l.b16 %v626
  %v698 = vunpack.c.l.b16 %v627
  %v699 = vunpack.c.l.b16 %v628
  %v700 = vunpack.c.l.b16 %v629
  %v701 = vunpack.c.l.b16 %v630
  %v702 = vunpack.c.l.b16 %v631
  %v703 = vunpack.c.l.b16 %v632
  %v704 = vunpack.c.l.b16 %v633
  %v705 = vunpack.c.l.b16 %v634
  %v706 = vunpack.c.l.b16 %v635
  %v707 = vunpack.c.l.b16 %v636
  %v708 = vunpack.c.l.b16 %v637
  %v709 = vunpack.c.l.b16 %v638
  %v710 = vunpack.c.l.b16 %v639
  %v711 = vunpack.c.l.b16 %v640
  %v712 = vunpack.c.l.b16 %v641
  %v713 = vunpack.c.l.b16 %v642
  %v714 = vunpack.c.l.b16 %v643
  %v715 = vunpack.c.l.b16 %v644
  %v716 = vunpack.c.l.b16 %v645
  %v717 = vunpack.c.l.b16 %v646
  %v718 = vunpack.c.l.b16 %v647
  %v719 = vunpack.c.l.b16 %v648
  %v720 = vunpack.c.l.b16 %v649
  %v721 = vunpack.c.l.b16 %v650
  %v722 = vunpack.c.l.b16 %v651
  %v723 = vunpack.c.l.b16 %v652
  %v724 = vunpack.c.l.b16 %v653
  %v725 = vpack.c.b16 %v694, %v693
  %v726 = vpack.c.b16 %v696, %v695
  %v727 = vpack.c.b16 %v698, %v697
  %v728 = vpack.c.b16 %v700, %v699
  %v729 = vpack.c.b16 %v702, %v701
  %v730 = vpack.c.b16 %v704, %v703
  %v731 = vpack.c.b16 %v706, %v705
  %v732 = vpack.c.b16 %v708, %v707
  %v733 = vpack.c.b16 %v710, %v709
  %v734 = vpack.c.b16 %v712, %v711
  %v735 = vpack.c.b16 %v714, %v713
  %v736 = vpack.c.b16 %v716, %v715
  %v737 = vpack.c.b16 %v718, %v717
  %v738 = vpack.c.b16 %v720, %v719
  %v739 = vpack.c.b16 %v722, %v721
  %v740 = vpack.c.b16 %v724, %v723
  %757 = vmatprep.subr.bf16.mxu0 0
  %758 = vmatpush1.bf16.msra.mxu0 %v725
  %759 = vmatprep.subr.bf16.mxu0 0
  %760 = vmatpush1.bf16.msra.mxu0 %v726
  %761 = vmatprep.subr.bf16.mxu0 0
  %762 = vmatpush1.bf16.msra.mxu0 %v727
  %763 = vmatprep.subr.bf16.mxu0 0
  %764 = vmatpush1.bf16.msra.mxu0 %v728
  %765 = vmatprep.subr.bf16.mxu0 0
  %766 = vmatpush1.bf16.msra.mxu0 %v729
  %767 = vmatprep.subr.bf16.mxu0 0
  %768 = vmatpush1.bf16.msra.mxu0 %v730
  %769 = vmatprep.subr.bf16.mxu0 0
  %770 = vmatpush1.bf16.msra.mxu0 %v731
  %771 = vmatprep.subr.bf16.mxu0 0
  %772 = vmatpush1.bf16.msra.mxu0 %v732
  %773 = vmatprep.subr.bf16.mxu0 0
  %774 = vmatpush1.bf16.msra.mxu0 %v733
  %775 = vmatprep.subr.bf16.mxu0 0
  %776 = vmatpush1.bf16.msra.mxu0 %v734
  %777 = vmatprep.subr.bf16.mxu0 0
  %778 = vmatpush1.bf16.msra.mxu0 %v735
  %779 = vmatprep.subr.bf16.mxu0 0
  %780 = vmatpush1.bf16.msra.mxu0 %v736
  %781 = vmatprep.subr.bf16.mxu0 0
  %782 = vmatpush1.bf16.msra.mxu0 %v737
  %783 = vmatprep.subr.bf16.mxu0 0
  %784 = vmatpush1.bf16.msra.mxu0 %v738
  %785 = vmatprep.subr.bf16.mxu0 0
  %786 = vmatpush1.bf16.msra.mxu0 %v739
  %787 = vmatprep.subr.bf16.mxu0 0
  %788 = vmatpush1.bf16.msra.mxu0 %v740
  %789 = vmatprep.mubr.bf16.mxu0 %v621
  %790 = vmatmul.mubr.bf16.gmra.mrb[0].mxu0 %v620
  %v791 = vpop.f32.mrb[0].mxu0
  %v792 = vadd.f32 %v659, %v791
  %v793 = vpop.f32.mrb[0].mxu0
  %v794 = vpop.f32.mrb[0].mxu0
  %v795 = vpop.f32.mrb[0].mxu0
  %796 = vdwg.mxu0
  %v797 = vmax.f32 %v792, 0.0
  %v798 = vpack.c.bf16 %v797, %v797
  %v799 = vld [vmem:[%s5] sm:$0xf]
  %v800 = vld [vmem:[%s5 + $0x4] sm:$0xf]
  %v801 = vld [vmem:[%s5 + $0x8] sm:$0xf]
  %v802 = vld [vmem:[%s5 + $0xc] sm:$0xf]
  %v803 = vld [vmem:[%s5 + $0x10] sm:$0xf]
  %v804 = vld [vmem:[%s5 + $0x14] sm:$0xf]
  %v805 = vld [vmem:[%s5 + $0x18] sm:$0xf]
  %v806 = vld [vmem:[%s5 + $0x1c] sm:$0xf]
  %v807 = vld [vmem:[%s5 + $0x20] sm:$0xf]
  %v808 = vld [vmem:[%s5 + $0x24] sm:$0xf]
  %v809 = vld [vmem:[%s5 + $0x28] sm:$0xf]
  %v810 = vld [vmem:[%s5 + $0x2c] sm:$0xf]
  %v811 = vld [vmem:[%s5 + $0x30] sm:$0xf]
  %v812 = vld [vmem:[%s5 + $0x34] sm:$0xf]
  %v813 = vld [vmem:[%s5 + $0x38] sm:$0xf]
  %v814 = vld [vmem:[%s5 + $0x3c] sm:$0xf]
  %v815 = vld [vmem:[%s6] sm:$0x1]
  %v817 = vlaneseq
  %v818 = vshrl.u32 %v817, 7
  %v819 = vsub.s32 0, %v818
  %v820 = vrot.slane %v815, %v819
  %v838 = vunpack.c.l.b16 %v799
  %v839 = vunpack.c.l.b16 %v800
  %v840 = vunpack.c.l.b16 %v801
  %v841 = vunpack.c.l.b16 %v802
  %v842 = vunpack.c.l.b16 %v803
  %v843 = vunpack.c.l.b16 %v804
  %v844 = vunpack.c.l.b16 %v805
  %v845 = vunpack.c.l.b16 %v806
  %v846 = vunpack.c.l.b16 %v807
  %v847 = vunpack.c.l.b16 %v808
  %v848 = vunpack.c.l.b16 %v809
  %v849 = vunpack.c.l.b16 %v810
  %v850 = vunpack.c.l.b16 %v811
  %v851 = vunpack.c.l.b16 %v812
  %v852 = vunpack.c.l.b16 %v813
  %v853 = vunpack.c.l.b16 %v814
  %v854 = vpack.c.b16 %v839, %v838
  %v855 = vpack.c.b16 %v841, %v840
  %v856 = vpack.c.b16 %v843, %v842
  %v857 = vpack.c.b16 %v845, %v844
  %v858 = vpack.c.b16 %v847, %v846
  %v859 = vpack.c.b16 %v849, %v848
  %v860 = vpack.c.b16 %v851, %v850
  %v861 = vpack.c.b16 %v853, %v852
  %870 = vmatprep.subr.bf16.mxu0 0
  %871 = vmatpush1.bf16.msra.mxu0 %v854
  %872 = vmatprep.subr.bf16.mxu0 0
  %873 = vmatpush1.bf16.msra.mxu0 %v855
  %874 = vmatprep.subr.bf16.mxu0 0
  %875 = vmatpush1.bf16.msra.mxu0 %v856
  %876 = vmatprep.subr.bf16.mxu0 0
  %877 = vmatpush1.bf16.msra.mxu0 %v857
  %878 = vmatprep.subr.bf16.mxu0 0
  %879 = vmatpush1.bf16.msra.mxu0 %v858
  %880 = vmatprep.subr.bf16.mxu0 0
  %881 = vmatpush1.bf16.msra.mxu0 %v859
  %882 = vmatprep.subr.bf16.mxu0 0
  %883 = vmatpush1.bf16.msra.mxu0 %v860
  %884 = vmatprep.subr.bf16.mxu0 0
  %885 = vmatpush1.bf16.msra.mxu0 %v861
  %886 = vmatprep.subr.bf16.mxu0 0
  %887 = vmatpush1.bf16.msra.mxu0 0
  %888 = vmatprep.subr.bf16.mxu0 0
  %889 = vmatpush1.bf16.msra.mxu0 0
  %890 = vmatprep.subr.bf16.mxu0 0
  %891 = vmatpush1.bf16.msra.mxu0 0
  %892 = vmatprep.subr.bf16.mxu0 0
  %893 = vmatpush1.bf16.msra.mxu0 0
  %894 = vmatprep.subr.bf16.mxu0 0
  %895 = vmatpush1.bf16.msra.mxu0 0
  %896 = vmatprep.subr.bf16.mxu0 0
  %897 = vmatpush1.bf16.msra.mxu0 0
  %898 = vmatprep.subr.bf16.mxu0 0
  %899 = vmatpush1.bf16.msra.mxu0 0
  %900 = vmatprep.subr.bf16.mxu0 0
  %901 = vmatpush1.bf16.msra.mxu0 0
  %902 = vmatprep.mubr.bf16.mxu0 0
  %903 = vmatmul.mubr.bf16.gmra.mrb[0].mxu0 %v798
  %v904 = vpop.f32.mrb[0].mxu0
  %v905 = vadd.f32 %v820, %v904
  %v906 = vpop.f32.mrb[0].mxu0
  %v907 = vpop.f32.mrb[0].mxu0
  %v908 = vpop.f32.mrb[0].mxu0
  %909 = vdwg.mxu0
  %vm910 = vcmask 39936
  %911 = vst.msk [vmem:[%s7] sm:$0xff] %vm910, %v905
  // Predicated region
  $region30: #{net_forward.7} parent=0 // pred_check
    _
  $region31: #{net_forward.7} parent=0 // pred_check_branch
    %913 = sbr.rel (0) target = $region33
  $region32: #{net_forward.7} parent=0 // pred_region
    _
  $region33: #{net_forward.7} parent=0 // pred_fallthru
    _
  // Predicated region
  $region34: #{net_forward.7} parent=0 // pred_check
    _
  $region35: #{net_forward.7} parent=0 // pred_check_branch
    %915 = sbr.rel (0) target = $region37
  $region36: #{net_forward.7} parent=0 // pred_region
    _
  $region37: #{net_forward.7} parent=0 // pred_fallthru
    _

</llo_original>
